<compile_context>
chip_gen: v6e
topology: v6e:2x2x1
jax: 0.10.0
libtpu: 0.0.40
codegen_flags: <defaults>
</compile_context>

<pallas_src>
import functools
import math

import numpy as np
import jax
import jax.numpy as jnp
from jax.experimental import pallas as pl
from jax.experimental.pallas import tpu as pltpu

# ----------------------------- model constants ------------------------------
ACTION_DIM = 10          # Da
HORIZON = 20             # T (num_action)
N_OBS_STEPS = 1          # To
OBS_FEAT = 64            # resnet_out_features -> obs_feature_dim
TIME_EMB = 32
DEC_HID = 64
COND_DIM = OBS_FEAT + OBS_FEAT            # time-emb(64) + global_cond(64)
N_DIFFUSION_STEPS = 5                      # TODO(synk): real policy uses ~100
GN_EPS = 1e-5


# ------------------------------ small helpers -------------------------------
def _mish(y):
    # numerically-stable softplus then tanh (EUP ops inside the kernel)
    sp = jnp.log1p(jnp.exp(-jnp.abs(y))) + jnp.maximum(y, 0.0)
    return y * jnp.tanh(sp)


def _group_avg_matrix(num_channels, num_groups):
    """Block-diagonal (C, C) matrix averaging per-channel stats within a group."""
    cg = num_channels // num_groups
    m = np.zeros((num_channels, num_channels), np.float32)
    for g in range(num_groups):
        m[g * cg:(g + 1) * cg, g * cg:(g + 1) * cg] = 1.0 / cg
    return m


def _sinusoidal_emb(t, dim):
    half = dim // 2
    freqs = np.exp(-math.log(10000.0) * np.arange(half) / (half - 1))
    arg = float(t) * freqs
    return np.concatenate([np.sin(arg), np.cos(arg)]).astype(np.float32)


def _group_norm_relu(y, gamma, beta, gmat, eps):
    """y:(M,C); group stats via per-channel reduce + block-diag averaging matmul."""
    m1 = jnp.mean(y, axis=0, keepdims=True)                       # (1, C)
    m2 = jnp.mean(y * y, axis=0, keepdims=True)                   # (1, C)
    gm = jnp.dot(m1, gmat, preferred_element_type=jnp.float32)    # group mean
    gv = jnp.dot(m2, gmat, preferred_element_type=jnp.float32) - gm * gm
    y = (y - gm) * jax.lax.rsqrt(jnp.maximum(gv, 0.0) + eps) * gamma + beta
    return jnp.maximum(y, 0.0)


# ------------------------------- Pallas kernels ------------------------------
def _conv_gn_relu_kernel(cols_ref, w_ref, b_ref, g_ref, be_ref, gmat_ref,
                         o_ref, *, eps):
    """Fused conv-as-GEMM + bias + GroupNorm + ReLU for one batch element."""
    y = jnp.dot(cols_ref[0], w_ref[...],
                preferred_element_type=jnp.float32) + b_ref[...]
    y = _group_norm_relu(y, g_ref[...], be_ref[...], gmat_ref[...], eps)
    o_ref[0] = y


def _conv_gn_pool_fc_kernel(cols_ref, w_ref, b_ref, g_ref, be_ref, gmat_ref,
                            wfc_ref, bfc_ref, o_ref, *, eps):
    """Fused conv-GEMM + GN + ReLU + global-average-pool + readout linear."""
    y = jnp.dot(cols_ref[0], w_ref[...],
                preferred_element_type=jnp.float32) + b_ref[...]
    y = _group_norm_relu(y, g_ref[...], be_ref[...], gmat_ref[...], eps)
    pooled = jnp.mean(y, axis=0, keepdims=True)                    # (1, C)
    o_ref[0] = jnp.dot(pooled, wfc_ref[...],
                       preferred_element_type=jnp.float32) + bfc_ref[...]


def _diffusion_kernel(temb_ref, gcond_ref, x0_ref, z_ref,
                      wt1_ref, bt1_ref, wt2_ref, bt2_ref,
                      wfs_ref, bfs_ref, wfb_ref, bfb_ref,
                      wci_ref, bci_ref, wco_ref, bco_ref,
                      o_ref, *, coeffs):
    """Whole reverse-diffusion sampling loop for one batch element.

    coeffs is a static python tuple of (1/sqrt(a_t), b_t/sqrt(1-abar_t), sigma_t)
    in loop order; the step loop is statically unrolled so all indexing is
    static and all weights stay resident in VMEM across every step.
    """
    gcond = gcond_ref[0]                     # (1, OBS_FEAT)
    wt1 = wt1_ref[...]; bt1 = bt1_ref[...]
    wt2 = wt2_ref[...]; bt2 = bt2_ref[...]
    wfs = wfs_ref[...]; bfs = bfs_ref[...]
    wfb = wfb_ref[...]; bfb = bfb_ref[...]
    wci = wci_ref[...]; bci = bci_ref[...]
    wco = wco_ref[...]; bco = bco_ref[...]

    def shift_cat(v):
        # 'same'-padded k=3 temporal im2col built from shifted copies (T, 3*C)
        zrow = jnp.zeros((1, v.shape[1]), jnp.float32)
        prev = jnp.concatenate([zrow, v[:-1, :]], axis=0)
        nxt = jnp.concatenate([v[1:, :], zrow], axis=0)
        return jnp.concatenate([prev, v, nxt], axis=-1)

    x = x0_ref[0]                            # (T, Da)
    for i, (c1, c2, sigma) in enumerate(coeffs):
        # diffusion-step encoder (time MLP) + FiLM conditioning
        temb = temb_ref[i]                   # (1, TIME_EMB), static index
        th = _mish(jnp.dot(temb, wt1, preferred_element_type=jnp.float32) + bt1)
        th = jnp.dot(th, wt2, preferred_element_type=jnp.float32) + bt2
        cond = jnp.concatenate([th, gcond], axis=-1)        # (1, COND_DIM)
        scale = jnp.dot(cond, wfs, preferred_element_type=jnp.float32) + bfs
        bias = jnp.dot(cond, wfb, preferred_element_type=jnp.float32) + bfb

        # temporal conv-in -> FiLM + Mish -> temporal conv-out -> residual
        h = jnp.dot(shift_cat(x), wci, preferred_element_type=jnp.float32) + bci
        h = _mish(h * (1.0 + scale) + bias)
        eps = jnp.dot(shift_cat(h), wco,
                      preferred_element_type=jnp.float32) + bco + x

        # DDPM reverse step (cond_mask is all-False in DP.forward -> no inpainting)
        z = z_ref[i][0]                      # (T, Da)
        x = c1 * (x - c2 * eps) + sigma * z

    o_ref[0] = x


# ------------------------------- JAX glue ------------------------------------
def im2col2d_nhwc(x, k, s, p):
    """x:(B,H,W,C) -> (B, Ho*Wo, k*k*C); column layout (di,dj)-major, c-minor."""
    B, H, W, C = x.shape
    xp = jnp.pad(x, ((0, 0), (p, p), (p, p), (0, 0)))
    Ho = (H + 2 * p - k) // s + 1
    Wo = (W + 2 * p - k) // s + 1
    slabs = []
    for di in range(k):
        for dj in range(k):
            slabs.append(xp[:, di:di + s * (Ho - 1) + 1:s,
                            dj:dj + s * (Wo - 1) + 1:s, :])
    cols = jnp.concatenate(slabs, axis=-1)          # (B, Ho, Wo, k*k*C)
    return cols.reshape(B, Ho * Wo, k * k * C), Ho, Wo


def conv_gn_relu(cols, w, b, gamma, beta, num_groups, eps=GN_EPS):
    """cols:(B,M,K) @ w:(K,N) + b, GroupNorm(num_groups), ReLU -> (B,M,N)."""
    B, M, K = cols.shape
    N = w.shape[1]
    gmat = jnp.asarray(_group_avg_matrix(N, num_groups))
    return pl.pallas_call(
        functools.partial(_conv_gn_relu_kernel, eps=eps),
        out_shape=jax.ShapeDtypeStruct((B, M, N), jnp.float32),
        grid=(B,),
        in_specs=[
            pl.BlockSpec((1, M, K), lambda i: (i, 0, 0)),
            pl.BlockSpec((K, N), lambda i: (0, 0)),
            pl.BlockSpec((1, N), lambda i: (0, 0)),
            pl.BlockSpec((1, N), lambda i: (0, 0)),
            pl.BlockSpec((1, N), lambda i: (0, 0)),
            pl.BlockSpec((N, N), lambda i: (0, 0)),
        ],
        out_specs=pl.BlockSpec((1, M, N), lambda i: (i, 0, 0)),
        compiler_params=pltpu.CompilerParams(
            dimension_semantics=("parallel",)),
    )(cols, w, b, gamma, beta, gmat)


def conv_gn_pool_fc(cols, w, b, gamma, beta, num_groups, w_fc, b_fc, eps=GN_EPS):
    """Fused conv-GEMM + GN + ReLU + global avg-pool + fc readout -> (B, F)."""
    B, M, K = cols.shape
    N = w.shape[1]
    F = w_fc.shape[1]
    gmat = jnp.asarray(_group_avg_matrix(N, num_groups))
    out = pl.pallas_call(
        functools.partial(_conv_gn_pool_fc_kernel, eps=eps),
        out_shape=jax.ShapeDtypeStruct((B, 1, F), jnp.float32),
        grid=(B,),
        in_specs=[
            pl.BlockSpec((1, M, K), lambda i: (i, 0, 0)),
            pl.BlockSpec((K, N), lambda i: (0, 0)),
            pl.BlockSpec((1, N), lambda i: (0, 0)),
            pl.BlockSpec((1, N), lambda i: (0, 0)),
            pl.BlockSpec((1, N), lambda i: (0, 0)),
            pl.BlockSpec((N, N), lambda i: (0, 0)),
            pl.BlockSpec((N, F), lambda i: (0, 0)),
            pl.BlockSpec((1, F), lambda i: (0, 0)),
        ],
        out_specs=pl.BlockSpec((1, 1, F), lambda i: (i, 0, 0)),
        compiler_params=pltpu.CompilerParams(
            dimension_semantics=("parallel",)),
    )(cols, w, b, gamma, beta, gmat, w_fc, b_fc)
    return out.reshape(B, F)


# --------------------------- image obs encoder --------------------------------
def img_encoder(params, img):
    """img: (B, 3, 64, 64) in [0,1] -> readout (B*To, OBS_FEAT)."""
    mean = jnp.array([0.485, 0.456, 0.406], jnp.float32)
    std = jnp.array([0.229, 0.224, 0.225], jnp.float32)
    x = (img.transpose(0, 2, 3, 1) - mean) / std          # NCHW -> NHWC, imagenet_norm
    B = x.shape[0]

    # conv1: 3 -> 32, k=7, s=4, p=3, fused GEMM + GN(2) + ReLU
    cols1, H1, W1 = im2col2d_nhwc(x, k=7, s=4, p=3)       # (B, 256, 147)
    h1 = conv_gn_relu(cols1, params["w_c1"], params["b_c1"],
                      params["g1"], params["be1"], num_groups=2)   # (B, 256, 32)
    h1 = h1.reshape(B, H1, W1, 32)

    # conv2: 32 -> 64, k=3, s=2, p=1, fused GEMM + GN(4) + ReLU + pool + fc
    cols2, _, _ = im2col2d_nhwc(h1, k=3, s=2, p=1)        # (B, 64, 288)
    readout = conv_gn_pool_fc(cols2, params["w_c2"], params["b_c2"],
                              params["g2"], params["be2"], num_groups=4,
                              w_fc=params["w_fc"], b_fc=params["b_fc"])
    return readout                                        # (B, OBS_FEAT)


# ------------------------ diffusion action decoder -----------------------------
def conditional_sample(params, global_cond, key, num_steps=N_DIFFUSION_STEPS):
    """Single fused pallas_call running the whole DDPM sampling loop."""
    B = global_cond.shape[0]
    T, Da = HORIZON, ACTION_DIM
    S = num_steps

    # linear-beta DDPM schedule -> static per-step coefficients (loop order t=S-1..0)
    betas = np.linspace(1e-4, 0.02, S, dtype=np.float64)
    alphas = 1.0 - betas
    abar = np.cumprod(alphas)
    coeffs = tuple(
        (float(1.0 / math.sqrt(alphas[t])),
         float(betas[t] / math.sqrt(1.0 - abar[t])),
         float(math.sqrt(betas[t])) if t > 0 else 0.0)
        for t in reversed(range(S)))

    temb_tab = jnp.asarray(
        np.stack([_sinusoidal_emb(t, TIME_EMB) for t in reversed(range(S))])
        .reshape(S, 1, TIME_EMB))

    k_x, k_z = jax.random.split(key)
    x0 = jax.random.normal(k_x, (B, T, Da), dtype=jnp.float32)
    zs = jax.random.normal(k_z, (S, B, T, Da), dtype=jnp.float32)  # sigma=0 at t=0

    kernel = functools.partial(_diffusion_kernel, coeffs=coeffs)
    return pl.pallas_call(
        kernel,
        out_shape=jax.ShapeDtypeStruct((B, T, Da), jnp.float32),
        grid=(B,),
        in_specs=[
            pl.BlockSpec((S, 1, TIME_EMB), lambda i: (0, 0, 0)),
            pl.BlockSpec((1, 1, OBS_FEAT), lambda i: (i, 0, 0)),
            pl.BlockSpec((1, T, Da), lambda i: (i, 0, 0)),
            pl.BlockSpec((S, 1, T, Da), lambda i: (0, i, 0, 0)),
            # denoiser weights: resident in VMEM for the whole loop
            pl.BlockSpec((TIME_EMB, 128), lambda i: (0, 0)),
            pl.BlockSpec((1, 128), lambda i: (0, 0)),
            pl.BlockSpec((128, OBS_FEAT), lambda i: (0, 0)),
            pl.BlockSpec((1, OBS_FEAT), lambda i: (0, 0)),
            pl.BlockSpec((COND_DIM, DEC_HID), lambda i: (0, 0)),
            pl.BlockSpec((1, DEC_HID), lambda i: (0, 0)),
            pl.BlockSpec((COND_DIM, DEC_HID), lambda i: (0, 0)),
            pl.BlockSpec((1, DEC_HID), lambda i: (0, 0)),
            pl.BlockSpec((3 * Da, DEC_HID), lambda i: (0, 0)),
            pl.BlockSpec((1, DEC_HID), lambda i: (0, 0)),
            pl.BlockSpec((3 * DEC_HID, Da), lambda i: (0, 0)),
            pl.BlockSpec((1, Da), lambda i: (0, 0)),
        ],
        out_specs=pl.BlockSpec((1, T, Da), lambda i: (i, 0, 0)),
        compiler_params=pltpu.CompilerParams(
            dimension_semantics=("parallel",)),
    )(temb_tab, global_cond.reshape(B, 1, OBS_FEAT), x0, zs,
      params["w_t1"], params["b_t1"], params["w_t2"], params["b_t2"],
      params["w_fs"], params["b_fs"], params["w_fb"], params["b_fb"],
      params["w_ci"], params["b_ci"], params["w_co"], params["b_co"])


# ---------------------------------- DP forward ---------------------------------
def dp_forward(params, img, sample_key):
    """DP.forward(obs_dict, actions=None): predict_action path -> (B, T, Da)."""
    readout = img_encoder(params, img)                # (B*To, Do), To=1
    B = readout.shape[0] // N_OBS_STEPS
    global_cond = readout.reshape(B, -1)              # (B, To*Do)
    sample = conditional_sample(params, global_cond, sample_key)
    action_pred = sample[..., :ACTION_DIM]
    return action_pred


# -------------------------------- parameters -----------------------------------
def init_params(key):
    def dense(k, fan_in, shape):
        return (jax.random.normal(k, shape, jnp.float32)
                * jnp.float32(1.0 / math.sqrt(fan_in)))

    ks = jax.random.split(key, 9)
    p = {}
    # image encoder
    p["w_c1"] = dense(ks[0], 3 * 7 * 7, (3 * 7 * 7, 32))
    p["b_c1"] = jnp.zeros((1, 32), jnp.float32)
    p["g1"] = jnp.ones((1, 32), jnp.float32)
    p["be1"] = jnp.zeros((1, 32), jnp.float32)
    p["w_c2"] = dense(ks[1], 32 * 3 * 3, (32 * 3 * 3, 64))
    p["b_c2"] = jnp.zeros((1, 64), jnp.float32)
    p["g2"] = jnp.ones((1, 64), jnp.float32)
    p["be2"] = jnp.zeros((1, 64), jnp.float32)
    p["w_fc"] = dense(ks[2], 64, (64, OBS_FEAT))
    p["b_fc"] = jnp.zeros((1, OBS_FEAT), jnp.float32)
    # diffusion step encoder (time MLP)
    p["w_t1"] = dense(ks[3], TIME_EMB, (TIME_EMB, 128))
    p["b_t1"] = jnp.zeros((1, 128), jnp.float32)
    p["w_t2"] = dense(ks[4], 128, (128, OBS_FEAT))
    p["b_t2"] = jnp.zeros((1, OBS_FEAT), jnp.float32)
    # FiLM (split into scale / bias heads) + temporal convs of the denoiser
    p["w_fs"] = dense(ks[5], COND_DIM, (COND_DIM, DEC_HID))
    p["b_fs"] = jnp.zeros((1, DEC_HID), jnp.float32)
    p["w_fb"] = dense(ks[6], COND_DIM, (COND_DIM, DEC_HID))
    p["b_fb"] = jnp.zeros((1, DEC_HID), jnp.float32)
    p["w_ci"] = dense(ks[7], ACTION_DIM * 3, (ACTION_DIM * 3, DEC_HID))
    p["b_ci"] = jnp.zeros((1, DEC_HID), jnp.float32)
    p["w_co"] = dense(ks[8], DEC_HID * 3, (DEC_HID * 3, ACTION_DIM))
    p["b_co"] = jnp.zeros((1, ACTION_DIM), jnp.float32)
    return p


# ------------------------------------ main --------------------------------------
if __name__ == "__main__":
    key = jax.random.PRNGKey(0)
    k_img, k_param, k_sample = jax.random.split(key, 3)

    B = 2
    # obs_dict = {"color_image": (B, 3, 64, 64)} per obs_shape_meta
    img = jax.random.uniform(k_img, (B, 3, 64, 64), dtype=jnp.float32)
    params = init_params(k_param)

    fwd = jax.jit(dp_forward)
    action_pred = fwd(params, img, k_sample)
    action_pred = jax.block_until_ready(action_pred)

    assert action_pred.shape == (B, HORIZON, ACTION_DIM)
    assert action_pred.dtype == jnp.float32
    assert bool(jnp.all(jnp.isfinite(action_pred)))
    print("KERNEL_OK")
</pallas_src>

<mosaic_0001>
module attributes {stable_mosaic.version = 11 : i64} {
  func.func @_conv_gn_relu_kernel(%arg0: i32, %arg1: memref<1x256x147xf32, #tpu.memory_space<vmem>>, %arg2: memref<147x32xf32, #tpu.memory_space<vmem>>, %arg3: memref<1x32xf32, #tpu.memory_space<vmem>>, %arg4: memref<1x32xf32, #tpu.memory_space<vmem>>, %arg5: memref<1x32xf32, #tpu.memory_space<vmem>>, %arg6: memref<32x32xf32, #tpu.memory_space<vmem>>, %arg7: memref<1x256x32xf32, #tpu.memory_space<vmem>>) attributes {dimension_semantics = [#tpu.dimension_semantics<parallel>], iteration_bounds = array<i64: 2>, scalar_prefetch = 0 : i64, scratch_operands = 0 : i64, tpu.core_type = #tpu.core_type<tc>, window_params = [{transform_indices = @transform_0, window_bounds = array<i64: 1, 256, 147>}, {pipeline_mode = #tpu.pipeline_mode<synchronous>, transform_indices = @transform_1, window_bounds = array<i64: 147, 32>}, {pipeline_mode = #tpu.pipeline_mode<synchronous>, transform_indices = @transform_2, window_bounds = array<i64: 1, 32>}, {pipeline_mode = #tpu.pipeline_mode<synchronous>, transform_indices = @transform_3, window_bounds = array<i64: 1, 32>}, {pipeline_mode = #tpu.pipeline_mode<synchronous>, transform_indices = @transform_4, window_bounds = array<i64: 1, 32>}, {pipeline_mode = #tpu.pipeline_mode<synchronous>, transform_indices = @transform_5, window_bounds = array<i64: 32, 32>}, {transform_indices = @transform_6, window_bounds = array<i64: 1, 256, 32>}]} {
    %c0 = arith.constant 0 : index
    %c0_0 = arith.constant 0 : index
    %c0_1 = arith.constant 0 : index
    %0 = vector.load %arg1[%c0, %c0_0, %c0_1] : memref<1x256x147xf32, #tpu.memory_space<vmem>>, vector<1x256x147xf32>
    %1 = vector.shape_cast %0 : vector<1x256x147xf32> to vector<256x147xf32>
    %c0_2 = arith.constant 0 : index
    %c0_3 = arith.constant 0 : index
    %2 = vector.load %arg2[%c0_2, %c0_3] : memref<147x32xf32, #tpu.memory_space<vmem>>, vector<147x32xf32>
    %cst = arith.constant dense<0.000000e+00> : vector<256x32xf32>
    %3 = tpu.matmul %1, %2, %cst {dimension_numbers = #tpu.dot_dimension_numbers<[1], [0], [0], [1], [0, 0, 1, 1], [], []>} : vector<256x147xf32>, vector<147x32xf32>, vector<256x32xf32> -> vector<256x32xf32>
    %c0_4 = arith.constant 0 : index
    %c0_5 = arith.constant 0 : index
    %4 = vector.load %arg3[%c0_4, %c0_5] : memref<1x32xf32, #tpu.memory_space<vmem>>, vector<1x32xf32>
    %5 = vector.broadcast %4 : vector<1x32xf32> to vector<256x32xf32>
    %6 = arith.addf %3, %5 : vector<256x32xf32>
    %c0_6 = arith.constant 0 : index
    %c0_7 = arith.constant 0 : index
    %7 = vector.load %arg4[%c0_6, %c0_7] : memref<1x32xf32, #tpu.memory_space<vmem>>, vector<1x32xf32>
    %c0_8 = arith.constant 0 : index
    %c0_9 = arith.constant 0 : index
    %8 = vector.load %arg5[%c0_8, %c0_9] : memref<1x32xf32, #tpu.memory_space<vmem>>, vector<1x32xf32>
    %c0_10 = arith.constant 0 : index
    %c0_11 = arith.constant 0 : index
    %9 = vector.load %arg6[%c0_10, %c0_11] : memref<32x32xf32, #tpu.memory_space<vmem>>, vector<32x32xf32>
    %cst_12 = arith.constant dense<0.000000e+00> : vector<32xf32>
    %10 = vector.multi_reduction <add>, %6, %cst_12 [0] : vector<256x32xf32> to vector<32xf32>
    %11 = vector.shape_cast %10 : vector<32xf32> to vector<1x32xf32>
    %cst_13 = arith.constant 2.560000e+02 : f32
    %12 = vector.broadcast %cst_13 : f32 to vector<1x32xf32>
    %13 = arith.divf %11, %12 : vector<1x32xf32>
    %14 = arith.mulf %6, %6 : vector<256x32xf32>
    %cst_14 = arith.constant dense<0.000000e+00> : vector<32xf32>
    %15 = vector.multi_reduction <add>, %14, %cst_14 [0] : vector<256x32xf32> to vector<32xf32>
    %16 = vector.shape_cast %15 : vector<32xf32> to vector<1x32xf32>
    %cst_15 = arith.constant 2.560000e+02 : f32
    %17 = vector.broadcast %cst_15 : f32 to vector<1x32xf32>
    %18 = arith.divf %16, %17 : vector<1x32xf32>
    %cst_16 = arith.constant dense<0.000000e+00> : vector<1x32xf32>
    %19 = tpu.matmul %13, %9, %cst_16 {dimension_numbers = #tpu.dot_dimension_numbers<[1], [0], [0], [1], [0, 0, 1, 1], [], []>} : vector<1x32xf32>, vector<32x32xf32>, vector<1x32xf32> -> vector<1x32xf32>
    %cst_17 = arith.constant dense<0.000000e+00> : vector<1x32xf32>
    %20 = tpu.matmul %18, %9, %cst_17 {dimension_numbers = #tpu.dot_dimension_numbers<[1], [0], [0], [1], [0, 0, 1, 1], [], []>} : vector<1x32xf32>, vector<32x32xf32>, vector<1x32xf32> -> vector<1x32xf32>
    %21 = arith.mulf %19, %19 : vector<1x32xf32>
    %22 = arith.subf %20, %21 : vector<1x32xf32>
    %23 = vector.broadcast %19 : vector<1x32xf32> to vector<256x32xf32>
    %24 = arith.subf %6, %23 : vector<256x32xf32>
    %cst_18 = arith.constant 0.000000e+00 : f32
    %25 = vector.broadcast %cst_18 : f32 to vector<1x32xf32>
    %26 = arith.maximumf %22, %25 : vector<1x32xf32>
    %cst_19 = arith.constant 9.99999974E-6 : f32
    %27 = vector.broadcast %cst_19 : f32 to vector<1x32xf32>
    %28 = arith.addf %26, %27 : vector<1x32xf32>
    %29 = math.rsqrt %28 : vector<1x32xf32>
    %30 = vector.broadcast %29 : vector<1x32xf32> to vector<256x32xf32>
    %31 = arith.mulf %24, %30 : vector<256x32xf32>
    %32 = vector.broadcast %7 : vector<1x32xf32> to vector<256x32xf32>
    %33 = arith.mulf %31, %32 : vector<256x32xf32>
    %34 = vector.broadcast %8 : vector<1x32xf32> to vector<256x32xf32>
    %35 = arith.addf %33, %34 : vector<256x32xf32>
    %cst_20 = arith.constant 0.000000e+00 : f32
    %36 = vector.broadcast %cst_20 : f32 to vector<256x32xf32>
    %37 = arith.maximumf %35, %36 : vector<256x32xf32>
    %c0_21 = arith.constant 0 : index
    %c0_22 = arith.constant 0 : index
    %c0_23 = arith.constant 0 : index
    %38 = vector.load %arg7[%c0_21, %c0_22, %c0_23] : memref<1x256x32xf32, #tpu.memory_space<vmem>>, vector<1x256x32xf32>
    %39 = vector.shape_cast %38 : vector<1x256x32xf32> to vector<256x32xf32>
    %40 = vector.shape_cast %37 : vector<256x32xf32> to vector<1x256x32xf32>
    tpu.vector_store %arg7[%c0_21, %c0_22, %c0_23], %40 {strides = array<i32>} : memref<1x256x32xf32, #tpu.memory_space<vmem>>, vector<1x256x32xf32>,
    return
  }
  func.func @transform_0(%arg0: i32) -> (i32, i32, i32) {
    %c0_i32 = arith.constant 0 : i32
    %c0_i32_0 = arith.constant 0 : i32
    %c0_i32_1 = arith.constant 0 : i32
    return %arg0, %c0_i32, %c0_i32_0 : i32, i32, i32
  }
  func.func @transform_1(%arg0: i32) -> (i32, i32) {
    %c0_i32 = arith.constant 0 : i32
    %c0_i32_0 = arith.constant 0 : i32
    %c0_i32_1 = arith.constant 0 : i32
    return %c0_i32, %c0_i32_0 : i32, i32
  }
  func.func @transform_2(%arg0: i32) -> (i32, i32) {
    %c0_i32 = arith.constant 0 : i32
    %c0_i32_0 = arith.constant 0 : i32
    %c0_i32_1 = arith.constant 0 : i32
    return %c0_i32, %c0_i32_0 : i32, i32
  }
  func.func @transform_3(%arg0: i32) -> (i32, i32) {
    %c0_i32 = arith.constant 0 : i32
    %c0_i32_0 = arith.constant 0 : i32
    %c0_i32_1 = arith.constant 0 : i32
    return %c0_i32, %c0_i32_0 : i32, i32
  }
  func.func @transform_4(%arg0: i32) -> (i32, i32) {
    %c0_i32 = arith.constant 0 : i32
    %c0_i32_0 = arith.constant 0 : i32
    %c0_i32_1 = arith.constant 0 : i32
    return %c0_i32, %c0_i32_0 : i32, i32
  }
  func.func @transform_5(%arg0: i32) -> (i32, i32) {
    %c0_i32 = arith.constant 0 : i32
    %c0_i32_0 = arith.constant 0 : i32
    %c0_i32_1 = arith.constant 0 : i32
    return %c0_i32, %c0_i32_0 : i32, i32
  }
  func.func @transform_6(%arg0: i32) -> (i32, i32, i32) {
    %c0_i32 = arith.constant 0 : i32
    %c0_i32_0 = arith.constant 0 : i32
    %c0_i32_1 = arith.constant 0 : i32
    return %arg0, %c0_i32, %c0_i32_0 : i32, i32, i32
  }
}

module attributes {stable_mosaic.version = 11 : i64} {
  func.func @_conv_gn_pool_fc_kernel(%arg0: i32, %arg1: memref<1x64x288xf32, #tpu.memory_space<vmem>>, %arg2: memref<288x64xf32, #tpu.memory_space<vmem>>, %arg3: memref<1x64xf32, #tpu.memory_space<vmem>>, %arg4: memref<1x64xf32, #tpu.memory_space<vmem>>, %arg5: memref<1x64xf32, #tpu.memory_space<vmem>>, %arg6: memref<64x64xf32, #tpu.memory_space<vmem>>, %arg7: memref<64x64xf32, #tpu.memory_space<vmem>>, %arg8: memref<1x64xf32, #tpu.memory_space<vmem>>, %arg9: memref<1x1x64xf32, #tpu.memory_space<vmem>>) attributes {dimension_semantics = [#tpu.dimension_semantics<parallel>], iteration_bounds = array<i64: 2>, scalar_prefetch = 0 : i64, scratch_operands = 0 : i64, tpu.core_type = #tpu.core_type<tc>, window_params = [{transform_indices = @transform_0, window_bounds = array<i64: 1, 64, 288>}, {pipeline_mode = #tpu.pipeline_mode<synchronous>, transform_indices = @transform_1, window_bounds = array<i64: 288, 64>}, {pipeline_mode = #tpu.pipeline_mode<synchronous>, transform_indices = @transform_2, window_bounds = array<i64: 1, 64>}, {pipeline_mode = #tpu.pipeline_mode<synchronous>, transform_indices = @transform_3, window_bounds = array<i64: 1, 64>}, {pipeline_mode = #tpu.pipeline_mode<synchronous>, transform_indices = @transform_4, window_bounds = array<i64: 1, 64>}, {pipeline_mode = #tpu.pipeline_mode<synchronous>, transform_indices = @transform_5, window_bounds = array<i64: 64, 64>}, {pipeline_mode = #tpu.pipeline_mode<synchronous>, transform_indices = @transform_6, window_bounds = array<i64: 64, 64>}, {pipeline_mode = #tpu.pipeline_mode<synchronous>, transform_indices = @transform_7, window_bounds = array<i64: 1, 64>}, {transform_indices = @transform_8, window_bounds = array<i64: 1, 1, 64>}]} {
    %c0 = arith.constant 0 : index
    %c0_0 = arith.constant 0 : index
    %c0_1 = arith.constant 0 : index
    %0 = vector.load %arg1[%c0, %c0_0, %c0_1] : memref<1x64x288xf32, #tpu.memory_space<vmem>>, vector<1x64x288xf32>
    %1 = vector.shape_cast %0 : vector<1x64x288xf32> to vector<64x288xf32>
    %c0_2 = arith.constant 0 : index
    %c0_3 = arith.constant 0 : index
    %2 = vector.load %arg2[%c0_2, %c0_3] : memref<288x64xf32, #tpu.memory_space<vmem>>, vector<288x64xf32>
    %cst = arith.constant dense<0.000000e+00> : vector<64x64xf32>
    %3 = tpu.matmul %1, %2, %cst {dimension_numbers = #tpu.dot_dimension_numbers<[1], [0], [0], [1], [0, 0, 1, 1], [], []>} : vector<64x288xf32>, vector<288x64xf32>, vector<64x64xf32> -> vector<64x64xf32>
    %c0_4 = arith.constant 0 : index
    %c0_5 = arith.constant 0 : index
    %4 = vector.load %arg3[%c0_4, %c0_5] : memref<1x64xf32, #tpu.memory_space<vmem>>, vector<1x64xf32>
    %5 = vector.broadcast %4 : vector<1x64xf32> to vector<64x64xf32>
    %6 = arith.addf %3, %5 : vector<64x64xf32>
    %c0_6 = arith.constant 0 : index
    %c0_7 = arith.constant 0 : index
    %7 = vector.load %arg4[%c0_6, %c0_7] : memref<1x64xf32, #tpu.memory_space<vmem>>, vector<1x64xf32>
    %c0_8 = arith.constant 0 : index
    %c0_9 = arith.constant 0 : index
    %8 = vector.load %arg5[%c0_8, %c0_9] : memref<1x64xf32, #tpu.memory_space<vmem>>, vector<1x64xf32>
    %c0_10 = arith.constant 0 : index
    %c0_11 = arith.constant 0 : index
    %9 = vector.load %arg6[%c0_10, %c0_11] : memref<64x64xf32, #tpu.memory_space<vmem>>, vector<64x64xf32>
    %cst_12 = arith.constant dense<0.000000e+00> : vector<64xf32>
    %10 = vector.multi_reduction <add>, %6, %cst_12 [0] : vector<64x64xf32> to vector<64xf32>
    %11 = vector.shape_cast %10 : vector<64xf32> to vector<1x64xf32>
    %cst_13 = arith.constant 6.400000e+01 : f32
    %12 = vector.broadcast %cst_13 : f32 to vector<1x64xf32>
    %13 = arith.divf %11, %12 : vector<1x64xf32>
    %14 = arith.mulf %6, %6 : vector<64x64xf32>
    %cst_14 = arith.constant dense<0.000000e+00> : vector<64xf32>
    %15 = vector.multi_reduction <add>, %14, %cst_14 [0] : vector<64x64xf32> to vector<64xf32>
    %16 = vector.shape_cast %15 : vector<64xf32> to vector<1x64xf32>
    %cst_15 = arith.constant 6.400000e+01 : f32
    %17 = vector.broadcast %cst_15 : f32 to vector<1x64xf32>
    %18 = arith.divf %16, %17 : vector<1x64xf32>
    %cst_16 = arith.constant dense<0.000000e+00> : vector<1x64xf32>
    %19 = tpu.matmul %13, %9, %cst_16 {dimension_numbers = #tpu.dot_dimension_numbers<[1], [0], [0], [1], [0, 0, 1, 1], [], []>} : vector<1x64xf32>, vector<64x64xf32>, vector<1x64xf32> -> vector<1x64xf32>
    %cst_17 = arith.constant dense<0.000000e+00> : vector<1x64xf32>
    %20 = tpu.matmul %18, %9, %cst_17 {dimension_numbers = #tpu.dot_dimension_numbers<[1], [0], [0], [1], [0, 0, 1, 1], [], []>} : vector<1x64xf32>, vector<64x64xf32>, vector<1x64xf32> -> vector<1x64xf32>
    %21 = arith.mulf %19, %19 : vector<1x64xf32>
    %22 = arith.subf %20, %21 : vector<1x64xf32>
    %23 = vector.broadcast %19 : vector<1x64xf32> to vector<64x64xf32>
    %24 = arith.subf %6, %23 : vector<64x64xf32>
    %cst_18 = arith.constant 0.000000e+00 : f32
    %25 = vector.broadcast %cst_18 : f32 to vector<1x64xf32>
    %26 = arith.maximumf %22, %25 : vector<1x64xf32>
    %cst_19 = arith.constant 9.99999974E-6 : f32
    %27 = vector.broadcast %cst_19 : f32 to vector<1x64xf32>
    %28 = arith.addf %26, %27 : vector<1x64xf32>
    %29 = math.rsqrt %28 : vector<1x64xf32>
    %30 = vector.broadcast %29 : vector<1x64xf32> to vector<64x64xf32>
    %31 = arith.mulf %24, %30 : vector<64x64xf32>
    %32 = vector.broadcast %7 : vector<1x64xf32> to vector<64x64xf32>
    %33 = arith.mulf %31, %32 : vector<64x64xf32>
    %34 = vector.broadcast %8 : vector<1x64xf32> to vector<64x64xf32>
    %35 = arith.addf %33, %34 : vector<64x64xf32>
    %cst_20 = arith.constant 0.000000e+00 : f32
    %36 = vector.broadcast %cst_20 : f32 to vector<64x64xf32>
    %37 = arith.maximumf %35, %36 : vector<64x64xf32>
    %cst_21 = arith.constant dense<0.000000e+00> : vector<64xf32>
    %38 = vector.multi_reduction <add>, %37, %cst_21 [0] : vector<64x64xf32> to vector<64xf32>
    %39 = vector.shape_cast %38 : vector<64xf32> to vector<1x64xf32>
    %cst_22 = arith.constant 6.400000e+01 : f32
    %40 = vector.broadcast %cst_22 : f32 to vector<1x64xf32>
    %41 = arith.divf %39, %40 : vector<1x64xf32>
    %c0_23 = arith.constant 0 : index
    %c0_24 = arith.constant 0 : index
    %42 = vector.load %arg7[%c0_23, %c0_24] : memref<64x64xf32, #tpu.memory_space<vmem>>, vector<64x64xf32>
    %cst_25 = arith.constant dense<0.000000e+00> : vector<1x64xf32>
    %43 = tpu.matmul %41, %42, %cst_25 {dimension_numbers = #tpu.dot_dimension_numbers<[1], [0], [0], [1], [0, 0, 1, 1], [], []>} : vector<1x64xf32>, vector<64x64xf32>, vector<1x64xf32> -> vector<1x64xf32>
    %c0_26 = arith.constant 0 : index
    %c0_27 = arith.constant 0 : index
    %44 = vector.load %arg8[%c0_26, %c0_27] : memref<1x64xf32, #tpu.memory_space<vmem>>, vector<1x64xf32>
    %45 = arith.addf %43, %44 : vector<1x64xf32>
    %c0_28 = arith.constant 0 : index
    %c0_29 = arith.constant 0 : index
    %c0_30 = arith.constant 0 : index
    %46 = vector.load %arg9[%c0_28, %c0_29, %c0_30] : memref<1x1x64xf32, #tpu.memory_space<vmem>>, vector<1x1x64xf32>
    %47 = vector.shape_cast %46 : vector<1x1x64xf32> to vector<1x64xf32>
    %48 = vector.shape_cast %45 : vector<1x64xf32> to vector<1x1x64xf32>
    tpu.vector_store %arg9[%c0_28, %c0_29, %c0_30], %48 {strides = array<i32>} : memref<1x1x64xf32, #tpu.memory_space<vmem>>, vector<1x1x64xf32>,
    return
  }
  func.func @transform_0(%arg0: i32) -> (i32, i32, i32) {
    %c0_i32 = arith.constant 0 : i32
    %c0_i32_0 = arith.constant 0 : i32
    %c0_i32_1 = arith.constant 0 : i32
    return %arg0, %c0_i32, %c0_i32_0 : i32, i32, i32
  }
  func.func @transform_1(%arg0: i32) -> (i32, i32) {
    %c0_i32 = arith.constant 0 : i32
    %c0_i32_0 = arith.constant 0 : i32
    %c0_i32_1 = arith.constant 0 : i32
    return %c0_i32, %c0_i32_0 : i32, i32
  }
  func.func @transform_2(%arg0: i32) -> (i32, i32) {
    %c0_i32 = arith.constant 0 : i32
    %c0_i32_0 = arith.constant 0 : i32
    %c0_i32_1 = arith.constant 0 : i32
    return %c0_i32, %c0_i32_0 : i32, i32
  }
  func.func @transform_3(%arg0: i32) -> (i32, i32) {
    %c0_i32 = arith.constant 0 : i32
    %c0_i32_0 = arith.constant 0 : i32
    %c0_i32_1 = arith.constant 0 : i32
    return %c0_i32, %c0_i32_0 : i32, i32
  }
  func.func @transform_4(%arg0: i32) -> (i32, i32) {
    %c0_i32 = arith.constant 0 : i32
    %c0_i32_0 = arith.constant 0 : i32
    %c0_i32_1 = arith.constant 0 : i32
    return %c0_i32, %c0_i32_0 : i32, i32
  }
  func.func @transform_5(%arg0: i32) -> (i32, i32) {
    %c0_i32 = arith.constant 0 : i32
    %c0_i32_0 = arith.constant 0 : i32
    %c0_i32_1 = arith.constant 0 : i32
    return %c0_i32, %c0_i32_0 : i32, i32
  }
  func.func @transform_6(%arg0: i32) -> (i32, i32) {
    %c0_i32 = arith.constant 0 : i32
    %c0_i32_0 = arith.constant 0 : i32
    %c0_i32_1 = arith.constant 0 : i32
    return %c0_i32, %c0_i32_0 : i32, i32
  }
  func.func @transform_7(%arg0: i32) -> (i32, i32) {
    %c0_i32 = arith.constant 0 : i32
    %c0_i32_0 = arith.constant 0 : i32
    %c0_i32_1 = arith.constant 0 : i32
    return %c0_i32, %c0_i32_0 : i32, i32
  }
  func.func @transform_8(%arg0: i32) -> (i32, i32, i32) {
    %c0_i32 = arith.constant 0 : i32
    %c0_i32_0 = arith.constant 0 : i32
    %c0_i32_1 = arith.constant 0 : i32
    return %arg0, %c0_i32, %c0_i32_0 : i32, i32, i32
  }
}

module attributes {stable_mosaic.version = 11 : i64} {
  func.func @_diffusion_kernel(%arg0: i32, %arg1: memref<5x1x32xf32, #tpu.memory_space<vmem>>, %arg2: memref<1x1x64xf32, #tpu.memory_space<vmem>>, %arg3: memref<1x20x10xf32, #tpu.memory_space<vmem>>, %arg4: memref<5x1x20x10xf32, #tpu.memory_space<vmem>>, %arg5: memref<32x128xf32, #tpu.memory_space<vmem>>, %arg6: memref<1x128xf32, #tpu.memory_space<vmem>>, %arg7: memref<128x64xf32, #tpu.memory_space<vmem>>, %arg8: memref<1x64xf32, #tpu.memory_space<vmem>>, %arg9: memref<128x64xf32, #tpu.memory_space<vmem>>, %arg10: memref<1x64xf32, #tpu.memory_space<vmem>>, %arg11: memref<128x64xf32, #tpu.memory_space<vmem>>, %arg12: memref<1x64xf32, #tpu.memory_space<vmem>>, %arg13: memref<30x64xf32, #tpu.memory_space<vmem>>, %arg14: memref<1x64xf32, #tpu.memory_space<vmem>>, %arg15: memref<192x10xf32, #tpu.memory_space<vmem>>, %arg16: memref<1x10xf32, #tpu.memory_space<vmem>>, %arg17: memref<1x20x10xf32, #tpu.memory_space<vmem>>) attributes {dimension_semantics = [#tpu.dimension_semantics<parallel>], iteration_bounds = array<i64: 2>, scalar_prefetch = 0 : i64, scratch_operands = 0 : i64, tpu.core_type = #tpu.core_type<tc>, window_params = [{pipeline_mode = #tpu.pipeline_mode<synchronous>, transform_indices = @transform_0, window_bounds = array<i64: 5, 1, 32>}, {transform_indices = @transform_1, window_bounds = array<i64: 1, 1, 64>}, {transform_indices = @transform_2, window_bounds = array<i64: 1, 20, 10>}, {transform_indices = @transform_3, window_bounds = array<i64: 5, 1, 20, 10>}, {pipeline_mode = #tpu.pipeline_mode<synchronous>, transform_indices = @transform_4, window_bounds = array<i64: 32, 128>}, {pipeline_mode = #tpu.pipeline_mode<synchronous>, transform_indices = @transform_5, window_bounds = array<i64: 1, 128>}, {pipeline_mode = #tpu.pipeline_mode<synchronous>, transform_indices = @transform_6, window_bounds = array<i64: 128, 64>}, {pipeline_mode = #tpu.pipeline_mode<synchronous>, transform_indices = @transform_7, window_bounds = array<i64: 1, 64>}, {pipeline_mode = #tpu.pipeline_mode<synchronous>, transform_indices = @transform_8, window_bounds = array<i64: 128, 64>}, {pipeline_mode = #tpu.pipeline_mode<synchronous>, transform_indices = @transform_9, window_bounds = array<i64: 1, 64>}, {pipeline_mode = #tpu.pipeline_mode<synchronous>, transform_indices = @transform_10, window_bounds = array<i64: 128, 64>}, {pipeline_mode = #tpu.pipeline_mode<synchronous>, transform_indices = @transform_11, window_bounds = array<i64: 1, 64>}, {pipeline_mode = #tpu.pipeline_mode<synchronous>, transform_indices = @transform_12, window_bounds = array<i64: 30, 64>}, {pipeline_mode = #tpu.pipeline_mode<synchronous>, transform_indices = @transform_13, window_bounds = array<i64: 1, 64>}, {pipeline_mode = #tpu.pipeline_mode<synchronous>, transform_indices = @transform_14, window_bounds = array<i64: 192, 10>}, {pipeline_mode = #tpu.pipeline_mode<synchronous>, transform_indices = @transform_15, window_bounds = array<i64: 1, 10>}, {transform_indices = @transform_16, window_bounds = array<i64: 1, 20, 10>}]} {
    %c0 = arith.constant 0 : index
    %c0_0 = arith.constant 0 : index
    %c0_1 = arith.constant 0 : index
    %0 = vector.load %arg2[%c0, %c0_0, %c0_1] : memref<1x1x64xf32, #tpu.memory_space<vmem>>, vector<1x1x64xf32>
    %1 = vector.shape_cast %0 : vector<1x1x64xf32> to vector<1x64xf32>
    %c0_2 = arith.constant 0 : index
    %c0_3 = arith.constant 0 : index
    %2 = vector.load %arg5[%c0_2, %c0_3] : memref<32x128xf32, #tpu.memory_space<vmem>>, vector<32x128xf32>
    %c0_4 = arith.constant 0 : index
    %c0_5 = arith.constant 0 : index
    %3 = vector.load %arg6[%c0_4, %c0_5] : memref<1x128xf32, #tpu.memory_space<vmem>>, vector<1x128xf32>
    %c0_6 = arith.constant 0 : index
    %c0_7 = arith.constant 0 : index
    %4 = vector.load %arg7[%c0_6, %c0_7] : memref<128x64xf32, #tpu.memory_space<vmem>>, vector<128x64xf32>
    %c0_8 = arith.constant 0 : index
    %c0_9 = arith.constant 0 : index
    %5 = vector.load %arg8[%c0_8, %c0_9] : memref<1x64xf32, #tpu.memory_space<vmem>>, vector<1x64xf32>
    %c0_10 = arith.constant 0 : index
    %c0_11 = arith.constant 0 : index
    %6 = vector.load %arg9[%c0_10, %c0_11] : memref<128x64xf32, #tpu.memory_space<vmem>>, vector<128x64xf32>
    %c0_12 = arith.constant 0 : index
    %c0_13 = arith.constant 0 : index
    %7 = vector.load %arg10[%c0_12, %c0_13] : memref<1x64xf32, #tpu.memory_space<vmem>>, vector<1x64xf32>
    %c0_14 = arith.constant 0 : index
    %c0_15 = arith.constant 0 : index
    %8 = vector.load %arg11[%c0_14, %c0_15] : memref<128x64xf32, #tpu.memory_space<vmem>>, vector<128x64xf32>
    %c0_16 = arith.constant 0 : index
    %c0_17 = arith.constant 0 : index
    %9 = vector.load %arg12[%c0_16, %c0_17] : memref<1x64xf32, #tpu.memory_space<vmem>>, vector<1x64xf32>
    %c0_18 = arith.constant 0 : index
    %c0_19 = arith.constant 0 : index
    %10 = vector.load %arg13[%c0_18, %c0_19] : memref<30x64xf32, #tpu.memory_space<vmem>>, vector<30x64xf32>
    %c0_20 = arith.constant 0 : index
    %c0_21 = arith.constant 0 : index
    %11 = vector.load %arg14[%c0_20, %c0_21] : memref<1x64xf32, #tpu.memory_space<vmem>>, vector<1x64xf32>
    %c0_22 = arith.constant 0 : index
    %c0_23 = arith.constant 0 : index
    %12 = vector.load %arg15[%c0_22, %c0_23] : memref<192x10xf32, #tpu.memory_space<vmem>>, vector<192x10xf32>
    %c0_24 = arith.constant 0 : index
    %c0_25 = arith.constant 0 : index
    %13 = vector.load %arg16[%c0_24, %c0_25] : memref<1x10xf32, #tpu.memory_space<vmem>>, vector<1x10xf32>
    %c0_26 = arith.constant 0 : index
    %c0_27 = arith.constant 0 : index
    %c0_28 = arith.constant 0 : index
    %14 = vector.load %arg3[%c0_26, %c0_27, %c0_28] : memref<1x20x10xf32, #tpu.memory_space<vmem>>, vector<1x20x10xf32>
    %15 = vector.shape_cast %14 : vector<1x20x10xf32> to vector<20x10xf32>
    %c0_29 = arith.constant 0 : index
    %c0_30 = arith.constant 0 : index
    %c0_31 = arith.constant 0 : index
    %16 = vector.load %arg1[%c0_29, %c0_30, %c0_31] : memref<5x1x32xf32, #tpu.memory_space<vmem>>, vector<1x1x32xf32>
    %17 = vector.shape_cast %16 : vector<1x1x32xf32> to vector<1x32xf32>
    %cst = arith.constant dense<0.000000e+00> : vector<1x128xf32>
    %18 = tpu.matmul %17, %2, %cst {dimension_numbers = #tpu.dot_dimension_numbers<[1], [0], [0], [1], [0, 0, 1, 1], [], []>} : vector<1x32xf32>, vector<32x128xf32>, vector<1x128xf32> -> vector<1x128xf32>
    %19 = arith.addf %18, %3 : vector<1x128xf32>
    %20 = math.absf %19 : vector<1x128xf32>
    %cst_32 = arith.constant 0.000000e+00 : f32
    %21 = vector.broadcast %cst_32 : f32 to vector<1x128xf32>
    %22 = arith.subf %21, %20 : vector<1x128xf32>
    %23 = math.exp %22 : vector<1x128xf32>
    %24 = math.log1p %23 : vector<1x128xf32>
    %cst_33 = arith.constant 0.000000e+00 : f32
    %25 = vector.broadcast %cst_33 : f32 to vector<1x128xf32>
    %26 = arith.maximumf %19, %25 : vector<1x128xf32>
    %27 = arith.addf %24, %26 : vector<1x128xf32>
    %28 = math.tanh %27 : vector<1x128xf32>
    %29 = arith.mulf %19, %28 : vector<1x128xf32>
    %cst_34 = arith.constant dense<0.000000e+00> : vector<1x64xf32>
    %30 = tpu.matmul %29, %4, %cst_34 {dimension_numbers = #tpu.dot_dimension_numbers<[1], [0], [0], [1], [0, 0, 1, 1], [], []>} : vector<1x128xf32>, vector<128x64xf32>, vector<1x64xf32> -> vector<1x64xf32>
    %31 = arith.addf %30, %5 : vector<1x64xf32>
    %32 = tpu.concatenate %31, %1 in 1 : vector<1x64xf32>, vector<1x64xf32> -> vector<1x128xf32>
    %cst_35 = arith.constant dense<0.000000e+00> : vector<1x64xf32>
    %33 = tpu.matmul %32, %6, %cst_35 {dimension_numbers = #tpu.dot_dimension_numbers<[1], [0], [0], [1], [0, 0, 1, 1], [], []>} : vector<1x128xf32>, vector<128x64xf32>, vector<1x64xf32> -> vector<1x64xf32>
    %34 = arith.addf %33, %7 : vector<1x64xf32>
    %cst_36 = arith.constant dense<0.000000e+00> : vector<1x64xf32>
    %35 = tpu.matmul %32, %8, %cst_36 {dimension_numbers = #tpu.dot_dimension_numbers<[1], [0], [0], [1], [0, 0, 1, 1], [], []>} : vector<1x128xf32>, vector<128x64xf32>, vector<1x64xf32> -> vector<1x64xf32>
    %36 = arith.addf %35, %9 : vector<1x64xf32>
    %cst_37 = arith.constant 0.000000e+00 : f32
    %37 = vector.broadcast %cst_37 : f32 to vector<1x10xf32>
    %38 = vector.extract_strided_slice %15 {offsets = [0, 0], sizes = [19, 10], strides = [1, 1]} : vector<20x10xf32> to vector<19x10xf32>
    %39 = tpu.concatenate %37, %38 in 0 : vector<1x10xf32>, vector<19x10xf32> -> vector<20x10xf32>
    %40 = vector.extract_strided_slice %15 {offsets = [1, 0], sizes = [19, 10], strides = [1, 1]} : vector<20x10xf32> to vector<19x10xf32>
    %41 = tpu.concatenate %40, %37 in 0 : vector<19x10xf32>, vector<1x10xf32> -> vector<20x10xf32>
    %42 = tpu.concatenate %39, %15, %41 in 1 : vector<20x10xf32>, vector<20x10xf32>, vector<20x10xf32> -> vector<20x30xf32>
    %cst_38 = arith.constant dense<0.000000e+00> : vector<20x64xf32>
    %43 = tpu.matmul %42, %10, %cst_38 {dimension_numbers = #tpu.dot_dimension_numbers<[1], [0], [0], [1], [0, 0, 1, 1], [], []>} : vector<20x30xf32>, vector<30x64xf32>, vector<20x64xf32> -> vector<20x64xf32>
    %44 = vector.broadcast %11 : vector<1x64xf32> to vector<20x64xf32>
    %45 = arith.addf %43, %44 : vector<20x64xf32>
    %cst_39 = arith.constant 1.000000e+00 : f32
    %46 = vector.broadcast %cst_39 : f32 to vector<1x64xf32>
    %47 = arith.addf %46, %34 : vector<1x64xf32>
    %48 = vector.broadcast %47 : vector<1x64xf32> to vector<20x64xf32>
    %49 = arith.mulf %45, %48 : vector<20x64xf32>
    %50 = vector.broadcast %36 : vector<1x64xf32> to vector<20x64xf32>
    %51 = arith.addf %49, %50 : vector<20x64xf32>
    %52 = math.absf %51 : vector<20x64xf32>
    %cst_40 = arith.constant 0.000000e+00 : f32
    %53 = vector.broadcast %cst_40 : f32 to vector<20x64xf32>
    %54 = arith.subf %53, %52 : vector<20x64xf32>
    %55 = math.exp %54 : vector<20x64xf32>
    %56 = math.log1p %55 : vector<20x64xf32>
    %cst_41 = arith.constant 0.000000e+00 : f32
    %57 = vector.broadcast %cst_41 : f32 to vector<20x64xf32>
    %58 = arith.maximumf %51, %57 : vector<20x64xf32>
    %59 = arith.addf %56, %58 : vector<20x64xf32>
    %60 = math.tanh %59 : vector<20x64xf32>
    %61 = arith.mulf %51, %60 : vector<20x64xf32>
    %cst_42 = arith.constant 0.000000e+00 : f32
    %62 = vector.broadcast %cst_42 : f32 to vector<1x64xf32>
    %63 = vector.extract_strided_slice %61 {offsets = [0, 0], sizes = [19, 64], strides = [1, 1]} : vector<20x64xf32> to vector<19x64xf32>
    %64 = tpu.concatenate %62, %63 in 0 : vector<1x64xf32>, vector<19x64xf32> -> vector<20x64xf32>
    %65 = vector.extract_strided_slice %61 {offsets = [1, 0], sizes = [19, 64], strides = [1, 1]} : vector<20x64xf32> to vector<19x64xf32>
    %66 = tpu.concatenate %65, %62 in 0 : vector<19x64xf32>, vector<1x64xf32> -> vector<20x64xf32>
    %67 = tpu.concatenate %64, %61, %66 in 1 : vector<20x64xf32>, vector<20x64xf32>, vector<20x64xf32> -> vector<20x192xf32>
    %cst_43 = arith.constant dense<0.000000e+00> : vector<20x10xf32>
    %68 = tpu.matmul %67, %12, %cst_43 {dimension_numbers = #tpu.dot_dimension_numbers<[1], [0], [0], [1], [0, 0, 1, 1], [], []>} : vector<20x192xf32>, vector<192x10xf32>, vector<20x10xf32> -> vector<20x10xf32>
    %69 = vector.broadcast %13 : vector<1x10xf32> to vector<20x10xf32>
    %70 = arith.addf %68, %69 : vector<20x10xf32>
    %71 = arith.addf %70, %15 : vector<20x10xf32>
    %c0_44 = arith.constant 0 : index
    %c0_45 = arith.constant 0 : index
    %c0_46 = arith.constant 0 : index
    %c0_47 = arith.constant 0 : index
    %72 = vector.load %arg4[%c0_44, %c0_45, %c0_46, %c0_47] : memref<5x1x20x10xf32, #tpu.memory_space<vmem>>, vector<1x1x20x10xf32>
    %73 = vector.shape_cast %72 : vector<1x1x20x10xf32> to vector<1x20x10xf32>
    %74 = vector.shape_cast %73 : vector<1x20x10xf32> to vector<20x10xf32>
    %cst_48 = arith.constant 0.09001147 : f32
    %75 = vector.broadcast %cst_48 : f32 to vector<20x10xf32>
    %76 = arith.mulf %75, %71 : vector<20x10xf32>
    %77 = arith.subf %15, %76 : vector<20x10xf32>
    %cst_49 = arith.constant 1.01015258 : f32
    %78 = vector.broadcast %cst_49 : f32 to vector<20x10xf32>
    %79 = arith.mulf %78, %77 : vector<20x10xf32>
    %cst_50 = arith.constant 0.141421363 : f32
    %80 = vector.broadcast %cst_50 : f32 to vector<20x10xf32>
    %81 = arith.mulf %80, %74 : vector<20x10xf32>
    %82 = arith.addf %79, %81 : vector<20x10xf32>
    %c1 = arith.constant 1 : index
    %c0_51 = arith.constant 0 : index
    %c0_52 = arith.constant 0 : index
    %83 = vector.load %arg1[%c1, %c0_51, %c0_52] : memref<5x1x32xf32, #tpu.memory_space<vmem>>, vector<1x1x32xf32>
    %84 = vector.shape_cast %83 : vector<1x1x32xf32> to vector<1x32xf32>
    %cst_53 = arith.constant dense<0.000000e+00> : vector<1x128xf32>
    %85 = tpu.matmul %84, %2, %cst_53 {dimension_numbers = #tpu.dot_dimension_numbers<[1], [0], [0], [1], [0, 0, 1, 1], [], []>} : vector<1x32xf32>, vector<32x128xf32>, vector<1x128xf32> -> vector<1x128xf32>
    %86 = arith.addf %85, %3 : vector<1x128xf32>
    %87 = math.absf %86 : vector<1x128xf32>
    %cst_54 = arith.constant 0.000000e+00 : f32
    %88 = vector.broadcast %cst_54 : f32 to vector<1x128xf32>
    %89 = arith.subf %88, %87 : vector<1x128xf32>
    %90 = math.exp %89 : vector<1x128xf32>
    %91 = math.log1p %90 : vector<1x128xf32>
    %cst_55 = arith.constant 0.000000e+00 : f32
    %92 = vector.broadcast %cst_55 : f32 to vector<1x128xf32>
    %93 = arith.maximumf %86, %92 : vector<1x128xf32>
    %94 = arith.addf %91, %93 : vector<1x128xf32>
    %95 = math.tanh %94 : vector<1x128xf32>
    %96 = arith.mulf %86, %95 : vector<1x128xf32>
    %cst_56 = arith.constant dense<0.000000e+00> : vector<1x64xf32>
    %97 = tpu.matmul %96, %4, %cst_56 {dimension_numbers = #tpu.dot_dimension_numbers<[1], [0], [0], [1], [0, 0, 1, 1], [], []>} : vector<1x128xf32>, vector<128x64xf32>, vector<1x64xf32> -> vector<1x64xf32>
    %98 = arith.addf %97, %5 : vector<1x64xf32>
    %99 = tpu.concatenate %98, %1 in 1 : vector<1x64xf32>, vector<1x64xf32> -> vector<1x128xf32>
    %cst_57 = arith.constant dense<0.000000e+00> : vector<1x64xf32>
    %100 = tpu.matmul %99, %6, %cst_57 {dimension_numbers = #tpu.dot_dimension_numbers<[1], [0], [0], [1], [0, 0, 1, 1], [], []>} : vector<1x128xf32>, vector<128x64xf32>, vector<1x64xf32> -> vector<1x64xf32>
    %101 = arith.addf %100, %7 : vector<1x64xf32>
    %cst_58 = arith.constant dense<0.000000e+00> : vector<1x64xf32>
    %102 = tpu.matmul %99, %8, %cst_58 {dimension_numbers = #tpu.dot_dimension_numbers<[1], [0], [0], [1], [0, 0, 1, 1], [], []>} : vector<1x128xf32>, vector<128x64xf32>, vector<1x64xf32> -> vector<1x64xf32>
    %103 = arith.addf %102, %9 : vector<1x64xf32>
    %cst_59 = arith.constant 0.000000e+00 : f32
    %104 = vector.broadcast %cst_59 : f32 to vector<1x10xf32>
    %105 = vector.extract_strided_slice %82 {offsets = [0, 0], sizes = [19, 10], strides = [1, 1]} : vector<20x10xf32> to vector<19x10xf32>
    %106 = tpu.concatenate %104, %105 in 0 : vector<1x10xf32>, vector<19x10xf32> -> vector<20x10xf32>
    %107 = vector.extract_strided_slice %82 {offsets = [1, 0], sizes = [19, 10], strides = [1, 1]} : vector<20x10xf32> to vector<19x10xf32>
    %108 = tpu.concatenate %107, %104 in 0 : vector<19x10xf32>, vector<1x10xf32> -> vector<20x10xf32>
    %109 = tpu.concatenate %106, %82, %108 in 1 : vector<20x10xf32>, vector<20x10xf32>, vector<20x10xf32> -> vector<20x30xf32>
    %cst_60 = arith.constant dense<0.000000e+00> : vector<20x64xf32>
    %110 = tpu.matmul %109, %10, %cst_60 {dimension_numbers = #tpu.dot_dimension_numbers<[1], [0], [0], [1], [0, 0, 1, 1], [], []>} : vector<20x30xf32>, vector<30x64xf32>, vector<20x64xf32> -> vector<20x64xf32>
    %111 = vector.broadcast %11 : vector<1x64xf32> to vector<20x64xf32>
    %112 = arith.addf %110, %111 : vector<20x64xf32>
    %cst_61 = arith.constant 1.000000e+00 : f32
    %113 = vector.broadcast %cst_61 : f32 to vector<1x64xf32>
    %114 = arith.addf %113, %101 : vector<1x64xf32>
    %115 = vector.broadcast %114 : vector<1x64xf32> to vector<20x64xf32>
    %116 = arith.mulf %112, %115 : vector<20x64xf32>
    %117 = vector.broadcast %103 : vector<1x64xf32> to vector<20x64xf32>
    %118 = arith.addf %116, %117 : vector<20x64xf32>
    %119 = math.absf %118 : vector<20x64xf32>
    %cst_62 = arith.constant 0.000000e+00 : f32
    %120 = vector.broadcast %cst_62 : f32 to vector<20x64xf32>
    %121 = arith.subf %120, %119 : vector<20x64xf32>
    %122 = math.exp %121 : vector<20x64xf32>
    %123 = math.log1p %122 : vector<20x64xf32>
    %cst_63 = arith.constant 0.000000e+00 : f32
    %124 = vector.broadcast %cst_63 : f32 to vector<20x64xf32>
    %125 = arith.maximumf %118, %124 : vector<20x64xf32>
    %126 = arith.addf %123, %125 : vector<20x64xf32>
    %127 = math.tanh %126 : vector<20x64xf32>
    %128 = arith.mulf %118, %127 : vector<20x64xf32>
    %cst_64 = arith.constant 0.000000e+00 : f32
    %129 = vector.broadcast %cst_64 : f32 to vector<1x64xf32>
    %130 = vector.extract_strided_slice %128 {offsets = [0, 0], sizes = [19, 64], strides = [1, 1]} : vector<20x64xf32> to vector<19x64xf32>
    %131 = tpu.concatenate %129, %130 in 0 : vector<1x64xf32>, vector<19x64xf32> -> vector<20x64xf32>
    %132 = vector.extract_strided_slice %128 {offsets = [1, 0], sizes = [19, 64], strides = [1, 1]} : vector<20x64xf32> to vector<19x64xf32>
    %133 = tpu.concatenate %132, %129 in 0 : vector<19x64xf32>, vector<1x64xf32> -> vector<20x64xf32>
    %134 = tpu.concatenate %131, %128, %133 in 1 : vector<20x64xf32>, vector<20x64xf32>, vector<20x64xf32> -> vector<20x192xf32>
    %cst_65 = arith.constant dense<0.000000e+00> : vector<20x10xf32>
    %135 = tpu.matmul %134, %12, %cst_65 {dimension_numbers = #tpu.dot_dimension_numbers<[1], [0], [0], [1], [0, 0, 1, 1], [], []>} : vector<20x192xf32>, vector<192x10xf32>, vector<20x10xf32> -> vector<20x10xf32>
    %136 = vector.broadcast %13 : vector<1x10xf32> to vector<20x10xf32>
    %137 = arith.addf %135, %136 : vector<20x10xf32>
    %138 = arith.addf %137, %82 : vector<20x10xf32>
    %c1_66 = arith.constant 1 : index
    %c0_67 = arith.constant 0 : index
    %c0_68 = arith.constant 0 : index
    %c0_69 = arith.constant 0 : index
    %139 = vector.load %arg4[%c1_66, %c0_67, %c0_68, %c0_69] : memref<5x1x20x10xf32, #tpu.memory_space<vmem>>, vector<1x1x20x10xf32>
    %140 = vector.shape_cast %139 : vector<1x1x20x10xf32> to vector<1x20x10xf32>
    %141 = vector.shape_cast %140 : vector<1x20x10xf32> to vector<20x10xf32>
    %cst_70 = arith.constant 0.0867909789 : f32
    %142 = vector.broadcast %cst_70 : f32 to vector<20x10xf32>
    %143 = arith.mulf %142, %138 : vector<20x10xf32>
    %144 = arith.subf %82, %143 : vector<20x10xf32>
    %cst_71 = arith.constant 1.00759828 : f32
    %145 = vector.broadcast %cst_71 : f32 to vector<20x10xf32>
    %146 = arith.mulf %145, %144 : vector<20x10xf32>
    %cst_72 = arith.constant 0.122576505 : f32
    %147 = vector.broadcast %cst_72 : f32 to vector<20x10xf32>
    %148 = arith.mulf %147, %141 : vector<20x10xf32>
    %149 = arith.addf %146, %148 : vector<20x10xf32>
    %c2 = arith.constant 2 : index
    %c0_73 = arith.constant 0 : index
    %c0_74 = arith.constant 0 : index
    %150 = vector.load %arg1[%c2, %c0_73, %c0_74] : memref<5x1x32xf32, #tpu.memory_space<vmem>>, vector<1x1x32xf32>
    %151 = vector.shape_cast %150 : vector<1x1x32xf32> to vector<1x32xf32>
    %cst_75 = arith.constant dense<0.000000e+00> : vector<1x128xf32>
    %152 = tpu.matmul %151, %2, %cst_75 {dimension_numbers = #tpu.dot_dimension_numbers<[1], [0], [0], [1], [0, 0, 1, 1], [], []>} : vector<1x32xf32>, vector<32x128xf32>, vector<1x128xf32> -> vector<1x128xf32>
    %153 = arith.addf %152, %3 : vector<1x128xf32>
    %154 = math.absf %153 : vector<1x128xf32>
    %cst_76 = arith.constant 0.000000e+00 : f32
    %155 = vector.broadcast %cst_76 : f32 to vector<1x128xf32>
    %156 = arith.subf %155, %154 : vector<1x128xf32>
    %157 = math.exp %156 : vector<1x128xf32>
    %158 = math.log1p %157 : vector<1x128xf32>
    %cst_77 = arith.constant 0.000000e+00 : f32
    %159 = vector.broadcast %cst_77 : f32 to vector<1x128xf32>
    %160 = arith.maximumf %153, %159 : vector<1x128xf32>
    %161 = arith.addf %158, %160 : vector<1x128xf32>
    %162 = math.tanh %161 : vector<1x128xf32>
    %163 = arith.mulf %153, %162 : vector<1x128xf32>
    %cst_78 = arith.constant dense<0.000000e+00> : vector<1x64xf32>
    %164 = tpu.matmul %163, %4, %cst_78 {dimension_numbers = #tpu.dot_dimension_numbers<[1], [0], [0], [1], [0, 0, 1, 1], [], []>} : vector<1x128xf32>, vector<128x64xf32>, vector<1x64xf32> -> vector<1x64xf32>
    %165 = arith.addf %164, %5 : vector<1x64xf32>
    %166 = tpu.concatenate %165, %1 in 1 : vector<1x64xf32>, vector<1x64xf32> -> vector<1x128xf32>
    %cst_79 = arith.constant dense<0.000000e+00> : vector<1x64xf32>
    %167 = tpu.matmul %166, %6, %cst_79 {dimension_numbers = #tpu.dot_dimension_numbers<[1], [0], [0], [1], [0, 0, 1, 1], [], []>} : vector<1x128xf32>, vector<128x64xf32>, vector<1x64xf32> -> vector<1x64xf32>
    %168 = arith.addf %167, %7 : vector<1x64xf32>
    %cst_80 = arith.constant dense<0.000000e+00> : vector<1x64xf32>
    %169 = tpu.matmul %166, %8, %cst_80 {dimension_numbers = #tpu.dot_dimension_numbers<[1], [0], [0], [1], [0, 0, 1, 1], [], []>} : vector<1x128xf32>, vector<128x64xf32>, vector<1x64xf32> -> vector<1x64xf32>
    %170 = arith.addf %169, %9 : vector<1x64xf32>
    %cst_81 = arith.constant 0.000000e+00 : f32
    %171 = vector.broadcast %cst_81 : f32 to vector<1x10xf32>
    %172 = vector.extract_strided_slice %149 {offsets = [0, 0], sizes = [19, 10], strides = [1, 1]} : vector<20x10xf32> to vector<19x10xf32>
    %173 = tpu.concatenate %171, %172 in 0 : vector<1x10xf32>, vector<19x10xf32> -> vector<20x10xf32>
    %174 = vector.extract_strided_slice %149 {offsets = [1, 0], sizes = [19, 10], strides = [1, 1]} : vector<20x10xf32> to vector<19x10xf32>
    %175 = tpu.concatenate %174, %171 in 0 : vector<19x10xf32>, vector<1x10xf32> -> vector<20x10xf32>
    %176 = tpu.concatenate %173, %149, %175 in 1 : vector<20x10xf32>, vector<20x10xf32>, vector<20x10xf32> -> vector<20x30xf32>
    %cst_82 = arith.constant dense<0.000000e+00> : vector<20x64xf32>
    %177 = tpu.matmul %176, %10, %cst_82 {dimension_numbers = #tpu.dot_dimension_numbers<[1], [0], [0], [1], [0, 0, 1, 1], [], []>} : vector<20x30xf32>, vector<30x64xf32>, vector<20x64xf32> -> vector<20x64xf32>
    %178 = vector.broadcast %11 : vector<1x64xf32> to vector<20x64xf32>
    %179 = arith.addf %177, %178 : vector<20x64xf32>
    %cst_83 = arith.constant 1.000000e+00 : f32
    %180 = vector.broadcast %cst_83 : f32 to vector<1x64xf32>
    %181 = arith.addf %180, %168 : vector<1x64xf32>
    %182 = vector.broadcast %181 : vector<1x64xf32> to vector<20x64xf32>
    %183 = arith.mulf %179, %182 : vector<20x64xf32>
    %184 = vector.broadcast %170 : vector<1x64xf32> to vector<20x64xf32>
    %185 = arith.addf %183, %184 : vector<20x64xf32>
    %186 = math.absf %185 : vector<20x64xf32>
    %cst_84 = arith.constant 0.000000e+00 : f32
    %187 = vector.broadcast %cst_84 : f32 to vector<20x64xf32>
    %188 = arith.subf %187, %186 : vector<20x64xf32>
    %189 = math.exp %188 : vector<20x64xf32>
    %190 = math.log1p %189 : vector<20x64xf32>
    %cst_85 = arith.constant 0.000000e+00 : f32
    %191 = vector.broadcast %cst_85 : f32 to vector<20x64xf32>
    %192 = arith.maximumf %185, %191 : vector<20x64xf32>
    %193 = arith.addf %190, %192 : vector<20x64xf32>
    %194 = math.tanh %193 : vector<20x64xf32>
    %195 = arith.mulf %185, %194 : vector<20x64xf32>
    %cst_86 = arith.constant 0.000000e+00 : f32
    %196 = vector.broadcast %cst_86 : f32 to vector<1x64xf32>
    %197 = vector.extract_strided_slice %195 {offsets = [0, 0], sizes = [19, 64], strides = [1, 1]} : vector<20x64xf32> to vector<19x64xf32>
    %198 = tpu.concatenate %196, %197 in 0 : vector<1x64xf32>, vector<19x64xf32> -> vector<20x64xf32>
    %199 = vector.extract_strided_slice %195 {offsets = [1, 0], sizes = [19, 64], strides = [1, 1]} : vector<20x64xf32> to vector<19x64xf32>
    %200 = tpu.concatenate %199, %196 in 0 : vector<19x64xf32>, vector<1x64xf32> -> vector<20x64xf32>
    %201 = tpu.concatenate %198, %195, %200 in 1 : vector<20x64xf32>, vector<20x64xf32>, vector<20x64xf32> -> vector<20x192xf32>
    %cst_87 = arith.constant dense<0.000000e+00> : vector<20x10xf32>
    %202 = tpu.matmul %201, %12, %cst_87 {dimension_numbers = #tpu.dot_dimension_numbers<[1], [0], [0], [1], [0, 0, 1, 1], [], []>} : vector<20x192xf32>, vector<192x10xf32>, vector<20x10xf32> -> vector<20x10xf32>
    %203 = vector.broadcast %13 : vector<1x10xf32> to vector<20x10xf32>
    %204 = arith.addf %202, %203 : vector<20x10xf32>
    %205 = arith.addf %204, %149 : vector<20x10xf32>
    %c2_88 = arith.constant 2 : index
    %c0_89 = arith.constant 0 : index
    %c0_90 = arith.constant 0 : index
    %c0_91 = arith.constant 0 : index
    %206 = vector.load %arg4[%c2_88, %c0_89, %c0_90, %c0_91] : memref<5x1x20x10xf32, #tpu.memory_space<vmem>>, vector<1x1x20x10xf32>
    %207 = vector.shape_cast %206 : vector<1x1x20x10xf32> to vector<1x20x10xf32>
    %208 = vector.shape_cast %207 : vector<1x20x10xf32> to vector<20x10xf32>
    %cst_92 = arith.constant 0.0815901309 : f32
    %209 = vector.broadcast %cst_92 : f32 to vector<20x10xf32>
    %210 = arith.mulf %209, %205 : vector<20x10xf32>
    %211 = arith.subf %149, %210 : vector<20x10xf32>
    %cst_93 = arith.constant 1.00506318 : f32
    %212 = vector.broadcast %cst_93 : f32 to vector<20x10xf32>
    %213 = arith.mulf %212, %211 : vector<20x10xf32>
    %cst_94 = arith.constant 0.100249685 : f32
    %214 = vector.broadcast %cst_94 : f32 to vector<20x10xf32>
    %215 = arith.mulf %214, %208 : vector<20x10xf32>
    %216 = arith.addf %213, %215 : vector<20x10xf32>
    %c3 = arith.constant 3 : index
    %c0_95 = arith.constant 0 : index
    %c0_96 = arith.constant 0 : index
    %217 = vector.load %arg1[%c3, %c0_95, %c0_96] : memref<5x1x32xf32, #tpu.memory_space<vmem>>, vector<1x1x32xf32>
    %218 = vector.shape_cast %217 : vector<1x1x32xf32> to vector<1x32xf32>
    %cst_97 = arith.constant dense<0.000000e+00> : vector<1x128xf32>
    %219 = tpu.matmul %218, %2, %cst_97 {dimension_numbers = #tpu.dot_dimension_numbers<[1], [0], [0], [1], [0, 0, 1, 1], [], []>} : vector<1x32xf32>, vector<32x128xf32>, vector<1x128xf32> -> vector<1x128xf32>
    %220 = arith.addf %219, %3 : vector<1x128xf32>
    %221 = math.absf %220 : vector<1x128xf32>
    %cst_98 = arith.constant 0.000000e+00 : f32
    %222 = vector.broadcast %cst_98 : f32 to vector<1x128xf32>
    %223 = arith.subf %222, %221 : vector<1x128xf32>
    %224 = math.exp %223 : vector<1x128xf32>
    %225 = math.log1p %224 : vector<1x128xf32>
    %cst_99 = arith.constant 0.000000e+00 : f32
    %226 = vector.broadcast %cst_99 : f32 to vector<1x128xf32>
    %227 = arith.maximumf %220, %226 : vector<1x128xf32>
    %228 = arith.addf %225, %227 : vector<1x128xf32>
    %229 = math.tanh %228 : vector<1x128xf32>
    %230 = arith.mulf %220, %229 : vector<1x128xf32>
    %cst_100 = arith.constant dense<0.000000e+00> : vector<1x64xf32>
    %231 = tpu.matmul %230, %4, %cst_100 {dimension_numbers = #tpu.dot_dimension_numbers<[1], [0], [0], [1], [0, 0, 1, 1], [], []>} : vector<1x128xf32>, vector<128x64xf32>, vector<1x64xf32> -> vector<1x64xf32>
    %232 = arith.addf %231, %5 : vector<1x64xf32>
    %233 = tpu.concatenate %232, %1 in 1 : vector<1x64xf32>, vector<1x64xf32> -> vector<1x128xf32>
    %cst_101 = arith.constant dense<0.000000e+00> : vector<1x64xf32>
    %234 = tpu.matmul %233, %6, %cst_101 {dimension_numbers = #tpu.dot_dimension_numbers<[1], [0], [0], [1], [0, 0, 1, 1], [], []>} : vector<1x128xf32>, vector<128x64xf32>, vector<1x64xf32> -> vector<1x64xf32>
    %235 = arith.addf %234, %7 : vector<1x64xf32>
    %cst_102 = arith.constant dense<0.000000e+00> : vector<1x64xf32>
    %236 = tpu.matmul %233, %8, %cst_102 {dimension_numbers = #tpu.dot_dimension_numbers<[1], [0], [0], [1], [0, 0, 1, 1], [], []>} : vector<1x128xf32>, vector<128x64xf32>, vector<1x64xf32> -> vector<1x64xf32>
    %237 = arith.addf %236, %9 : vector<1x64xf32>
    %cst_103 = arith.constant 0.000000e+00 : f32
    %238 = vector.broadcast %cst_103 : f32 to vector<1x10xf32>
    %239 = vector.extract_strided_slice %216 {offsets = [0, 0], sizes = [19, 10], strides = [1, 1]} : vector<20x10xf32> to vector<19x10xf32>
    %240 = tpu.concatenate %238, %239 in 0 : vector<1x10xf32>, vector<19x10xf32> -> vector<20x10xf32>
    %241 = vector.extract_strided_slice %216 {offsets = [1, 0], sizes = [19, 10], strides = [1, 1]} : vector<20x10xf32> to vector<19x10xf32>
    %242 = tpu.concatenate %241, %238 in 0 : vector<19x10xf32>, vector<1x10xf32> -> vector<20x10xf32>
    %243 = tpu.concatenate %240, %216, %242 in 1 : vector<20x10xf32>, vector<20x10xf32>, vector<20x10xf32> -> vector<20x30xf32>
    %cst_104 = arith.constant dense<0.000000e+00> : vector<20x64xf32>
    %244 = tpu.matmul %243, %10, %cst_104 {dimension_numbers = #tpu.dot_dimension_numbers<[1], [0], [0], [1], [0, 0, 1, 1], [], []>} : vector<20x30xf32>, vector<30x64xf32>, vector<20x64xf32> -> vector<20x64xf32>
    %245 = vector.broadcast %11 : vector<1x64xf32> to vector<20x64xf32>
    %246 = arith.addf %244, %245 : vector<20x64xf32>
    %cst_105 = arith.constant 1.000000e+00 : f32
    %247 = vector.broadcast %cst_105 : f32 to vector<1x64xf32>
    %248 = arith.addf %247, %235 : vector<1x64xf32>
    %249 = vector.broadcast %248 : vector<1x64xf32> to vector<20x64xf32>
    %250 = arith.mulf %246, %249 : vector<20x64xf32>
    %251 = vector.broadcast %237 : vector<1x64xf32> to vector<20x64xf32>
    %252 = arith.addf %250, %251 : vector<20x64xf32>
    %253 = math.absf %252 : vector<20x64xf32>
    %cst_106 = arith.constant 0.000000e+00 : f32
    %254 = vector.broadcast %cst_106 : f32 to vector<20x64xf32>
    %255 = arith.subf %254, %253 : vector<20x64xf32>
    %256 = math.exp %255 : vector<20x64xf32>
    %257 = math.log1p %256 : vector<20x64xf32>
    %cst_107 = arith.constant 0.000000e+00 : f32
    %258 = vector.broadcast %cst_107 : f32 to vector<20x64xf32>
    %259 = arith.maximumf %252, %258 : vector<20x64xf32>
    %260 = arith.addf %257, %259 : vector<20x64xf32>
    %261 = math.tanh %260 : vector<20x64xf32>
    %262 = arith.mulf %252, %261 : vector<20x64xf32>
    %cst_108 = arith.constant 0.000000e+00 : f32
    %263 = vector.broadcast %cst_108 : f32 to vector<1x64xf32>
    %264 = vector.extract_strided_slice %262 {offsets = [0, 0], sizes = [19, 64], strides = [1, 1]} : vector<20x64xf32> to vector<19x64xf32>
    %265 = tpu.concatenate %263, %264 in 0 : vector<1x64xf32>, vector<19x64xf32> -> vector<20x64xf32>
    %266 = vector.extract_strided_slice %262 {offsets = [1, 0], sizes = [19, 64], strides = [1, 1]} : vector<20x64xf32> to vector<19x64xf32>
    %267 = tpu.concatenate %266, %263 in 0 : vector<19x64xf32>, vector<1x64xf32> -> vector<20x64xf32>
    %268 = tpu.concatenate %265, %262, %267 in 1 : vector<20x64xf32>, vector<20x64xf32>, vector<20x64xf32> -> vector<20x192xf32>
    %cst_109 = arith.constant dense<0.000000e+00> : vector<20x10xf32>
    %269 = tpu.matmul %268, %12, %cst_109 {dimension_numbers = #tpu.dot_dimension_numbers<[1], [0], [0], [1], [0, 0, 1, 1], [], []>} : vector<20x192xf32>, vector<192x10xf32>, vector<20x10xf32> -> vector<20x10xf32>
    %270 = vector.broadcast %13 : vector<1x10xf32> to vector<20x10xf32>
    %271 = arith.addf %269, %270 : vector<20x10xf32>
    %272 = arith.addf %271, %216 : vector<20x10xf32>
    %c3_110 = arith.constant 3 : index
    %c0_111 = arith.constant 0 : index
    %c0_112 = arith.constant 0 : index
    %c0_113 = arith.constant 0 : index
    %273 = vector.load %arg4[%c3_110, %c0_111, %c0_112, %c0_113] : memref<5x1x20x10xf32, #tpu.memory_space<vmem>>, vector<1x1x20x10xf32>
    %274 = vector.shape_cast %273 : vector<1x1x20x10xf32> to vector<1x20x10xf32>
    %275 = vector.shape_cast %274 : vector<1x20x10xf32> to vector<20x10xf32>
    %cst_114 = arith.constant 0.0705508366 : f32
    %276 = vector.broadcast %cst_114 : f32 to vector<20x10xf32>
    %277 = arith.mulf %276, %272 : vector<20x10xf32>
    %278 = arith.subf %216, %277 : vector<20x10xf32>
    %cst_115 = arith.constant 1.00254714 : f32
    %279 = vector.broadcast %cst_115 : f32 to vector<20x10xf32>
    %280 = arith.mulf %279, %278 : vector<20x10xf32>
    %cst_116 = arith.constant 0.0712390319 : f32
    %281 = vector.broadcast %cst_116 : f32 to vector<20x10xf32>
    %282 = arith.mulf %281, %275 : vector<20x10xf32>
    %283 = arith.addf %280, %282 : vector<20x10xf32>
    %c4 = arith.constant 4 : index
    %c0_117 = arith.constant 0 : index
    %c0_118 = arith.constant 0 : index
    %284 = vector.load %arg1[%c4, %c0_117, %c0_118] : memref<5x1x32xf32, #tpu.memory_space<vmem>>, vector<1x1x32xf32>
    %285 = vector.shape_cast %284 : vector<1x1x32xf32> to vector<1x32xf32>
    %cst_119 = arith.constant dense<0.000000e+00> : vector<1x128xf32>
    %286 = tpu.matmul %285, %2, %cst_119 {dimension_numbers = #tpu.dot_dimension_numbers<[1], [0], [0], [1], [0, 0, 1, 1], [], []>} : vector<1x32xf32>, vector<32x128xf32>, vector<1x128xf32> -> vector<1x128xf32>
    %287 = arith.addf %286, %3 : vector<1x128xf32>
    %288 = math.absf %287 : vector<1x128xf32>
    %cst_120 = arith.constant 0.000000e+00 : f32
    %289 = vector.broadcast %cst_120 : f32 to vector<1x128xf32>
    %290 = arith.subf %289, %288 : vector<1x128xf32>
    %291 = math.exp %290 : vector<1x128xf32>
    %292 = math.log1p %291 : vector<1x128xf32>
    %cst_121 = arith.constant 0.000000e+00 : f32
    %293 = vector.broadcast %cst_121 : f32 to vector<1x128xf32>
    %294 = arith.maximumf %287, %293 : vector<1x128xf32>
    %295 = arith.addf %292, %294 : vector<1x128xf32>
    %296 = math.tanh %295 : vector<1x128xf32>
    %297 = arith.mulf %287, %296 : vector<1x128xf32>
    %cst_122 = arith.constant dense<0.000000e+00> : vector<1x64xf32>
    %298 = tpu.matmul %297, %4, %cst_122 {dimension_numbers = #tpu.dot_dimension_numbers<[1], [0], [0], [1], [0, 0, 1, 1], [], []>} : vector<1x128xf32>, vector<128x64xf32>, vector<1x64xf32> -> vector<1x64xf32>
    %299 = arith.addf %298, %5 : vector<1x64xf32>
    %300 = tpu.concatenate %299, %1 in 1 : vector<1x64xf32>, vector<1x64xf32> -> vector<1x128xf32>
    %cst_123 = arith.constant dense<0.000000e+00> : vector<1x64xf32>
    %301 = tpu.matmul %300, %6, %cst_123 {dimension_numbers = #tpu.dot_dimension_numbers<[1], [0], [0], [1], [0, 0, 1, 1], [], []>} : vector<1x128xf32>, vector<128x64xf32>, vector<1x64xf32> -> vector<1x64xf32>
    %302 = arith.addf %301, %7 : vector<1x64xf32>
    %cst_124 = arith.constant dense<0.000000e+00> : vector<1x64xf32>
    %303 = tpu.matmul %300, %8, %cst_124 {dimension_numbers = #tpu.dot_dimension_numbers<[1], [0], [0], [1], [0, 0, 1, 1], [], []>} : vector<1x128xf32>, vector<128x64xf32>, vector<1x64xf32> -> vector<1x64xf32>
    %304 = arith.addf %303, %9 : vector<1x64xf32>
    %cst_125 = arith.constant 0.000000e+00 : f32
    %305 = vector.broadcast %cst_125 : f32 to vector<1x10xf32>
    %306 = vector.extract_strided_slice %283 {offsets = [0, 0], sizes = [19, 10], strides = [1, 1]} : vector<20x10xf32> to vector<19x10xf32>
    %307 = tpu.concatenate %305, %306 in 0 : vector<1x10xf32>, vector<19x10xf32> -> vector<20x10xf32>
    %308 = vector.extract_strided_slice %283 {offsets = [1, 0], sizes = [19, 10], strides = [1, 1]} : vector<20x10xf32> to vector<19x10xf32>
    %309 = tpu.concatenate %308, %305 in 0 : vector<19x10xf32>, vector<1x10xf32> -> vector<20x10xf32>
    %310 = tpu.concatenate %307, %283, %309 in 1 : vector<20x10xf32>, vector<20x10xf32>, vector<20x10xf32> -> vector<20x30xf32>
    %cst_126 = arith.constant dense<0.000000e+00> : vector<20x64xf32>
    %311 = tpu.matmul %310, %10, %cst_126 {dimension_numbers = #tpu.dot_dimension_numbers<[1], [0], [0], [1], [0, 0, 1, 1], [], []>} : vector<20x30xf32>, vector<30x64xf32>, vector<20x64xf32> -> vector<20x64xf32>
    %312 = vector.broadcast %11 : vector<1x64xf32> to vector<20x64xf32>
    %313 = arith.addf %311, %312 : vector<20x64xf32>
    %cst_127 = arith.constant 1.000000e+00 : f32
    %314 = vector.broadcast %cst_127 : f32 to vector<1x64xf32>
    %315 = arith.addf %314, %302 : vector<1x64xf32>
    %316 = vector.broadcast %315 : vector<1x64xf32> to vector<20x64xf32>
    %317 = arith.mulf %313, %316 : vector<20x64xf32>
    %318 = vector.broadcast %304 : vector<1x64xf32> to vector<20x64xf32>
    %319 = arith.addf %317, %318 : vector<20x64xf32>
    %320 = math.absf %319 : vector<20x64xf32>
    %cst_128 = arith.constant 0.000000e+00 : f32
    %321 = vector.broadcast %cst_128 : f32 to vector<20x64xf32>
    %322 = arith.subf %321, %320 : vector<20x64xf32>
    %323 = math.exp %322 : vector<20x64xf32>
    %324 = math.log1p %323 : vector<20x64xf32>
    %cst_129 = arith.constant 0.000000e+00 : f32
    %325 = vector.broadcast %cst_129 : f32 to vector<20x64xf32>
    %326 = arith.maximumf %319, %325 : vector<20x64xf32>
    %327 = arith.addf %324, %326 : vector<20x64xf32>
    %328 = math.tanh %327 : vector<20x64xf32>
    %329 = arith.mulf %319, %328 : vector<20x64xf32>
    %cst_130 = arith.constant 0.000000e+00 : f32
    %330 = vector.broadcast %cst_130 : f32 to vector<1x64xf32>
    %331 = vector.extract_strided_slice %329 {offsets = [0, 0], sizes = [19, 64], strides = [1, 1]} : vector<20x64xf32> to vector<19x64xf32>
    %332 = tpu.concatenate %330, %331 in 0 : vector<1x64xf32>, vector<19x64xf32> -> vector<20x64xf32>
    %333 = vector.extract_strided_slice %329 {offsets = [1, 0], sizes = [19, 64], strides = [1, 1]} : vector<20x64xf32> to vector<19x64xf32>
    %334 = tpu.concatenate %333, %330 in 0 : vector<19x64xf32>, vector<1x64xf32> -> vector<20x64xf32>
    %335 = tpu.concatenate %332, %329, %334 in 1 : vector<20x64xf32>, vector<20x64xf32>, vector<20x64xf32> -> vector<20x192xf32>
    %cst_131 = arith.constant dense<0.000000e+00> : vector<20x10xf32>
    %336 = tpu.matmul %335, %12, %cst_131 {dimension_numbers = #tpu.dot_dimension_numbers<[1], [0], [0], [1], [0, 0, 1, 1], [], []>} : vector<20x192xf32>, vector<192x10xf32>, vector<20x10xf32> -> vector<20x10xf32>
    %337 = vector.broadcast %13 : vector<1x10xf32> to vector<20x10xf32>
    %338 = arith.addf %336, %337 : vector<20x10xf32>
    %339 = arith.addf %338, %283 : vector<20x10xf32>
    %c4_132 = arith.constant 4 : index
    %c0_133 = arith.constant 0 : index
    %c0_134 = arith.constant 0 : index
    %c0_135 = arith.constant 0 : index
    %340 = vector.load %arg4[%c4_132, %c0_133, %c0_134, %c0_135] : memref<5x1x20x10xf32, #tpu.memory_space<vmem>>, vector<1x1x20x10xf32>
    %341 = vector.shape_cast %340 : vector<1x1x20x10xf32> to vector<1x20x10xf32>
    %342 = vector.shape_cast %341 : vector<1x20x10xf32> to vector<20x10xf32>
    %cst_136 = arith.constant 0.00999999977 : f32
    %343 = vector.broadcast %cst_136 : f32 to vector<20x10xf32>
    %344 = arith.mulf %343, %339 : vector<20x10xf32>
    %345 = arith.subf %283, %344 : vector<20x10xf32>
    %cst_137 = arith.constant 1.000050e+00 : f32
    %346 = vector.broadcast %cst_137 : f32 to vector<20x10xf32>
    %347 = arith.mulf %346, %345 : vector<20x10xf32>
    %cst_138 = arith.constant 0.000000e+00 : f32
    %348 = vector.broadcast %cst_138 : f32 to vector<20x10xf32>
    %349 = arith.mulf %348, %342 : vector<20x10xf32>
    %350 = arith.addf %347, %349 : vector<20x10xf32>
    %c0_139 = arith.constant 0 : index
    %c0_140 = arith.constant 0 : index
    %c0_141 = arith.constant 0 : index
    %351 = vector.load %arg17[%c0_139, %c0_140, %c0_141] : memref<1x20x10xf32, #tpu.memory_space<vmem>>, vector<1x20x10xf32>
    %352 = vector.shape_cast %351 : vector<1x20x10xf32> to vector<20x10xf32>
    %353 = vector.shape_cast %350 : vector<20x10xf32> to vector<1x20x10xf32>
    tpu.vector_store %arg17[%c0_139, %c0_140, %c0_141], %353 {strides = array<i32>} : memref<1x20x10xf32, #tpu.memory_space<vmem>>, vector<1x20x10xf32>,
    return
  }
  func.func @transform_0(%arg0: i32) -> (i32, i32, i32) {
    %c0_i32 = arith.constant 0 : i32
    %c0_i32_0 = arith.constant 0 : i32
    %c0_i32_1 = arith.constant 0 : i32
    %c0_i32_2 = arith.constant 0 : i32
    return %c0_i32, %c0_i32_0, %c0_i32_1 : i32, i32, i32
  }
  func.func @transform_1(%arg0: i32) -> (i32, i32, i32) {
    %c0_i32 = arith.constant 0 : i32
    %c0_i32_0 = arith.constant 0 : i32
    %c0_i32_1 = arith.constant 0 : i32
    return %arg0, %c0_i32, %c0_i32_0 : i32, i32, i32
  }
  func.func @transform_2(%arg0: i32) -> (i32, i32, i32) {
    %c0_i32 = arith.constant 0 : i32
    %c0_i32_0 = arith.constant 0 : i32
    %c0_i32_1 = arith.constant 0 : i32
    return %arg0, %c0_i32, %c0_i32_0 : i32, i32, i32
  }
  func.func @transform_3(%arg0: i32) -> (i32, i32, i32, i32) {
    %c0_i32 = arith.constant 0 : i32
    %c0_i32_0 = arith.constant 0 : i32
    %c0_i32_1 = arith.constant 0 : i32
    %c0_i32_2 = arith.constant 0 : i32
    return %c0_i32, %arg0, %c0_i32_0, %c0_i32_1 : i32, i32, i32, i32
  }
  func.func @transform_4(%arg0: i32) -> (i32, i32) {
    %c0_i32 = arith.constant 0 : i32
    %c0_i32_0 = arith.constant 0 : i32
    %c0_i32_1 = arith.constant 0 : i32
    return %c0_i32, %c0_i32_0 : i32, i32
  }
  func.func @transform_5(%arg0: i32) -> (i32, i32) {
    %c0_i32 = arith.constant 0 : i32
    %c0_i32_0 = arith.constant 0 : i32
    %c0_i32_1 = arith.constant 0 : i32
    return %c0_i32, %c0_i32_0 : i32, i32
  }
  func.func @transform_6(%arg0: i32) -> (i32, i32) {
    %c0_i32 = arith.constant 0 : i32
    %c0_i32_0 = arith.constant 0 : i32
    %c0_i32_1 = arith.constant 0 : i32
    return %c0_i32, %c0_i32_0 : i32, i32
  }
  func.func @transform_7(%arg0: i32) -> (i32, i32) {
    %c0_i32 = arith.constant 0 : i32
    %c0_i32_0 = arith.constant 0 : i32
    %c0_i32_1 = arith.constant 0 : i32
    return %c0_i32, %c0_i32_0 : i32, i32
  }
  func.func @transform_8(%arg0: i32) -> (i32, i32) {
    %c0_i32 = arith.constant 0 : i32
    %c0_i32_0 = arith.constant 0 : i32
    %c0_i32_1 = arith.constant 0 : i32
    return %c0_i32, %c0_i32_0 : i32, i32
  }
  func.func @transform_9(%arg0: i32) -> (i32, i32) {
    %c0_i32 = arith.constant 0 : i32
    %c0_i32_0 = arith.constant 0 : i32
    %c0_i32_1 = arith.constant 0 : i32
    return %c0_i32, %c0_i32_0 : i32, i32
  }
  func.func @transform_10(%arg0: i32) -> (i32, i32) {
    %c0_i32 = arith.constant 0 : i32
    %c0_i32_0 = arith.constant 0 : i32
    %c0_i32_1 = arith.constant 0 : i32
    return %c0_i32, %c0_i32_0 : i32, i32
  }
  func.func @transform_11(%arg0: i32) -> (i32, i32) {
    %c0_i32 = arith.constant 0 : i32
    %c0_i32_0 = arith.constant 0 : i32
    %c0_i32_1 = arith.constant 0 : i32
    return %c0_i32, %c0_i32_0 : i32, i32
  }
  func.func @transform_12(%arg0: i32) -> (i32, i32) {
    %c0_i32 = arith.constant 0 : i32
    %c0_i32_0 = arith.constant 0 : i32
    %c0_i32_1 = arith.constant 0 : i32
    return %c0_i32, %c0_i32_0 : i32, i32
  }
  func.func @transform_13(%arg0: i32) -> (i32, i32) {
    %c0_i32 = arith.constant 0 : i32
    %c0_i32_0 = arith.constant 0 : i32
    %c0_i32_1 = arith.constant 0 : i32
    return %c0_i32, %c0_i32_0 : i32, i32
  }
  func.func @transform_14(%arg0: i32) -> (i32, i32) {
    %c0_i32 = arith.constant 0 : i32
    %c0_i32_0 = arith.constant 0 : i32
    %c0_i32_1 = arith.constant 0 : i32
    return %c0_i32, %c0_i32_0 : i32, i32
  }
  func.func @transform_15(%arg0: i32) -> (i32, i32) {
    %c0_i32 = arith.constant 0 : i32
    %c0_i32_0 = arith.constant 0 : i32
    %c0_i32_1 = arith.constant 0 : i32
    return %c0_i32, %c0_i32_0 : i32, i32
  }
  func.func @transform_16(%arg0: i32) -> (i32, i32, i32) {
    %c0_i32 = arith.constant 0 : i32
    %c0_i32_0 = arith.constant 0 : i32
    %c0_i32_1 = arith.constant 0 : i32
    return %arg0, %c0_i32, %c0_i32_0 : i32, i32, i32
  }
}

</mosaic_0001>

<llo_original>
// kernel: dp_forward.3
$region0: #{dp_forward.3}
  #allocation0 [shape = 'u32[]', space=smem, size = 0x4, offset = 0x4, fixed_abs, tag = 'smem constant byte address 0x4 - core index']
  #allocation1 [shape = 'u32[144,128]{1,0:T(1,128)}', space=vmem, size = 0x12000, scoped, tag = 'internal scratch']
  %s0 = inlined_call_operand.vmem [shape: f32[2,256,147], index: 0, kind: input, shape index: {}]
  %s1 = inlined_call_operand.vmem [shape: f32[147,32], index: 1, kind: input, shape index: {}]
  %s2 = inlined_call_operand.vmem [shape: f32[1,32], index: 2, kind: input, shape index: {}]
  %s3 = inlined_call_operand.vmem [shape: f32[1,32], index: 3, kind: input, shape index: {}]
  %s4 = inlined_call_operand.vmem [shape: f32[1,32], index: 4, kind: input, shape index: {}]
  %s5 = inlined_call_operand.vmem [shape: f32[32,32], index: 5, kind: input, shape index: {}]
  %s6 = inlined_call_operand.vmem [shape: f32[2,256,32], index: 6, kind: output, shape index: {}]
  %s7 = sld [smem:[#allocation0]]
  $region57: #{dp_forward.3} parent=0
    _
  %s9 = ssub.s32 1, %s7
  %s10 = scalar_select 0, %s9, %s7
  loop: start=0, step=1, limit=4
  $region2: #{dp_forward.3} parent=0 // loop_pre_header
    _
  $region3: #{dp_forward.3} parent=0 // loop_header
    %s12 = sphi 0, %s16
    %p13 = scmp.ge.s32.totalorder %s12, 4
    %s22 = sphi 0, %s24
    %s25 = sphi 0, %s22
    %s26 = sphi 0, %s25
    %s42 = sphi 0, %s26
    %s46 = sphi 0, %s46
    %s48 = sphi 0, %s46
    %s49 = sphi 0, %s48
    %s63 = sphi 0, %s49
    %s67 = sphi 0, %s67
    %s69 = sphi 0, %s67
    %s70 = sphi 0, %s69
    %s84 = sphi 0, %s70
    %s88 = sphi 0, %s88
    %s90 = sphi 0, %s88
    %s91 = sphi 0, %s90
    %s105 = sphi 0, %s91
    %s109 = sphi 0, %s109
    %s111 = sphi 0, %s109
    %s112 = sphi 0, %s111
    %s126 = sphi 0, %s112
    %s130 = sphi 0, %s130
    %s132 = sphi 0, %s130
    %s133 = sphi 0, %s132
    %s147 = sphi 0, %s133
    %s153 = sphi 0, %s155
    %s156 = sphi 0, %s153
    %s157 = sphi 0, %s156
    %s173 = sphi 0, %s157
  $region4: #{dp_forward.3} parent=0 // loop_header_branch
    %15 = sbr.rel (%p13) target = $region8
  $region5: #{dp_forward.3} parent=0 // loop_body
    %s17 = ssub.s32 %s12, 1
    %s18 = ssub.s32 %s12, 2
    %s19 = sadd.s32 %s12, 1
    %s20 = ssub.s32 %s12, %s19
    %p21 = scmp.eq.s32.totalorder %s20, 0
    %s23 = sadd.s32 %s22, 1
    %s24 = scalar_select %p21, %s22, %s23
    %p27 = pneg %p21
    %p28 = scmp.eq.s32.totalorder %s12, 1
    %p29 = por %p27, %p28
    %p30 = scmp.ne.s32.totalorder %s22, %s25
    %p31 = scmp.eq.s32.totalorder %s12, 0
    %p32 = por %p30, %p31
    %p33 = scmp.ne.s32.totalorder %s22, %s25
    %p34 = scmp.eq.s32.totalorder %s17, 1
    %p35 = por %p33, %p34
    %p36 = scmp.ne.s32.totalorder %s25, %s26
    %p37 = scmp.eq.s32.totalorder %s17, 0
    %p38 = por %p36, %p37
    %p39 = scmp.ne.s32.totalorder %s25, %s26
    %p40 = scmp.eq.s32.totalorder %s18, 1
    %p41 = por %p39, %p40
    %p43 = scmp.ne.s32.totalorder %s26, %s42
    %p44 = scmp.eq.s32.totalorder %s18, 0
    %p45 = por %p43, %p44
    %s47 = sadd.s32 %s46, 1
    %p50 = scmp.eq.s32.totalorder %s12, 1
    %p51 = scmp.ne.s32.totalorder %s46, %s48
    %p52 = scmp.eq.s32.totalorder %s12, 0
    %p53 = por %p51, %p52
    %p54 = scmp.ne.s32.totalorder %s46, %s48
    %p55 = scmp.eq.s32.totalorder %s17, 1
    %p56 = por %p54, %p55
    %p57 = scmp.ne.s32.totalorder %s48, %s49
    %p58 = scmp.eq.s32.totalorder %s17, 0
    %p59 = por %p57, %p58
    %p60 = scmp.ne.s32.totalorder %s48, %s49
    %p61 = scmp.eq.s32.totalorder %s18, 1
    %p62 = por %p60, %p61
    %p64 = scmp.ne.s32.totalorder %s49, %s63
    %p65 = scmp.eq.s32.totalorder %s18, 0
    %p66 = por %p64, %p65
    %s68 = sadd.s32 %s67, 1
    %p71 = scmp.eq.s32.totalorder %s12, 1
    %p72 = scmp.ne.s32.totalorder %s67, %s69
    %p73 = scmp.eq.s32.totalorder %s12, 0
    %p74 = por %p72, %p73
    %p75 = scmp.ne.s32.totalorder %s67, %s69
    %p76 = scmp.eq.s32.totalorder %s17, 1
    %p77 = por %p75, %p76
    %p78 = scmp.ne.s32.totalorder %s69, %s70
    %p79 = scmp.eq.s32.totalorder %s17, 0
    %p80 = por %p78, %p79
    %p81 = scmp.ne.s32.totalorder %s69, %s70
    %p82 = scmp.eq.s32.totalorder %s18, 1
    %p83 = por %p81, %p82
    %p85 = scmp.ne.s32.totalorder %s70, %s84
    %p86 = scmp.eq.s32.totalorder %s18, 0
    %p87 = por %p85, %p86
    %s89 = sadd.s32 %s88, 1
    %p92 = scmp.eq.s32.totalorder %s12, 1
    %p93 = scmp.ne.s32.totalorder %s88, %s90
    %p94 = scmp.eq.s32.totalorder %s12, 0
    %p95 = por %p93, %p94
    %p96 = scmp.ne.s32.totalorder %s88, %s90
    %p97 = scmp.eq.s32.totalorder %s17, 1
    %p98 = por %p96, %p97
    %p99 = scmp.ne.s32.totalorder %s90, %s91
    %p100 = scmp.eq.s32.totalorder %s17, 0
    %p101 = por %p99, %p100
    %p102 = scmp.ne.s32.totalorder %s90, %s91
    %p103 = scmp.eq.s32.totalorder %s18, 1
    %p104 = por %p102, %p103
    %p106 = scmp.ne.s32.totalorder %s91, %s105
    %p107 = scmp.eq.s32.totalorder %s18, 0
    %p108 = por %p106, %p107
    %s110 = sadd.s32 %s109, 1
    %p113 = scmp.eq.s32.totalorder %s12, 1
    %p114 = scmp.ne.s32.totalorder %s109, %s111
    %p115 = scmp.eq.s32.totalorder %s12, 0
    %p116 = por %p114, %p115
    %p117 = scmp.ne.s32.totalorder %s109, %s111
    %p118 = scmp.eq.s32.totalorder %s17, 1
    %p119 = por %p117, %p118
    %p120 = scmp.ne.s32.totalorder %s111, %s112
    %p121 = scmp.eq.s32.totalorder %s17, 0
    %p122 = por %p120, %p121
    %p123 = scmp.ne.s32.totalorder %s111, %s112
    %p124 = scmp.eq.s32.totalorder %s18, 1
    %p125 = por %p123, %p124
    %p127 = scmp.ne.s32.totalorder %s112, %s126
    %p128 = scmp.eq.s32.totalorder %s18, 0
    %p129 = por %p127, %p128
    %s131 = sadd.s32 %s130, 1
    %p134 = scmp.eq.s32.totalorder %s12, 1
    %p135 = scmp.ne.s32.totalorder %s130, %s132
    %p136 = scmp.eq.s32.totalorder %s12, 0
    %p137 = por %p135, %p136
    %p138 = scmp.ne.s32.totalorder %s130, %s132
    %p139 = scmp.eq.s32.totalorder %s17, 1
    %p140 = por %p138, %p139
    %p141 = scmp.ne.s32.totalorder %s132, %s133
    %p142 = scmp.eq.s32.totalorder %s17, 0
    %p143 = por %p141, %p142
    %p144 = scmp.ne.s32.totalorder %s132, %s133
    %p145 = scmp.eq.s32.totalorder %s18, 1
    %p146 = por %p144, %p145
    %p148 = scmp.ne.s32.totalorder %s133, %s147
    %p149 = scmp.eq.s32.totalorder %s18, 0
    %p150 = por %p148, %p149
    %s151 = ssub.s32 %s12, %s19
    %p152 = scmp.eq.s32.totalorder %s151, 0
    %s154 = sadd.s32 %s153, 1
    %s155 = scalar_select %p152, %s153, %s154
    %p158 = pneg %p152
    %p159 = scmp.eq.s32.totalorder %s12, 1
    %p160 = por %p158, %p159
    %p161 = scmp.ne.s32.totalorder %s153, %s156
    %p162 = scmp.eq.s32.totalorder %s12, 0
    %p163 = por %p161, %p162
    %p164 = scmp.ne.s32.totalorder %s153, %s156
    %p165 = scmp.eq.s32.totalorder %s17, 1
    %p166 = por %p164, %p165
    %p167 = scmp.ne.s32.totalorder %s156, %s157
    %p168 = scmp.eq.s32.totalorder %s17, 0
    %p169 = por %p167, %p168
    %p170 = scmp.ne.s32.totalorder %s156, %s157
    %p171 = scmp.eq.s32.totalorder %s18, 1
    %p172 = por %p170, %p171
    %p174 = scmp.ne.s32.totalorder %s157, %s173
    %p175 = scmp.eq.s32.totalorder %s18, 0
    %p176 = por %p174, %p175
    %p177 = scmp.le.s32.totalorder 1, %s12
    %p178 = scmp.lt.s32.totalorder %s12, 3
    %p179 = pnand %p177, %p178
    %p180 = pneg %p179
    // Predicated region
    $region9: #{dp_forward.3} parent=5 // pred_check
      _
    $region10: #{dp_forward.3} parent=5 // pred_check_branch
      %182 = sbr.rel (%p179) target = $region12
    $region11: #{dp_forward.3} parent=5 // pred_region
      %s183 = ssub.s32 %s12, 1
      // Predicated region
      $region13: #{dp_forward.3} parent=11 // pred_check
        %p184 = pneg %p59
      $region14: #{dp_forward.3} parent=11 // pred_check_branch
        %186 = sbr.rel (%p184) target = $region16
      $region15: #{dp_forward.3} parent=11 // pred_region
        _
      $region16: #{dp_forward.3} parent=11 // pred_fallthru
        _
      // Predicated region
      $region17: #{dp_forward.3} parent=11 // pred_check
        %p187 = pneg %p80
      $region18: #{dp_forward.3} parent=11 // pred_check_branch
        %189 = sbr.rel (%p187) target = $region20
      $region19: #{dp_forward.3} parent=11 // pred_region
        _
      $region20: #{dp_forward.3} parent=11 // pred_fallthru
        _
      // Predicated region
      $region21: #{dp_forward.3} parent=11 // pred_check
        %p190 = pneg %p101
      $region22: #{dp_forward.3} parent=11 // pred_check_branch
        %192 = sbr.rel (%p190) target = $region24
      $region23: #{dp_forward.3} parent=11 // pred_region
        _
      $region24: #{dp_forward.3} parent=11 // pred_fallthru
        _
      // Predicated region
      $region25: #{dp_forward.3} parent=11 // pred_check
        %p193 = pneg %p122
      $region26: #{dp_forward.3} parent=11 // pred_check_branch
        %195 = sbr.rel (%p193) target = $region28
      $region27: #{dp_forward.3} parent=11 // pred_region
        _
      $region28: #{dp_forward.3} parent=11 // pred_fallthru
        _
      // Predicated region
      $region29: #{dp_forward.3} parent=11 // pred_check
        %p196 = pneg %p143
      $region30: #{dp_forward.3} parent=11 // pred_check_branch
        %198 = sbr.rel (%p196) target = $region32
      $region31: #{dp_forward.3} parent=11 // pred_region
        _
      $region32: #{dp_forward.3} parent=11 // pred_fallthru
        _
    $region12: #{dp_forward.3} parent=5 // pred_fallthru
      _
    %p199 = scmp.lt.s32.totalorder %s12, 2
    // Predicated region
    $region33: #{dp_forward.3} parent=5 // pred_check
      %p200 = pneg %p199
    $region34: #{dp_forward.3} parent=5 // pred_check_branch
      %202 = sbr.rel (%p200) target = $region36
    $region35: #{dp_forward.3} parent=5 // pred_region
      // Predicated region
      $region37: #{dp_forward.3} parent=35 // pred_check
        %p203 = pneg %p32
      $region38: #{dp_forward.3} parent=35 // pred_check_branch
        %205 = sbr.rel (%p203) target = $region40
      $region39: #{dp_forward.3} parent=35 // pred_region
        %p206 = scmp.lt.s32.totalorder %s12, 1
        %s207 = scalar_select %p206, %s12, 1
        %s208 = smul.addr %s207, 64
        %s209 = smul.addr %s208, 8
        %s210 = scalar_lea.vmem %s0, %s209
      $region40: #{dp_forward.3} parent=35 // pred_fallthru
        _
    $region36: #{dp_forward.3} parent=5 // pred_fallthru
      _
    %p211 = scmp.le.s32.totalorder 1, %s12
    %p212 = scmp.lt.s32.totalorder %s12, 3
    %p213 = pnand %p211, %p212
    %p214 = pneg %p213
    // Predicated region
    $region41: #{dp_forward.3} parent=5 // pred_check
      _
    $region42: #{dp_forward.3} parent=5 // pred_check_branch
      %216 = sbr.rel (%p213) target = $region44
    $region43: #{dp_forward.3} parent=5 // pred_region
      %s217 = ssub.s32 %s12, 1
      %p218 = scmp.lt.s32.totalorder %s17, 1
      %s219 = scalar_select %p218, %s17, 1
      %s220 = smul.addr %s219, 64
      %s221 = smul.addr %s220, 8
      %s222 = scalar_lea.vmem %s0, %s221
      %p223 = pneg %p38
      %p224 = pneg %p35
      %p225 = pneg %p59
      %p226 = pneg %p56
      %p227 = pneg %p80
      %p228 = pneg %p77
      %p229 = pneg %p101
      %p230 = pneg %p98
      %p231 = pneg %p122
      %p232 = pneg %p119
      %p233 = pneg %p143
      %p234 = pneg %p140
      %p235 = pneg %p169
      %p236 = pneg %p166
      %p237 = scmp.lt.s32.totalorder %s17, 1
      %s238 = scalar_select %p237, %s17, 1
      %s239 = smul.addr %s238, 32
      %s240 = smul.addr %s239, 8
      %s241 = scalar_lea.vmem %s6, %s240
      %p242 = scmp.lt.s32.totalorder %s17, 1
      %s243 = scalar_select %p242, %s17, 1
      %s244 = smul.addr %s243, 64
      %s245 = smul.addr %s244, 8
      %s246 = scalar_lea.vmem %s0, %s245
      %p247 = scmp.lt.s32.totalorder %s17, 1
      %s248 = scalar_select %p247, %s17, 1
      %s249 = smul.addr %s248, 32
      %s250 = smul.addr %s249, 8
      %s251 = scalar_lea.vmem %s6, %s250
      %v252 = vld [vmem:[%s246] sm:$0xff]
      %v253 = vld [vmem:[%s246 + $0x8] sm:$0xff]
      %v254 = vld [vmem:[%s246 + $0x10] sm:$0xff]
      %v255 = vld [vmem:[%s246 + $0x18] sm:$0xff]
      %v256 = vld [vmem:[%s246 + $0x20] sm:$0xff]
      %v257 = vld [vmem:[%s246 + $0x28] sm:$0xff]
      %v258 = vld [vmem:[%s246 + $0x30] sm:$0xff]
      %v259 = vld [vmem:[%s246 + $0x38] sm:$0xff]
      %v260 = vld [vmem:[%s246 + $0x40] sm:$0xff]
      %v261 = vld [vmem:[%s246 + $0x48] sm:$0xff]
      %v262 = vld [vmem:[%s246 + $0x50] sm:$0xff]
      %v263 = vld [vmem:[%s246 + $0x58] sm:$0xff]
      %v264 = vld [vmem:[%s246 + $0x60] sm:$0xff]
      %v265 = vld [vmem:[%s246 + $0x68] sm:$0xff]
      %v266 = vld [vmem:[%s246 + $0x70] sm:$0xff]
      %v267 = vld [vmem:[%s246 + $0x78] sm:$0xff]
      %v268 = vld [vmem:[%s246 + $0x80] sm:$0xff]
      %v269 = vld [vmem:[%s246 + $0x88] sm:$0xff]
      %v270 = vld [vmem:[%s246 + $0x90] sm:$0xff]
      %v271 = vld [vmem:[%s246 + $0x98] sm:$0xff]
      %v272 = vld [vmem:[%s246 + $0xa0] sm:$0xff]
      %v273 = vld [vmem:[%s246 + $0xa8] sm:$0xff]
      %v274 = vld [vmem:[%s246 + $0xb0] sm:$0xff]
      %v275 = vld [vmem:[%s246 + $0xb8] sm:$0xff]
      %v276 = vld [vmem:[%s246 + $0xc0] sm:$0xff]
      %v277 = vld [vmem:[%s246 + $0xc8] sm:$0xff]
      %v278 = vld [vmem:[%s246 + $0xd0] sm:$0xff]
      %v279 = vld [vmem:[%s246 + $0xd8] sm:$0xff]
      %v280 = vld [vmem:[%s246 + $0xe0] sm:$0xff]
      %v281 = vld [vmem:[%s246 + $0xe8] sm:$0xff]
      %v282 = vld [vmem:[%s246 + $0xf0] sm:$0xff]
      %v283 = vld [vmem:[%s246 + $0xf8] sm:$0xff]
      %v284 = vld [vmem:[%s246 + $0x100] sm:$0xff]
      %v285 = vld [vmem:[%s246 + $0x108] sm:$0xff]
      %v286 = vld [vmem:[%s246 + $0x110] sm:$0xff]
      %v287 = vld [vmem:[%s246 + $0x118] sm:$0xff]
      %v288 = vld [vmem:[%s246 + $0x120] sm:$0xff]
      %v289 = vld [vmem:[%s246 + $0x128] sm:$0xff]
      %v290 = vld [vmem:[%s246 + $0x130] sm:$0xff]
      %v291 = vld [vmem:[%s246 + $0x138] sm:$0xff]
      %v292 = vld [vmem:[%s246 + $0x140] sm:$0xff]
      %v293 = vld [vmem:[%s246 + $0x148] sm:$0xff]
      %v294 = vld [vmem:[%s246 + $0x150] sm:$0xff]
      %v295 = vld [vmem:[%s246 + $0x158] sm:$0xff]
      %v296 = vld [vmem:[%s246 + $0x160] sm:$0xff]
      %v297 = vld [vmem:[%s246 + $0x168] sm:$0xff]
      %v298 = vld [vmem:[%s246 + $0x170] sm:$0xff]
      %v299 = vld [vmem:[%s246 + $0x178] sm:$0xff]
      %v300 = vld [vmem:[%s246 + $0x180] sm:$0xff]
      %v301 = vld [vmem:[%s246 + $0x188] sm:$0xff]
      %v302 = vld [vmem:[%s246 + $0x190] sm:$0xff]
      %v303 = vld [vmem:[%s246 + $0x198] sm:$0xff]
      %v304 = vld [vmem:[%s246 + $0x1a0] sm:$0xff]
      %v305 = vld [vmem:[%s246 + $0x1a8] sm:$0xff]
      %v306 = vld [vmem:[%s246 + $0x1b0] sm:$0xff]
      %v307 = vld [vmem:[%s246 + $0x1b8] sm:$0xff]
      %v308 = vld [vmem:[%s246 + $0x1c0] sm:$0xff]
      %v309 = vld [vmem:[%s246 + $0x1c8] sm:$0xff]
      %v310 = vld [vmem:[%s246 + $0x1d0] sm:$0xff]
      %v311 = vld [vmem:[%s246 + $0x1d8] sm:$0xff]
      %v312 = vld [vmem:[%s246 + $0x1e0] sm:$0xff]
      %v313 = vld [vmem:[%s246 + $0x1e8] sm:$0xff]
      %v314 = vld [vmem:[%s246 + $0x1f0] sm:$0xff]
      %v315 = vld [vmem:[%s246 + $0x1f8] sm:$0xff]
      %v316 = vld [vmem:[%s1] sm:$0xff]
      %v317 = vld [vmem:[%s1 + $0x8] sm:$0xff]
      %v318 = vld [vmem:[%s1 + $0x10] sm:$0xff]
      %v319 = vld [vmem:[%s1 + $0x18] sm:$0xff]
      %v320 = vld [vmem:[%s1 + $0x20] sm:$0xff]
      %v321 = vld [vmem:[%s1 + $0x28] sm:$0xff]
      %v322 = vld [vmem:[%s1 + $0x30] sm:$0xff]
      %v323 = vld [vmem:[%s1 + $0x38] sm:$0xff]
      %v324 = vld [vmem:[%s1 + $0x40] sm:$0xff]
      %v325 = vld [vmem:[%s1 + $0x48] sm:$0xff]
      %v326 = vld [vmem:[%s1 + $0x50] sm:$0xff]
      %v327 = vld [vmem:[%s1 + $0x58] sm:$0xff]
      %v328 = vld [vmem:[%s1 + $0x60] sm:$0xff]
      %v329 = vld [vmem:[%s1 + $0x68] sm:$0xff]
      %v330 = vld [vmem:[%s1 + $0x70] sm:$0xff]
      %v331 = vld [vmem:[%s1 + $0x78] sm:$0xff]
      %v332 = vld [vmem:[%s1 + $0x80] sm:$0xff]
      %v333 = vld [vmem:[%s1 + $0x88] sm:$0xff]
      %v334 = vld [vmem:[%s1 + $0x90] sm:$0x7]
      %v335 = vld [vmem:[%s2] sm:$0x1]
      %v337 = vlaneseq
      %v338 = vshrl.u32 %v337, 7
      %v339 = vsub.s32 0, %v338
      %v340 = vrot.slane %v335, %v339
      %vm342 = vcmask 154624
      %v344 = vsel %vm342, %v253, 0
      %v347 = vsel %vm342, %v255, 0
      %v350 = vsel %vm342, %v257, 0
      %v353 = vsel %vm342, %v259, 0
      %v356 = vsel %vm342, %v261, 0
      %v359 = vsel %vm342, %v263, 0
      %v362 = vsel %vm342, %v265, 0
      %v365 = vsel %vm342, %v267, 0
      %v368 = vsel %vm342, %v269, 0
      %v371 = vsel %vm342, %v271, 0
      %v374 = vsel %vm342, %v273, 0
      %v377 = vsel %vm342, %v275, 0
      %v380 = vsel %vm342, %v277, 0
      %v383 = vsel %vm342, %v279, 0
      %v386 = vsel %vm342, %v281, 0
      %v389 = vsel %vm342, %v283, 0
      %v392 = vsel %vm342, %v285, 0
      %v395 = vsel %vm342, %v287, 0
      %v398 = vsel %vm342, %v289, 0
      %v401 = vsel %vm342, %v291, 0
      %v404 = vsel %vm342, %v293, 0
      %v407 = vsel %vm342, %v295, 0
      %v410 = vsel %vm342, %v297, 0
      %v413 = vsel %vm342, %v299, 0
      %v416 = vsel %vm342, %v301, 0
      %v419 = vsel %vm342, %v303, 0
      %v422 = vsel %vm342, %v305, 0
      %v425 = vsel %vm342, %v307, 0
      %v428 = vsel %vm342, %v309, 0
      %v431 = vsel %vm342, %v311, 0
      %v434 = vsel %vm342, %v313, 0
      %v437 = vsel %vm342, %v315, 0
      %vm439 = vcmask 1042432
      %v441 = vsel %vm439, %v334, 0
      %443 = vmatprep.subr.mxu0 0.0
      %444 = vmatpush1.msra.mxu0 %v331
      %445 = vmatprep.subr.mxu0 0.0
      %446 = vmatpush1.msra.mxu0 %v330
      %447 = vmatprep.subr.mxu0 0.0
      %448 = vmatpush1.msra.mxu0 %v329
      %449 = vmatprep.subr.mxu0 0.0
      %450 = vmatpush1.msra.mxu0 %v328
      %451 = vmatprep.subr.mxu0 0.0
      %452 = vmatpush1.msra.mxu0 %v327
      %453 = vmatprep.subr.mxu0 0.0
      %454 = vmatpush1.msra.mxu0 %v326
      %455 = vmatprep.subr.mxu0 0.0
      %456 = vmatpush1.msra.mxu0 %v325
      %457 = vmatprep.subr.mxu0 0.0
      %458 = vmatpush1.msra.mxu0 %v324
      %459 = vmatprep.subr.mxu0 0.0
      %460 = vmatpush1.msra.mxu0 %v323
      %461 = vmatprep.subr.mxu0 0.0
      %462 = vmatpush1.msra.mxu0 %v322
      %463 = vmatprep.subr.mxu0 0.0
      %464 = vmatpush1.msra.mxu0 %v321
      %465 = vmatprep.subr.mxu0 0.0
      %466 = vmatpush1.msra.mxu0 %v320
      %467 = vmatprep.subr.mxu0 0.0
      %468 = vmatpush1.msra.mxu0 %v319
      %469 = vmatprep.subr.mxu0 0.0
      %470 = vmatpush1.msra.mxu0 %v318
      %471 = vmatprep.subr.mxu0 0.0
      %472 = vmatpush1.msra.mxu0 %v317
      %473 = vmatprep.subr.mxu0 0.0
      %474 = vmatpush1.msra.mxu0 %v316
      %475 = vmatprep.subr.mxu0 0.0
      %476 = vmatpush2.msra.mxu0 0.0
      %477 = vmatprep.subr.mxu0 0.0
      %478 = vmatpush2.msra.mxu0 0.0
      %479 = vmatprep.subr.mxu0 0.0
      %480 = vmatpush2.msra.mxu0 0.0
      %481 = vmatprep.subr.mxu0 0.0
      %482 = vmatpush2.msra.mxu0 0.0
      %483 = vmatprep.subr.mxu0 0.0
      %484 = vmatpush2.msra.mxu0 0.0
      %485 = vmatprep.subr.mxu0 0.0
      %486 = vmatpush2.msra.mxu0 0.0
      %487 = vmatprep.subr.mxu0 0.0
      %488 = vmatpush2.msra.mxu0 0.0
      %489 = vmatprep.subr.mxu0 0.0
      %490 = vmatpush2.msra.mxu0 0.0
      %491 = vmatprep.subr.mxu0 0.0
      %492 = vmatpush2.msra.mxu0 0.0
      %493 = vmatprep.subr.mxu0 0.0
      %494 = vmatpush2.msra.mxu0 0.0
      %495 = vmatprep.subr.mxu0 0.0
      %496 = vmatpush2.msra.mxu0 0.0
      %497 = vmatprep.subr.mxu0 0.0
      %498 = vmatpush2.msra.mxu0 0.0
      %499 = vmatprep.subr.mxu0 0.0
      %500 = vmatpush2.msra.mxu0 0.0
      %501 = vmatprep.subr.mxu0 0.0
      %502 = vmatpush2.msra.mxu0 %v441
      %503 = vmatprep.subr.mxu0 0.0
      %504 = vmatpush2.msra.mxu0 %v333
      %505 = vmatprep.subr.mxu0 0.0
      %506 = vmatpush2.msra.mxu0 %v332
      %507 = vmatprep.mubr.f32.mxu0 %v344
      %508 = vmatmul.mubr.f32.gmra.mxu0 %v252
      %v509 = vpop.f32.mrf.mxu0
      %v510 = vadd.f32 %v340, %v509
      %v511 = vpop.f32.mrf.mxu0
      %512 = vmatprep.mubr.f32.mxu0 %v347
      %513 = vmatmul.mubr.f32.gmra.mxu0 %v254
      %v514 = vpop.f32.mrf.mxu0
      %v515 = vadd.f32 %v340, %v514
      %v516 = vpop.f32.mrf.mxu0
      %517 = vmatprep.mubr.f32.mxu0 %v350
      %518 = vmatmul.mubr.f32.gmra.mxu0 %v256
      %v519 = vpop.f32.mrf.mxu0
      %v520 = vadd.f32 %v340, %v519
      %v521 = vpop.f32.mrf.mxu0
      %522 = vmatprep.mubr.f32.mxu0 %v353
      %523 = vmatmul.mubr.f32.gmra.mxu0 %v258
      %v524 = vpop.f32.mrf.mxu0
      %v525 = vadd.f32 %v340, %v524
      %v526 = vpop.f32.mrf.mxu0
      %527 = vmatprep.mubr.f32.mxu0 %v356
      %528 = vmatmul.mubr.f32.gmra.mxu0 %v260
      %v529 = vpop.f32.mrf.mxu0
      %v530 = vadd.f32 %v340, %v529
      %v531 = vpop.f32.mrf.mxu0
      %532 = vmatprep.mubr.f32.mxu0 %v359
      %533 = vmatmul.mubr.f32.gmra.mxu0 %v262
      %v534 = vpop.f32.mrf.mxu0
      %v535 = vadd.f32 %v340, %v534
      %v536 = vpop.f32.mrf.mxu0
      %537 = vmatprep.mubr.f32.mxu0 %v362
      %538 = vmatmul.mubr.f32.gmra.mxu0 %v264
      %v539 = vpop.f32.mrf.mxu0
      %v540 = vadd.f32 %v340, %v539
      %v541 = vpop.f32.mrf.mxu0
      %542 = vmatprep.mubr.f32.mxu0 %v365
      %543 = vmatmul.mubr.f32.gmra.mxu0 %v266
      %v544 = vpop.f32.mrf.mxu0
      %v545 = vadd.f32 %v340, %v544
      %v546 = vpop.f32.mrf.mxu0
      %547 = vmatprep.mubr.f32.mxu0 %v368
      %548 = vmatmul.mubr.f32.gmra.mxu0 %v268
      %v549 = vpop.f32.mrf.mxu0
      %v550 = vadd.f32 %v340, %v549
      %v551 = vpop.f32.mrf.mxu0
      %552 = vmatprep.mubr.f32.mxu0 %v371
      %553 = vmatmul.mubr.f32.gmra.mxu0 %v270
      %v554 = vpop.f32.mrf.mxu0
      %v555 = vadd.f32 %v340, %v554
      %v556 = vpop.f32.mrf.mxu0
      %557 = vmatprep.mubr.f32.mxu0 %v374
      %558 = vmatmul.mubr.f32.gmra.mxu0 %v272
      %v559 = vpop.f32.mrf.mxu0
      %v560 = vadd.f32 %v340, %v559
      %v561 = vpop.f32.mrf.mxu0
      %562 = vmatprep.mubr.f32.mxu0 %v377
      %563 = vmatmul.mubr.f32.gmra.mxu0 %v274
      %v564 = vpop.f32.mrf.mxu0
      %v565 = vadd.f32 %v340, %v564
      %v566 = vpop.f32.mrf.mxu0
      %567 = vmatprep.mubr.f32.mxu0 %v380
      %568 = vmatmul.mubr.f32.gmra.mxu0 %v276
      %v569 = vpop.f32.mrf.mxu0
      %v570 = vadd.f32 %v340, %v569
      %v571 = vpop.f32.mrf.mxu0
      %572 = vmatprep.mubr.f32.mxu0 %v383
      %573 = vmatmul.mubr.f32.gmra.mxu0 %v278
      %v574 = vpop.f32.mrf.mxu0
      %v575 = vadd.f32 %v340, %v574
      %v576 = vpop.f32.mrf.mxu0
      %577 = vmatprep.mubr.f32.mxu0 %v386
      %578 = vmatmul.mubr.f32.gmra.mxu0 %v280
      %v579 = vpop.f32.mrf.mxu0
      %v580 = vadd.f32 %v340, %v579
      %v581 = vpop.f32.mrf.mxu0
      %582 = vmatprep.mubr.f32.mxu0 %v389
      %583 = vmatmul.mubr.f32.gmra.mxu0 %v282
      %v584 = vpop.f32.mrf.mxu0
      %v585 = vadd.f32 %v340, %v584
      %v586 = vpop.f32.mrf.mxu0
      %587 = vmatprep.mubr.f32.mxu0 %v392
      %588 = vmatmul.mubr.f32.gmra.mxu0 %v284
      %v589 = vpop.f32.mrf.mxu0
      %v590 = vadd.f32 %v340, %v589
      %v591 = vpop.f32.mrf.mxu0
      %592 = vmatprep.mubr.f32.mxu0 %v395
      %593 = vmatmul.mubr.f32.gmra.mxu0 %v286
      %v594 = vpop.f32.mrf.mxu0
      %v595 = vadd.f32 %v340, %v594
      %v596 = vpop.f32.mrf.mxu0
      %597 = vmatprep.mubr.f32.mxu0 %v398
      %598 = vmatmul.mubr.f32.gmra.mxu0 %v288
      %v599 = vpop.f32.mrf.mxu0
      %v600 = vadd.f32 %v340, %v599
      %v601 = vpop.f32.mrf.mxu0
      %602 = vmatprep.mubr.f32.mxu0 %v401
      %603 = vmatmul.mubr.f32.gmra.mxu0 %v290
      %v604 = vpop.f32.mrf.mxu0
      %v605 = vadd.f32 %v340, %v604
      %v606 = vpop.f32.mrf.mxu0
      %607 = vmatprep.mubr.f32.mxu0 %v404
      %608 = vmatmul.mubr.f32.gmra.mxu0 %v292
      %v609 = vpop.f32.mrf.mxu0
      %v610 = vadd.f32 %v340, %v609
      %v611 = vpop.f32.mrf.mxu0
      %612 = vmatprep.mubr.f32.mxu0 %v407
      %613 = vmatmul.mubr.f32.gmra.mxu0 %v294
      %v614 = vpop.f32.mrf.mxu0
      %v615 = vadd.f32 %v340, %v614
      %v616 = vpop.f32.mrf.mxu0
      %617 = vmatprep.mubr.f32.mxu0 %v410
      %618 = vmatmul.mubr.f32.gmra.mxu0 %v296
      %v619 = vpop.f32.mrf.mxu0
      %v620 = vadd.f32 %v340, %v619
      %v621 = vpop.f32.mrf.mxu0
      %622 = vmatprep.mubr.f32.mxu0 %v413
      %623 = vmatmul.mubr.f32.gmra.mxu0 %v298
      %v624 = vpop.f32.mrf.mxu0
      %v625 = vadd.f32 %v340, %v624
      %v626 = vpop.f32.mrf.mxu0
      %627 = vmatprep.mubr.f32.mxu0 %v416
      %628 = vmatmul.mubr.f32.gmra.mxu0 %v300
      %v629 = vpop.f32.mrf.mxu0
      %v630 = vadd.f32 %v340, %v629
      %v631 = vpop.f32.mrf.mxu0
      %632 = vmatprep.mubr.f32.mxu0 %v419
      %633 = vmatmul.mubr.f32.gmra.mxu0 %v302
      %v634 = vpop.f32.mrf.mxu0
      %v635 = vadd.f32 %v340, %v634
      %v636 = vpop.f32.mrf.mxu0
      %637 = vmatprep.mubr.f32.mxu0 %v422
      %638 = vmatmul.mubr.f32.gmra.mxu0 %v304
      %v639 = vpop.f32.mrf.mxu0
      %v640 = vadd.f32 %v340, %v639
      %v641 = vpop.f32.mrf.mxu0
      %642 = vmatprep.mubr.f32.mxu0 %v425
      %643 = vmatmul.mubr.f32.gmra.mxu0 %v306
      %v644 = vpop.f32.mrf.mxu0
      %v645 = vadd.f32 %v340, %v644
      %v646 = vpop.f32.mrf.mxu0
      %647 = vmatprep.mubr.f32.mxu0 %v428
      %648 = vmatmul.mubr.f32.gmra.mxu0 %v308
      %v649 = vpop.f32.mrf.mxu0
      %v650 = vadd.f32 %v340, %v649
      %v651 = vpop.f32.mrf.mxu0
      %652 = vmatprep.mubr.f32.mxu0 %v431
      %653 = vmatmul.mubr.f32.gmra.mxu0 %v310
      %v654 = vpop.f32.mrf.mxu0
      %v655 = vadd.f32 %v340, %v654
      %v656 = vpop.f32.mrf.mxu0
      %657 = vmatprep.mubr.f32.mxu0 %v434
      %658 = vmatmul.mubr.f32.gmra.mxu0 %v312
      %v659 = vpop.f32.mrf.mxu0
      %v660 = vadd.f32 %v340, %v659
      %v661 = vpop.f32.mrf.mxu0
      %662 = vmatprep.mubr.f32.mxu0 %v437
      %663 = vmatmul.mubr.f32.gmra.mxu0 %v314
      %v664 = vpop.f32.mrf.mxu0
      %v665 = vadd.f32 %v340, %v664
      %v666 = vpop.f32.mrf.mxu0
      %667 = vdwg.mxu0
      %v668 = vld [vmem:[%s3] sm:$0x1]
      %v669 = vld [vmem:[%s4] sm:$0x1]
      %v670 = vld [vmem:[%s5] sm:$0xff]
      %v671 = vld [vmem:[%s5 + $0x8] sm:$0xff]
      %v672 = vld [vmem:[%s5 + $0x10] sm:$0xff]
      %v673 = vld [vmem:[%s5 + $0x18] sm:$0xff]
      %vm674 = vcmask 261120
      %v675 = vsel %vm674, %v510, 0.0
      %v676 = vsel %vm674, %v515, 0.0
      %v677 = vadd.f32 %v675, %v676
      %v678 = vsel %vm674, %v520, 0.0
      %v679 = vadd.f32 %v677, %v678
      %v680 = vsel %vm674, %v525, 0.0
      %v681 = vadd.f32 %v679, %v680
      %v682 = vsel %vm674, %v530, 0.0
      %v683 = vadd.f32 %v681, %v682
      %v684 = vsel %vm674, %v535, 0.0
      %v685 = vadd.f32 %v683, %v684
      %v686 = vsel %vm674, %v540, 0.0
      %v687 = vadd.f32 %v685, %v686
      %v688 = vsel %vm674, %v545, 0.0
      %v689 = vadd.f32 %v687, %v688
      %v690 = vsel %vm674, %v550, 0.0
      %v691 = vadd.f32 %v689, %v690
      %v692 = vsel %vm674, %v555, 0.0
      %v693 = vadd.f32 %v691, %v692
      %v694 = vsel %vm674, %v560, 0.0
      %v695 = vadd.f32 %v693, %v694
      %v696 = vsel %vm674, %v565, 0.0
      %v697 = vadd.f32 %v695, %v696
      %v698 = vsel %vm674, %v570, 0.0
      %v699 = vadd.f32 %v697, %v698
      %v700 = vsel %vm674, %v575, 0.0
      %v701 = vadd.f32 %v699, %v700
      %v702 = vsel %vm674, %v580, 0.0
      %v703 = vadd.f32 %v701, %v702
      %v704 = vsel %vm674, %v585, 0.0
      %v705 = vadd.f32 %v703, %v704
      %v706 = vsel %vm674, %v590, 0.0
      %v707 = vadd.f32 %v705, %v706
      %v708 = vsel %vm674, %v595, 0.0
      %v709 = vadd.f32 %v707, %v708
      %v710 = vsel %vm674, %v600, 0.0
      %v711 = vadd.f32 %v709, %v710
      %v712 = vsel %vm674, %v605, 0.0
      %v713 = vadd.f32 %v711, %v712
      %v714 = vsel %vm674, %v610, 0.0
      %v715 = vadd.f32 %v713, %v714
      %v716 = vsel %vm674, %v615, 0.0
      %v717 = vadd.f32 %v715, %v716
      %v718 = vsel %vm674, %v620, 0.0
      %v719 = vadd.f32 %v717, %v718
      %v720 = vsel %vm674, %v625, 0.0
      %v721 = vadd.f32 %v719, %v720
      %v722 = vsel %vm674, %v630, 0.0
      %v723 = vadd.f32 %v721, %v722
      %v724 = vsel %vm674, %v635, 0.0
      %v725 = vadd.f32 %v723, %v724
      %v726 = vsel %vm674, %v640, 0.0
      %v727 = vadd.f32 %v725, %v726
      %v728 = vsel %vm674, %v645, 0.0
      %v729 = vadd.f32 %v727, %v728
      %v730 = vsel %vm674, %v650, 0.0
      %v731 = vadd.f32 %v729, %v730
      %v732 = vsel %vm674, %v655, 0.0
      %v733 = vadd.f32 %v731, %v732
      %v734 = vsel %vm674, %v660, 0.0
      %v735 = vadd.f32 %v733, %v734
      %v736 = vsel %vm674, %v665, 0.0
      %v737 = vadd.f32 %v735, %v736
      %v738 = vrot.slane %v737, 4
      %v739 = vadd.f32 %v737, %v738
      %v740 = vrot.slane %v739, 2
      %v741 = vadd.f32 %v739, %v740
      %v742 = vrot.slane %v741, 1
      %v743 = vadd.f32 %v741, %v742
      %v744 = vrcp.pop 256.0
      %v745 = vmul.f32 %v743, %v744
      %v746 = vmul.f32 %v510, %v510
      %v747 = vmul.f32 %v515, %v515
      %v748 = vmul.f32 %v520, %v520
      %v749 = vmul.f32 %v525, %v525
      %v750 = vmul.f32 %v530, %v530
      %v751 = vmul.f32 %v535, %v535
      %v752 = vmul.f32 %v540, %v540
      %v753 = vmul.f32 %v545, %v545
      %v754 = vmul.f32 %v550, %v550
      %v755 = vmul.f32 %v555, %v555
      %v756 = vmul.f32 %v560, %v560
      %v757 = vmul.f32 %v565, %v565
      %v758 = vmul.f32 %v570, %v570
      %v759 = vmul.f32 %v575, %v575
      %v760 = vmul.f32 %v580, %v580
      %v761 = vmul.f32 %v585, %v585
      %v762 = vmul.f32 %v590, %v590
      %v763 = vmul.f32 %v595, %v595
      %v764 = vmul.f32 %v600, %v600
      %v765 = vmul.f32 %v605, %v605
      %v766 = vmul.f32 %v610, %v610
      %v767 = vmul.f32 %v615, %v615
      %v768 = vmul.f32 %v620, %v620
      %v769 = vmul.f32 %v625, %v625
      %v770 = vmul.f32 %v630, %v630
      %v771 = vmul.f32 %v635, %v635
      %v772 = vmul.f32 %v640, %v640
      %v773 = vmul.f32 %v645, %v645
      %v774 = vmul.f32 %v650, %v650
      %v775 = vmul.f32 %v655, %v655
      %v776 = vmul.f32 %v660, %v660
      %v777 = vmul.f32 %v665, %v665
      %v778 = vsel %vm674, %v746, 0.0
      %v779 = vsel %vm674, %v747, 0.0
      %v780 = vadd.f32 %v778, %v779
      %v781 = vsel %vm674, %v748, 0.0
      %v782 = vadd.f32 %v780, %v781
      %v783 = vsel %vm674, %v749, 0.0
      %v784 = vadd.f32 %v782, %v783
      %v785 = vsel %vm674, %v750, 0.0
      %v786 = vadd.f32 %v784, %v785
      %v787 = vsel %vm674, %v751, 0.0
      %v788 = vadd.f32 %v786, %v787
      %v789 = vsel %vm674, %v752, 0.0
      %v790 = vadd.f32 %v788, %v789
      %v791 = vsel %vm674, %v753, 0.0
      %v792 = vadd.f32 %v790, %v791
      %v793 = vsel %vm674, %v754, 0.0
      %v794 = vadd.f32 %v792, %v793
      %v795 = vsel %vm674, %v755, 0.0
      %v796 = vadd.f32 %v794, %v795
      %v797 = vsel %vm674, %v756, 0.0
      %v798 = vadd.f32 %v796, %v797
      %v799 = vsel %vm674, %v757, 0.0
      %v800 = vadd.f32 %v798, %v799
      %v801 = vsel %vm674, %v758, 0.0
      %v802 = vadd.f32 %v800, %v801
      %v803 = vsel %vm674, %v759, 0.0
      %v804 = vadd.f32 %v802, %v803
      %v805 = vsel %vm674, %v760, 0.0
      %v806 = vadd.f32 %v804, %v805
      %v807 = vsel %vm674, %v761, 0.0
      %v808 = vadd.f32 %v806, %v807
      %v809 = vsel %vm674, %v762, 0.0
      %v810 = vadd.f32 %v808, %v809
      %v811 = vsel %vm674, %v763, 0.0
      %v812 = vadd.f32 %v810, %v811
      %v813 = vsel %vm674, %v764, 0.0
      %v814 = vadd.f32 %v812, %v813
      %v815 = vsel %vm674, %v765, 0.0
      %v816 = vadd.f32 %v814, %v815
      %v817 = vsel %vm674, %v766, 0.0
      %v818 = vadd.f32 %v816, %v817
      %v819 = vsel %vm674, %v767, 0.0
      %v820 = vadd.f32 %v818, %v819
      %v821 = vsel %vm674, %v768, 0.0
      %v822 = vadd.f32 %v820, %v821
      %v823 = vsel %vm674, %v769, 0.0
      %v824 = vadd.f32 %v822, %v823
      %v825 = vsel %vm674, %v770, 0.0
      %v826 = vadd.f32 %v824, %v825
      %v827 = vsel %vm674, %v771, 0.0
      %v828 = vadd.f32 %v826, %v827
      %v829 = vsel %vm674, %v772, 0.0
      %v830 = vadd.f32 %v828, %v829
      %v831 = vsel %vm674, %v773, 0.0
      %v832 = vadd.f32 %v830, %v831
      %v833 = vsel %vm674, %v774, 0.0
      %v834 = vadd.f32 %v832, %v833
      %v835 = vsel %vm674, %v775, 0.0
      %v836 = vadd.f32 %v834, %v835
      %v837 = vsel %vm674, %v776, 0.0
      %v838 = vadd.f32 %v836, %v837
      %v839 = vsel %vm674, %v777, 0.0
      %v840 = vadd.f32 %v838, %v839
      %v841 = vrot.slane %v840, 4
      %v842 = vadd.f32 %v840, %v841
      %v843 = vrot.slane %v842, 2
      %v844 = vadd.f32 %v842, %v843
      %v845 = vrot.slane %v844, 1
      %v846 = vadd.f32 %v844, %v845
      %v847 = vmul.f32 %v846, %v744
      %v849 = vsel %vm674, %v745, 0
      %851 = vmatprep.subr.mxu0 0.0
      %852 = vmatpush1.msra.mxu0 0.0
      %853 = vmatprep.subr.mxu0 0.0
      %854 = vmatpush1.msra.mxu0 0.0
      %855 = vmatprep.subr.mxu0 0.0
      %856 = vmatpush1.msra.mxu0 0.0
      %857 = vmatprep.subr.mxu0 0.0
      %858 = vmatpush1.msra.mxu0 0.0
      %859 = vmatprep.subr.mxu0 0.0
      %860 = vmatpush1.msra.mxu0 0.0
      %861 = vmatprep.subr.mxu0 0.0
      %862 = vmatpush1.msra.mxu0 0.0
      %863 = vmatprep.subr.mxu0 0.0
      %864 = vmatpush1.msra.mxu0 0.0
      %865 = vmatprep.subr.mxu0 0.0
      %866 = vmatpush1.msra.mxu0 0.0
      %867 = vmatprep.subr.mxu0 0.0
      %868 = vmatpush1.msra.mxu0 0.0
      %869 = vmatprep.subr.mxu0 0.0
      %870 = vmatpush1.msra.mxu0 0.0
      %871 = vmatprep.subr.mxu0 0.0
      %872 = vmatpush1.msra.mxu0 0.0
      %873 = vmatprep.subr.mxu0 0.0
      %874 = vmatpush1.msra.mxu0 0.0
      %875 = vmatprep.subr.mxu0 0.0
      %876 = vmatpush1.msra.mxu0 %v673
      %877 = vmatprep.subr.mxu0 0.0
      %878 = vmatpush1.msra.mxu0 %v672
      %879 = vmatprep.subr.mxu0 0.0
      %880 = vmatpush1.msra.mxu0 %v671
      %881 = vmatprep.subr.mxu0 0.0
      %882 = vmatpush1.msra.mxu0 %v670
      %883 = vmatprep.subr.mxu0 0.0
      %884 = vmatpush2.msra.mxu0 0.0
      %885 = vmatprep.subr.mxu0 0.0
      %886 = vmatpush2.msra.mxu0 0.0
      %887 = vmatprep.subr.mxu0 0.0
      %888 = vmatpush2.msra.mxu0 0.0
      %889 = vmatprep.subr.mxu0 0.0
      %890 = vmatpush2.msra.mxu0 0.0
      %891 = vmatprep.subr.mxu0 0.0
      %892 = vmatpush2.msra.mxu0 0.0
      %893 = vmatprep.subr.mxu0 0.0
      %894 = vmatpush2.msra.mxu0 0.0
      %895 = vmatprep.subr.mxu0 0.0
      %896 = vmatpush2.msra.mxu0 0.0
      %897 = vmatprep.subr.mxu0 0.0
      %898 = vmatpush2.msra.mxu0 0.0
      %899 = vmatprep.subr.mxu0 0.0
      %900 = vmatpush2.msra.mxu0 0.0
      %901 = vmatprep.subr.mxu0 0.0
      %902 = vmatpush2.msra.mxu0 0.0
      %903 = vmatprep.subr.mxu0 0.0
      %904 = vmatpush2.msra.mxu0 0.0
      %905 = vmatprep.subr.mxu0 0.0
      %906 = vmatpush2.msra.mxu0 0.0
      %907 = vmatprep.subr.mxu0 0.0
      %908 = vmatpush2.msra.mxu0 0.0
      %909 = vmatprep.subr.mxu0 0.0
      %910 = vmatpush2.msra.mxu0 0.0
      %911 = vmatprep.subr.mxu0 0.0
      %912 = vmatpush2.msra.mxu0 0.0
      %913 = vmatprep.subr.mxu0 0.0
      %914 = vmatpush2.msra.mxu0 0.0
      %915 = vmatprep.mubr.f32.mxu0 0.0
      %916 = vmatmul.mubr.f32.gmra.mxu0 %v849
      %v917 = vpop.f32.mrf.mxu0
      %v918 = vadd.f32 0.0, %v917
      %v919 = vpop.f32.mrf.mxu0
      %920 = vdwg.mxu0
      %v922 = vsel %vm674, %v847, 0
      %924 = vmatprep.subr.mxu0 0.0
      %925 = vmatpush1.msra.mxu0 0.0
      %926 = vmatprep.subr.mxu0 0.0
      %927 = vmatpush1.msra.mxu0 0.0
      %928 = vmatprep.subr.mxu0 0.0
      %929 = vmatpush1.msra.mxu0 0.0
      %930 = vmatprep.subr.mxu0 0.0
      %931 = vmatpush1.msra.mxu0 0.0
      %932 = vmatprep.subr.mxu0 0.0
      %933 = vmatpush1.msra.mxu0 0.0
      %934 = vmatprep.subr.mxu0 0.0
      %935 = vmatpush1.msra.mxu0 0.0
      %936 = vmatprep.subr.mxu0 0.0
      %937 = vmatpush1.msra.mxu0 0.0
      %938 = vmatprep.subr.mxu0 0.0
      %939 = vmatpush1.msra.mxu0 0.0
      %940 = vmatprep.subr.mxu0 0.0
      %941 = vmatpush1.msra.mxu0 0.0
      %942 = vmatprep.subr.mxu0 0.0
      %943 = vmatpush1.msra.mxu0 0.0
      %944 = vmatprep.subr.mxu0 0.0
      %945 = vmatpush1.msra.mxu0 0.0
      %946 = vmatprep.subr.mxu0 0.0
      %947 = vmatpush1.msra.mxu0 0.0
      %948 = vmatprep.subr.mxu0 0.0
      %949 = vmatpush1.msra.mxu0 %v673
      %950 = vmatprep.subr.mxu0 0.0
      %951 = vmatpush1.msra.mxu0 %v672
      %952 = vmatprep.subr.mxu0 0.0
      %953 = vmatpush1.msra.mxu0 %v671
      %954 = vmatprep.subr.mxu0 0.0
      %955 = vmatpush1.msra.mxu0 %v670
      %956 = vmatprep.subr.mxu0 0.0
      %957 = vmatpush2.msra.mxu0 0.0
      %958 = vmatprep.subr.mxu0 0.0
      %959 = vmatpush2.msra.mxu0 0.0
      %960 = vmatprep.subr.mxu0 0.0
      %961 = vmatpush2.msra.mxu0 0.0
      %962 = vmatprep.subr.mxu0 0.0
      %963 = vmatpush2.msra.mxu0 0.0
      %964 = vmatprep.subr.mxu0 0.0
      %965 = vmatpush2.msra.mxu0 0.0
      %966 = vmatprep.subr.mxu0 0.0
      %967 = vmatpush2.msra.mxu0 0.0
      %968 = vmatprep.subr.mxu0 0.0
      %969 = vmatpush2.msra.mxu0 0.0
      %970 = vmatprep.subr.mxu0 0.0
      %971 = vmatpush2.msra.mxu0 0.0
      %972 = vmatprep.subr.mxu0 0.0
      %973 = vmatpush2.msra.mxu0 0.0
      %974 = vmatprep.subr.mxu0 0.0
      %975 = vmatpush2.msra.mxu0 0.0
      %976 = vmatprep.subr.mxu0 0.0
      %977 = vmatpush2.msra.mxu0 0.0
      %978 = vmatprep.subr.mxu0 0.0
      %979 = vmatpush2.msra.mxu0 0.0
      %980 = vmatprep.subr.mxu0 0.0
      %981 = vmatpush2.msra.mxu0 0.0
      %982 = vmatprep.subr.mxu0 0.0
      %983 = vmatpush2.msra.mxu0 0.0
      %984 = vmatprep.subr.mxu0 0.0
      %985 = vmatpush2.msra.mxu0 0.0
      %986 = vmatprep.subr.mxu0 0.0
      %987 = vmatpush2.msra.mxu0 0.0
      %988 = vmatprep.mubr.f32.mxu0 0.0
      %989 = vmatmul.mubr.f32.gmra.mxu0 %v922
      %v990 = vpop.f32.mrf.mxu0
      %v991 = vadd.f32 0.0, %v990
      %v992 = vpop.f32.mrf.mxu0
      %993 = vdwg.mxu0
      %v994 = vmul.f32 %v918, %v918
      %v995 = vsub.f32 %v991, %v994
      %v996 = vlaneseq
      %v997 = vshrl.u32 %v996, 7
      %v998 = vsub.s32 0, %v997
      %v999 = vrot.slane %v918, %v998
      %v1000 = vsub.f32 %v510, %v999
      %v1001 = vsub.f32 %v515, %v999
      %v1002 = vsub.f32 %v520, %v999
      %v1003 = vsub.f32 %v525, %v999
      %v1004 = vsub.f32 %v530, %v999
      %v1005 = vsub.f32 %v535, %v999
      %v1006 = vsub.f32 %v540, %v999
      %v1007 = vsub.f32 %v545, %v999
      %v1008 = vsub.f32 %v550, %v999
      %v1009 = vsub.f32 %v555, %v999
      %v1010 = vsub.f32 %v560, %v999
      %v1011 = vsub.f32 %v565, %v999
      %v1012 = vsub.f32 %v570, %v999
      %v1013 = vsub.f32 %v575, %v999
      %v1014 = vsub.f32 %v580, %v999
      %v1015 = vsub.f32 %v585, %v999
      %v1016 = vsub.f32 %v590, %v999
      %v1017 = vsub.f32 %v595, %v999
      %v1018 = vsub.f32 %v600, %v999
      %v1019 = vsub.f32 %v605, %v999
      %v1020 = vsub.f32 %v610, %v999
      %v1021 = vsub.f32 %v615, %v999
      %v1022 = vsub.f32 %v620, %v999
      %v1023 = vsub.f32 %v625, %v999
      %v1024 = vsub.f32 %v630, %v999
      %v1025 = vsub.f32 %v635, %v999
      %v1026 = vsub.f32 %v640, %v999
      %v1027 = vsub.f32 %v645, %v999
      %v1028 = vsub.f32 %v650, %v999
      %v1029 = vsub.f32 %v655, %v999
      %v1030 = vsub.f32 %v660, %v999
      %v1031 = vsub.f32 %v665, %v999
      %v1032 = vmax.f32 %v995, 0.0
      %v1033 = vadd.f32 %v1032, 1e-05
      %v1034 = vrsqrt.pop %v1033
      %v1035 = vlaneseq
      %v1036 = vshrl.u32 %v1035, 7
      %v1037 = vsub.s32 0, %v1036
      %v1038 = vrot.slane %v1034, %v1037
      %v1039 = vmul.f32 %v1000, %v1038
      %v1040 = vmul.f32 %v1001, %v1038
      %v1041 = vmul.f32 %v1002, %v1038
      %v1042 = vmul.f32 %v1003, %v1038
      %v1043 = vmul.f32 %v1004, %v1038
      %v1044 = vmul.f32 %v1005, %v1038
      %v1045 = vmul.f32 %v1006, %v1038
      %v1046 = vmul.f32 %v1007, %v1038
      %v1047 = vmul.f32 %v1008, %v1038
      %v1048 = vmul.f32 %v1009, %v1038
      %v1049 = vmul.f32 %v1010, %v1038
      %v1050 = vmul.f32 %v1011, %v1038
      %v1051 = vmul.f32 %v1012, %v1038
      %v1052 = vmul.f32 %v1013, %v1038
      %v1053 = vmul.f32 %v1014, %v1038
      %v1054 = vmul.f32 %v1015, %v1038
      %v1055 = vmul.f32 %v1016, %v1038
      %v1056 = vmul.f32 %v1017, %v1038
      %v1057 = vmul.f32 %v1018, %v1038
      %v1058 = vmul.f32 %v1019, %v1038
      %v1059 = vmul.f32 %v1020, %v1038
      %v1060 = vmul.f32 %v1021, %v1038
      %v1061 = vmul.f32 %v1022, %v1038
      %v1062 = vmul.f32 %v1023, %v1038
      %v1063 = vmul.f32 %v1024, %v1038
      %v1064 = vmul.f32 %v1025, %v1038
      %v1065 = vmul.f32 %v1026, %v1038
      %v1066 = vmul.f32 %v1027, %v1038
      %v1067 = vmul.f32 %v1028, %v1038
      %v1068 = vmul.f32 %v1029, %v1038
      %v1069 = vmul.f32 %v1030, %v1038
      %v1070 = vmul.f32 %v1031, %v1038
      %v1072 = vlaneseq
      %v1073 = vshrl.u32 %v1072, 7
      %v1074 = vsub.s32 0, %v1073
      %v1075 = vrot.slane %v668, %v1074
      %v1077 = vmul.f32 %v1039, %v1075
      %v1078 = vmul.f32 %v1040, %v1075
      %v1079 = vmul.f32 %v1041, %v1075
      %v1080 = vmul.f32 %v1042, %v1075
      %v1081 = vmul.f32 %v1043, %v1075
      %v1082 = vmul.f32 %v1044, %v1075
      %v1083 = vmul.f32 %v1045, %v1075
      %v1084 = vmul.f32 %v1046, %v1075
      %v1085 = vmul.f32 %v1047, %v1075
      %v1086 = vmul.f32 %v1048, %v1075
      %v1087 = vmul.f32 %v1049, %v1075
      %v1088 = vmul.f32 %v1050, %v1075
      %v1089 = vmul.f32 %v1051, %v1075
      %v1090 = vmul.f32 %v1052, %v1075
      %v1091 = vmul.f32 %v1053, %v1075
      %v1092 = vmul.f32 %v1054, %v1075
      %v1093 = vmul.f32 %v1055, %v1075
      %v1094 = vmul.f32 %v1056, %v1075
      %v1095 = vmul.f32 %v1057, %v1075
      %v1096 = vmul.f32 %v1058, %v1075
      %v1097 = vmul.f32 %v1059, %v1075
      %v1098 = vmul.f32 %v1060, %v1075
      %v1099 = vmul.f32 %v1061, %v1075
      %v1100 = vmul.f32 %v1062, %v1075
      %v1101 = vmul.f32 %v1063, %v1075
      %v1102 = vmul.f32 %v1064, %v1075
      %v1103 = vmul.f32 %v1065, %v1075
      %v1104 = vmul.f32 %v1066, %v1075
      %v1105 = vmul.f32 %v1067, %v1075
      %v1106 = vmul.f32 %v1068, %v1075
      %v1107 = vmul.f32 %v1069, %v1075
      %v1108 = vmul.f32 %v1070, %v1075
      %v1110 = vlaneseq
      %v1111 = vshrl.u32 %v1110, 7
      %v1112 = vsub.s32 0, %v1111
      %v1113 = vrot.slane %v669, %v1112
      %v1115 = vadd.f32 %v1077, %v1113
      %v1116 = vadd.f32 %v1078, %v1113
      %v1117 = vadd.f32 %v1079, %v1113
      %v1118 = vadd.f32 %v1080, %v1113
      %v1119 = vadd.f32 %v1081, %v1113
      %v1120 = vadd.f32 %v1082, %v1113
      %v1121 = vadd.f32 %v1083, %v1113
      %v1122 = vadd.f32 %v1084, %v1113
      %v1123 = vadd.f32 %v1085, %v1113
      %v1124 = vadd.f32 %v1086, %v1113
      %v1125 = vadd.f32 %v1087, %v1113
      %v1126 = vadd.f32 %v1088, %v1113
      %v1127 = vadd.f32 %v1089, %v1113
      %v1128 = vadd.f32 %v1090, %v1113
      %v1129 = vadd.f32 %v1091, %v1113
      %v1130 = vadd.f32 %v1092, %v1113
      %v1131 = vadd.f32 %v1093, %v1113
      %v1132 = vadd.f32 %v1094, %v1113
      %v1133 = vadd.f32 %v1095, %v1113
      %v1134 = vadd.f32 %v1096, %v1113
      %v1135 = vadd.f32 %v1097, %v1113
      %v1136 = vadd.f32 %v1098, %v1113
      %v1137 = vadd.f32 %v1099, %v1113
      %v1138 = vadd.f32 %v1100, %v1113
      %v1139 = vadd.f32 %v1101, %v1113
      %v1140 = vadd.f32 %v1102, %v1113
      %v1141 = vadd.f32 %v1103, %v1113
      %v1142 = vadd.f32 %v1104, %v1113
      %v1143 = vadd.f32 %v1105, %v1113
      %v1144 = vadd.f32 %v1106, %v1113
      %v1145 = vadd.f32 %v1107, %v1113
      %v1146 = vadd.f32 %v1108, %v1113
      %v1147 = vmax.f32 %v1115, 0.0
      %v1148 = vmax.f32 %v1116, 0.0
      %v1149 = vmax.f32 %v1117, 0.0
      %v1150 = vmax.f32 %v1118, 0.0
      %v1151 = vmax.f32 %v1119, 0.0
      %v1152 = vmax.f32 %v1120, 0.0
      %v1153 = vmax.f32 %v1121, 0.0
      %v1154 = vmax.f32 %v1122, 0.0
      %v1155 = vmax.f32 %v1123, 0.0
      %v1156 = vmax.f32 %v1124, 0.0
      %v1157 = vmax.f32 %v1125, 0.0
      %v1158 = vmax.f32 %v1126, 0.0
      %v1159 = vmax.f32 %v1127, 0.0
      %v1160 = vmax.f32 %v1128, 0.0
      %v1161 = vmax.f32 %v1129, 0.0
      %v1162 = vmax.f32 %v1130, 0.0
      %v1163 = vmax.f32 %v1131, 0.0
      %v1164 = vmax.f32 %v1132, 0.0
      %v1165 = vmax.f32 %v1133, 0.0
      %v1166 = vmax.f32 %v1134, 0.0
      %v1167 = vmax.f32 %v1135, 0.0
      %v1168 = vmax.f32 %v1136, 0.0
      %v1169 = vmax.f32 %v1137, 0.0
      %v1170 = vmax.f32 %v1138, 0.0
      %v1171 = vmax.f32 %v1139, 0.0
      %v1172 = vmax.f32 %v1140, 0.0
      %v1173 = vmax.f32 %v1141, 0.0
      %v1174 = vmax.f32 %v1142, 0.0
      %v1175 = vmax.f32 %v1143, 0.0
      %v1176 = vmax.f32 %v1144, 0.0
      %v1177 = vmax.f32 %v1145, 0.0
      %v1178 = vmax.f32 %v1146, 0.0
      %1179 = vst.msk [vmem:[%s251] sm:$0xff] %vm674, %v1147
      %1180 = vst.msk [vmem:[%s251 + $0x8] sm:$0xff] %vm674, %v1148
      %1181 = vst.msk [vmem:[%s251 + $0x10] sm:$0xff] %vm674, %v1149
      %1182 = vst.msk [vmem:[%s251 + $0x18] sm:$0xff] %vm674, %v1150
      %1183 = vst.msk [vmem:[%s251 + $0x20] sm:$0xff] %vm674, %v1151
      %1184 = vst.msk [vmem:[%s251 + $0x28] sm:$0xff] %vm674, %v1152
      %1185 = vst.msk [vmem:[%s251 + $0x30] sm:$0xff] %vm674, %v1153
      %1186 = vst.msk [vmem:[%s251 + $0x38] sm:$0xff] %vm674, %v1154
      %1187 = vst.msk [vmem:[%s251 + $0x40] sm:$0xff] %vm674, %v1155
      %1188 = vst.msk [vmem:[%s251 + $0x48] sm:$0xff] %vm674, %v1156
      %1189 = vst.msk [vmem:[%s251 + $0x50] sm:$0xff] %vm674, %v1157
      %1190 = vst.msk [vmem:[%s251 + $0x58] sm:$0xff] %vm674, %v1158
      %1191 = vst.msk [vmem:[%s251 + $0x60] sm:$0xff] %vm674, %v1159
      %1192 = vst.msk [vmem:[%s251 + $0x68] sm:$0xff] %vm674, %v1160
      %1193 = vst.msk [vmem:[%s251 + $0x70] sm:$0xff] %vm674, %v1161
      %1194 = vst.msk [vmem:[%s251 + $0x78] sm:$0xff] %vm674, %v1162
      %1195 = vst.msk [vmem:[%s251 + $0x80] sm:$0xff] %vm674, %v1163
      %1196 = vst.msk [vmem:[%s251 + $0x88] sm:$0xff] %vm674, %v1164
      %1197 = vst.msk [vmem:[%s251 + $0x90] sm:$0xff] %vm674, %v1165
      %1198 = vst.msk [vmem:[%s251 + $0x98] sm:$0xff] %vm674, %v1166
      %1199 = vst.msk [vmem:[%s251 + $0xa0] sm:$0xff] %vm674, %v1167
      %1200 = vst.msk [vmem:[%s251 + $0xa8] sm:$0xff] %vm674, %v1168
      %1201 = vst.msk [vmem:[%s251 + $0xb0] sm:$0xff] %vm674, %v1169
      %1202 = vst.msk [vmem:[%s251 + $0xb8] sm:$0xff] %vm674, %v1170
      %1203 = vst.msk [vmem:[%s251 + $0xc0] sm:$0xff] %vm674, %v1171
      %1204 = vst.msk [vmem:[%s251 + $0xc8] sm:$0xff] %vm674, %v1172
      %1205 = vst.msk [vmem:[%s251 + $0xd0] sm:$0xff] %vm674, %v1173
      %1206 = vst.msk [vmem:[%s251 + $0xd8] sm:$0xff] %vm674, %v1174
      %1207 = vst.msk [vmem:[%s251 + $0xe0] sm:$0xff] %vm674, %v1175
      %1208 = vst.msk [vmem:[%s251 + $0xe8] sm:$0xff] %vm674, %v1176
      %1209 = vst.msk [vmem:[%s251 + $0xf0] sm:$0xff] %vm674, %v1177
      %1210 = vst.msk [vmem:[%s251 + $0xf8] sm:$0xff] %vm674, %v1178
      %p1211 = scmp.lt.s32.totalorder %s17, 1
      %s1212 = scalar_select %p1211, %s17, 1
      %s1213 = smul.addr %s1212, 32
      %s1214 = smul.addr %s1213, 8
      %s1215 = scalar_lea.vmem %s6, %s1214
      // Predicated region
      $region45: #{dp_forward.3} parent=43 // pred_check
        %p1216 = pneg %p166
      $region46: #{dp_forward.3} parent=43 // pred_check_branch
        %1218 = sbr.rel (%p1216) target = $region48
      $region47: #{dp_forward.3} parent=43 // pred_region
        _
      $region48: #{dp_forward.3} parent=43 // pred_fallthru
        _
    $region44: #{dp_forward.3} parent=5 // pred_fallthru
      _
    %p1219 = scmp.le.s32.totalorder 2, %s12
    // Predicated region
    $region49: #{dp_forward.3} parent=5 // pred_check
      %p1220 = pneg %p1219
    $region50: #{dp_forward.3} parent=5 // pred_check_branch
      %1222 = sbr.rel (%p1220) target = $region52
    $region51: #{dp_forward.3} parent=5 // pred_region
      %s1223 = ssub.s32 %s12, 2
      // Predicated region
      $region53: #{dp_forward.3} parent=51 // pred_check
        %p1224 = pneg %p172
      $region54: #{dp_forward.3} parent=51 // pred_check_branch
        %1226 = sbr.rel (%p1224) target = $region56
      $region55: #{dp_forward.3} parent=51 // pred_region
        %p1227 = scmp.lt.s32.totalorder %s18, 1
        %s1228 = scalar_select %p1227, %s18, 1
        %s1229 = smul.addr %s1228, 32
        %s1230 = smul.addr %s1229, 8
        %s1231 = scalar_lea.vmem %s6, %s1230
      $region56: #{dp_forward.3} parent=51 // pred_fallthru
        _
    $region52: #{dp_forward.3} parent=5 // pred_fallthru
      _
  $region6: #{dp_forward.3} parent=0 // loop_footer
    %s16 = sadd.s32 1, %s12
  $region7: #{dp_forward.3} parent=0 // loop_footer_branch
    %11 = sbr.rel target = $region3
  $region8: #{dp_forward.3} parent=0 // loop_exit
    _

// kernel: dp_forward.4
$region0: #{dp_forward.4}
  #allocation0 [shape = 'u32[]', space=smem, size = 0x4, offset = 0x4, fixed_abs, tag = 'smem constant byte address 0x4 - core index']
  #allocation1 [shape = 'u32[144,128]{1,0:T(1,128)}', space=vmem, size = 0x12000, scoped, tag = 'internal scratch']
  %s0 = inlined_call_operand.vmem [shape: f32[2,64,288], index: 0, kind: input, shape index: {}]
  %s1 = inlined_call_operand.vmem [shape: f32[288,64], index: 1, kind: input, shape index: {}]
  %s2 = inlined_call_operand.vmem [shape: f32[1,64], index: 2, kind: input, shape index: {}]
  %s3 = inlined_call_operand.vmem [shape: f32[1,64], index: 3, kind: input, shape index: {}]
  %s4 = inlined_call_operand.vmem [shape: f32[1,64], index: 4, kind: input, shape index: {}]
  %s5 = inlined_call_operand.vmem [shape: f32[64,64], index: 5, kind: input, shape index: {}]
  %s6 = inlined_call_operand.vmem [shape: f32[64,64], index: 6, kind: input, shape index: {}]
  %s7 = inlined_call_operand.vmem [shape: f32[1,64], index: 7, kind: input, shape index: {}]
  %s8 = inlined_call_operand.vmem [shape: f32[2,1,64], index: 8, kind: output, shape index: {}]
  %s9 = sld [smem:[#allocation0]]
  $region65: #{dp_forward.4} parent=0
    _
  %s11 = ssub.s32 1, %s9
  %s12 = scalar_select 0, %s11, %s9
  loop: start=0, step=1, limit=4
  $region2: #{dp_forward.4} parent=0 // loop_pre_header
    _
  $region3: #{dp_forward.4} parent=0 // loop_header
    %s14 = sphi 0, %s18
    %p15 = scmp.ge.s32.totalorder %s14, 4
    %s24 = sphi 0, %s26
    %s27 = sphi 0, %s24
    %s28 = sphi 0, %s27
    %s44 = sphi 0, %s28
    %s48 = sphi 0, %s48
    %s50 = sphi 0, %s48
    %s51 = sphi 0, %s50
    %s65 = sphi 0, %s51
    %s69 = sphi 0, %s69
    %s71 = sphi 0, %s69
    %s72 = sphi 0, %s71
    %s86 = sphi 0, %s72
    %s90 = sphi 0, %s90
    %s92 = sphi 0, %s90
    %s93 = sphi 0, %s92
    %s107 = sphi 0, %s93
    %s111 = sphi 0, %s111
    %s113 = sphi 0, %s111
    %s114 = sphi 0, %s113
    %s128 = sphi 0, %s114
    %s132 = sphi 0, %s132
    %s134 = sphi 0, %s132
    %s135 = sphi 0, %s134
    %s149 = sphi 0, %s135
    %s153 = sphi 0, %s153
    %s155 = sphi 0, %s153
    %s156 = sphi 0, %s155
    %s170 = sphi 0, %s156
    %s174 = sphi 0, %s174
    %s176 = sphi 0, %s174
    %s177 = sphi 0, %s176
    %s191 = sphi 0, %s177
    %s197 = sphi 0, %s199
    %s200 = sphi 0, %s197
    %s201 = sphi 0, %s200
    %s217 = sphi 0, %s201
  $region4: #{dp_forward.4} parent=0 // loop_header_branch
    %17 = sbr.rel (%p15) target = $region8
  $region5: #{dp_forward.4} parent=0 // loop_body
    %s19 = ssub.s32 %s14, 1
    %s20 = ssub.s32 %s14, 2
    %s21 = sadd.s32 %s14, 1
    %s22 = ssub.s32 %s14, %s21
    %p23 = scmp.eq.s32.totalorder %s22, 0
    %s25 = sadd.s32 %s24, 1
    %s26 = scalar_select %p23, %s24, %s25
    %p29 = pneg %p23
    %p30 = scmp.eq.s32.totalorder %s14, 1
    %p31 = por %p29, %p30
    %p32 = scmp.ne.s32.totalorder %s24, %s27
    %p33 = scmp.eq.s32.totalorder %s14, 0
    %p34 = por %p32, %p33
    %p35 = scmp.ne.s32.totalorder %s24, %s27
    %p36 = scmp.eq.s32.totalorder %s19, 1
    %p37 = por %p35, %p36
    %p38 = scmp.ne.s32.totalorder %s27, %s28
    %p39 = scmp.eq.s32.totalorder %s19, 0
    %p40 = por %p38, %p39
    %p41 = scmp.ne.s32.totalorder %s27, %s28
    %p42 = scmp.eq.s32.totalorder %s20, 1
    %p43 = por %p41, %p42
    %p45 = scmp.ne.s32.totalorder %s28, %s44
    %p46 = scmp.eq.s32.totalorder %s20, 0
    %p47 = por %p45, %p46
    %s49 = sadd.s32 %s48, 1
    %p52 = scmp.eq.s32.totalorder %s14, 1
    %p53 = scmp.ne.s32.totalorder %s48, %s50
    %p54 = scmp.eq.s32.totalorder %s14, 0
    %p55 = por %p53, %p54
    %p56 = scmp.ne.s32.totalorder %s48, %s50
    %p57 = scmp.eq.s32.totalorder %s19, 1
    %p58 = por %p56, %p57
    %p59 = scmp.ne.s32.totalorder %s50, %s51
    %p60 = scmp.eq.s32.totalorder %s19, 0
    %p61 = por %p59, %p60
    %p62 = scmp.ne.s32.totalorder %s50, %s51
    %p63 = scmp.eq.s32.totalorder %s20, 1
    %p64 = por %p62, %p63
    %p66 = scmp.ne.s32.totalorder %s51, %s65
    %p67 = scmp.eq.s32.totalorder %s20, 0
    %p68 = por %p66, %p67
    %s70 = sadd.s32 %s69, 1
    %p73 = scmp.eq.s32.totalorder %s14, 1
    %p74 = scmp.ne.s32.totalorder %s69, %s71
    %p75 = scmp.eq.s32.totalorder %s14, 0
    %p76 = por %p74, %p75
    %p77 = scmp.ne.s32.totalorder %s69, %s71
    %p78 = scmp.eq.s32.totalorder %s19, 1
    %p79 = por %p77, %p78
    %p80 = scmp.ne.s32.totalorder %s71, %s72
    %p81 = scmp.eq.s32.totalorder %s19, 0
    %p82 = por %p80, %p81
    %p83 = scmp.ne.s32.totalorder %s71, %s72
    %p84 = scmp.eq.s32.totalorder %s20, 1
    %p85 = por %p83, %p84
    %p87 = scmp.ne.s32.totalorder %s72, %s86
    %p88 = scmp.eq.s32.totalorder %s20, 0
    %p89 = por %p87, %p88
    %s91 = sadd.s32 %s90, 1
    %p94 = scmp.eq.s32.totalorder %s14, 1
    %p95 = scmp.ne.s32.totalorder %s90, %s92
    %p96 = scmp.eq.s32.totalorder %s14, 0
    %p97 = por %p95, %p96
    %p98 = scmp.ne.s32.totalorder %s90, %s92
    %p99 = scmp.eq.s32.totalorder %s19, 1
    %p100 = por %p98, %p99
    %p101 = scmp.ne.s32.totalorder %s92, %s93
    %p102 = scmp.eq.s32.totalorder %s19, 0
    %p103 = por %p101, %p102
    %p104 = scmp.ne.s32.totalorder %s92, %s93
    %p105 = scmp.eq.s32.totalorder %s20, 1
    %p106 = por %p104, %p105
    %p108 = scmp.ne.s32.totalorder %s93, %s107
    %p109 = scmp.eq.s32.totalorder %s20, 0
    %p110 = por %p108, %p109
    %s112 = sadd.s32 %s111, 1
    %p115 = scmp.eq.s32.totalorder %s14, 1
    %p116 = scmp.ne.s32.totalorder %s111, %s113
    %p117 = scmp.eq.s32.totalorder %s14, 0
    %p118 = por %p116, %p117
    %p119 = scmp.ne.s32.totalorder %s111, %s113
    %p120 = scmp.eq.s32.totalorder %s19, 1
    %p121 = por %p119, %p120
    %p122 = scmp.ne.s32.totalorder %s113, %s114
    %p123 = scmp.eq.s32.totalorder %s19, 0
    %p124 = por %p122, %p123
    %p125 = scmp.ne.s32.totalorder %s113, %s114
    %p126 = scmp.eq.s32.totalorder %s20, 1
    %p127 = por %p125, %p126
    %p129 = scmp.ne.s32.totalorder %s114, %s128
    %p130 = scmp.eq.s32.totalorder %s20, 0
    %p131 = por %p129, %p130
    %s133 = sadd.s32 %s132, 1
    %p136 = scmp.eq.s32.totalorder %s14, 1
    %p137 = scmp.ne.s32.totalorder %s132, %s134
    %p138 = scmp.eq.s32.totalorder %s14, 0
    %p139 = por %p137, %p138
    %p140 = scmp.ne.s32.totalorder %s132, %s134
    %p141 = scmp.eq.s32.totalorder %s19, 1
    %p142 = por %p140, %p141
    %p143 = scmp.ne.s32.totalorder %s134, %s135
    %p144 = scmp.eq.s32.totalorder %s19, 0
    %p145 = por %p143, %p144
    %p146 = scmp.ne.s32.totalorder %s134, %s135
    %p147 = scmp.eq.s32.totalorder %s20, 1
    %p148 = por %p146, %p147
    %p150 = scmp.ne.s32.totalorder %s135, %s149
    %p151 = scmp.eq.s32.totalorder %s20, 0
    %p152 = por %p150, %p151
    %s154 = sadd.s32 %s153, 1
    %p157 = scmp.eq.s32.totalorder %s14, 1
    %p158 = scmp.ne.s32.totalorder %s153, %s155
    %p159 = scmp.eq.s32.totalorder %s14, 0
    %p160 = por %p158, %p159
    %p161 = scmp.ne.s32.totalorder %s153, %s155
    %p162 = scmp.eq.s32.totalorder %s19, 1
    %p163 = por %p161, %p162
    %p164 = scmp.ne.s32.totalorder %s155, %s156
    %p165 = scmp.eq.s32.totalorder %s19, 0
    %p166 = por %p164, %p165
    %p167 = scmp.ne.s32.totalorder %s155, %s156
    %p168 = scmp.eq.s32.totalorder %s20, 1
    %p169 = por %p167, %p168
    %p171 = scmp.ne.s32.totalorder %s156, %s170
    %p172 = scmp.eq.s32.totalorder %s20, 0
    %p173 = por %p171, %p172
    %s175 = sadd.s32 %s174, 1
    %p178 = scmp.eq.s32.totalorder %s14, 1
    %p179 = scmp.ne.s32.totalorder %s174, %s176
    %p180 = scmp.eq.s32.totalorder %s14, 0
    %p181 = por %p179, %p180
    %p182 = scmp.ne.s32.totalorder %s174, %s176
    %p183 = scmp.eq.s32.totalorder %s19, 1
    %p184 = por %p182, %p183
    %p185 = scmp.ne.s32.totalorder %s176, %s177
    %p186 = scmp.eq.s32.totalorder %s19, 0
    %p187 = por %p185, %p186
    %p188 = scmp.ne.s32.totalorder %s176, %s177
    %p189 = scmp.eq.s32.totalorder %s20, 1
    %p190 = por %p188, %p189
    %p192 = scmp.ne.s32.totalorder %s177, %s191
    %p193 = scmp.eq.s32.totalorder %s20, 0
    %p194 = por %p192, %p193
    %s195 = ssub.s32 %s14, %s21
    %p196 = scmp.eq.s32.totalorder %s195, 0
    %s198 = sadd.s32 %s197, 1
    %s199 = scalar_select %p196, %s197, %s198
    %p202 = pneg %p196
    %p203 = scmp.eq.s32.totalorder %s14, 1
    %p204 = por %p202, %p203
    %p205 = scmp.ne.s32.totalorder %s197, %s200
    %p206 = scmp.eq.s32.totalorder %s14, 0
    %p207 = por %p205, %p206
    %p208 = scmp.ne.s32.totalorder %s197, %s200
    %p209 = scmp.eq.s32.totalorder %s19, 1
    %p210 = por %p208, %p209
    %p211 = scmp.ne.s32.totalorder %s200, %s201
    %p212 = scmp.eq.s32.totalorder %s19, 0
    %p213 = por %p211, %p212
    %p214 = scmp.ne.s32.totalorder %s200, %s201
    %p215 = scmp.eq.s32.totalorder %s20, 1
    %p216 = por %p214, %p215
    %p218 = scmp.ne.s32.totalorder %s201, %s217
    %p219 = scmp.eq.s32.totalorder %s20, 0
    %p220 = por %p218, %p219
    %p221 = scmp.le.s32.totalorder 1, %s14
    %p222 = scmp.lt.s32.totalorder %s14, 3
    %p223 = pnand %p221, %p222
    %p224 = pneg %p223
    // Predicated region
    $region9: #{dp_forward.4} parent=5 // pred_check
      _
    $region10: #{dp_forward.4} parent=5 // pred_check_branch
      %226 = sbr.rel (%p223) target = $region12
    $region11: #{dp_forward.4} parent=5 // pred_region
      %s227 = ssub.s32 %s14, 1
      // Predicated region
      $region13: #{dp_forward.4} parent=11 // pred_check
        %p228 = pneg %p61
      $region14: #{dp_forward.4} parent=11 // pred_check_branch
        %230 = sbr.rel (%p228) target = $region16
      $region15: #{dp_forward.4} parent=11 // pred_region
        _
      $region16: #{dp_forward.4} parent=11 // pred_fallthru
        _
      // Predicated region
      $region17: #{dp_forward.4} parent=11 // pred_check
        %p231 = pneg %p82
      $region18: #{dp_forward.4} parent=11 // pred_check_branch
        %233 = sbr.rel (%p231) target = $region20
      $region19: #{dp_forward.4} parent=11 // pred_region
        _
      $region20: #{dp_forward.4} parent=11 // pred_fallthru
        _
      // Predicated region
      $region21: #{dp_forward.4} parent=11 // pred_check
        %p234 = pneg %p103
      $region22: #{dp_forward.4} parent=11 // pred_check_branch
        %236 = sbr.rel (%p234) target = $region24
      $region23: #{dp_forward.4} parent=11 // pred_region
        _
      $region24: #{dp_forward.4} parent=11 // pred_fallthru
        _
      // Predicated region
      $region25: #{dp_forward.4} parent=11 // pred_check
        %p237 = pneg %p124
      $region26: #{dp_forward.4} parent=11 // pred_check_branch
        %239 = sbr.rel (%p237) target = $region28
      $region27: #{dp_forward.4} parent=11 // pred_region
        _
      $region28: #{dp_forward.4} parent=11 // pred_fallthru
        _
      // Predicated region
      $region29: #{dp_forward.4} parent=11 // pred_check
        %p240 = pneg %p145
      $region30: #{dp_forward.4} parent=11 // pred_check_branch
        %242 = sbr.rel (%p240) target = $region32
      $region31: #{dp_forward.4} parent=11 // pred_region
        _
      $region32: #{dp_forward.4} parent=11 // pred_fallthru
        _
      // Predicated region
      $region33: #{dp_forward.4} parent=11 // pred_check
        %p243 = pneg %p166
      $region34: #{dp_forward.4} parent=11 // pred_check_branch
        %245 = sbr.rel (%p243) target = $region36
      $region35: #{dp_forward.4} parent=11 // pred_region
        _
      $region36: #{dp_forward.4} parent=11 // pred_fallthru
        _
      // Predicated region
      $region37: #{dp_forward.4} parent=11 // pred_check
        %p246 = pneg %p187
      $region38: #{dp_forward.4} parent=11 // pred_check_branch
        %248 = sbr.rel (%p246) target = $region40
      $region39: #{dp_forward.4} parent=11 // pred_region
        _
      $region40: #{dp_forward.4} parent=11 // pred_fallthru
        _
    $region12: #{dp_forward.4} parent=5 // pred_fallthru
      _
    %p249 = scmp.lt.s32.totalorder %s14, 2
    // Predicated region
    $region41: #{dp_forward.4} parent=5 // pred_check
      %p250 = pneg %p249
    $region42: #{dp_forward.4} parent=5 // pred_check_branch
      %252 = sbr.rel (%p250) target = $region44
    $region43: #{dp_forward.4} parent=5 // pred_region
      // Predicated region
      $region45: #{dp_forward.4} parent=43 // pred_check
        %p253 = pneg %p34
      $region46: #{dp_forward.4} parent=43 // pred_check_branch
        %255 = sbr.rel (%p253) target = $region48
      $region47: #{dp_forward.4} parent=43 // pred_region
        %p256 = scmp.lt.s32.totalorder %s14, 1
        %s257 = scalar_select %p256, %s14, 1
        %s258 = smul.addr %s257, 24
        %s259 = smul.addr %s258, 8
        %s260 = scalar_lea.vmem %s0, %s259
      $region48: #{dp_forward.4} parent=43 // pred_fallthru
        _
    $region44: #{dp_forward.4} parent=5 // pred_fallthru
      _
    %p261 = scmp.le.s32.totalorder 1, %s14
    %p262 = scmp.lt.s32.totalorder %s14, 3
    %p263 = pnand %p261, %p262
    %p264 = pneg %p263
    // Predicated region
    $region49: #{dp_forward.4} parent=5 // pred_check
      _
    $region50: #{dp_forward.4} parent=5 // pred_check_branch
      %266 = sbr.rel (%p263) target = $region52
    $region51: #{dp_forward.4} parent=5 // pred_region
      %s267 = ssub.s32 %s14, 1
      %p268 = scmp.lt.s32.totalorder %s19, 1
      %s269 = scalar_select %p268, %s19, 1
      %s270 = smul.addr %s269, 24
      %s271 = smul.addr %s270, 8
      %s272 = scalar_lea.vmem %s0, %s271
      %p273 = pneg %p40
      %p274 = pneg %p37
      %p275 = pneg %p61
      %p276 = pneg %p58
      %p277 = pneg %p82
      %p278 = pneg %p79
      %p279 = pneg %p103
      %p280 = pneg %p100
      %p281 = pneg %p124
      %p282 = pneg %p121
      %p283 = pneg %p145
      %p284 = pneg %p142
      %p285 = pneg %p166
      %p286 = pneg %p163
      %p287 = pneg %p187
      %p288 = pneg %p184
      %p289 = pneg %p213
      %p290 = pneg %p210
      %p291 = scmp.lt.s32.totalorder %s19, 1
      %s292 = scalar_select %p291, %s19, 1
      %s293 = scalar_lea.vmem %s8, %s292
      %p294 = scmp.lt.s32.totalorder %s19, 1
      %s295 = scalar_select %p294, %s19, 1
      %s296 = smul.addr %s295, 24
      %s297 = smul.addr %s296, 8
      %s298 = scalar_lea.vmem %s0, %s297
      %p299 = scmp.lt.s32.totalorder %s19, 1
      %s300 = scalar_select %p299, %s19, 1
      %s301 = scalar_lea.vmem %s8, %s300
      %v302 = vld [vmem:[%s298] sm:$0xff]
      %v303 = vld [vmem:[%s298 + $0x8] sm:$0xff]
      %v304 = vld [vmem:[%s298 + $0x10] sm:$0xff]
      %v305 = vld [vmem:[%s298 + $0x18] sm:$0xff]
      %v306 = vld [vmem:[%s298 + $0x20] sm:$0xff]
      %v307 = vld [vmem:[%s298 + $0x28] sm:$0xff]
      %v308 = vld [vmem:[%s298 + $0x30] sm:$0xff]
      %v309 = vld [vmem:[%s298 + $0x38] sm:$0xff]
      %v310 = vld [vmem:[%s298 + $0x40] sm:$0xff]
      %v311 = vld [vmem:[%s298 + $0x48] sm:$0xff]
      %v312 = vld [vmem:[%s298 + $0x50] sm:$0xff]
      %v313 = vld [vmem:[%s298 + $0x58] sm:$0xff]
      %v314 = vld [vmem:[%s298 + $0x60] sm:$0xff]
      %v315 = vld [vmem:[%s298 + $0x68] sm:$0xff]
      %v316 = vld [vmem:[%s298 + $0x70] sm:$0xff]
      %v317 = vld [vmem:[%s298 + $0x78] sm:$0xff]
      %v318 = vld [vmem:[%s298 + $0x80] sm:$0xff]
      %v319 = vld [vmem:[%s298 + $0x88] sm:$0xff]
      %v320 = vld [vmem:[%s298 + $0x90] sm:$0xff]
      %v321 = vld [vmem:[%s298 + $0x98] sm:$0xff]
      %v322 = vld [vmem:[%s298 + $0xa0] sm:$0xff]
      %v323 = vld [vmem:[%s298 + $0xa8] sm:$0xff]
      %v324 = vld [vmem:[%s298 + $0xb0] sm:$0xff]
      %v325 = vld [vmem:[%s298 + $0xb8] sm:$0xff]
      %v326 = vld [vmem:[%s1] sm:$0xff]
      %v327 = vld [vmem:[%s1 + $0x8] sm:$0xff]
      %v328 = vld [vmem:[%s1 + $0x10] sm:$0xff]
      %v329 = vld [vmem:[%s1 + $0x18] sm:$0xff]
      %v330 = vld [vmem:[%s1 + $0x20] sm:$0xff]
      %v331 = vld [vmem:[%s1 + $0x28] sm:$0xff]
      %v332 = vld [vmem:[%s1 + $0x30] sm:$0xff]
      %v333 = vld [vmem:[%s1 + $0x38] sm:$0xff]
      %v334 = vld [vmem:[%s1 + $0x40] sm:$0xff]
      %v335 = vld [vmem:[%s1 + $0x48] sm:$0xff]
      %v336 = vld [vmem:[%s1 + $0x50] sm:$0xff]
      %v337 = vld [vmem:[%s1 + $0x58] sm:$0xff]
      %v338 = vld [vmem:[%s1 + $0x60] sm:$0xff]
      %v339 = vld [vmem:[%s1 + $0x68] sm:$0xff]
      %v340 = vld [vmem:[%s1 + $0x70] sm:$0xff]
      %v341 = vld [vmem:[%s1 + $0x78] sm:$0xff]
      %v342 = vld [vmem:[%s1 + $0x80] sm:$0xff]
      %v343 = vld [vmem:[%s1 + $0x88] sm:$0xff]
      %v344 = vld [vmem:[%s1 + $0x90] sm:$0xff]
      %v345 = vld [vmem:[%s1 + $0x98] sm:$0xff]
      %v346 = vld [vmem:[%s1 + $0xa0] sm:$0xff]
      %v347 = vld [vmem:[%s1 + $0xa8] sm:$0xff]
      %v348 = vld [vmem:[%s1 + $0xb0] sm:$0xff]
      %v349 = vld [vmem:[%s1 + $0xb8] sm:$0xff]
      %v350 = vld [vmem:[%s1 + $0xc0] sm:$0xff]
      %v351 = vld [vmem:[%s1 + $0xc8] sm:$0xff]
      %v352 = vld [vmem:[%s1 + $0xd0] sm:$0xff]
      %v353 = vld [vmem:[%s1 + $0xd8] sm:$0xff]
      %v354 = vld [vmem:[%s1 + $0xe0] sm:$0xff]
      %v355 = vld [vmem:[%s1 + $0xe8] sm:$0xff]
      %v356 = vld [vmem:[%s1 + $0xf0] sm:$0xff]
      %v357 = vld [vmem:[%s1 + $0xf8] sm:$0xff]
      %v358 = vld [vmem:[%s1 + $0x100] sm:$0xff]
      %v359 = vld [vmem:[%s1 + $0x108] sm:$0xff]
      %v360 = vld [vmem:[%s1 + $0x110] sm:$0xff]
      %v361 = vld [vmem:[%s1 + $0x118] sm:$0xff]
      %v362 = vld [vmem:[%s2] sm:$0x1]
      %v364 = vlaneseq
      %v365 = vshrl.u32 %v364, 7
      %v366 = vsub.s32 0, %v365
      %v367 = vrot.slane %v362, %v366
      %vm369 = vcmask 261120
      %v371 = vsel %vm369, %v304, 0
      %v374 = vsel %vm369, %v307, 0
      %v377 = vsel %vm369, %v310, 0
      %v380 = vsel %vm369, %v313, 0
      %v383 = vsel %vm369, %v316, 0
      %v386 = vsel %vm369, %v319, 0
      %v389 = vsel %vm369, %v322, 0
      %v392 = vsel %vm369, %v325, 0
      %394 = vmatprep.subr.mxu0 0.0
      %395 = vmatpush1.msra.mxu0 %v341
      %396 = vmatprep.subr.mxu0 0.0
      %397 = vmatpush1.msra.mxu0 %v340
      %398 = vmatprep.subr.mxu0 0.0
      %399 = vmatpush1.msra.mxu0 %v339
      %400 = vmatprep.subr.mxu0 0.0
      %401 = vmatpush1.msra.mxu0 %v338
      %402 = vmatprep.subr.mxu0 0.0
      %403 = vmatpush1.msra.mxu0 %v337
      %404 = vmatprep.subr.mxu0 0.0
      %405 = vmatpush1.msra.mxu0 %v336
      %406 = vmatprep.subr.mxu0 0.0
      %407 = vmatpush1.msra.mxu0 %v335
      %408 = vmatprep.subr.mxu0 0.0
      %409 = vmatpush1.msra.mxu0 %v334
      %410 = vmatprep.subr.mxu0 0.0
      %411 = vmatpush1.msra.mxu0 %v333
      %412 = vmatprep.subr.mxu0 0.0
      %413 = vmatpush1.msra.mxu0 %v332
      %414 = vmatprep.subr.mxu0 0.0
      %415 = vmatpush1.msra.mxu0 %v331
      %416 = vmatprep.subr.mxu0 0.0
      %417 = vmatpush1.msra.mxu0 %v330
      %418 = vmatprep.subr.mxu0 0.0
      %419 = vmatpush1.msra.mxu0 %v329
      %420 = vmatprep.subr.mxu0 0.0
      %421 = vmatpush1.msra.mxu0 %v328
      %422 = vmatprep.subr.mxu0 0.0
      %423 = vmatpush1.msra.mxu0 %v327
      %424 = vmatprep.subr.mxu0 0.0
      %425 = vmatpush1.msra.mxu0 %v326
      %426 = vmatprep.subr.mxu0 0.0
      %427 = vmatpush2.msra.mxu0 %v357
      %428 = vmatprep.subr.mxu0 0.0
      %429 = vmatpush2.msra.mxu0 %v356
      %430 = vmatprep.subr.mxu0 0.0
      %431 = vmatpush2.msra.mxu0 %v355
      %432 = vmatprep.subr.mxu0 0.0
      %433 = vmatpush2.msra.mxu0 %v354
      %434 = vmatprep.subr.mxu0 0.0
      %435 = vmatpush2.msra.mxu0 %v353
      %436 = vmatprep.subr.mxu0 0.0
      %437 = vmatpush2.msra.mxu0 %v352
      %438 = vmatprep.subr.mxu0 0.0
      %439 = vmatpush2.msra.mxu0 %v351
      %440 = vmatprep.subr.mxu0 0.0
      %441 = vmatpush2.msra.mxu0 %v350
      %442 = vmatprep.subr.mxu0 0.0
      %443 = vmatpush2.msra.mxu0 %v349
      %444 = vmatprep.subr.mxu0 0.0
      %445 = vmatpush2.msra.mxu0 %v348
      %446 = vmatprep.subr.mxu0 0.0
      %447 = vmatpush2.msra.mxu0 %v347
      %448 = vmatprep.subr.mxu0 0.0
      %449 = vmatpush2.msra.mxu0 %v346
      %450 = vmatprep.subr.mxu0 0.0
      %451 = vmatpush2.msra.mxu0 %v345
      %452 = vmatprep.subr.mxu0 0.0
      %453 = vmatpush2.msra.mxu0 %v344
      %454 = vmatprep.subr.mxu0 0.0
      %455 = vmatpush2.msra.mxu0 %v343
      %456 = vmatprep.subr.mxu0 0.0
      %457 = vmatpush2.msra.mxu0 %v342
      %458 = vmatprep.mubr.f32.mxu0 %v303
      %459 = vmatmul.mubr.f32.gmra.mxu0 %v302
      %v460 = vpop.f32.mrf.mxu0
      %v461 = vadd.f32 %v367, %v460
      %v462 = vpop.f32.mrf.mxu0
      %463 = vmatprep.mubr.f32.mxu0 %v306
      %464 = vmatmul.mubr.f32.gmra.mxu0 %v305
      %v465 = vpop.f32.mrf.mxu0
      %v466 = vadd.f32 %v367, %v465
      %v467 = vpop.f32.mrf.mxu0
      %468 = vmatprep.mubr.f32.mxu0 %v309
      %469 = vmatmul.mubr.f32.gmra.mxu0 %v308
      %v470 = vpop.f32.mrf.mxu0
      %v471 = vadd.f32 %v367, %v470
      %v472 = vpop.f32.mrf.mxu0
      %473 = vmatprep.mubr.f32.mxu0 %v312
      %474 = vmatmul.mubr.f32.gmra.mxu0 %v311
      %v475 = vpop.f32.mrf.mxu0
      %v476 = vadd.f32 %v367, %v475
      %v477 = vpop.f32.mrf.mxu0
      %478 = vmatprep.mubr.f32.mxu0 %v315
      %479 = vmatmul.mubr.f32.gmra.mxu0 %v314
      %v480 = vpop.f32.mrf.mxu0
      %v481 = vadd.f32 %v367, %v480
      %v482 = vpop.f32.mrf.mxu0
      %483 = vmatprep.mubr.f32.mxu0 %v318
      %484 = vmatmul.mubr.f32.gmra.mxu0 %v317
      %v485 = vpop.f32.mrf.mxu0
      %v486 = vadd.f32 %v367, %v485
      %v487 = vpop.f32.mrf.mxu0
      %488 = vmatprep.mubr.f32.mxu0 %v321
      %489 = vmatmul.mubr.f32.gmra.mxu0 %v320
      %v490 = vpop.f32.mrf.mxu0
      %v491 = vadd.f32 %v367, %v490
      %v492 = vpop.f32.mrf.mxu0
      %493 = vmatprep.mubr.f32.mxu0 %v324
      %494 = vmatmul.mubr.f32.gmra.mxu0 %v323
      %v495 = vpop.f32.mrf.mxu0
      %v496 = vadd.f32 %v367, %v495
      %v497 = vpop.f32.mrf.mxu0
      %498 = vdwg.mxu0
      %499 = vmatprep.subr.mxu0 0.0
      %500 = vmatpush1.msra.mxu0 0.0
      %501 = vmatprep.subr.mxu0 0.0
      %502 = vmatpush1.msra.mxu0 0.0
      %503 = vmatprep.subr.mxu0 0.0
      %504 = vmatpush1.msra.mxu0 0.0
      %505 = vmatprep.subr.mxu0 0.0
      %506 = vmatpush1.msra.mxu0 0.0
      %507 = vmatprep.subr.mxu0 0.0
      %508 = vmatpush1.msra.mxu0 0.0
      %509 = vmatprep.subr.mxu0 0.0
      %510 = vmatpush1.msra.mxu0 0.0
      %511 = vmatprep.subr.mxu0 0.0
      %512 = vmatpush1.msra.mxu0 0.0
      %513 = vmatprep.subr.mxu0 0.0
      %514 = vmatpush1.msra.mxu0 0.0
      %515 = vmatprep.subr.mxu0 0.0
      %516 = vmatpush1.msra.mxu0 0.0
      %517 = vmatprep.subr.mxu0 0.0
      %518 = vmatpush1.msra.mxu0 0.0
      %519 = vmatprep.subr.mxu0 0.0
      %520 = vmatpush1.msra.mxu0 0.0
      %521 = vmatprep.subr.mxu0 0.0
      %522 = vmatpush1.msra.mxu0 0.0
      %523 = vmatprep.subr.mxu0 0.0
      %524 = vmatpush1.msra.mxu0 %v361
      %525 = vmatprep.subr.mxu0 0.0
      %526 = vmatpush1.msra.mxu0 %v360
      %527 = vmatprep.subr.mxu0 0.0
      %528 = vmatpush1.msra.mxu0 %v359
      %529 = vmatprep.subr.mxu0 0.0
      %530 = vmatpush1.msra.mxu0 %v358
      %531 = vmatprep.subr.mxu0 0.0
      %532 = vmatpush2.msra.mxu0 0.0
      %533 = vmatprep.subr.mxu0 0.0
      %534 = vmatpush2.msra.mxu0 0.0
      %535 = vmatprep.subr.mxu0 0.0
      %536 = vmatpush2.msra.mxu0 0.0
      %537 = vmatprep.subr.mxu0 0.0
      %538 = vmatpush2.msra.mxu0 0.0
      %539 = vmatprep.subr.mxu0 0.0
      %540 = vmatpush2.msra.mxu0 0.0
      %541 = vmatprep.subr.mxu0 0.0
      %542 = vmatpush2.msra.mxu0 0.0
      %543 = vmatprep.subr.mxu0 0.0
      %544 = vmatpush2.msra.mxu0 0.0
      %545 = vmatprep.subr.mxu0 0.0
      %546 = vmatpush2.msra.mxu0 0.0
      %547 = vmatprep.subr.mxu0 0.0
      %548 = vmatpush2.msra.mxu0 0.0
      %549 = vmatprep.subr.mxu0 0.0
      %550 = vmatpush2.msra.mxu0 0.0
      %551 = vmatprep.subr.mxu0 0.0
      %552 = vmatpush2.msra.mxu0 0.0
      %553 = vmatprep.subr.mxu0 0.0
      %554 = vmatpush2.msra.mxu0 0.0
      %555 = vmatprep.subr.mxu0 0.0
      %556 = vmatpush2.msra.mxu0 0.0
      %557 = vmatprep.subr.mxu0 0.0
      %558 = vmatpush2.msra.mxu0 0.0
      %559 = vmatprep.subr.mxu0 0.0
      %560 = vmatpush2.msra.mxu0 0.0
      %561 = vmatprep.subr.mxu0 0.0
      %562 = vmatpush2.msra.mxu0 0.0
      %563 = vmatprep.mubr.f32.mxu0 0.0
      %564 = vmatmul.mubr.f32.gmra.mxu0 %v371
      %v565 = vpop.f32.mrf.mxu0
      %v566 = vadd.f32 %v461, %v565
      %v567 = vpop.f32.mrf.mxu0
      %568 = vmatprep.mubr.f32.mxu0 0.0
      %569 = vmatmul.mubr.f32.gmra.mxu0 %v374
      %v570 = vpop.f32.mrf.mxu0
      %v571 = vadd.f32 %v466, %v570
      %v572 = vpop.f32.mrf.mxu0
      %573 = vmatprep.mubr.f32.mxu0 0.0
      %574 = vmatmul.mubr.f32.gmra.mxu0 %v377
      %v575 = vpop.f32.mrf.mxu0
      %v576 = vadd.f32 %v471, %v575
      %v577 = vpop.f32.mrf.mxu0
      %578 = vmatprep.mubr.f32.mxu0 0.0
      %579 = vmatmul.mubr.f32.gmra.mxu0 %v380
      %v580 = vpop.f32.mrf.mxu0
      %v581 = vadd.f32 %v476, %v580
      %v582 = vpop.f32.mrf.mxu0
      %583 = vmatprep.mubr.f32.mxu0 0.0
      %584 = vmatmul.mubr.f32.gmra.mxu0 %v383
      %v585 = vpop.f32.mrf.mxu0
      %v586 = vadd.f32 %v481, %v585
      %v587 = vpop.f32.mrf.mxu0
      %588 = vmatprep.mubr.f32.mxu0 0.0
      %589 = vmatmul.mubr.f32.gmra.mxu0 %v386
      %v590 = vpop.f32.mrf.mxu0
      %v591 = vadd.f32 %v486, %v590
      %v592 = vpop.f32.mrf.mxu0
      %593 = vmatprep.mubr.f32.mxu0 0.0
      %594 = vmatmul.mubr.f32.gmra.mxu0 %v389
      %v595 = vpop.f32.mrf.mxu0
      %v596 = vadd.f32 %v491, %v595
      %v597 = vpop.f32.mrf.mxu0
      %598 = vmatprep.mubr.f32.mxu0 0.0
      %599 = vmatmul.mubr.f32.gmra.mxu0 %v392
      %v600 = vpop.f32.mrf.mxu0
      %v601 = vadd.f32 %v496, %v600
      %v602 = vpop.f32.mrf.mxu0
      %603 = vdwg.mxu0
      %v604 = vld [vmem:[%s3] sm:$0x1]
      %v605 = vld [vmem:[%s4] sm:$0x1]
      %v606 = vld [vmem:[%s5] sm:$0xff]
      %v607 = vld [vmem:[%s5 + $0x8] sm:$0xff]
      %v608 = vld [vmem:[%s5 + $0x10] sm:$0xff]
      %v609 = vld [vmem:[%s5 + $0x18] sm:$0xff]
      %v610 = vld [vmem:[%s5 + $0x20] sm:$0xff]
      %v611 = vld [vmem:[%s5 + $0x28] sm:$0xff]
      %v612 = vld [vmem:[%s5 + $0x30] sm:$0xff]
      %v613 = vld [vmem:[%s5 + $0x38] sm:$0xff]
      %vm614 = vcmask 523264
      %v615 = vsel %vm614, %v566, 0.0
      %v616 = vsel %vm614, %v571, 0.0
      %v617 = vadd.f32 %v615, %v616
      %v618 = vsel %vm614, %v576, 0.0
      %v619 = vadd.f32 %v617, %v618
      %v620 = vsel %vm614, %v581, 0.0
      %v621 = vadd.f32 %v619, %v620
      %v622 = vsel %vm614, %v586, 0.0
      %v623 = vadd.f32 %v621, %v622
      %v624 = vsel %vm614, %v591, 0.0
      %v625 = vadd.f32 %v623, %v624
      %v626 = vsel %vm614, %v596, 0.0
      %v627 = vadd.f32 %v625, %v626
      %v628 = vsel %vm614, %v601, 0.0
      %v629 = vadd.f32 %v627, %v628
      %v630 = vrot.slane %v629, 4
      %v631 = vadd.f32 %v629, %v630
      %v632 = vrot.slane %v631, 2
      %v633 = vadd.f32 %v631, %v632
      %v634 = vrot.slane %v633, 1
      %v635 = vadd.f32 %v633, %v634
      %v636 = vrcp.pop 64.0
      %v637 = vmul.f32 %v635, %v636
      %v638 = vmul.f32 %v566, %v566
      %v639 = vmul.f32 %v571, %v571
      %v640 = vmul.f32 %v576, %v576
      %v641 = vmul.f32 %v581, %v581
      %v642 = vmul.f32 %v586, %v586
      %v643 = vmul.f32 %v591, %v591
      %v644 = vmul.f32 %v596, %v596
      %v645 = vmul.f32 %v601, %v601
      %v646 = vsel %vm614, %v638, 0.0
      %v647 = vsel %vm614, %v639, 0.0
      %v648 = vadd.f32 %v646, %v647
      %v649 = vsel %vm614, %v640, 0.0
      %v650 = vadd.f32 %v648, %v649
      %v651 = vsel %vm614, %v641, 0.0
      %v652 = vadd.f32 %v650, %v651
      %v653 = vsel %vm614, %v642, 0.0
      %v654 = vadd.f32 %v652, %v653
      %v655 = vsel %vm614, %v643, 0.0
      %v656 = vadd.f32 %v654, %v655
      %v657 = vsel %vm614, %v644, 0.0
      %v658 = vadd.f32 %v656, %v657
      %v659 = vsel %vm614, %v645, 0.0
      %v660 = vadd.f32 %v658, %v659
      %v661 = vrot.slane %v660, 4
      %v662 = vadd.f32 %v660, %v661
      %v663 = vrot.slane %v662, 2
      %v664 = vadd.f32 %v662, %v663
      %v665 = vrot.slane %v664, 1
      %v666 = vadd.f32 %v664, %v665
      %v667 = vmul.f32 %v666, %v636
      %v669 = vsel %vm614, %v637, 0
      %671 = vmatprep.subr.mxu0 0.0
      %672 = vmatpush1.msra.mxu0 0.0
      %673 = vmatprep.subr.mxu0 0.0
      %674 = vmatpush1.msra.mxu0 0.0
      %675 = vmatprep.subr.mxu0 0.0
      %676 = vmatpush1.msra.mxu0 0.0
      %677 = vmatprep.subr.mxu0 0.0
      %678 = vmatpush1.msra.mxu0 0.0
      %679 = vmatprep.subr.mxu0 0.0
      %680 = vmatpush1.msra.mxu0 0.0
      %681 = vmatprep.subr.mxu0 0.0
      %682 = vmatpush1.msra.mxu0 0.0
      %683 = vmatprep.subr.mxu0 0.0
      %684 = vmatpush1.msra.mxu0 0.0
      %685 = vmatprep.subr.mxu0 0.0
      %686 = vmatpush1.msra.mxu0 0.0
      %687 = vmatprep.subr.mxu0 0.0
      %688 = vmatpush1.msra.mxu0 %v613
      %689 = vmatprep.subr.mxu0 0.0
      %690 = vmatpush1.msra.mxu0 %v612
      %691 = vmatprep.subr.mxu0 0.0
      %692 = vmatpush1.msra.mxu0 %v611
      %693 = vmatprep.subr.mxu0 0.0
      %694 = vmatpush1.msra.mxu0 %v610
      %695 = vmatprep.subr.mxu0 0.0
      %696 = vmatpush1.msra.mxu0 %v609
      %697 = vmatprep.subr.mxu0 0.0
      %698 = vmatpush1.msra.mxu0 %v608
      %699 = vmatprep.subr.mxu0 0.0
      %700 = vmatpush1.msra.mxu0 %v607
      %701 = vmatprep.subr.mxu0 0.0
      %702 = vmatpush1.msra.mxu0 %v606
      %703 = vmatprep.subr.mxu0 0.0
      %704 = vmatpush2.msra.mxu0 0.0
      %705 = vmatprep.subr.mxu0 0.0
      %706 = vmatpush2.msra.mxu0 0.0
      %707 = vmatprep.subr.mxu0 0.0
      %708 = vmatpush2.msra.mxu0 0.0
      %709 = vmatprep.subr.mxu0 0.0
      %710 = vmatpush2.msra.mxu0 0.0
      %711 = vmatprep.subr.mxu0 0.0
      %712 = vmatpush2.msra.mxu0 0.0
      %713 = vmatprep.subr.mxu0 0.0
      %714 = vmatpush2.msra.mxu0 0.0
      %715 = vmatprep.subr.mxu0 0.0
      %716 = vmatpush2.msra.mxu0 0.0
      %717 = vmatprep.subr.mxu0 0.0
      %718 = vmatpush2.msra.mxu0 0.0
      %719 = vmatprep.subr.mxu0 0.0
      %720 = vmatpush2.msra.mxu0 0.0
      %721 = vmatprep.subr.mxu0 0.0
      %722 = vmatpush2.msra.mxu0 0.0
      %723 = vmatprep.subr.mxu0 0.0
      %724 = vmatpush2.msra.mxu0 0.0
      %725 = vmatprep.subr.mxu0 0.0
      %726 = vmatpush2.msra.mxu0 0.0
      %727 = vmatprep.subr.mxu0 0.0
      %728 = vmatpush2.msra.mxu0 0.0
      %729 = vmatprep.subr.mxu0 0.0
      %730 = vmatpush2.msra.mxu0 0.0
      %731 = vmatprep.subr.mxu0 0.0
      %732 = vmatpush2.msra.mxu0 0.0
      %733 = vmatprep.subr.mxu0 0.0
      %734 = vmatpush2.msra.mxu0 0.0
      %735 = vmatprep.mubr.f32.mxu0 0.0
      %736 = vmatmul.mubr.f32.gmra.mxu0 %v669
      %v737 = vpop.f32.mrf.mxu0
      %v738 = vadd.f32 0.0, %v737
      %v739 = vpop.f32.mrf.mxu0
      %740 = vdwg.mxu0
      %v742 = vsel %vm614, %v667, 0
      %744 = vmatprep.subr.mxu0 0.0
      %745 = vmatpush1.msra.mxu0 0.0
      %746 = vmatprep.subr.mxu0 0.0
      %747 = vmatpush1.msra.mxu0 0.0
      %748 = vmatprep.subr.mxu0 0.0
      %749 = vmatpush1.msra.mxu0 0.0
      %750 = vmatprep.subr.mxu0 0.0
      %751 = vmatpush1.msra.mxu0 0.0
      %752 = vmatprep.subr.mxu0 0.0
      %753 = vmatpush1.msra.mxu0 0.0
      %754 = vmatprep.subr.mxu0 0.0
      %755 = vmatpush1.msra.mxu0 0.0
      %756 = vmatprep.subr.mxu0 0.0
      %757 = vmatpush1.msra.mxu0 0.0
      %758 = vmatprep.subr.mxu0 0.0
      %759 = vmatpush1.msra.mxu0 0.0
      %760 = vmatprep.subr.mxu0 0.0
      %761 = vmatpush1.msra.mxu0 %v613
      %762 = vmatprep.subr.mxu0 0.0
      %763 = vmatpush1.msra.mxu0 %v612
      %764 = vmatprep.subr.mxu0 0.0
      %765 = vmatpush1.msra.mxu0 %v611
      %766 = vmatprep.subr.mxu0 0.0
      %767 = vmatpush1.msra.mxu0 %v610
      %768 = vmatprep.subr.mxu0 0.0
      %769 = vmatpush1.msra.mxu0 %v609
      %770 = vmatprep.subr.mxu0 0.0
      %771 = vmatpush1.msra.mxu0 %v608
      %772 = vmatprep.subr.mxu0 0.0
      %773 = vmatpush1.msra.mxu0 %v607
      %774 = vmatprep.subr.mxu0 0.0
      %775 = vmatpush1.msra.mxu0 %v606
      %776 = vmatprep.subr.mxu0 0.0
      %777 = vmatpush2.msra.mxu0 0.0
      %778 = vmatprep.subr.mxu0 0.0
      %779 = vmatpush2.msra.mxu0 0.0
      %780 = vmatprep.subr.mxu0 0.0
      %781 = vmatpush2.msra.mxu0 0.0
      %782 = vmatprep.subr.mxu0 0.0
      %783 = vmatpush2.msra.mxu0 0.0
      %784 = vmatprep.subr.mxu0 0.0
      %785 = vmatpush2.msra.mxu0 0.0
      %786 = vmatprep.subr.mxu0 0.0
      %787 = vmatpush2.msra.mxu0 0.0
      %788 = vmatprep.subr.mxu0 0.0
      %789 = vmatpush2.msra.mxu0 0.0
      %790 = vmatprep.subr.mxu0 0.0
      %791 = vmatpush2.msra.mxu0 0.0
      %792 = vmatprep.subr.mxu0 0.0
      %793 = vmatpush2.msra.mxu0 0.0
      %794 = vmatprep.subr.mxu0 0.0
      %795 = vmatpush2.msra.mxu0 0.0
      %796 = vmatprep.subr.mxu0 0.0
      %797 = vmatpush2.msra.mxu0 0.0
      %798 = vmatprep.subr.mxu0 0.0
      %799 = vmatpush2.msra.mxu0 0.0
      %800 = vmatprep.subr.mxu0 0.0
      %801 = vmatpush2.msra.mxu0 0.0
      %802 = vmatprep.subr.mxu0 0.0
      %803 = vmatpush2.msra.mxu0 0.0
      %804 = vmatprep.subr.mxu0 0.0
      %805 = vmatpush2.msra.mxu0 0.0
      %806 = vmatprep.subr.mxu0 0.0
      %807 = vmatpush2.msra.mxu0 0.0
      %808 = vmatprep.mubr.f32.mxu0 0.0
      %809 = vmatmul.mubr.f32.gmra.mxu0 %v742
      %v810 = vpop.f32.mrf.mxu0
      %v811 = vadd.f32 0.0, %v810
      %v812 = vpop.f32.mrf.mxu0
      %813 = vdwg.mxu0
      %v814 = vmul.f32 %v738, %v738
      %v815 = vsub.f32 %v811, %v814
      %v816 = vlaneseq
      %v817 = vshrl.u32 %v816, 7
      %v818 = vsub.s32 0, %v817
      %v819 = vrot.slane %v738, %v818
      %v820 = vsub.f32 %v566, %v819
      %v821 = vsub.f32 %v571, %v819
      %v822 = vsub.f32 %v576, %v819
      %v823 = vsub.f32 %v581, %v819
      %v824 = vsub.f32 %v586, %v819
      %v825 = vsub.f32 %v591, %v819
      %v826 = vsub.f32 %v596, %v819
      %v827 = vsub.f32 %v601, %v819
      %v828 = vmax.f32 %v815, 0.0
      %v829 = vadd.f32 %v828, 1e-05
      %v830 = vrsqrt.pop %v829
      %v831 = vlaneseq
      %v832 = vshrl.u32 %v831, 7
      %v833 = vsub.s32 0, %v832
      %v834 = vrot.slane %v830, %v833
      %v835 = vmul.f32 %v820, %v834
      %v836 = vmul.f32 %v821, %v834
      %v837 = vmul.f32 %v822, %v834
      %v838 = vmul.f32 %v823, %v834
      %v839 = vmul.f32 %v824, %v834
      %v840 = vmul.f32 %v825, %v834
      %v841 = vmul.f32 %v826, %v834
      %v842 = vmul.f32 %v827, %v834
      %v844 = vlaneseq
      %v845 = vshrl.u32 %v844, 7
      %v846 = vsub.s32 0, %v845
      %v847 = vrot.slane %v604, %v846
      %v849 = vmul.f32 %v835, %v847
      %v850 = vmul.f32 %v836, %v847
      %v851 = vmul.f32 %v837, %v847
      %v852 = vmul.f32 %v838, %v847
      %v853 = vmul.f32 %v839, %v847
      %v854 = vmul.f32 %v840, %v847
      %v855 = vmul.f32 %v841, %v847
      %v856 = vmul.f32 %v842, %v847
      %v858 = vlaneseq
      %v859 = vshrl.u32 %v858, 7
      %v860 = vsub.s32 0, %v859
      %v861 = vrot.slane %v605, %v860
      %v863 = vadd.f32 %v849, %v861
      %v864 = vadd.f32 %v850, %v861
      %v865 = vadd.f32 %v851, %v861
      %v866 = vadd.f32 %v852, %v861
      %v867 = vadd.f32 %v853, %v861
      %v868 = vadd.f32 %v854, %v861
      %v869 = vadd.f32 %v855, %v861
      %v870 = vadd.f32 %v856, %v861
      %v871 = vmax.f32 %v863, 0.0
      %v872 = vmax.f32 %v864, 0.0
      %v873 = vmax.f32 %v865, 0.0
      %v874 = vmax.f32 %v866, 0.0
      %v875 = vmax.f32 %v867, 0.0
      %v876 = vmax.f32 %v868, 0.0
      %v877 = vmax.f32 %v869, 0.0
      %v878 = vmax.f32 %v870, 0.0
      %v879 = vsel %vm614, %v871, 0.0
      %v880 = vsel %vm614, %v872, 0.0
      %v881 = vadd.f32 %v879, %v880
      %v882 = vsel %vm614, %v873, 0.0
      %v883 = vadd.f32 %v881, %v882
      %v884 = vsel %vm614, %v874, 0.0
      %v885 = vadd.f32 %v883, %v884
      %v886 = vsel %vm614, %v875, 0.0
      %v887 = vadd.f32 %v885, %v886
      %v888 = vsel %vm614, %v876, 0.0
      %v889 = vadd.f32 %v887, %v888
      %v890 = vsel %vm614, %v877, 0.0
      %v891 = vadd.f32 %v889, %v890
      %v892 = vsel %vm614, %v878, 0.0
      %v893 = vadd.f32 %v891, %v892
      %v894 = vrot.slane %v893, 4
      %v895 = vadd.f32 %v893, %v894
      %v896 = vrot.slane %v895, 2
      %v897 = vadd.f32 %v895, %v896
      %v898 = vrot.slane %v897, 1
      %v899 = vadd.f32 %v897, %v898
      %v900 = vmul.f32 %v899, %v636
      %v901 = vld [vmem:[%s6] sm:$0xff]
      %v902 = vld [vmem:[%s6 + $0x8] sm:$0xff]
      %v903 = vld [vmem:[%s6 + $0x10] sm:$0xff]
      %v904 = vld [vmem:[%s6 + $0x18] sm:$0xff]
      %v905 = vld [vmem:[%s6 + $0x20] sm:$0xff]
      %v906 = vld [vmem:[%s6 + $0x28] sm:$0xff]
      %v907 = vld [vmem:[%s6 + $0x30] sm:$0xff]
      %v908 = vld [vmem:[%s6 + $0x38] sm:$0xff]
      %v909 = vld [vmem:[%s7] sm:$0x1]
      %v911 = vsel %vm614, %v900, 0
      %913 = vmatprep.subr.mxu0 0.0
      %914 = vmatpush1.msra.mxu0 0.0
      %915 = vmatprep.subr.mxu0 0.0
      %916 = vmatpush1.msra.mxu0 0.0
      %917 = vmatprep.subr.mxu0 0.0
      %918 = vmatpush1.msra.mxu0 0.0
      %919 = vmatprep.subr.mxu0 0.0
      %920 = vmatpush1.msra.mxu0 0.0
      %921 = vmatprep.subr.mxu0 0.0
      %922 = vmatpush1.msra.mxu0 0.0
      %923 = vmatprep.subr.mxu0 0.0
      %924 = vmatpush1.msra.mxu0 0.0
      %925 = vmatprep.subr.mxu0 0.0
      %926 = vmatpush1.msra.mxu0 0.0
      %927 = vmatprep.subr.mxu0 0.0
      %928 = vmatpush1.msra.mxu0 0.0
      %929 = vmatprep.subr.mxu0 0.0
      %930 = vmatpush1.msra.mxu0 %v908
      %931 = vmatprep.subr.mxu0 0.0
      %932 = vmatpush1.msra.mxu0 %v907
      %933 = vmatprep.subr.mxu0 0.0
      %934 = vmatpush1.msra.mxu0 %v906
      %935 = vmatprep.subr.mxu0 0.0
      %936 = vmatpush1.msra.mxu0 %v905
      %937 = vmatprep.subr.mxu0 0.0
      %938 = vmatpush1.msra.mxu0 %v904
      %939 = vmatprep.subr.mxu0 0.0
      %940 = vmatpush1.msra.mxu0 %v903
      %941 = vmatprep.subr.mxu0 0.0
      %942 = vmatpush1.msra.mxu0 %v902
      %943 = vmatprep.subr.mxu0 0.0
      %944 = vmatpush1.msra.mxu0 %v901
      %945 = vmatprep.subr.mxu0 0.0
      %946 = vmatpush2.msra.mxu0 0.0
      %947 = vmatprep.subr.mxu0 0.0
      %948 = vmatpush2.msra.mxu0 0.0
      %949 = vmatprep.subr.mxu0 0.0
      %950 = vmatpush2.msra.mxu0 0.0
      %951 = vmatprep.subr.mxu0 0.0
      %952 = vmatpush2.msra.mxu0 0.0
      %953 = vmatprep.subr.mxu0 0.0
      %954 = vmatpush2.msra.mxu0 0.0
      %955 = vmatprep.subr.mxu0 0.0
      %956 = vmatpush2.msra.mxu0 0.0
      %957 = vmatprep.subr.mxu0 0.0
      %958 = vmatpush2.msra.mxu0 0.0
      %959 = vmatprep.subr.mxu0 0.0
      %960 = vmatpush2.msra.mxu0 0.0
      %961 = vmatprep.subr.mxu0 0.0
      %962 = vmatpush2.msra.mxu0 0.0
      %963 = vmatprep.subr.mxu0 0.0
      %964 = vmatpush2.msra.mxu0 0.0
      %965 = vmatprep.subr.mxu0 0.0
      %966 = vmatpush2.msra.mxu0 0.0
      %967 = vmatprep.subr.mxu0 0.0
      %968 = vmatpush2.msra.mxu0 0.0
      %969 = vmatprep.subr.mxu0 0.0
      %970 = vmatpush2.msra.mxu0 0.0
      %971 = vmatprep.subr.mxu0 0.0
      %972 = vmatpush2.msra.mxu0 0.0
      %973 = vmatprep.subr.mxu0 0.0
      %974 = vmatpush2.msra.mxu0 0.0
      %975 = vmatprep.subr.mxu0 0.0
      %976 = vmatpush2.msra.mxu0 0.0
      %977 = vmatprep.mubr.f32.mxu0 0.0
      %978 = vmatmul.mubr.f32.gmra.mxu0 %v911
      %v979 = vpop.f32.mrf.mxu0
      %v980 = vadd.f32 %v909, %v979
      %v981 = vpop.f32.mrf.mxu0
      %982 = vdwg.mxu0
      %vm983 = vcmask 516096
      %984 = vst.msk [vmem:[%s301] sm:$0x1] %vm983, %v980
      %p985 = scmp.lt.s32.totalorder %s19, 1
      %s986 = scalar_select %p985, %s19, 1
      %s987 = scalar_lea.vmem %s8, %s986
      // Predicated region
      $region53: #{dp_forward.4} parent=51 // pred_check
        %p988 = pneg %p210
      $region54: #{dp_forward.4} parent=51 // pred_check_branch
        %990 = sbr.rel (%p988) target = $region56
      $region55: #{dp_forward.4} parent=51 // pred_region
        _
      $region56: #{dp_forward.4} parent=51 // pred_fallthru
        _
    $region52: #{dp_forward.4} parent=5 // pred_fallthru
      _
    %p991 = scmp.le.s32.totalorder 2, %s14
    // Predicated region
    $region57: #{dp_forward.4} parent=5 // pred_check
      %p992 = pneg %p991
    $region58: #{dp_forward.4} parent=5 // pred_check_branch
      %994 = sbr.rel (%p992) target = $region60
    $region59: #{dp_forward.4} parent=5 // pred_region
      %s995 = ssub.s32 %s14, 2
      // Predicated region
      $region61: #{dp_forward.4} parent=59 // pred_check
        %p996 = pneg %p216
      $region62: #{dp_forward.4} parent=59 // pred_check_branch
        %998 = sbr.rel (%p996) target = $region64
      $region63: #{dp_forward.4} parent=59 // pred_region
        %p999 = scmp.lt.s32.totalorder %s20, 1
        %s1000 = scalar_select %p999, %s20, 1
        %s1001 = scalar_lea.vmem %s8, %s1000
      $region64: #{dp_forward.4} parent=59 // pred_fallthru
        _
    $region60: #{dp_forward.4} parent=5 // pred_fallthru
      _
  $region6: #{dp_forward.4} parent=0 // loop_footer
    %s18 = sadd.s32 1, %s14
  $region7: #{dp_forward.4} parent=0 // loop_footer_branch
    %13 = sbr.rel target = $region3
  $region8: #{dp_forward.4} parent=0 // loop_exit
    _

// kernel: dp_forward.5
$region0: #{dp_forward.5}
  #allocation0 [shape = 'u32[]', space=smem, size = 0x4, offset = 0x4, fixed_abs, tag = 'smem constant byte address 0x4 - core index']
  #allocation1 [shape = 'u32[144,128]{1,0:T(1,128)}', space=vmem, size = 0x12000, scoped, tag = 'internal scratch']
  %s0 = inlined_call_operand.vmem [shape: f32[5,1,32], index: 0, kind: input, shape index: {}]
  %s1 = inlined_call_operand.vmem [shape: f32[2,1,64], index: 1, kind: input, shape index: {}]
  %s2 = inlined_call_operand.vmem [shape: f32[2,20,10], index: 2, kind: input, shape index: {}]
  %s3 = inlined_call_operand.vmem [shape: f32[5,2,20,10], index: 3, kind: input, shape index: {}]
  %s4 = inlined_call_operand.vmem [shape: f32[32,128], index: 4, kind: input, shape index: {}]
  %s5 = inlined_call_operand.vmem [shape: f32[1,128], index: 5, kind: input, shape index: {}]
  %s6 = inlined_call_operand.vmem [shape: f32[128,64], index: 6, kind: input, shape index: {}]
  %s7 = inlined_call_operand.vmem [shape: f32[1,64], index: 7, kind: input, shape index: {}]
  %s8 = inlined_call_operand.vmem [shape: f32[128,64], index: 8, kind: input, shape index: {}]
  %s9 = inlined_call_operand.vmem [shape: f32[1,64], index: 9, kind: input, shape index: {}]
  %s10 = inlined_call_operand.vmem [shape: f32[128,64], index: 10, kind: input, shape index: {}]
  %s11 = inlined_call_operand.vmem [shape: f32[1,64], index: 11, kind: input, shape index: {}]
  %s12 = inlined_call_operand.vmem [shape: f32[30,64], index: 12, kind: input, shape index: {}]
  %s13 = inlined_call_operand.vmem [shape: f32[1,64], index: 13, kind: input, shape index: {}]
  %s14 = inlined_call_operand.vmem [shape: f32[192,10], index: 14, kind: input, shape index: {}]
  %s15 = inlined_call_operand.vmem [shape: f32[1,10], index: 15, kind: input, shape index: {}]
  %s16 = inlined_call_operand.vmem [shape: f32[2,20,10], index: 16, kind: output, shape index: {}]
  %s17 = sld [smem:[#allocation0]]
  $region135: #{dp_forward.5} parent=0
    _
  %s19 = ssub.s32 1, %s17
  %s20 = scalar_select 0, %s19, %s17
  $region1: #{dp_forward.5} parent=0
    #allocation2 [shape = 'u8[122880]{0}', space=vmem, size = 0x1e000, scoped, tag = 'input window, operand 3']
    loop: start=0, step=1, limit=4
    $region2: #{dp_forward.5} parent=1 // loop_pre_header
      _
    $region3: #{dp_forward.5} parent=1 // loop_header
      %s22 = sphi 0, %s26
      %p23 = scmp.ge.s32.totalorder %s22, 4
      %s30 = sphi 0, %s30
      %s32 = sphi 0, %s30
      %s33 = sphi 0, %s32
      %s47 = sphi 0, %s33
      %s53 = sphi 0, %s55
      %s56 = sphi 0, %s53
      %s57 = sphi 0, %s56
      %s73 = sphi 0, %s57
      %s79 = sphi 0, %s81
      %s82 = sphi 0, %s79
      %s83 = sphi 0, %s82
      %s99 = sphi 0, %s83
      %s105 = sphi 0, %s107
      %s108 = sphi 0, %s105
      %s109 = sphi 0, %s108
      %s125 = sphi 0, %s109
      %s129 = sphi 0, %s129
      %s131 = sphi 0, %s129
      %s132 = sphi 0, %s131
      %s146 = sphi 0, %s132
      %s150 = sphi 0, %s150
      %s152 = sphi 0, %s150
      %s153 = sphi 0, %s152
      %s167 = sphi 0, %s153
      %s171 = sphi 0, %s171
      %s173 = sphi 0, %s171
      %s174 = sphi 0, %s173
      %s188 = sphi 0, %s174
      %s192 = sphi 0, %s192
      %s194 = sphi 0, %s192
      %s195 = sphi 0, %s194
      %s209 = sphi 0, %s195
      %s213 = sphi 0, %s213
      %s215 = sphi 0, %s213
      %s216 = sphi 0, %s215
      %s230 = sphi 0, %s216
      %s234 = sphi 0, %s234
      %s236 = sphi 0, %s234
      %s237 = sphi 0, %s236
      %s251 = sphi 0, %s237
      %s255 = sphi 0, %s255
      %s257 = sphi 0, %s255
      %s258 = sphi 0, %s257
      %s272 = sphi 0, %s258
      %s276 = sphi 0, %s276
      %s278 = sphi 0, %s276
      %s279 = sphi 0, %s278
      %s293 = sphi 0, %s279
      %s297 = sphi 0, %s297
      %s299 = sphi 0, %s297
      %s300 = sphi 0, %s299
      %s314 = sphi 0, %s300
      %s318 = sphi 0, %s318
      %s320 = sphi 0, %s318
      %s321 = sphi 0, %s320
      %s335 = sphi 0, %s321
      %s339 = sphi 0, %s339
      %s341 = sphi 0, %s339
      %s342 = sphi 0, %s341
      %s356 = sphi 0, %s342
      %s360 = sphi 0, %s360
      %s362 = sphi 0, %s360
      %s363 = sphi 0, %s362
      %s377 = sphi 0, %s363
      %s383 = sphi 0, %s385
      %s386 = sphi 0, %s383
      %s387 = sphi 0, %s386
      %s403 = sphi 0, %s387
    $region4: #{dp_forward.5} parent=1 // loop_header_branch
      %25 = sbr.rel (%p23) target = $region8
    $region5: #{dp_forward.5} parent=1 // loop_body
      %s27 = ssub.s32 %s22, 1
      %s28 = ssub.s32 %s22, 2
      %s29 = sadd.s32 %s22, 1
      %s31 = sadd.s32 %s30, 1
      %p34 = scmp.eq.s32.totalorder %s22, 1
      %p35 = scmp.ne.s32.totalorder %s30, %s32
      %p36 = scmp.eq.s32.totalorder %s22, 0
      %p37 = por %p35, %p36
      %p38 = scmp.ne.s32.totalorder %s30, %s32
      %p39 = scmp.eq.s32.totalorder %s27, 1
      %p40 = por %p38, %p39
      %p41 = scmp.ne.s32.totalorder %s32, %s33
      %p42 = scmp.eq.s32.totalorder %s27, 0
      %p43 = por %p41, %p42
      %p44 = scmp.ne.s32.totalorder %s32, %s33
      %p45 = scmp.eq.s32.totalorder %s28, 1
      %p46 = por %p44, %p45
      %p48 = scmp.ne.s32.totalorder %s33, %s47
      %p49 = scmp.eq.s32.totalorder %s28, 0
      %p50 = por %p48, %p49
      %s51 = ssub.s32 %s22, %s29
      %p52 = scmp.eq.s32.totalorder %s51, 0
      %s54 = sadd.s32 %s53, 1
      %s55 = scalar_select %p52, %s53, %s54
      %p58 = pneg %p52
      %p59 = scmp.eq.s32.totalorder %s22, 1
      %p60 = por %p58, %p59
      %p61 = scmp.ne.s32.totalorder %s53, %s56
      %p62 = scmp.eq.s32.totalorder %s22, 0
      %p63 = por %p61, %p62
      %p64 = scmp.ne.s32.totalorder %s53, %s56
      %p65 = scmp.eq.s32.totalorder %s27, 1
      %p66 = por %p64, %p65
      %p67 = scmp.ne.s32.totalorder %s56, %s57
      %p68 = scmp.eq.s32.totalorder %s27, 0
      %p69 = por %p67, %p68
      %p70 = scmp.ne.s32.totalorder %s56, %s57
      %p71 = scmp.eq.s32.totalorder %s28, 1
      %p72 = por %p70, %p71
      %p74 = scmp.ne.s32.totalorder %s57, %s73
      %p75 = scmp.eq.s32.totalorder %s28, 0
      %p76 = por %p74, %p75
      %s77 = ssub.s32 %s22, %s29
      %p78 = scmp.eq.s32.totalorder %s77, 0
      %s80 = sadd.s32 %s79, 1
      %s81 = scalar_select %p78, %s79, %s80
      %p84 = pneg %p78
      %p85 = scmp.eq.s32.totalorder %s22, 1
      %p86 = por %p84, %p85
      %p87 = scmp.ne.s32.totalorder %s79, %s82
      %p88 = scmp.eq.s32.totalorder %s22, 0
      %p89 = por %p87, %p88
      %p90 = scmp.ne.s32.totalorder %s79, %s82
      %p91 = scmp.eq.s32.totalorder %s27, 1
      %p92 = por %p90, %p91
      %p93 = scmp.ne.s32.totalorder %s82, %s83
      %p94 = scmp.eq.s32.totalorder %s27, 0
      %p95 = por %p93, %p94
      %p96 = scmp.ne.s32.totalorder %s82, %s83
      %p97 = scmp.eq.s32.totalorder %s28, 1
      %p98 = por %p96, %p97
      %p100 = scmp.ne.s32.totalorder %s83, %s99
      %p101 = scmp.eq.s32.totalorder %s28, 0
      %p102 = por %p100, %p101
      %s103 = ssub.s32 %s22, %s29
      %p104 = scmp.eq.s32.totalorder %s103, 0
      %s106 = sadd.s32 %s105, 1
      %s107 = scalar_select %p104, %s105, %s106
      %p110 = pneg %p104
      %p111 = scmp.eq.s32.totalorder %s22, 1
      %p112 = por %p110, %p111
      %p113 = scmp.ne.s32.totalorder %s105, %s108
      %p114 = scmp.eq.s32.totalorder %s22, 0
      %p115 = por %p113, %p114
      %p116 = scmp.ne.s32.totalorder %s105, %s108
      %p117 = scmp.eq.s32.totalorder %s27, 1
      %p118 = por %p116, %p117
      %p119 = scmp.ne.s32.totalorder %s108, %s109
      %p120 = scmp.eq.s32.totalorder %s27, 0
      %p121 = por %p119, %p120
      %p122 = scmp.ne.s32.totalorder %s108, %s109
      %p123 = scmp.eq.s32.totalorder %s28, 1
      %p124 = por %p122, %p123
      %p126 = scmp.ne.s32.totalorder %s109, %s125
      %p127 = scmp.eq.s32.totalorder %s28, 0
      %p128 = por %p126, %p127
      %s130 = sadd.s32 %s129, 1
      %p133 = scmp.eq.s32.totalorder %s22, 1
      %p134 = scmp.ne.s32.totalorder %s129, %s131
      %p135 = scmp.eq.s32.totalorder %s22, 0
      %p136 = por %p134, %p135
      %p137 = scmp.ne.s32.totalorder %s129, %s131
      %p138 = scmp.eq.s32.totalorder %s27, 1
      %p139 = por %p137, %p138
      %p140 = scmp.ne.s32.totalorder %s131, %s132
      %p141 = scmp.eq.s32.totalorder %s27, 0
      %p142 = por %p140, %p141
      %p143 = scmp.ne.s32.totalorder %s131, %s132
      %p144 = scmp.eq.s32.totalorder %s28, 1
      %p145 = por %p143, %p144
      %p147 = scmp.ne.s32.totalorder %s132, %s146
      %p148 = scmp.eq.s32.totalorder %s28, 0
      %p149 = por %p147, %p148
      %s151 = sadd.s32 %s150, 1
      %p154 = scmp.eq.s32.totalorder %s22, 1
      %p155 = scmp.ne.s32.totalorder %s150, %s152
      %p156 = scmp.eq.s32.totalorder %s22, 0
      %p157 = por %p155, %p156
      %p158 = scmp.ne.s32.totalorder %s150, %s152
      %p159 = scmp.eq.s32.totalorder %s27, 1
      %p160 = por %p158, %p159
      %p161 = scmp.ne.s32.totalorder %s152, %s153
      %p162 = scmp.eq.s32.totalorder %s27, 0
      %p163 = por %p161, %p162
      %p164 = scmp.ne.s32.totalorder %s152, %s153
      %p165 = scmp.eq.s32.totalorder %s28, 1
      %p166 = por %p164, %p165
      %p168 = scmp.ne.s32.totalorder %s153, %s167
      %p169 = scmp.eq.s32.totalorder %s28, 0
      %p170 = por %p168, %p169
      %s172 = sadd.s32 %s171, 1
      %p175 = scmp.eq.s32.totalorder %s22, 1
      %p176 = scmp.ne.s32.totalorder %s171, %s173
      %p177 = scmp.eq.s32.totalorder %s22, 0
      %p178 = por %p176, %p177
      %p179 = scmp.ne.s32.totalorder %s171, %s173
      %p180 = scmp.eq.s32.totalorder %s27, 1
      %p181 = por %p179, %p180
      %p182 = scmp.ne.s32.totalorder %s173, %s174
      %p183 = scmp.eq.s32.totalorder %s27, 0
      %p184 = por %p182, %p183
      %p185 = scmp.ne.s32.totalorder %s173, %s174
      %p186 = scmp.eq.s32.totalorder %s28, 1
      %p187 = por %p185, %p186
      %p189 = scmp.ne.s32.totalorder %s174, %s188
      %p190 = scmp.eq.s32.totalorder %s28, 0
      %p191 = por %p189, %p190
      %s193 = sadd.s32 %s192, 1
      %p196 = scmp.eq.s32.totalorder %s22, 1
      %p197 = scmp.ne.s32.totalorder %s192, %s194
      %p198 = scmp.eq.s32.totalorder %s22, 0
      %p199 = por %p197, %p198
      %p200 = scmp.ne.s32.totalorder %s192, %s194
      %p201 = scmp.eq.s32.totalorder %s27, 1
      %p202 = por %p200, %p201
      %p203 = scmp.ne.s32.totalorder %s194, %s195
      %p204 = scmp.eq.s32.totalorder %s27, 0
      %p205 = por %p203, %p204
      %p206 = scmp.ne.s32.totalorder %s194, %s195
      %p207 = scmp.eq.s32.totalorder %s28, 1
      %p208 = por %p206, %p207
      %p210 = scmp.ne.s32.totalorder %s195, %s209
      %p211 = scmp.eq.s32.totalorder %s28, 0
      %p212 = por %p210, %p211
      %s214 = sadd.s32 %s213, 1
      %p217 = scmp.eq.s32.totalorder %s22, 1
      %p218 = scmp.ne.s32.totalorder %s213, %s215
      %p219 = scmp.eq.s32.totalorder %s22, 0
      %p220 = por %p218, %p219
      %p221 = scmp.ne.s32.totalorder %s213, %s215
      %p222 = scmp.eq.s32.totalorder %s27, 1
      %p223 = por %p221, %p222
      %p224 = scmp.ne.s32.totalorder %s215, %s216
      %p225 = scmp.eq.s32.totalorder %s27, 0
      %p226 = por %p224, %p225
      %p227 = scmp.ne.s32.totalorder %s215, %s216
      %p228 = scmp.eq.s32.totalorder %s28, 1
      %p229 = por %p227, %p228
      %p231 = scmp.ne.s32.totalorder %s216, %s230
      %p232 = scmp.eq.s32.totalorder %s28, 0
      %p233 = por %p231, %p232
      %s235 = sadd.s32 %s234, 1
      %p238 = scmp.eq.s32.totalorder %s22, 1
      %p239 = scmp.ne.s32.totalorder %s234, %s236
      %p240 = scmp.eq.s32.totalorder %s22, 0
      %p241 = por %p239, %p240
      %p242 = scmp.ne.s32.totalorder %s234, %s236
      %p243 = scmp.eq.s32.totalorder %s27, 1
      %p244 = por %p242, %p243
      %p245 = scmp.ne.s32.totalorder %s236, %s237
      %p246 = scmp.eq.s32.totalorder %s27, 0
      %p247 = por %p245, %p246
      %p248 = scmp.ne.s32.totalorder %s236, %s237
      %p249 = scmp.eq.s32.totalorder %s28, 1
      %p250 = por %p248, %p249
      %p252 = scmp.ne.s32.totalorder %s237, %s251
      %p253 = scmp.eq.s32.totalorder %s28, 0
      %p254 = por %p252, %p253
      %s256 = sadd.s32 %s255, 1
      %p259 = scmp.eq.s32.totalorder %s22, 1
      %p260 = scmp.ne.s32.totalorder %s255, %s257
      %p261 = scmp.eq.s32.totalorder %s22, 0
      %p262 = por %p260, %p261
      %p263 = scmp.ne.s32.totalorder %s255, %s257
      %p264 = scmp.eq.s32.totalorder %s27, 1
      %p265 = por %p263, %p264
      %p266 = scmp.ne.s32.totalorder %s257, %s258
      %p267 = scmp.eq.s32.totalorder %s27, 0
      %p268 = por %p266, %p267
      %p269 = scmp.ne.s32.totalorder %s257, %s258
      %p270 = scmp.eq.s32.totalorder %s28, 1
      %p271 = por %p269, %p270
      %p273 = scmp.ne.s32.totalorder %s258, %s272
      %p274 = scmp.eq.s32.totalorder %s28, 0
      %p275 = por %p273, %p274
      %s277 = sadd.s32 %s276, 1
      %p280 = scmp.eq.s32.totalorder %s22, 1
      %p281 = scmp.ne.s32.totalorder %s276, %s278
      %p282 = scmp.eq.s32.totalorder %s22, 0
      %p283 = por %p281, %p282
      %p284 = scmp.ne.s32.totalorder %s276, %s278
      %p285 = scmp.eq.s32.totalorder %s27, 1
      %p286 = por %p284, %p285
      %p287 = scmp.ne.s32.totalorder %s278, %s279
      %p288 = scmp.eq.s32.totalorder %s27, 0
      %p289 = por %p287, %p288
      %p290 = scmp.ne.s32.totalorder %s278, %s279
      %p291 = scmp.eq.s32.totalorder %s28, 1
      %p292 = por %p290, %p291
      %p294 = scmp.ne.s32.totalorder %s279, %s293
      %p295 = scmp.eq.s32.totalorder %s28, 0
      %p296 = por %p294, %p295
      %s298 = sadd.s32 %s297, 1
      %p301 = scmp.eq.s32.totalorder %s22, 1
      %p302 = scmp.ne.s32.totalorder %s297, %s299
      %p303 = scmp.eq.s32.totalorder %s22, 0
      %p304 = por %p302, %p303
      %p305 = scmp.ne.s32.totalorder %s297, %s299
      %p306 = scmp.eq.s32.totalorder %s27, 1
      %p307 = por %p305, %p306
      %p308 = scmp.ne.s32.totalorder %s299, %s300
      %p309 = scmp.eq.s32.totalorder %s27, 0
      %p310 = por %p308, %p309
      %p311 = scmp.ne.s32.totalorder %s299, %s300
      %p312 = scmp.eq.s32.totalorder %s28, 1
      %p313 = por %p311, %p312
      %p315 = scmp.ne.s32.totalorder %s300, %s314
      %p316 = scmp.eq.s32.totalorder %s28, 0
      %p317 = por %p315, %p316
      %s319 = sadd.s32 %s318, 1
      %p322 = scmp.eq.s32.totalorder %s22, 1
      %p323 = scmp.ne.s32.totalorder %s318, %s320
      %p324 = scmp.eq.s32.totalorder %s22, 0
      %p325 = por %p323, %p324
      %p326 = scmp.ne.s32.totalorder %s318, %s320
      %p327 = scmp.eq.s32.totalorder %s27, 1
      %p328 = por %p326, %p327
      %p329 = scmp.ne.s32.totalorder %s320, %s321
      %p330 = scmp.eq.s32.totalorder %s27, 0
      %p331 = por %p329, %p330
      %p332 = scmp.ne.s32.totalorder %s320, %s321
      %p333 = scmp.eq.s32.totalorder %s28, 1
      %p334 = por %p332, %p333
      %p336 = scmp.ne.s32.totalorder %s321, %s335
      %p337 = scmp.eq.s32.totalorder %s28, 0
      %p338 = por %p336, %p337
      %s340 = sadd.s32 %s339, 1
      %p343 = scmp.eq.s32.totalorder %s22, 1
      %p344 = scmp.ne.s32.totalorder %s339, %s341
      %p345 = scmp.eq.s32.totalorder %s22, 0
      %p346 = por %p344, %p345
      %p347 = scmp.ne.s32.totalorder %s339, %s341
      %p348 = scmp.eq.s32.totalorder %s27, 1
      %p349 = por %p347, %p348
      %p350 = scmp.ne.s32.totalorder %s341, %s342
      %p351 = scmp.eq.s32.totalorder %s27, 0
      %p352 = por %p350, %p351
      %p353 = scmp.ne.s32.totalorder %s341, %s342
      %p354 = scmp.eq.s32.totalorder %s28, 1
      %p355 = por %p353, %p354
      %p357 = scmp.ne.s32.totalorder %s342, %s356
      %p358 = scmp.eq.s32.totalorder %s28, 0
      %p359 = por %p357, %p358
      %s361 = sadd.s32 %s360, 1
      %p364 = scmp.eq.s32.totalorder %s22, 1
      %p365 = scmp.ne.s32.totalorder %s360, %s362
      %p366 = scmp.eq.s32.totalorder %s22, 0
      %p367 = por %p365, %p366
      %p368 = scmp.ne.s32.totalorder %s360, %s362
      %p369 = scmp.eq.s32.totalorder %s27, 1
      %p370 = por %p368, %p369
      %p371 = scmp.ne.s32.totalorder %s362, %s363
      %p372 = scmp.eq.s32.totalorder %s27, 0
      %p373 = por %p371, %p372
      %p374 = scmp.ne.s32.totalorder %s362, %s363
      %p375 = scmp.eq.s32.totalorder %s28, 1
      %p376 = por %p374, %p375
      %p378 = scmp.ne.s32.totalorder %s363, %s377
      %p379 = scmp.eq.s32.totalorder %s28, 0
      %p380 = por %p378, %p379
      %s381 = ssub.s32 %s22, %s29
      %p382 = scmp.eq.s32.totalorder %s381, 0
      %s384 = sadd.s32 %s383, 1
      %s385 = scalar_select %p382, %s383, %s384
      %p388 = pneg %p382
      %p389 = scmp.eq.s32.totalorder %s22, 1
      %p390 = por %p388, %p389
      %p391 = scmp.ne.s32.totalorder %s383, %s386
      %p392 = scmp.eq.s32.totalorder %s22, 0
      %p393 = por %p391, %p392
      %p394 = scmp.ne.s32.totalorder %s383, %s386
      %p395 = scmp.eq.s32.totalorder %s27, 1
      %p396 = por %p394, %p395
      %p397 = scmp.ne.s32.totalorder %s386, %s387
      %p398 = scmp.eq.s32.totalorder %s27, 0
      %p399 = por %p397, %p398
      %p400 = scmp.ne.s32.totalorder %s386, %s387
      %p401 = scmp.eq.s32.totalorder %s28, 1
      %p402 = por %p400, %p401
      %p404 = scmp.ne.s32.totalorder %s387, %s403
      %p405 = scmp.eq.s32.totalorder %s28, 0
      %p406 = por %p404, %p405
      %p407 = scmp.le.s32.totalorder 1, %s22
      %p408 = scmp.lt.s32.totalorder %s22, 3
      %p409 = pnand %p407, %p408
      %p410 = pneg %p409
      // Predicated region
      $region9: #{dp_forward.5} parent=5 // pred_check
        _
      $region10: #{dp_forward.5} parent=5 // pred_check_branch
        %412 = sbr.rel (%p409) target = $region12
      $region11: #{dp_forward.5} parent=5 // pred_region
        %s413 = ssub.s32 %s22, 1
        // Predicated region
        $region13: #{dp_forward.5} parent=11 // pred_check
          %p414 = pneg %p43
        $region14: #{dp_forward.5} parent=11 // pred_check_branch
          %416 = sbr.rel (%p414) target = $region16
        $region15: #{dp_forward.5} parent=11 // pred_region
          _
        $region16: #{dp_forward.5} parent=11 // pred_fallthru
          _
        // Predicated region
        $region17: #{dp_forward.5} parent=11 // pred_check
          %p417 = pneg %p142
        $region18: #{dp_forward.5} parent=11 // pred_check_branch
          %419 = sbr.rel (%p417) target = $region20
        $region19: #{dp_forward.5} parent=11 // pred_region
          _
        $region20: #{dp_forward.5} parent=11 // pred_fallthru
          _
        // Predicated region
        $region21: #{dp_forward.5} parent=11 // pred_check
          %p420 = pneg %p163
        $region22: #{dp_forward.5} parent=11 // pred_check_branch
          %422 = sbr.rel (%p420) target = $region24
        $region23: #{dp_forward.5} parent=11 // pred_region
          _
        $region24: #{dp_forward.5} parent=11 // pred_fallthru
          _
        // Predicated region
        $region25: #{dp_forward.5} parent=11 // pred_check
          %p423 = pneg %p184
        $region26: #{dp_forward.5} parent=11 // pred_check_branch
          %425 = sbr.rel (%p423) target = $region28
        $region27: #{dp_forward.5} parent=11 // pred_region
          _
        $region28: #{dp_forward.5} parent=11 // pred_fallthru
          _
        // Predicated region
        $region29: #{dp_forward.5} parent=11 // pred_check
          %p426 = pneg %p205
        $region30: #{dp_forward.5} parent=11 // pred_check_branch
          %428 = sbr.rel (%p426) target = $region32
        $region31: #{dp_forward.5} parent=11 // pred_region
          _
        $region32: #{dp_forward.5} parent=11 // pred_fallthru
          _
        // Predicated region
        $region33: #{dp_forward.5} parent=11 // pred_check
          %p429 = pneg %p226
        $region34: #{dp_forward.5} parent=11 // pred_check_branch
          %431 = sbr.rel (%p429) target = $region36
        $region35: #{dp_forward.5} parent=11 // pred_region
          _
        $region36: #{dp_forward.5} parent=11 // pred_fallthru
          _
        // Predicated region
        $region37: #{dp_forward.5} parent=11 // pred_check
          %p432 = pneg %p247
        $region38: #{dp_forward.5} parent=11 // pred_check_branch
          %434 = sbr.rel (%p432) target = $region40
        $region39: #{dp_forward.5} parent=11 // pred_region
          _
        $region40: #{dp_forward.5} parent=11 // pred_fallthru
          _
        // Predicated region
        $region41: #{dp_forward.5} parent=11 // pred_check
          %p435 = pneg %p268
        $region42: #{dp_forward.5} parent=11 // pred_check_branch
          %437 = sbr.rel (%p435) target = $region44
        $region43: #{dp_forward.5} parent=11 // pred_region
          _
        $region44: #{dp_forward.5} parent=11 // pred_fallthru
          _
        // Predicated region
        $region45: #{dp_forward.5} parent=11 // pred_check
          %p438 = pneg %p289
        $region46: #{dp_forward.5} parent=11 // pred_check_branch
          %440 = sbr.rel (%p438) target = $region48
        $region47: #{dp_forward.5} parent=11 // pred_region
          _
        $region48: #{dp_forward.5} parent=11 // pred_fallthru
          _
        // Predicated region
        $region49: #{dp_forward.5} parent=11 // pred_check
          %p441 = pneg %p310
        $region50: #{dp_forward.5} parent=11 // pred_check_branch
          %443 = sbr.rel (%p441) target = $region52
        $region51: #{dp_forward.5} parent=11 // pred_region
          _
        $region52: #{dp_forward.5} parent=11 // pred_fallthru
          _
        // Predicated region
        $region53: #{dp_forward.5} parent=11 // pred_check
          %p444 = pneg %p331
        $region54: #{dp_forward.5} parent=11 // pred_check_branch
          %446 = sbr.rel (%p444) target = $region56
        $region55: #{dp_forward.5} parent=11 // pred_region
          _
        $region56: #{dp_forward.5} parent=11 // pred_fallthru
          _
        // Predicated region
        $region57: #{dp_forward.5} parent=11 // pred_check
          %p447 = pneg %p352
        $region58: #{dp_forward.5} parent=11 // pred_check_branch
          %449 = sbr.rel (%p447) target = $region60
        $region59: #{dp_forward.5} parent=11 // pred_region
          _
        $region60: #{dp_forward.5} parent=11 // pred_fallthru
          _
        // Predicated region
        $region61: #{dp_forward.5} parent=11 // pred_check
          %p450 = pneg %p373
        $region62: #{dp_forward.5} parent=11 // pred_check_branch
          %452 = sbr.rel (%p450) target = $region64
        $region63: #{dp_forward.5} parent=11 // pred_region
          _
        $region64: #{dp_forward.5} parent=11 // pred_fallthru
          _
      $region12: #{dp_forward.5} parent=5 // pred_fallthru
        _
      %p453 = scmp.lt.s32.totalorder %s22, 2
      // Predicated region
      $region65: #{dp_forward.5} parent=5 // pred_check
        %p454 = pneg %p453
      $region66: #{dp_forward.5} parent=5 // pred_check_branch
        %456 = sbr.rel (%p454) target = $region68
      $region67: #{dp_forward.5} parent=5 // pred_region
        // Predicated region
        $region69: #{dp_forward.5} parent=67 // pred_check
          %p457 = pneg %p63
        $region70: #{dp_forward.5} parent=67 // pred_check_branch
          %459 = sbr.rel (%p457) target = $region72
        $region71: #{dp_forward.5} parent=67 // pred_region
          %p460 = scmp.lt.s32.totalorder %s22, 1
          %s461 = scalar_select %p460, %s22, 1
          %s462 = scalar_lea.vmem %s1, %s461
        $region72: #{dp_forward.5} parent=67 // pred_fallthru
          _
        // Predicated region
        $region73: #{dp_forward.5} parent=67 // pred_check
          %p463 = pneg %p89
        $region74: #{dp_forward.5} parent=67 // pred_check_branch
          %465 = sbr.rel (%p463) target = $region76
        $region75: #{dp_forward.5} parent=67 // pred_region
          %p466 = scmp.lt.s32.totalorder %s22, 1
          %s467 = scalar_select %p466, %s22, 1
          %s468 = smul.addr %s467, 3
          %s469 = smul.addr %s468, 8
          %s470 = scalar_lea.vmem %s2, %s469
        $region76: #{dp_forward.5} parent=67 // pred_fallthru
          _
        // Predicated region
        $region77: #{dp_forward.5} parent=67 // pred_check
          %p471 = pneg %p115
        $region78: #{dp_forward.5} parent=67 // pred_check_branch
          %473 = sbr.rel (%p471) target = $region80
        $region79: #{dp_forward.5} parent=67 // pred_region
          %s474 = sand.u32 %s105, 1
          %s475 = sand.u32 %s105, 1
          %s476 = smul.addr %s475, 120
          %s477 = scalar_lea.vmem [#allocation2], %s476
          %s478 = smul.addr %s22, 3
          %s479 = smul.addr %s478, 8
          %s480 = scalar_lea.vmem %s3, %s479
          // Predicated region
          $region81: #{dp_forward.5} parent=79 // pred_check
            _
          $region82: #{dp_forward.5} parent=79 // pred_check_branch
            %482 = sbr.rel (0) target = $region84
          $region83: #{dp_forward.5} parent=79 // pred_region
            // Predicated region
            $region85: #{dp_forward.5} parent=83 // pred_check
              _
            $region86: #{dp_forward.5} parent=83 // pred_check_branch
              %484 = sbr.rel (0) target = $region88
            $region87: #{dp_forward.5} parent=83 // pred_region
              // Predicated region
              $region100: #{dp_forward.5} parent=87 // pred_check
                _
              $region101: #{dp_forward.5} parent=87 // pred_check_branch
                %528 = sbr.rel (0) target = $region103
              $region102: #{dp_forward.5} parent=87 // pred_region
                loop: start=0, step=1, limit=1
                $region104: #{dp_forward.5} parent=102 // loop_pre_header
                  _
                $region105: #{dp_forward.5} parent=102 // loop_header
                  %s530 = sphi 0, %s534
                  %p531 = scmp.ge.s32.totalorder %s530, 1
                  %s535 = sphi %s480, %s480
                  %s536 = sphi %s477, %s477
                $region106: #{dp_forward.5} parent=102 // loop_header_branch
                  %533 = sbr.rel (%p531) target = $region110
                $region107: #{dp_forward.5} parent=102 // loop_body
                  %v537 = vld [vmem:[%s535] sm:$0xff]
                  %538 = vst [vmem:[%s536] sm:$0xff] %v537
                  %v539 = vld [vmem:[%s535 + $0x8] sm:$0xff]
                  %540 = vst [vmem:[%s536 + $0x8] sm:$0xff] %v539
                  %v541 = vld [vmem:[%s535 + $0x10] sm:$0xff]
                  %542 = vst [vmem:[%s536 + $0x10] sm:$0xff] %v541
                  %v543 = vld [vmem:[%s535 + $0x30] sm:$0xff]
                  %544 = vst [vmem:[%s536 + $0x18] sm:$0xff] %v543
                  %v545 = vld [vmem:[%s535 + $0x38] sm:$0xff]
                  %546 = vst [vmem:[%s536 + $0x20] sm:$0xff] %v545
                  %v547 = vld [vmem:[%s535 + $0x40] sm:$0xff]
                  %548 = vst [vmem:[%s536 + $0x28] sm:$0xff] %v547
                  %v549 = vld [vmem:[%s535 + $0x60] sm:$0xff]
                  %550 = vst [vmem:[%s536 + $0x30] sm:$0xff] %v549
                  %v551 = vld [vmem:[%s535 + $0x68] sm:$0xff]
                  %552 = vst [vmem:[%s536 + $0x38] sm:$0xff] %v551
                  %v553 = vld [vmem:[%s535 + $0x70] sm:$0xff]
                  %554 = vst [vmem:[%s536 + $0x40] sm:$0xff] %v553
                  %v555 = vld [vmem:[%s535 + $0x90] sm:$0xff]
                  %556 = vst [vmem:[%s536 + $0x48] sm:$0xff] %v555
                  %v557 = vld [vmem:[%s535 + $0x98] sm:$0xff]
                  %558 = vst [vmem:[%s536 + $0x50] sm:$0xff] %v557
                  %v559 = vld [vmem:[%s535 + $0xa0] sm:$0xff]
                  %560 = vst [vmem:[%s536 + $0x58] sm:$0xff] %v559
                  %v561 = vld [vmem:[%s535 + $0xc0] sm:$0xff]
                  %562 = vst [vmem:[%s536 + $0x60] sm:$0xff] %v561
                  %v563 = vld [vmem:[%s535 + $0xc8] sm:$0xff]
                  %564 = vst [vmem:[%s536 + $0x68] sm:$0xff] %v563
                  %v565 = vld [vmem:[%s535 + $0xd0] sm:$0xff]
                  %566 = vst [vmem:[%s536 + $0x70] sm:$0xff] %v565
                $region108: #{dp_forward.5} parent=102 // loop_footer
                  %s534 = sadd.s32 1, %s530
                $region109: #{dp_forward.5} parent=102 // loop_footer_branch
                  %529 = sbr.rel target = $region105
                $region110: #{dp_forward.5} parent=102 // loop_exit
                  _
              $region103: #{dp_forward.5} parent=87 // pred_fallthru
                _
              // Predicated region
              $region111: #{dp_forward.5} parent=87 // pred_check
                _
              $region112: #{dp_forward.5} parent=87 // pred_check_branch
                %568 = sbr.rel target = $region114
              $region113: #{dp_forward.5} parent=87 // pred_region
                _
              $region114: #{dp_forward.5} parent=87 // pred_fallthru
                _
            $region88: #{dp_forward.5} parent=83 // pred_fallthru
              _
            // Predicated region
            $region89: #{dp_forward.5} parent=83 // pred_check
              _
            $region90: #{dp_forward.5} parent=83 // pred_check_branch
              %486 = sbr.rel target = $region92
            $region91: #{dp_forward.5} parent=83 // pred_region
              %s488 = ssub.s32 256, 1
              loop: start=0, step=1, limit=1
              $region93: #{dp_forward.5} parent=91 // loop_pre_header
                _
              $region94: #{dp_forward.5} parent=91 // loop_header
                %s490 = sphi 0, %s494
                %p491 = scmp.ge.s32.totalorder %s490, 1
                %s495 = sphi %s480, %s480
                %s496 = sphi %s477, %s477
              $region95: #{dp_forward.5} parent=91 // loop_header_branch
                %493 = sbr.rel (%p491) target = $region99
              $region96: #{dp_forward.5} parent=91 // loop_body
                %v497 = vld [vmem:[%s495] sm:%s488]
                %498 = vst [vmem:[%s496] sm:%s488] %v497
                %v499 = vld [vmem:[%s495 + $0x8] sm:%s488]
                %500 = vst [vmem:[%s496 + $0x8] sm:%s488] %v499
                %v501 = vld [vmem:[%s495 + $0x10] sm:%s488]
                %502 = vst [vmem:[%s496 + $0x10] sm:%s488] %v501
                %v503 = vld [vmem:[%s495 + $0x30] sm:%s488]
                %504 = vst [vmem:[%s496 + $0x18] sm:%s488] %v503
                %v505 = vld [vmem:[%s495 + $0x38] sm:%s488]
                %506 = vst [vmem:[%s496 + $0x20] sm:%s488] %v505
                %v507 = vld [vmem:[%s495 + $0x40] sm:%s488]
                %508 = vst [vmem:[%s496 + $0x28] sm:%s488] %v507
                %v509 = vld [vmem:[%s495 + $0x60] sm:%s488]
                %510 = vst [vmem:[%s496 + $0x30] sm:%s488] %v509
                %v511 = vld [vmem:[%s495 + $0x68] sm:%s488]
                %512 = vst [vmem:[%s496 + $0x38] sm:%s488] %v511
                %v513 = vld [vmem:[%s495 + $0x70] sm:%s488]
                %514 = vst [vmem:[%s496 + $0x40] sm:%s488] %v513
                %v515 = vld [vmem:[%s495 + $0x90] sm:%s488]
                %516 = vst [vmem:[%s496 + $0x48] sm:%s488] %v515
                %v517 = vld [vmem:[%s495 + $0x98] sm:%s488]
                %518 = vst [vmem:[%s496 + $0x50] sm:%s488] %v517
                %v519 = vld [vmem:[%s495 + $0xa0] sm:%s488]
                %520 = vst [vmem:[%s496 + $0x58] sm:%s488] %v519
                %v521 = vld [vmem:[%s495 + $0xc0] sm:%s488]
                %522 = vst [vmem:[%s496 + $0x60] sm:%s488] %v521
                %v523 = vld [vmem:[%s495 + $0xc8] sm:%s488]
                %524 = vst [vmem:[%s496 + $0x68] sm:%s488] %v523
                %v525 = vld [vmem:[%s495 + $0xd0] sm:%s488]
                %526 = vst [vmem:[%s496 + $0x70] sm:%s488] %v525
              $region97: #{dp_forward.5} parent=91 // loop_footer
                %s494 = sadd.s32 1, %s490
              $region98: #{dp_forward.5} parent=91 // loop_footer_branch
                %489 = sbr.rel target = $region94
              $region99: #{dp_forward.5} parent=91 // loop_exit
                _
            $region92: #{dp_forward.5} parent=83 // pred_fallthru
              _
          $region84: #{dp_forward.5} parent=79 // pred_fallthru
            _
          %569 = vnop
        $region80: #{dp_forward.5} parent=67 // pred_fallthru
          _
      $region68: #{dp_forward.5} parent=5 // pred_fallthru
        _
      %p570 = scmp.le.s32.totalorder 1, %s22
      %p571 = scmp.lt.s32.totalorder %s22, 3
      %p572 = pnand %p570, %p571
      %p573 = pneg %p572
      // Predicated region
      $region115: #{dp_forward.5} parent=5 // pred_check
        _
      $region116: #{dp_forward.5} parent=5 // pred_check_branch
        %575 = sbr.rel (%p572) target = $region118
      $region117: #{dp_forward.5} parent=5 // pred_region
        %s576 = ssub.s32 %s22, 1
        %s577 = sand.u32 %s108, 1
        %s578 = sand.u32 %s108, 1
        %s579 = smul.addr %s578, 120
        %s580 = scalar_lea.vmem [#allocation2], %s579
        // Predicated region
        $region119: #{dp_forward.5} parent=117 // pred_check
          %p581 = pneg %p121
        $region120: #{dp_forward.5} parent=117 // pred_check_branch
          %583 = sbr.rel (%p581) target = $region122
        $region121: #{dp_forward.5} parent=117 // pred_region
          _
        $region122: #{dp_forward.5} parent=117 // pred_fallthru
          _
        %p584 = pneg %p43
        %p585 = pneg %p40
        %p586 = scmp.lt.s32.totalorder %s27, 1
        %s587 = scalar_select %p586, %s27, 1
        %s588 = scalar_lea.vmem %s1, %s587
        %p589 = pneg %p69
        %p590 = pneg %p66
        %p591 = scmp.lt.s32.totalorder %s27, 1
        %s592 = scalar_select %p591, %s27, 1
        %s593 = smul.addr %s592, 3
        %s594 = smul.addr %s593, 8
        %s595 = scalar_lea.vmem %s2, %s594
        %p596 = pneg %p95
        %p597 = pneg %p92
        %s598 = sand.u32 %s108, 1
        %s599 = sand.u32 %s108, 1
        %s600 = smul.addr %s599, 120
        %s601 = scalar_lea.vmem [#allocation2], %s600
        %p602 = pneg %p121
        %p603 = pneg %p118
        %p604 = pneg %p142
        %p605 = pneg %p139
        %p606 = pneg %p163
        %p607 = pneg %p160
        %p608 = pneg %p184
        %p609 = pneg %p181
        %p610 = pneg %p205
        %p611 = pneg %p202
        %p612 = pneg %p226
        %p613 = pneg %p223
        %p614 = pneg %p247
        %p615 = pneg %p244
        %p616 = pneg %p268
        %p617 = pneg %p265
        %p618 = pneg %p289
        %p619 = pneg %p286
        %p620 = pneg %p310
        %p621 = pneg %p307
        %p622 = pneg %p331
        %p623 = pneg %p328
        %p624 = pneg %p352
        %p625 = pneg %p349
        %p626 = pneg %p373
        %p627 = pneg %p370
        %p628 = pneg %p399
        %p629 = pneg %p396
        %p630 = scmp.lt.s32.totalorder %s27, 1
        %s631 = scalar_select %p630, %s27, 1
        %s632 = smul.addr %s631, 3
        %s633 = smul.addr %s632, 8
        %s634 = scalar_lea.vmem %s16, %s633
        %p635 = scmp.lt.s32.totalorder %s27, 1
        %s636 = scalar_select %p635, %s27, 1
        %s637 = scalar_lea.vmem %s1, %s636
        %p638 = scmp.lt.s32.totalorder %s27, 1
        %s639 = scalar_select %p638, %s27, 1
        %s640 = smul.addr %s639, 3
        %s641 = smul.addr %s640, 8
        %s642 = scalar_lea.vmem %s2, %s641
        %p643 = scmp.lt.s32.totalorder %s27, 1
        %s644 = scalar_select %p643, %s27, 1
        %s645 = smul.addr %s644, 3
        %s646 = smul.addr %s645, 8
        %s647 = scalar_lea.vmem %s16, %s646
        %v648 = vld [vmem:[%s637] sm:$0x1]
        %v649 = vld [vmem:[%s4] sm:$0xff]
        %v650 = vld [vmem:[%s4 + $0x8] sm:$0xff]
        %v651 = vld [vmem:[%s4 + $0x10] sm:$0xff]
        %v652 = vld [vmem:[%s4 + $0x18] sm:$0xff]
        %v653 = vld [vmem:[%s5] sm:$0x1]
        %v654 = vld [vmem:[%s6] sm:$0xff]
        %v655 = vld [vmem:[%s6 + $0x8] sm:$0xff]
        %v656 = vld [vmem:[%s6 + $0x10] sm:$0xff]
        %v657 = vld [vmem:[%s6 + $0x18] sm:$0xff]
        %v658 = vld [vmem:[%s6 + $0x20] sm:$0xff]
        %v659 = vld [vmem:[%s6 + $0x28] sm:$0xff]
        %v660 = vld [vmem:[%s6 + $0x30] sm:$0xff]
        %v661 = vld [vmem:[%s6 + $0x38] sm:$0xff]
        %v662 = vld [vmem:[%s6 + $0x40] sm:$0xff]
        %v663 = vld [vmem:[%s6 + $0x48] sm:$0xff]
        %v664 = vld [vmem:[%s6 + $0x50] sm:$0xff]
        %v665 = vld [vmem:[%s6 + $0x58] sm:$0xff]
        %v666 = vld [vmem:[%s6 + $0x60] sm:$0xff]
        %v667 = vld [vmem:[%s6 + $0x68] sm:$0xff]
        %v668 = vld [vmem:[%s6 + $0x70] sm:$0xff]
        %v669 = vld [vmem:[%s6 + $0x78] sm:$0xff]
        %v670 = vld [vmem:[%s7] sm:$0x1]
        %v671 = vld [vmem:[%s8] sm:$0xff]
        %v672 = vld [vmem:[%s8 + $0x8] sm:$0xff]
        %v673 = vld [vmem:[%s8 + $0x10] sm:$0xff]
        %v674 = vld [vmem:[%s8 + $0x18] sm:$0xff]
        %v675 = vld [vmem:[%s8 + $0x20] sm:$0xff]
        %v676 = vld [vmem:[%s8 + $0x28] sm:$0xff]
        %v677 = vld [vmem:[%s8 + $0x30] sm:$0xff]
        %v678 = vld [vmem:[%s8 + $0x38] sm:$0xff]
        %v679 = vld [vmem:[%s8 + $0x40] sm:$0xff]
        %v680 = vld [vmem:[%s8 + $0x48] sm:$0xff]
        %v681 = vld [vmem:[%s8 + $0x50] sm:$0xff]
        %v682 = vld [vmem:[%s8 + $0x58] sm:$0xff]
        %v683 = vld [vmem:[%s8 + $0x60] sm:$0xff]
        %v684 = vld [vmem:[%s8 + $0x68] sm:$0xff]
        %v685 = vld [vmem:[%s8 + $0x70] sm:$0xff]
        %v686 = vld [vmem:[%s8 + $0x78] sm:$0xff]
        %v687 = vld [vmem:[%s9] sm:$0x1]
        %v688 = vld [vmem:[%s10] sm:$0xff]
        %v689 = vld [vmem:[%s10 + $0x8] sm:$0xff]
        %v690 = vld [vmem:[%s10 + $0x10] sm:$0xff]
        %v691 = vld [vmem:[%s10 + $0x18] sm:$0xff]
        %v692 = vld [vmem:[%s10 + $0x20] sm:$0xff]
        %v693 = vld [vmem:[%s10 + $0x28] sm:$0xff]
        %v694 = vld [vmem:[%s10 + $0x30] sm:$0xff]
        %v695 = vld [vmem:[%s10 + $0x38] sm:$0xff]
        %v696 = vld [vmem:[%s10 + $0x40] sm:$0xff]
        %v697 = vld [vmem:[%s10 + $0x48] sm:$0xff]
        %v698 = vld [vmem:[%s10 + $0x50] sm:$0xff]
        %v699 = vld [vmem:[%s10 + $0x58] sm:$0xff]
        %v700 = vld [vmem:[%s10 + $0x60] sm:$0xff]
        %v701 = vld [vmem:[%s10 + $0x68] sm:$0xff]
        %v702 = vld [vmem:[%s10 + $0x70] sm:$0xff]
        %v703 = vld [vmem:[%s10 + $0x78] sm:$0xff]
        %v704 = vld [vmem:[%s11] sm:$0x1]
        %v705 = vld [vmem:[%s12] sm:$0xff]
        %v706 = vld [vmem:[%s12 + $0x8] sm:$0xff]
        %v707 = vld [vmem:[%s12 + $0x10] sm:$0xff]
        %v708 = vld [vmem:[%s12 + $0x18] sm:$0x3f]
        %v709 = vld [vmem:[%s13] sm:$0x1]
        %v710 = vld [vmem:[%s14] sm:$0xff]
        %v711 = vld [vmem:[%s14 + $0x8] sm:$0xff]
        %v712 = vld [vmem:[%s14 + $0x10] sm:$0xff]
        %v713 = vld [vmem:[%s14 + $0x18] sm:$0xff]
        %v714 = vld [vmem:[%s14 + $0x20] sm:$0xff]
        %v715 = vld [vmem:[%s14 + $0x28] sm:$0xff]
        %v716 = vld [vmem:[%s14 + $0x30] sm:$0xff]
        %v717 = vld [vmem:[%s14 + $0x38] sm:$0xff]
        %v718 = vld [vmem:[%s14 + $0x40] sm:$0xff]
        %v719 = vld [vmem:[%s14 + $0x48] sm:$0xff]
        %v720 = vld [vmem:[%s14 + $0x50] sm:$0xff]
        %v721 = vld [vmem:[%s14 + $0x58] sm:$0xff]
        %v722 = vld [vmem:[%s14 + $0x60] sm:$0xff]
        %v723 = vld [vmem:[%s14 + $0x68] sm:$0xff]
        %v724 = vld [vmem:[%s14 + $0x70] sm:$0xff]
        %v725 = vld [vmem:[%s14 + $0x78] sm:$0xff]
        %v726 = vld [vmem:[%s14 + $0x80] sm:$0xff]
        %v727 = vld [vmem:[%s14 + $0x88] sm:$0xff]
        %v728 = vld [vmem:[%s14 + $0x90] sm:$0xff]
        %v729 = vld [vmem:[%s14 + $0x98] sm:$0xff]
        %v730 = vld [vmem:[%s14 + $0xa0] sm:$0xff]
        %v731 = vld [vmem:[%s14 + $0xa8] sm:$0xff]
        %v732 = vld [vmem:[%s14 + $0xb0] sm:$0xff]
        %v733 = vld [vmem:[%s14 + $0xb8] sm:$0xff]
        %v734 = vld [vmem:[%s15] sm:$0x1]
        %v735 = vld [vmem:[%s642] sm:$0xff]
        %v736 = vld [vmem:[%s642 + $0x8] sm:$0xff]
        %v737 = vld [vmem:[%s642 + $0x10] sm:$0xf]
        %v738 = vld [vmem:[%s0] sm:$0x1]
        %vm739 = vcmask 261120
        %v741 = vsel %vm739, %v738, 0
        %743 = vmatprep.subr.mxu0 0.0
        %744 = vmatpush1.msra.mxu0 0.0
        %745 = vmatprep.subr.mxu0 0.0
        %746 = vmatpush1.msra.mxu0 0.0
        %747 = vmatprep.subr.mxu0 0.0
        %748 = vmatpush1.msra.mxu0 0.0
        %749 = vmatprep.subr.mxu0 0.0
        %750 = vmatpush1.msra.mxu0 0.0
        %751 = vmatprep.subr.mxu0 0.0
        %752 = vmatpush1.msra.mxu0 0.0
        %753 = vmatprep.subr.mxu0 0.0
        %754 = vmatpush1.msra.mxu0 0.0
        %755 = vmatprep.subr.mxu0 0.0
        %756 = vmatpush1.msra.mxu0 0.0
        %757 = vmatprep.subr.mxu0 0.0
        %758 = vmatpush1.msra.mxu0 0.0
        %759 = vmatprep.subr.mxu0 0.0
        %760 = vmatpush1.msra.mxu0 0.0
        %761 = vmatprep.subr.mxu0 0.0
        %762 = vmatpush1.msra.mxu0 0.0
        %763 = vmatprep.subr.mxu0 0.0
        %764 = vmatpush1.msra.mxu0 0.0
        %765 = vmatprep.subr.mxu0 0.0
        %766 = vmatpush1.msra.mxu0 0.0
        %767 = vmatprep.subr.mxu0 0.0
        %768 = vmatpush1.msra.mxu0 %v652
        %769 = vmatprep.subr.mxu0 0.0
        %770 = vmatpush1.msra.mxu0 %v651
        %771 = vmatprep.subr.mxu0 0.0
        %772 = vmatpush1.msra.mxu0 %v650
        %773 = vmatprep.subr.mxu0 0.0
        %774 = vmatpush1.msra.mxu0 %v649
        %775 = vmatprep.subr.mxu0 0.0
        %776 = vmatpush2.msra.mxu0 0.0
        %777 = vmatprep.subr.mxu0 0.0
        %778 = vmatpush2.msra.mxu0 0.0
        %779 = vmatprep.subr.mxu0 0.0
        %780 = vmatpush2.msra.mxu0 0.0
        %781 = vmatprep.subr.mxu0 0.0
        %782 = vmatpush2.msra.mxu0 0.0
        %783 = vmatprep.subr.mxu0 0.0
        %784 = vmatpush2.msra.mxu0 0.0
        %785 = vmatprep.subr.mxu0 0.0
        %786 = vmatpush2.msra.mxu0 0.0
        %787 = vmatprep.subr.mxu0 0.0
        %788 = vmatpush2.msra.mxu0 0.0
        %789 = vmatprep.subr.mxu0 0.0
        %790 = vmatpush2.msra.mxu0 0.0
        %791 = vmatprep.subr.mxu0 0.0
        %792 = vmatpush2.msra.mxu0 0.0
        %793 = vmatprep.subr.mxu0 0.0
        %794 = vmatpush2.msra.mxu0 0.0
        %795 = vmatprep.subr.mxu0 0.0
        %796 = vmatpush2.msra.mxu0 0.0
        %797 = vmatprep.subr.mxu0 0.0
        %798 = vmatpush2.msra.mxu0 0.0
        %799 = vmatprep.subr.mxu0 0.0
        %800 = vmatpush2.msra.mxu0 0.0
        %801 = vmatprep.subr.mxu0 0.0
        %802 = vmatpush2.msra.mxu0 0.0
        %803 = vmatprep.subr.mxu0 0.0
        %804 = vmatpush2.msra.mxu0 0.0
        %805 = vmatprep.subr.mxu0 0.0
        %806 = vmatpush2.msra.mxu0 0.0
        %807 = vmatprep.mubr.f32.mxu0 0.0
        %808 = vmatmul.mubr.f32.gmra.mxu0 %v741
        %v809 = vpop.f32.mrf.mxu0
        %v810 = vadd.f32 %v653, %v809
        %v811 = vpop.f32.mrf.mxu0
        %812 = vdwg.mxu0
        %v813 = vand.u32 2147483647, %v810
        %v814 = vsub.f32 0.0, %v813
        %v815 = vmul.f32 %v814, 1.442695
        %v816 = vpow.pop %v815
        %v817 = vadd.f32 %v816, 1.0
        %v818 = vlog2.pop %v817
        %v819 = vmul.f32 %v818, 0.6931472
        %v820 = vmul.f32 -0.5, %v816
        %v821 = vadd.f32 %v820, 1.0
        %v822 = vmul.f32 %v821, %v816
        %v823 = vand.u32 2147483647, %v816
        %vm824 = vcmp.lt.f32.partialorder %v823, 0.0004427343
        %v825 = vsel %vm824, %v822, %v819
        %v826 = vmax.f32 %v810, 0.0
        %v827 = vadd.f32 %v825, %v826
        %v828 = vtanh.pop %v827
        %v829 = vmul.f32 %v810, %v828
        %830 = vmatprep.subr.mxu0 0.0
        %831 = vmatpush1.msra.mxu0 %v669
        %832 = vmatprep.subr.mxu0 0.0
        %833 = vmatpush1.msra.mxu0 %v668
        %834 = vmatprep.subr.mxu0 0.0
        %835 = vmatpush1.msra.mxu0 %v667
        %836 = vmatprep.subr.mxu0 0.0
        %837 = vmatpush1.msra.mxu0 %v666
        %838 = vmatprep.subr.mxu0 0.0
        %839 = vmatpush1.msra.mxu0 %v665
        %840 = vmatprep.subr.mxu0 0.0
        %841 = vmatpush1.msra.mxu0 %v664
        %842 = vmatprep.subr.mxu0 0.0
        %843 = vmatpush1.msra.mxu0 %v663
        %844 = vmatprep.subr.mxu0 0.0
        %845 = vmatpush1.msra.mxu0 %v662
        %846 = vmatprep.subr.mxu0 0.0
        %847 = vmatpush1.msra.mxu0 %v661
        %848 = vmatprep.subr.mxu0 0.0
        %849 = vmatpush1.msra.mxu0 %v660
        %850 = vmatprep.subr.mxu0 0.0
        %851 = vmatpush1.msra.mxu0 %v659
        %852 = vmatprep.subr.mxu0 0.0
        %853 = vmatpush1.msra.mxu0 %v658
        %854 = vmatprep.subr.mxu0 0.0
        %855 = vmatpush1.msra.mxu0 %v657
        %856 = vmatprep.subr.mxu0 0.0
        %857 = vmatpush1.msra.mxu0 %v656
        %858 = vmatprep.subr.mxu0 0.0
        %859 = vmatpush1.msra.mxu0 %v655
        %860 = vmatprep.subr.mxu0 0.0
        %861 = vmatpush1.msra.mxu0 %v654
        %862 = vmatprep.subr.mxu0 0.0
        %863 = vmatpush2.msra.mxu0 0.0
        %864 = vmatprep.subr.mxu0 0.0
        %865 = vmatpush2.msra.mxu0 0.0
        %866 = vmatprep.subr.mxu0 0.0
        %867 = vmatpush2.msra.mxu0 0.0
        %868 = vmatprep.subr.mxu0 0.0
        %869 = vmatpush2.msra.mxu0 0.0
        %870 = vmatprep.subr.mxu0 0.0
        %871 = vmatpush2.msra.mxu0 0.0
        %872 = vmatprep.subr.mxu0 0.0
        %873 = vmatpush2.msra.mxu0 0.0
        %874 = vmatprep.subr.mxu0 0.0
        %875 = vmatpush2.msra.mxu0 0.0
        %876 = vmatprep.subr.mxu0 0.0
        %877 = vmatpush2.msra.mxu0 0.0
        %878 = vmatprep.subr.mxu0 0.0
        %879 = vmatpush2.msra.mxu0 0.0
        %880 = vmatprep.subr.mxu0 0.0
        %881 = vmatpush2.msra.mxu0 0.0
        %882 = vmatprep.subr.mxu0 0.0
        %883 = vmatpush2.msra.mxu0 0.0
        %884 = vmatprep.subr.mxu0 0.0
        %885 = vmatpush2.msra.mxu0 0.0
        %886 = vmatprep.subr.mxu0 0.0
        %887 = vmatpush2.msra.mxu0 0.0
        %888 = vmatprep.subr.mxu0 0.0
        %889 = vmatpush2.msra.mxu0 0.0
        %890 = vmatprep.subr.mxu0 0.0
        %891 = vmatpush2.msra.mxu0 0.0
        %892 = vmatprep.subr.mxu0 0.0
        %893 = vmatpush2.msra.mxu0 0.0
        %894 = vmatprep.mubr.f32.mxu0 0.0
        %895 = vmatmul.mubr.f32.gmra.mxu0 %v829
        %v896 = vpop.f32.mrf.mxu0
        %v897 = vadd.f32 %v670, %v896
        %v898 = vpop.f32.mrf.mxu0
        %899 = vdwg.mxu0
        %v901 = vlaneseq
        %v902 = vshrl.u32 %v901, 7
        %v903 = vsub.s32 0, %v902
        %v904 = vrot.slane %v648, %v903
        %905 = vrot.lane.b32.xlu0 %v904, 64
        %v906 = vpop.permute.xlu0 %905
        %vm908 = vcmask 523264
        %v909 = vsel %vm908, %v897, %v906
        %910 = vmatprep.subr.mxu0 0.0
        %911 = vmatpush1.msra.mxu0 %v686
        %912 = vmatprep.subr.mxu0 0.0
        %913 = vmatpush1.msra.mxu0 %v685
        %914 = vmatprep.subr.mxu0 0.0
        %915 = vmatpush1.msra.mxu0 %v684
        %916 = vmatprep.subr.mxu0 0.0
        %917 = vmatpush1.msra.mxu0 %v683
        %918 = vmatprep.subr.mxu0 0.0
        %919 = vmatpush1.msra.mxu0 %v682
        %920 = vmatprep.subr.mxu0 0.0
        %921 = vmatpush1.msra.mxu0 %v681
        %922 = vmatprep.subr.mxu0 0.0
        %923 = vmatpush1.msra.mxu0 %v680
        %924 = vmatprep.subr.mxu0 0.0
        %925 = vmatpush1.msra.mxu0 %v679
        %926 = vmatprep.subr.mxu0 0.0
        %927 = vmatpush1.msra.mxu0 %v678
        %928 = vmatprep.subr.mxu0 0.0
        %929 = vmatpush1.msra.mxu0 %v677
        %930 = vmatprep.subr.mxu0 0.0
        %931 = vmatpush1.msra.mxu0 %v676
        %932 = vmatprep.subr.mxu0 0.0
        %933 = vmatpush1.msra.mxu0 %v675
        %934 = vmatprep.subr.mxu0 0.0
        %935 = vmatpush1.msra.mxu0 %v674
        %936 = vmatprep.subr.mxu0 0.0
        %937 = vmatpush1.msra.mxu0 %v673
        %938 = vmatprep.subr.mxu0 0.0
        %939 = vmatpush1.msra.mxu0 %v672
        %940 = vmatprep.subr.mxu0 0.0
        %941 = vmatpush1.msra.mxu0 %v671
        %942 = vmatprep.subr.mxu0 0.0
        %943 = vmatpush2.msra.mxu0 0.0
        %944 = vmatprep.subr.mxu0 0.0
        %945 = vmatpush2.msra.mxu0 0.0
        %946 = vmatprep.subr.mxu0 0.0
        %947 = vmatpush2.msra.mxu0 0.0
        %948 = vmatprep.subr.mxu0 0.0
        %949 = vmatpush2.msra.mxu0 0.0
        %950 = vmatprep.subr.mxu0 0.0
        %951 = vmatpush2.msra.mxu0 0.0
        %952 = vmatprep.subr.mxu0 0.0
        %953 = vmatpush2.msra.mxu0 0.0
        %954 = vmatprep.subr.mxu0 0.0
        %955 = vmatpush2.msra.mxu0 0.0
        %956 = vmatprep.subr.mxu0 0.0
        %957 = vmatpush2.msra.mxu0 0.0
        %958 = vmatprep.subr.mxu0 0.0
        %959 = vmatpush2.msra.mxu0 0.0
        %960 = vmatprep.subr.mxu0 0.0
        %961 = vmatpush2.msra.mxu0 0.0
        %962 = vmatprep.subr.mxu0 0.0
        %963 = vmatpush2.msra.mxu0 0.0
        %964 = vmatprep.subr.mxu0 0.0
        %965 = vmatpush2.msra.mxu0 0.0
        %966 = vmatprep.subr.mxu0 0.0
        %967 = vmatpush2.msra.mxu0 0.0
        %968 = vmatprep.subr.mxu0 0.0
        %969 = vmatpush2.msra.mxu0 0.0
        %970 = vmatprep.subr.mxu0 0.0
        %971 = vmatpush2.msra.mxu0 0.0
        %972 = vmatprep.subr.mxu0 0.0
        %973 = vmatpush2.msra.mxu0 0.0
        %974 = vmatprep.mubr.f32.mxu0 0.0
        %975 = vmatmul.mubr.f32.gmra.mxu0 %v909
        %v976 = vpop.f32.mrf.mxu0
        %v977 = vadd.f32 %v687, %v976
        %v978 = vpop.f32.mrf.mxu0
        %979 = vdwg.mxu0
        %980 = vmatprep.subr.mxu0 0.0
        %981 = vmatpush1.msra.mxu0 %v703
        %982 = vmatprep.subr.mxu0 0.0
        %983 = vmatpush1.msra.mxu0 %v702
        %984 = vmatprep.subr.mxu0 0.0
        %985 = vmatpush1.msra.mxu0 %v701
        %986 = vmatprep.subr.mxu0 0.0
        %987 = vmatpush1.msra.mxu0 %v700
        %988 = vmatprep.subr.mxu0 0.0
        %989 = vmatpush1.msra.mxu0 %v699
        %990 = vmatprep.subr.mxu0 0.0
        %991 = vmatpush1.msra.mxu0 %v698
        %992 = vmatprep.subr.mxu0 0.0
        %993 = vmatpush1.msra.mxu0 %v697
        %994 = vmatprep.subr.mxu0 0.0
        %995 = vmatpush1.msra.mxu0 %v696
        %996 = vmatprep.subr.mxu0 0.0
        %997 = vmatpush1.msra.mxu0 %v695
        %998 = vmatprep.subr.mxu0 0.0
        %999 = vmatpush1.msra.mxu0 %v694
        %1000 = vmatprep.subr.mxu0 0.0
        %1001 = vmatpush1.msra.mxu0 %v693
        %1002 = vmatprep.subr.mxu0 0.0
        %1003 = vmatpush1.msra.mxu0 %v692
        %1004 = vmatprep.subr.mxu0 0.0
        %1005 = vmatpush1.msra.mxu0 %v691
        %1006 = vmatprep.subr.mxu0 0.0
        %1007 = vmatpush1.msra.mxu0 %v690
        %1008 = vmatprep.subr.mxu0 0.0
        %1009 = vmatpush1.msra.mxu0 %v689
        %1010 = vmatprep.subr.mxu0 0.0
        %1011 = vmatpush1.msra.mxu0 %v688
        %1012 = vmatprep.subr.mxu0 0.0
        %1013 = vmatpush2.msra.mxu0 0.0
        %1014 = vmatprep.subr.mxu0 0.0
        %1015 = vmatpush2.msra.mxu0 0.0
        %1016 = vmatprep.subr.mxu0 0.0
        %1017 = vmatpush2.msra.mxu0 0.0
        %1018 = vmatprep.subr.mxu0 0.0
        %1019 = vmatpush2.msra.mxu0 0.0
        %1020 = vmatprep.subr.mxu0 0.0
        %1021 = vmatpush2.msra.mxu0 0.0
        %1022 = vmatprep.subr.mxu0 0.0
        %1023 = vmatpush2.msra.mxu0 0.0
        %1024 = vmatprep.subr.mxu0 0.0
        %1025 = vmatpush2.msra.mxu0 0.0
        %1026 = vmatprep.subr.mxu0 0.0
        %1027 = vmatpush2.msra.mxu0 0.0
        %1028 = vmatprep.subr.mxu0 0.0
        %1029 = vmatpush2.msra.mxu0 0.0
        %1030 = vmatprep.subr.mxu0 0.0
        %1031 = vmatpush2.msra.mxu0 0.0
        %1032 = vmatprep.subr.mxu0 0.0
        %1033 = vmatpush2.msra.mxu0 0.0
        %1034 = vmatprep.subr.mxu0 0.0
        %1035 = vmatpush2.msra.mxu0 0.0
        %1036 = vmatprep.subr.mxu0 0.0
        %1037 = vmatpush2.msra.mxu0 0.0
        %1038 = vmatprep.subr.mxu0 0.0
        %1039 = vmatpush2.msra.mxu0 0.0
        %1040 = vmatprep.subr.mxu0 0.0
        %1041 = vmatpush2.msra.mxu0 0.0
        %1042 = vmatprep.subr.mxu0 0.0
        %1043 = vmatpush2.msra.mxu0 0.0
        %1044 = vmatprep.mubr.f32.mxu0 0.0
        %1045 = vmatmul.mubr.f32.gmra.mxu0 %v909
        %v1046 = vpop.f32.mrf.mxu0
        %v1047 = vadd.f32 %v704, %v1046
        %v1048 = vpop.f32.mrf.mxu0
        %1049 = vdwg.mxu0
        %vm1053 = vcmask 1040384
        %v1054 = vrot.slane %v735, 7
        %v1055 = vrot.slane %v736, 7
        %v1056 = vsel %vm1053, %v1054, %v1055
        %v1057 = vrot.slane %v737, 7
        %v1058 = vsel %vm1053, %v1055, %v1057
        %v1062 = vsel %vm1053, 0.0, %v1054
        %vm1063 = vcmask 1046528
        %v1064 = vrot.slane %v735, 1
        %v1065 = vrot.slane %v736, 1
        %v1066 = vsel %vm1063, %v1064, %v1065
        %v1067 = vrot.slane %v737, 1
        %v1068 = vsel %vm1063, %v1065, %v1067
        %vm1070 = vcmask 1042432
        %v1071 = vsel %vm1070, %v1067, 0.0
        %1072 = vrot.lane.b32.xlu0 %v735, 10
        %v1073 = vpop.permute.xlu0 %1072
        %1074 = vrot.lane.b32.xlu0 %v736, 10
        %v1075 = vpop.permute.xlu0 %1074
        %1076 = vrot.lane.b32.xlu0 %v737, 10
        %v1077 = vpop.permute.xlu0 %1076
        %1082 = vrot.lane.b32.xlu0 %v1066, 20
        %v1083 = vpop.permute.xlu0 %1082
        %1084 = vrot.lane.b32.xlu0 %v1068, 20
        %v1085 = vpop.permute.xlu0 %1084
        %1086 = vrot.lane.b32.xlu0 %v1071, 20
        %v1087 = vpop.permute.xlu0 %1086
        %vm1091 = vcmask 80896
        %v1092 = vsel %vm1091, %v1062, %v1073
        %v1093 = vsel %vm1091, %v1056, %v1075
        %v1094 = vsel %vm1091, %v1058, %v1077
        %vm1095 = vcmask 162816
        %v1096 = vsel %vm1095, %v1092, %v1083
        %v1097 = vsel %vm1095, %v1093, %v1085
        %v1098 = vsel %vm1095, %v1094, %v1087
        %v1100 = vlaneseq
        %v1101 = vshrl.u32 %v1100, 7
        %v1102 = vsub.s32 0, %v1101
        %v1103 = vrot.slane %v709, %v1102
        %vm1105 = vcmask 244736
        %v1107 = vsel %vm1105, %v1096, 0
        %v1110 = vsel %vm1105, %v1097, 0
        %v1113 = vsel %vm1105, %v1098, 0
        %vm1115 = vcmask 1045504
        %v1117 = vsel %vm1115, %v708, 0
        %1119 = vmatprep.subr.mxu0 0.0
        %1120 = vmatpush1.msra.mxu0 0.0
        %1121 = vmatprep.subr.mxu0 0.0
        %1122 = vmatpush1.msra.mxu0 0.0
        %1123 = vmatprep.subr.mxu0 0.0
        %1124 = vmatpush1.msra.mxu0 0.0
        %1125 = vmatprep.subr.mxu0 0.0
        %1126 = vmatpush1.msra.mxu0 0.0
        %1127 = vmatprep.subr.mxu0 0.0
        %1128 = vmatpush1.msra.mxu0 0.0
        %1129 = vmatprep.subr.mxu0 0.0
        %1130 = vmatpush1.msra.mxu0 0.0
        %1131 = vmatprep.subr.mxu0 0.0
        %1132 = vmatpush1.msra.mxu0 0.0
        %1133 = vmatprep.subr.mxu0 0.0
        %1134 = vmatpush1.msra.mxu0 0.0
        %1135 = vmatprep.subr.mxu0 0.0
        %1136 = vmatpush1.msra.mxu0 0.0
        %1137 = vmatprep.subr.mxu0 0.0
        %1138 = vmatpush1.msra.mxu0 0.0
        %1139 = vmatprep.subr.mxu0 0.0
        %1140 = vmatpush1.msra.mxu0 0.0
        %1141 = vmatprep.subr.mxu0 0.0
        %1142 = vmatpush1.msra.mxu0 0.0
        %1143 = vmatprep.subr.mxu0 0.0
        %1144 = vmatpush1.msra.mxu0 %v1117
        %1145 = vmatprep.subr.mxu0 0.0
        %1146 = vmatpush1.msra.mxu0 %v707
        %1147 = vmatprep.subr.mxu0 0.0
        %1148 = vmatpush1.msra.mxu0 %v706
        %1149 = vmatprep.subr.mxu0 0.0
        %1150 = vmatpush1.msra.mxu0 %v705
        %1151 = vmatprep.subr.mxu0 0.0
        %1152 = vmatpush2.msra.mxu0 0.0
        %1153 = vmatprep.subr.mxu0 0.0
        %1154 = vmatpush2.msra.mxu0 0.0
        %1155 = vmatprep.subr.mxu0 0.0
        %1156 = vmatpush2.msra.mxu0 0.0
        %1157 = vmatprep.subr.mxu0 0.0
        %1158 = vmatpush2.msra.mxu0 0.0
        %1159 = vmatprep.subr.mxu0 0.0
        %1160 = vmatpush2.msra.mxu0 0.0
        %1161 = vmatprep.subr.mxu0 0.0
        %1162 = vmatpush2.msra.mxu0 0.0
        %1163 = vmatprep.subr.mxu0 0.0
        %1164 = vmatpush2.msra.mxu0 0.0
        %1165 = vmatprep.subr.mxu0 0.0
        %1166 = vmatpush2.msra.mxu0 0.0
        %1167 = vmatprep.subr.mxu0 0.0
        %1168 = vmatpush2.msra.mxu0 0.0
        %1169 = vmatprep.subr.mxu0 0.0
        %1170 = vmatpush2.msra.mxu0 0.0
        %1171 = vmatprep.subr.mxu0 0.0
        %1172 = vmatpush2.msra.mxu0 0.0
        %1173 = vmatprep.subr.mxu0 0.0
        %1174 = vmatpush2.msra.mxu0 0.0
        %1175 = vmatprep.subr.mxu0 0.0
        %1176 = vmatpush2.msra.mxu0 0.0
        %1177 = vmatprep.subr.mxu0 0.0
        %1178 = vmatpush2.msra.mxu0 0.0
        %1179 = vmatprep.subr.mxu0 0.0
        %1180 = vmatpush2.msra.mxu0 0.0
        %1181 = vmatprep.subr.mxu0 0.0
        %1182 = vmatpush2.msra.mxu0 0.0
        %1183 = vmatprep.mubr.f32.mxu0 0.0
        %1184 = vmatmul.mubr.f32.gmra.mxu0 %v1107
        %v1185 = vpop.f32.mrf.mxu0
        %v1186 = vadd.f32 %v1103, %v1185
        %v1187 = vpop.f32.mrf.mxu0
        %1188 = vmatprep.mubr.f32.mxu0 0.0
        %1189 = vmatmul.mubr.f32.gmra.mxu0 %v1110
        %v1190 = vpop.f32.mrf.mxu0
        %v1191 = vadd.f32 %v1103, %v1190
        %v1192 = vpop.f32.mrf.mxu0
        %1193 = vmatprep.mubr.f32.mxu0 0.0
        %1194 = vmatmul.mubr.f32.gmra.mxu0 %v1113
        %v1195 = vpop.f32.mrf.mxu0
        %v1196 = vadd.f32 %v1103, %v1195
        %v1197 = vpop.f32.mrf.mxu0
        %1198 = vdwg.mxu0
        %v1199 = vadd.f32 %v977, 1.0
        %v1200 = vlaneseq
        %v1201 = vshrl.u32 %v1200, 7
        %v1202 = vsub.s32 0, %v1201
        %v1203 = vrot.slane %v1199, %v1202
        %v1204 = vmul.f32 %v1186, %v1203
        %v1205 = vmul.f32 %v1191, %v1203
        %v1206 = vmul.f32 %v1196, %v1203
        %v1207 = vlaneseq
        %v1208 = vshrl.u32 %v1207, 7
        %v1209 = vsub.s32 0, %v1208
        %v1210 = vrot.slane %v1047, %v1209
        %v1211 = vadd.f32 %v1204, %v1210
        %v1212 = vadd.f32 %v1205, %v1210
        %v1213 = vadd.f32 %v1206, %v1210
        %v1214 = vand.u32 2147483647, %v1211
        %v1215 = vand.u32 2147483647, %v1212
        %v1216 = vand.u32 2147483647, %v1213
        %v1217 = vsub.f32 0.0, %v1214
        %v1218 = vsub.f32 0.0, %v1215
        %v1219 = vsub.f32 0.0, %v1216
        %v1220 = vmul.f32 %v1217, 1.442695
        %v1221 = vpow.pop %v1220
        %v1222 = vmul.f32 %v1218, 1.442695
        %v1223 = vpow.pop %v1222
        %v1224 = vmul.f32 %v1219, 1.442695
        %v1225 = vpow.pop %v1224
        %v1226 = vadd.f32 %v1221, 1.0
        %v1227 = vlog2.pop %v1226
        %v1228 = vmul.f32 %v1227, 0.6931472
        %v1229 = vmul.f32 -0.5, %v1221
        %v1230 = vadd.f32 %v1229, 1.0
        %v1231 = vmul.f32 %v1230, %v1221
        %v1232 = vand.u32 2147483647, %v1221
        %vm1233 = vcmp.lt.f32.partialorder %v1232, 0.0004427343
        %v1234 = vsel %vm1233, %v1231, %v1228
        %v1235 = vadd.f32 %v1223, 1.0
        %v1236 = vlog2.pop %v1235
        %v1237 = vmul.f32 %v1236, 0.6931472
        %v1238 = vmul.f32 -0.5, %v1223
        %v1239 = vadd.f32 %v1238, 1.0
        %v1240 = vmul.f32 %v1239, %v1223
        %v1241 = vand.u32 2147483647, %v1223
        %vm1242 = vcmp.lt.f32.partialorder %v1241, 0.0004427343
        %v1243 = vsel %vm1242, %v1240, %v1237
        %v1244 = vadd.f32 %v1225, 1.0
        %v1245 = vlog2.pop %v1244
        %v1246 = vmul.f32 %v1245, 0.6931472
        %v1247 = vmul.f32 -0.5, %v1225
        %v1248 = vadd.f32 %v1247, 1.0
        %v1249 = vmul.f32 %v1248, %v1225
        %v1250 = vand.u32 2147483647, %v1225
        %vm1251 = vcmp.lt.f32.partialorder %v1250, 0.0004427343
        %v1252 = vsel %vm1251, %v1249, %v1246
        %v1253 = vmax.f32 %v1211, 0.0
        %v1254 = vmax.f32 %v1212, 0.0
        %v1255 = vmax.f32 %v1213, 0.0
        %v1256 = vadd.f32 %v1234, %v1253
        %v1257 = vadd.f32 %v1243, %v1254
        %v1258 = vadd.f32 %v1252, %v1255
        %v1259 = vtanh.pop %v1256
        %v1260 = vtanh.pop %v1257
        %v1261 = vtanh.pop %v1258
        %v1262 = vmul.f32 %v1211, %v1259
        %v1263 = vmul.f32 %v1212, %v1260
        %v1264 = vmul.f32 %v1213, %v1261
        %v1268 = vrot.slane %v1262, 7
        %v1269 = vrot.slane %v1263, 7
        %v1270 = vsel %vm1053, %v1268, %v1269
        %v1271 = vrot.slane %v1264, 7
        %v1272 = vsel %vm1053, %v1269, %v1271
        %v1276 = vsel %vm1053, 0.0, %v1268
        %v1277 = vrot.slane %v1262, 1
        %v1278 = vrot.slane %v1263, 1
        %v1279 = vsel %vm1063, %v1277, %v1278
        %v1280 = vrot.slane %v1264, 1
        %v1281 = vsel %vm1063, %v1278, %v1280
        %v1283 = vsel %vm1070, %v1280, 0.0
        %1284 = vrot.lane.b32.xlu0 %v1262, 64
        %v1285 = vpop.permute.xlu0 %1284
        %1286 = vrot.lane.b32.xlu0 %v1263, 64
        %v1287 = vpop.permute.xlu0 %1286
        %1288 = vrot.lane.b32.xlu0 %v1264, 64
        %v1289 = vpop.permute.xlu0 %1288
        %v1293 = vsel %vm908, %v1276, %v1285
        %v1294 = vsel %vm908, %v1270, %v1287
        %v1295 = vsel %vm908, %v1272, %v1289
        %v1297 = vlaneseq
        %v1298 = vshrl.u32 %v1297, 7
        %v1299 = vsub.s32 0, %v1298
        %v1300 = vrot.slane %v734, %v1299
        %v1302 = vsel %vm908, %v1279, 0
        %v1304 = vsel %vm908, %v1281, 0
        %v1307 = vsel %vm908, %v1283, 0
        %1309 = vmatprep.subr.mxu0 0.0
        %1310 = vmatpush1.msra.mxu0 %v725
        %1311 = vmatprep.subr.mxu0 0.0
        %1312 = vmatpush1.msra.mxu0 %v724
        %1313 = vmatprep.subr.mxu0 0.0
        %1314 = vmatpush1.msra.mxu0 %v723
        %1315 = vmatprep.subr.mxu0 0.0
        %1316 = vmatpush1.msra.mxu0 %v722
        %1317 = vmatprep.subr.mxu0 0.0
        %1318 = vmatpush1.msra.mxu0 %v721
        %1319 = vmatprep.subr.mxu0 0.0
        %1320 = vmatpush1.msra.mxu0 %v720
        %1321 = vmatprep.subr.mxu0 0.0
        %1322 = vmatpush1.msra.mxu0 %v719
        %1323 = vmatprep.subr.mxu0 0.0
        %1324 = vmatpush1.msra.mxu0 %v718
        %1325 = vmatprep.subr.mxu0 0.0
        %1326 = vmatpush1.msra.mxu0 %v717
        %1327 = vmatprep.subr.mxu0 0.0
        %1328 = vmatpush1.msra.mxu0 %v716
        %1329 = vmatprep.subr.mxu0 0.0
        %1330 = vmatpush1.msra.mxu0 %v715
        %1331 = vmatprep.subr.mxu0 0.0
        %1332 = vmatpush1.msra.mxu0 %v714
        %1333 = vmatprep.subr.mxu0 0.0
        %1334 = vmatpush1.msra.mxu0 %v713
        %1335 = vmatprep.subr.mxu0 0.0
        %1336 = vmatpush1.msra.mxu0 %v712
        %1337 = vmatprep.subr.mxu0 0.0
        %1338 = vmatpush1.msra.mxu0 %v711
        %1339 = vmatprep.subr.mxu0 0.0
        %1340 = vmatpush1.msra.mxu0 %v710
        %1341 = vmatprep.subr.mxu0 0.0
        %1342 = vmatpush2.msra.mxu0 0.0
        %1343 = vmatprep.subr.mxu0 0.0
        %1344 = vmatpush2.msra.mxu0 0.0
        %1345 = vmatprep.subr.mxu0 0.0
        %1346 = vmatpush2.msra.mxu0 0.0
        %1347 = vmatprep.subr.mxu0 0.0
        %1348 = vmatpush2.msra.mxu0 0.0
        %1349 = vmatprep.subr.mxu0 0.0
        %1350 = vmatpush2.msra.mxu0 0.0
        %1351 = vmatprep.subr.mxu0 0.0
        %1352 = vmatpush2.msra.mxu0 0.0
        %1353 = vmatprep.subr.mxu0 0.0
        %1354 = vmatpush2.msra.mxu0 0.0
        %1355 = vmatprep.subr.mxu0 0.0
        %1356 = vmatpush2.msra.mxu0 0.0
        %1357 = vmatprep.subr.mxu0 0.0
        %1358 = vmatpush2.msra.mxu0 %v733
        %1359 = vmatprep.subr.mxu0 0.0
        %1360 = vmatpush2.msra.mxu0 %v732
        %1361 = vmatprep.subr.mxu0 0.0
        %1362 = vmatpush2.msra.mxu0 %v731
        %1363 = vmatprep.subr.mxu0 0.0
        %1364 = vmatpush2.msra.mxu0 %v730
        %1365 = vmatprep.subr.mxu0 0.0
        %1366 = vmatpush2.msra.mxu0 %v729
        %1367 = vmatprep.subr.mxu0 0.0
        %1368 = vmatpush2.msra.mxu0 %v728
        %1369 = vmatprep.subr.mxu0 0.0
        %1370 = vmatpush2.msra.mxu0 %v727
        %1371 = vmatprep.subr.mxu0 0.0
        %1372 = vmatpush2.msra.mxu0 %v726
        %1373 = vmatprep.mubr.f32.mxu0 %v1302
        %1374 = vmatmul.mubr.f32.gmra.mxu0 %v1293
        %v1375 = vpop.f32.mrf.mxu0
        %v1376 = vadd.f32 %v1300, %v1375
        %v1377 = vpop.f32.mrf.mxu0
        %1378 = vmatprep.mubr.f32.mxu0 %v1304
        %1379 = vmatmul.mubr.f32.gmra.mxu0 %v1294
        %v1380 = vpop.f32.mrf.mxu0
        %v1381 = vadd.f32 %v1300, %v1380
        %v1382 = vpop.f32.mrf.mxu0
        %1383 = vmatprep.mubr.f32.mxu0 %v1307
        %1384 = vmatmul.mubr.f32.gmra.mxu0 %v1295
        %v1385 = vpop.f32.mrf.mxu0
        %v1386 = vadd.f32 %v1300, %v1385
        %v1387 = vpop.f32.mrf.mxu0
        %1388 = vdwg.mxu0
        %v1389 = vadd.f32 %v1376, %v735
        %v1390 = vadd.f32 %v1381, %v736
        %v1391 = vadd.f32 %v1386, %v737
        %v1392 = vld [vmem:[%s580] sm:$0xff]
        %v1393 = vld [vmem:[%s580 + $0x8] sm:$0xff]
        %v1394 = vld [vmem:[%s580 + $0x10] sm:$0xf]
        %v1395 = vmul.f32 %v1389, 0.09001147
        %v1396 = vmul.f32 %v1390, 0.09001147
        %v1397 = vmul.f32 %v1391, 0.09001147
        %v1398 = vsub.f32 %v735, %v1395
        %v1399 = vsub.f32 %v736, %v1396
        %v1400 = vsub.f32 %v737, %v1397
        %v1401 = vmul.f32 %v1398, 1.0101526
        %v1402 = vmul.f32 %v1399, 1.0101526
        %v1403 = vmul.f32 %v1400, 1.0101526
        %v1404 = vmul.f32 %v1392, 0.14142136
        %v1405 = vmul.f32 %v1393, 0.14142136
        %v1406 = vmul.f32 %v1394, 0.14142136
        %v1407 = vadd.f32 %v1401, %v1404
        %v1408 = vadd.f32 %v1402, %v1405
        %v1409 = vadd.f32 %v1403, %v1406
        %s1410 = scalar_lea.vmem %s0, 1
        %v1411 = vld [vmem:[%s1410] sm:$0x1]
        %v1413 = vsel %vm739, %v1411, 0
        %1415 = vmatprep.subr.mxu0 0.0
        %1416 = vmatpush1.msra.mxu0 0.0
        %1417 = vmatprep.subr.mxu0 0.0
        %1418 = vmatpush1.msra.mxu0 0.0
        %1419 = vmatprep.subr.mxu0 0.0
        %1420 = vmatpush1.msra.mxu0 0.0
        %1421 = vmatprep.subr.mxu0 0.0
        %1422 = vmatpush1.msra.mxu0 0.0
        %1423 = vmatprep.subr.mxu0 0.0
        %1424 = vmatpush1.msra.mxu0 0.0
        %1425 = vmatprep.subr.mxu0 0.0
        %1426 = vmatpush1.msra.mxu0 0.0
        %1427 = vmatprep.subr.mxu0 0.0
        %1428 = vmatpush1.msra.mxu0 0.0
        %1429 = vmatprep.subr.mxu0 0.0
        %1430 = vmatpush1.msra.mxu0 0.0
        %1431 = vmatprep.subr.mxu0 0.0
        %1432 = vmatpush1.msra.mxu0 0.0
        %1433 = vmatprep.subr.mxu0 0.0
        %1434 = vmatpush1.msra.mxu0 0.0
        %1435 = vmatprep.subr.mxu0 0.0
        %1436 = vmatpush1.msra.mxu0 0.0
        %1437 = vmatprep.subr.mxu0 0.0
        %1438 = vmatpush1.msra.mxu0 0.0
        %1439 = vmatprep.subr.mxu0 0.0
        %1440 = vmatpush1.msra.mxu0 %v652
        %1441 = vmatprep.subr.mxu0 0.0
        %1442 = vmatpush1.msra.mxu0 %v651
        %1443 = vmatprep.subr.mxu0 0.0
        %1444 = vmatpush1.msra.mxu0 %v650
        %1445 = vmatprep.subr.mxu0 0.0
        %1446 = vmatpush1.msra.mxu0 %v649
        %1447 = vmatprep.subr.mxu0 0.0
        %1448 = vmatpush2.msra.mxu0 0.0
        %1449 = vmatprep.subr.mxu0 0.0
        %1450 = vmatpush2.msra.mxu0 0.0
        %1451 = vmatprep.subr.mxu0 0.0
        %1452 = vmatpush2.msra.mxu0 0.0
        %1453 = vmatprep.subr.mxu0 0.0
        %1454 = vmatpush2.msra.mxu0 0.0
        %1455 = vmatprep.subr.mxu0 0.0
        %1456 = vmatpush2.msra.mxu0 0.0
        %1457 = vmatprep.subr.mxu0 0.0
        %1458 = vmatpush2.msra.mxu0 0.0
        %1459 = vmatprep.subr.mxu0 0.0
        %1460 = vmatpush2.msra.mxu0 0.0
        %1461 = vmatprep.subr.mxu0 0.0
        %1462 = vmatpush2.msra.mxu0 0.0
        %1463 = vmatprep.subr.mxu0 0.0
        %1464 = vmatpush2.msra.mxu0 0.0
        %1465 = vmatprep.subr.mxu0 0.0
        %1466 = vmatpush2.msra.mxu0 0.0
        %1467 = vmatprep.subr.mxu0 0.0
        %1468 = vmatpush2.msra.mxu0 0.0
        %1469 = vmatprep.subr.mxu0 0.0
        %1470 = vmatpush2.msra.mxu0 0.0
        %1471 = vmatprep.subr.mxu0 0.0
        %1472 = vmatpush2.msra.mxu0 0.0
        %1473 = vmatprep.subr.mxu0 0.0
        %1474 = vmatpush2.msra.mxu0 0.0
        %1475 = vmatprep.subr.mxu0 0.0
        %1476 = vmatpush2.msra.mxu0 0.0
        %1477 = vmatprep.subr.mxu0 0.0
        %1478 = vmatpush2.msra.mxu0 0.0
        %1479 = vmatprep.mubr.f32.mxu0 0.0
        %1480 = vmatmul.mubr.f32.gmra.mxu0 %v1413
        %v1481 = vpop.f32.mrf.mxu0
        %v1482 = vadd.f32 %v653, %v1481
        %v1483 = vpop.f32.mrf.mxu0
        %1484 = vdwg.mxu0
        %v1485 = vand.u32 2147483647, %v1482
        %v1486 = vsub.f32 0.0, %v1485
        %v1487 = vmul.f32 %v1486, 1.442695
        %v1488 = vpow.pop %v1487
        %v1489 = vadd.f32 %v1488, 1.0
        %v1490 = vlog2.pop %v1489
        %v1491 = vmul.f32 %v1490, 0.6931472
        %v1492 = vmul.f32 -0.5, %v1488
        %v1493 = vadd.f32 %v1492, 1.0
        %v1494 = vmul.f32 %v1493, %v1488
        %v1495 = vand.u32 2147483647, %v1488
        %vm1496 = vcmp.lt.f32.partialorder %v1495, 0.0004427343
        %v1497 = vsel %vm1496, %v1494, %v1491
        %v1498 = vmax.f32 %v1482, 0.0
        %v1499 = vadd.f32 %v1497, %v1498
        %v1500 = vtanh.pop %v1499
        %v1501 = vmul.f32 %v1482, %v1500
        %1502 = vmatprep.subr.mxu0 0.0
        %1503 = vmatpush1.msra.mxu0 %v669
        %1504 = vmatprep.subr.mxu0 0.0
        %1505 = vmatpush1.msra.mxu0 %v668
        %1506 = vmatprep.subr.mxu0 0.0
        %1507 = vmatpush1.msra.mxu0 %v667
        %1508 = vmatprep.subr.mxu0 0.0
        %1509 = vmatpush1.msra.mxu0 %v666
        %1510 = vmatprep.subr.mxu0 0.0
        %1511 = vmatpush1.msra.mxu0 %v665
        %1512 = vmatprep.subr.mxu0 0.0
        %1513 = vmatpush1.msra.mxu0 %v664
        %1514 = vmatprep.subr.mxu0 0.0
        %1515 = vmatpush1.msra.mxu0 %v663
        %1516 = vmatprep.subr.mxu0 0.0
        %1517 = vmatpush1.msra.mxu0 %v662
        %1518 = vmatprep.subr.mxu0 0.0
        %1519 = vmatpush1.msra.mxu0 %v661
        %1520 = vmatprep.subr.mxu0 0.0
        %1521 = vmatpush1.msra.mxu0 %v660
        %1522 = vmatprep.subr.mxu0 0.0
        %1523 = vmatpush1.msra.mxu0 %v659
        %1524 = vmatprep.subr.mxu0 0.0
        %1525 = vmatpush1.msra.mxu0 %v658
        %1526 = vmatprep.subr.mxu0 0.0
        %1527 = vmatpush1.msra.mxu0 %v657
        %1528 = vmatprep.subr.mxu0 0.0
        %1529 = vmatpush1.msra.mxu0 %v656
        %1530 = vmatprep.subr.mxu0 0.0
        %1531 = vmatpush1.msra.mxu0 %v655
        %1532 = vmatprep.subr.mxu0 0.0
        %1533 = vmatpush1.msra.mxu0 %v654
        %1534 = vmatprep.subr.mxu0 0.0
        %1535 = vmatpush2.msra.mxu0 0.0
        %1536 = vmatprep.subr.mxu0 0.0
        %1537 = vmatpush2.msra.mxu0 0.0
        %1538 = vmatprep.subr.mxu0 0.0
        %1539 = vmatpush2.msra.mxu0 0.0
        %1540 = vmatprep.subr.mxu0 0.0
        %1541 = vmatpush2.msra.mxu0 0.0
        %1542 = vmatprep.subr.mxu0 0.0
        %1543 = vmatpush2.msra.mxu0 0.0
        %1544 = vmatprep.subr.mxu0 0.0
        %1545 = vmatpush2.msra.mxu0 0.0
        %1546 = vmatprep.subr.mxu0 0.0
        %1547 = vmatpush2.msra.mxu0 0.0
        %1548 = vmatprep.subr.mxu0 0.0
        %1549 = vmatpush2.msra.mxu0 0.0
        %1550 = vmatprep.subr.mxu0 0.0
        %1551 = vmatpush2.msra.mxu0 0.0
        %1552 = vmatprep.subr.mxu0 0.0
        %1553 = vmatpush2.msra.mxu0 0.0
        %1554 = vmatprep.subr.mxu0 0.0
        %1555 = vmatpush2.msra.mxu0 0.0
        %1556 = vmatprep.subr.mxu0 0.0
        %1557 = vmatpush2.msra.mxu0 0.0
        %1558 = vmatprep.subr.mxu0 0.0
        %1559 = vmatpush2.msra.mxu0 0.0
        %1560 = vmatprep.subr.mxu0 0.0
        %1561 = vmatpush2.msra.mxu0 0.0
        %1562 = vmatprep.subr.mxu0 0.0
        %1563 = vmatpush2.msra.mxu0 0.0
        %1564 = vmatprep.subr.mxu0 0.0
        %1565 = vmatpush2.msra.mxu0 0.0
        %1566 = vmatprep.mubr.f32.mxu0 0.0
        %1567 = vmatmul.mubr.f32.gmra.mxu0 %v1501
        %v1568 = vpop.f32.mrf.mxu0
        %v1569 = vadd.f32 %v670, %v1568
        %v1570 = vpop.f32.mrf.mxu0
        %1571 = vdwg.mxu0
        %v1572 = vsel %vm908, %v1569, %v906
        %1573 = vmatprep.subr.mxu0 0.0
        %1574 = vmatpush1.msra.mxu0 %v686
        %1575 = vmatprep.subr.mxu0 0.0
        %1576 = vmatpush1.msra.mxu0 %v685
        %1577 = vmatprep.subr.mxu0 0.0
        %1578 = vmatpush1.msra.mxu0 %v684
        %1579 = vmatprep.subr.mxu0 0.0
        %1580 = vmatpush1.msra.mxu0 %v683
        %1581 = vmatprep.subr.mxu0 0.0
        %1582 = vmatpush1.msra.mxu0 %v682
        %1583 = vmatprep.subr.mxu0 0.0
        %1584 = vmatpush1.msra.mxu0 %v681
        %1585 = vmatprep.subr.mxu0 0.0
        %1586 = vmatpush1.msra.mxu0 %v680
        %1587 = vmatprep.subr.mxu0 0.0
        %1588 = vmatpush1.msra.mxu0 %v679
        %1589 = vmatprep.subr.mxu0 0.0
        %1590 = vmatpush1.msra.mxu0 %v678
        %1591 = vmatprep.subr.mxu0 0.0
        %1592 = vmatpush1.msra.mxu0 %v677
        %1593 = vmatprep.subr.mxu0 0.0
        %1594 = vmatpush1.msra.mxu0 %v676
        %1595 = vmatprep.subr.mxu0 0.0
        %1596 = vmatpush1.msra.mxu0 %v675
        %1597 = vmatprep.subr.mxu0 0.0
        %1598 = vmatpush1.msra.mxu0 %v674
        %1599 = vmatprep.subr.mxu0 0.0
        %1600 = vmatpush1.msra.mxu0 %v673
        %1601 = vmatprep.subr.mxu0 0.0
        %1602 = vmatpush1.msra.mxu0 %v672
        %1603 = vmatprep.subr.mxu0 0.0
        %1604 = vmatpush1.msra.mxu0 %v671
        %1605 = vmatprep.subr.mxu0 0.0
        %1606 = vmatpush2.msra.mxu0 0.0
        %1607 = vmatprep.subr.mxu0 0.0
        %1608 = vmatpush2.msra.mxu0 0.0
        %1609 = vmatprep.subr.mxu0 0.0
        %1610 = vmatpush2.msra.mxu0 0.0
        %1611 = vmatprep.subr.mxu0 0.0
        %1612 = vmatpush2.msra.mxu0 0.0
        %1613 = vmatprep.subr.mxu0 0.0
        %1614 = vmatpush2.msra.mxu0 0.0
        %1615 = vmatprep.subr.mxu0 0.0
        %1616 = vmatpush2.msra.mxu0 0.0
        %1617 = vmatprep.subr.mxu0 0.0
        %1618 = vmatpush2.msra.mxu0 0.0
        %1619 = vmatprep.subr.mxu0 0.0
        %1620 = vmatpush2.msra.mxu0 0.0
        %1621 = vmatprep.subr.mxu0 0.0
        %1622 = vmatpush2.msra.mxu0 0.0
        %1623 = vmatprep.subr.mxu0 0.0
        %1624 = vmatpush2.msra.mxu0 0.0
        %1625 = vmatprep.subr.mxu0 0.0
        %1626 = vmatpush2.msra.mxu0 0.0
        %1627 = vmatprep.subr.mxu0 0.0
        %1628 = vmatpush2.msra.mxu0 0.0
        %1629 = vmatprep.subr.mxu0 0.0
        %1630 = vmatpush2.msra.mxu0 0.0
        %1631 = vmatprep.subr.mxu0 0.0
        %1632 = vmatpush2.msra.mxu0 0.0
        %1633 = vmatprep.subr.mxu0 0.0
        %1634 = vmatpush2.msra.mxu0 0.0
        %1635 = vmatprep.subr.mxu0 0.0
        %1636 = vmatpush2.msra.mxu0 0.0
        %1637 = vmatprep.mubr.f32.mxu0 0.0
        %1638 = vmatmul.mubr.f32.gmra.mxu0 %v1572
        %v1639 = vpop.f32.mrf.mxu0
        %v1640 = vadd.f32 %v687, %v1639
        %v1641 = vpop.f32.mrf.mxu0
        %1642 = vdwg.mxu0
        %1643 = vmatprep.subr.mxu0 0.0
        %1644 = vmatpush1.msra.mxu0 %v703
        %1645 = vmatprep.subr.mxu0 0.0
        %1646 = vmatpush1.msra.mxu0 %v702
        %1647 = vmatprep.subr.mxu0 0.0
        %1648 = vmatpush1.msra.mxu0 %v701
        %1649 = vmatprep.subr.mxu0 0.0
        %1650 = vmatpush1.msra.mxu0 %v700
        %1651 = vmatprep.subr.mxu0 0.0
        %1652 = vmatpush1.msra.mxu0 %v699
        %1653 = vmatprep.subr.mxu0 0.0
        %1654 = vmatpush1.msra.mxu0 %v698
        %1655 = vmatprep.subr.mxu0 0.0
        %1656 = vmatpush1.msra.mxu0 %v697
        %1657 = vmatprep.subr.mxu0 0.0
        %1658 = vmatpush1.msra.mxu0 %v696
        %1659 = vmatprep.subr.mxu0 0.0
        %1660 = vmatpush1.msra.mxu0 %v695
        %1661 = vmatprep.subr.mxu0 0.0
        %1662 = vmatpush1.msra.mxu0 %v694
        %1663 = vmatprep.subr.mxu0 0.0
        %1664 = vmatpush1.msra.mxu0 %v693
        %1665 = vmatprep.subr.mxu0 0.0
        %1666 = vmatpush1.msra.mxu0 %v692
        %1667 = vmatprep.subr.mxu0 0.0
        %1668 = vmatpush1.msra.mxu0 %v691
        %1669 = vmatprep.subr.mxu0 0.0
        %1670 = vmatpush1.msra.mxu0 %v690
        %1671 = vmatprep.subr.mxu0 0.0
        %1672 = vmatpush1.msra.mxu0 %v689
        %1673 = vmatprep.subr.mxu0 0.0
        %1674 = vmatpush1.msra.mxu0 %v688
        %1675 = vmatprep.subr.mxu0 0.0
        %1676 = vmatpush2.msra.mxu0 0.0
        %1677 = vmatprep.subr.mxu0 0.0
        %1678 = vmatpush2.msra.mxu0 0.0
        %1679 = vmatprep.subr.mxu0 0.0
        %1680 = vmatpush2.msra.mxu0 0.0
        %1681 = vmatprep.subr.mxu0 0.0
        %1682 = vmatpush2.msra.mxu0 0.0
        %1683 = vmatprep.subr.mxu0 0.0
        %1684 = vmatpush2.msra.mxu0 0.0
        %1685 = vmatprep.subr.mxu0 0.0
        %1686 = vmatpush2.msra.mxu0 0.0
        %1687 = vmatprep.subr.mxu0 0.0
        %1688 = vmatpush2.msra.mxu0 0.0
        %1689 = vmatprep.subr.mxu0 0.0
        %1690 = vmatpush2.msra.mxu0 0.0
        %1691 = vmatprep.subr.mxu0 0.0
        %1692 = vmatpush2.msra.mxu0 0.0
        %1693 = vmatprep.subr.mxu0 0.0
        %1694 = vmatpush2.msra.mxu0 0.0
        %1695 = vmatprep.subr.mxu0 0.0
        %1696 = vmatpush2.msra.mxu0 0.0
        %1697 = vmatprep.subr.mxu0 0.0
        %1698 = vmatpush2.msra.mxu0 0.0
        %1699 = vmatprep.subr.mxu0 0.0
        %1700 = vmatpush2.msra.mxu0 0.0
        %1701 = vmatprep.subr.mxu0 0.0
        %1702 = vmatpush2.msra.mxu0 0.0
        %1703 = vmatprep.subr.mxu0 0.0
        %1704 = vmatpush2.msra.mxu0 0.0
        %1705 = vmatprep.subr.mxu0 0.0
        %1706 = vmatpush2.msra.mxu0 0.0
        %1707 = vmatprep.mubr.f32.mxu0 0.0
        %1708 = vmatmul.mubr.f32.gmra.mxu0 %v1572
        %v1709 = vpop.f32.mrf.mxu0
        %v1710 = vadd.f32 %v704, %v1709
        %v1711 = vpop.f32.mrf.mxu0
        %1712 = vdwg.mxu0
        %v1716 = vrot.slane %v1407, 7
        %v1717 = vrot.slane %v1408, 7
        %v1718 = vsel %vm1053, %v1716, %v1717
        %v1719 = vrot.slane %v1409, 7
        %v1720 = vsel %vm1053, %v1717, %v1719
        %v1724 = vsel %vm1053, 0.0, %v1716
        %v1725 = vrot.slane %v1407, 1
        %v1726 = vrot.slane %v1408, 1
        %v1727 = vsel %vm1063, %v1725, %v1726
        %v1728 = vrot.slane %v1409, 1
        %v1729 = vsel %vm1063, %v1726, %v1728
        %v1731 = vsel %vm1070, %v1728, 0.0
        %1732 = vrot.lane.b32.xlu0 %v1407, 10
        %v1733 = vpop.permute.xlu0 %1732
        %1734 = vrot.lane.b32.xlu0 %v1408, 10
        %v1735 = vpop.permute.xlu0 %1734
        %1736 = vrot.lane.b32.xlu0 %v1409, 10
        %v1737 = vpop.permute.xlu0 %1736
        %1742 = vrot.lane.b32.xlu0 %v1727, 20
        %v1743 = vpop.permute.xlu0 %1742
        %1744 = vrot.lane.b32.xlu0 %v1729, 20
        %v1745 = vpop.permute.xlu0 %1744
        %1746 = vrot.lane.b32.xlu0 %v1731, 20
        %v1747 = vpop.permute.xlu0 %1746
        %v1751 = vsel %vm1091, %v1724, %v1733
        %v1752 = vsel %vm1091, %v1718, %v1735
        %v1753 = vsel %vm1091, %v1720, %v1737
        %v1754 = vsel %vm1095, %v1751, %v1743
        %v1755 = vsel %vm1095, %v1752, %v1745
        %v1756 = vsel %vm1095, %v1753, %v1747
        %v1758 = vsel %vm1105, %v1754, 0
        %v1761 = vsel %vm1105, %v1755, 0
        %v1764 = vsel %vm1105, %v1756, 0
        %1766 = vmatprep.subr.mxu0 0.0
        %1767 = vmatpush1.msra.mxu0 0.0
        %1768 = vmatprep.subr.mxu0 0.0
        %1769 = vmatpush1.msra.mxu0 0.0
        %1770 = vmatprep.subr.mxu0 0.0
        %1771 = vmatpush1.msra.mxu0 0.0
        %1772 = vmatprep.subr.mxu0 0.0
        %1773 = vmatpush1.msra.mxu0 0.0
        %1774 = vmatprep.subr.mxu0 0.0
        %1775 = vmatpush1.msra.mxu0 0.0
        %1776 = vmatprep.subr.mxu0 0.0
        %1777 = vmatpush1.msra.mxu0 0.0
        %1778 = vmatprep.subr.mxu0 0.0
        %1779 = vmatpush1.msra.mxu0 0.0
        %1780 = vmatprep.subr.mxu0 0.0
        %1781 = vmatpush1.msra.mxu0 0.0
        %1782 = vmatprep.subr.mxu0 0.0
        %1783 = vmatpush1.msra.mxu0 0.0
        %1784 = vmatprep.subr.mxu0 0.0
        %1785 = vmatpush1.msra.mxu0 0.0
        %1786 = vmatprep.subr.mxu0 0.0
        %1787 = vmatpush1.msra.mxu0 0.0
        %1788 = vmatprep.subr.mxu0 0.0
        %1789 = vmatpush1.msra.mxu0 0.0
        %1790 = vmatprep.subr.mxu0 0.0
        %1791 = vmatpush1.msra.mxu0 %v1117
        %1792 = vmatprep.subr.mxu0 0.0
        %1793 = vmatpush1.msra.mxu0 %v707
        %1794 = vmatprep.subr.mxu0 0.0
        %1795 = vmatpush1.msra.mxu0 %v706
        %1796 = vmatprep.subr.mxu0 0.0
        %1797 = vmatpush1.msra.mxu0 %v705
        %1798 = vmatprep.subr.mxu0 0.0
        %1799 = vmatpush2.msra.mxu0 0.0
        %1800 = vmatprep.subr.mxu0 0.0
        %1801 = vmatpush2.msra.mxu0 0.0
        %1802 = vmatprep.subr.mxu0 0.0
        %1803 = vmatpush2.msra.mxu0 0.0
        %1804 = vmatprep.subr.mxu0 0.0
        %1805 = vmatpush2.msra.mxu0 0.0
        %1806 = vmatprep.subr.mxu0 0.0
        %1807 = vmatpush2.msra.mxu0 0.0
        %1808 = vmatprep.subr.mxu0 0.0
        %1809 = vmatpush2.msra.mxu0 0.0
        %1810 = vmatprep.subr.mxu0 0.0
        %1811 = vmatpush2.msra.mxu0 0.0
        %1812 = vmatprep.subr.mxu0 0.0
        %1813 = vmatpush2.msra.mxu0 0.0
        %1814 = vmatprep.subr.mxu0 0.0
        %1815 = vmatpush2.msra.mxu0 0.0
        %1816 = vmatprep.subr.mxu0 0.0
        %1817 = vmatpush2.msra.mxu0 0.0
        %1818 = vmatprep.subr.mxu0 0.0
        %1819 = vmatpush2.msra.mxu0 0.0
        %1820 = vmatprep.subr.mxu0 0.0
        %1821 = vmatpush2.msra.mxu0 0.0
        %1822 = vmatprep.subr.mxu0 0.0
        %1823 = vmatpush2.msra.mxu0 0.0
        %1824 = vmatprep.subr.mxu0 0.0
        %1825 = vmatpush2.msra.mxu0 0.0
        %1826 = vmatprep.subr.mxu0 0.0
        %1827 = vmatpush2.msra.mxu0 0.0
        %1828 = vmatprep.subr.mxu0 0.0
        %1829 = vmatpush2.msra.mxu0 0.0
        %1830 = vmatprep.mubr.f32.mxu0 0.0
        %1831 = vmatmul.mubr.f32.gmra.mxu0 %v1758
        %v1832 = vpop.f32.mrf.mxu0
        %v1833 = vadd.f32 %v1103, %v1832
        %v1834 = vpop.f32.mrf.mxu0
        %1835 = vmatprep.mubr.f32.mxu0 0.0
        %1836 = vmatmul.mubr.f32.gmra.mxu0 %v1761
        %v1837 = vpop.f32.mrf.mxu0
        %v1838 = vadd.f32 %v1103, %v1837
        %v1839 = vpop.f32.mrf.mxu0
        %1840 = vmatprep.mubr.f32.mxu0 0.0
        %1841 = vmatmul.mubr.f32.gmra.mxu0 %v1764
        %v1842 = vpop.f32.mrf.mxu0
        %v1843 = vadd.f32 %v1103, %v1842
        %v1844 = vpop.f32.mrf.mxu0
        %1845 = vdwg.mxu0
        %v1846 = vadd.f32 %v1640, 1.0
        %v1847 = vlaneseq
        %v1848 = vshrl.u32 %v1847, 7
        %v1849 = vsub.s32 0, %v1848
        %v1850 = vrot.slane %v1846, %v1849
        %v1851 = vmul.f32 %v1833, %v1850
        %v1852 = vmul.f32 %v1838, %v1850
        %v1853 = vmul.f32 %v1843, %v1850
        %v1854 = vlaneseq
        %v1855 = vshrl.u32 %v1854, 7
        %v1856 = vsub.s32 0, %v1855
        %v1857 = vrot.slane %v1710, %v1856
        %v1858 = vadd.f32 %v1851, %v1857
        %v1859 = vadd.f32 %v1852, %v1857
        %v1860 = vadd.f32 %v1853, %v1857
        %v1861 = vand.u32 2147483647, %v1858
        %v1862 = vand.u32 2147483647, %v1859
        %v1863 = vand.u32 2147483647, %v1860
        %v1864 = vsub.f32 0.0, %v1861
        %v1865 = vsub.f32 0.0, %v1862
        %v1866 = vsub.f32 0.0, %v1863
        %v1867 = vmul.f32 %v1864, 1.442695
        %v1868 = vpow.pop %v1867
        %v1869 = vmul.f32 %v1865, 1.442695
        %v1870 = vpow.pop %v1869
        %v1871 = vmul.f32 %v1866, 1.442695
        %v1872 = vpow.pop %v1871
        %v1873 = vadd.f32 %v1868, 1.0
        %v1874 = vlog2.pop %v1873
        %v1875 = vmul.f32 %v1874, 0.6931472
        %v1876 = vmul.f32 -0.5, %v1868
        %v1877 = vadd.f32 %v1876, 1.0
        %v1878 = vmul.f32 %v1877, %v1868
        %v1879 = vand.u32 2147483647, %v1868
        %vm1880 = vcmp.lt.f32.partialorder %v1879, 0.0004427343
        %v1881 = vsel %vm1880, %v1878, %v1875
        %v1882 = vadd.f32 %v1870, 1.0
        %v1883 = vlog2.pop %v1882
        %v1884 = vmul.f32 %v1883, 0.6931472
        %v1885 = vmul.f32 -0.5, %v1870
        %v1886 = vadd.f32 %v1885, 1.0
        %v1887 = vmul.f32 %v1886, %v1870
        %v1888 = vand.u32 2147483647, %v1870
        %vm1889 = vcmp.lt.f32.partialorder %v1888, 0.0004427343
        %v1890 = vsel %vm1889, %v1887, %v1884
        %v1891 = vadd.f32 %v1872, 1.0
        %v1892 = vlog2.pop %v1891
        %v1893 = vmul.f32 %v1892, 0.6931472
        %v1894 = vmul.f32 -0.5, %v1872
        %v1895 = vadd.f32 %v1894, 1.0
        %v1896 = vmul.f32 %v1895, %v1872
        %v1897 = vand.u32 2147483647, %v1872
        %vm1898 = vcmp.lt.f32.partialorder %v1897, 0.0004427343
        %v1899 = vsel %vm1898, %v1896, %v1893
        %v1900 = vmax.f32 %v1858, 0.0
        %v1901 = vmax.f32 %v1859, 0.0
        %v1902 = vmax.f32 %v1860, 0.0
        %v1903 = vadd.f32 %v1881, %v1900
        %v1904 = vadd.f32 %v1890, %v1901
        %v1905 = vadd.f32 %v1899, %v1902
        %v1906 = vtanh.pop %v1903
        %v1907 = vtanh.pop %v1904
        %v1908 = vtanh.pop %v1905
        %v1909 = vmul.f32 %v1858, %v1906
        %v1910 = vmul.f32 %v1859, %v1907
        %v1911 = vmul.f32 %v1860, %v1908
        %v1915 = vrot.slane %v1909, 7
        %v1916 = vrot.slane %v1910, 7
        %v1917 = vsel %vm1053, %v1915, %v1916
        %v1918 = vrot.slane %v1911, 7
        %v1919 = vsel %vm1053, %v1916, %v1918
        %v1923 = vsel %vm1053, 0.0, %v1915
        %v1924 = vrot.slane %v1909, 1
        %v1925 = vrot.slane %v1910, 1
        %v1926 = vsel %vm1063, %v1924, %v1925
        %v1927 = vrot.slane %v1911, 1
        %v1928 = vsel %vm1063, %v1925, %v1927
        %v1930 = vsel %vm1070, %v1927, 0.0
        %1931 = vrot.lane.b32.xlu0 %v1909, 64
        %v1932 = vpop.permute.xlu0 %1931
        %1933 = vrot.lane.b32.xlu0 %v1910, 64
        %v1934 = vpop.permute.xlu0 %1933
        %1935 = vrot.lane.b32.xlu0 %v1911, 64
        %v1936 = vpop.permute.xlu0 %1935
        %v1940 = vsel %vm908, %v1923, %v1932
        %v1941 = vsel %vm908, %v1917, %v1934
        %v1942 = vsel %vm908, %v1919, %v1936
        %v1943 = vsel %vm908, %v1926, 0
        %v1945 = vsel %vm908, %v1928, 0
        %v1948 = vsel %vm908, %v1930, 0
        %1950 = vmatprep.subr.mxu0 0.0
        %1951 = vmatpush1.msra.mxu0 %v725
        %1952 = vmatprep.subr.mxu0 0.0
        %1953 = vmatpush1.msra.mxu0 %v724
        %1954 = vmatprep.subr.mxu0 0.0
        %1955 = vmatpush1.msra.mxu0 %v723
        %1956 = vmatprep.subr.mxu0 0.0
        %1957 = vmatpush1.msra.mxu0 %v722
        %1958 = vmatprep.subr.mxu0 0.0
        %1959 = vmatpush1.msra.mxu0 %v721
        %1960 = vmatprep.subr.mxu0 0.0
        %1961 = vmatpush1.msra.mxu0 %v720
        %1962 = vmatprep.subr.mxu0 0.0
        %1963 = vmatpush1.msra.mxu0 %v719
        %1964 = vmatprep.subr.mxu0 0.0
        %1965 = vmatpush1.msra.mxu0 %v718
        %1966 = vmatprep.subr.mxu0 0.0
        %1967 = vmatpush1.msra.mxu0 %v717
        %1968 = vmatprep.subr.mxu0 0.0
        %1969 = vmatpush1.msra.mxu0 %v716
        %1970 = vmatprep.subr.mxu0 0.0
        %1971 = vmatpush1.msra.mxu0 %v715
        %1972 = vmatprep.subr.mxu0 0.0
        %1973 = vmatpush1.msra.mxu0 %v714
        %1974 = vmatprep.subr.mxu0 0.0
        %1975 = vmatpush1.msra.mxu0 %v713
        %1976 = vmatprep.subr.mxu0 0.0
        %1977 = vmatpush1.msra.mxu0 %v712
        %1978 = vmatprep.subr.mxu0 0.0
        %1979 = vmatpush1.msra.mxu0 %v711
        %1980 = vmatprep.subr.mxu0 0.0
        %1981 = vmatpush1.msra.mxu0 %v710
        %1982 = vmatprep.subr.mxu0 0.0
        %1983 = vmatpush2.msra.mxu0 0.0
        %1984 = vmatprep.subr.mxu0 0.0
        %1985 = vmatpush2.msra.mxu0 0.0
        %1986 = vmatprep.subr.mxu0 0.0
        %1987 = vmatpush2.msra.mxu0 0.0
        %1988 = vmatprep.subr.mxu0 0.0
        %1989 = vmatpush2.msra.mxu0 0.0
        %1990 = vmatprep.subr.mxu0 0.0
        %1991 = vmatpush2.msra.mxu0 0.0
        %1992 = vmatprep.subr.mxu0 0.0
        %1993 = vmatpush2.msra.mxu0 0.0
        %1994 = vmatprep.subr.mxu0 0.0
        %1995 = vmatpush2.msra.mxu0 0.0
        %1996 = vmatprep.subr.mxu0 0.0
        %1997 = vmatpush2.msra.mxu0 0.0
        %1998 = vmatprep.subr.mxu0 0.0
        %1999 = vmatpush2.msra.mxu0 %v733
        %2000 = vmatprep.subr.mxu0 0.0
        %2001 = vmatpush2.msra.mxu0 %v732
        %2002 = vmatprep.subr.mxu0 0.0
        %2003 = vmatpush2.msra.mxu0 %v731
        %2004 = vmatprep.subr.mxu0 0.0
        %2005 = vmatpush2.msra.mxu0 %v730
        %2006 = vmatprep.subr.mxu0 0.0
        %2007 = vmatpush2.msra.mxu0 %v729
        %2008 = vmatprep.subr.mxu0 0.0
        %2009 = vmatpush2.msra.mxu0 %v728
        %2010 = vmatprep.subr.mxu0 0.0
        %2011 = vmatpush2.msra.mxu0 %v727
        %2012 = vmatprep.subr.mxu0 0.0
        %2013 = vmatpush2.msra.mxu0 %v726
        %2014 = vmatprep.mubr.f32.mxu0 %v1943
        %2015 = vmatmul.mubr.f32.gmra.mxu0 %v1940
        %v2016 = vpop.f32.mrf.mxu0
        %v2017 = vadd.f32 %v1300, %v2016
        %v2018 = vpop.f32.mrf.mxu0
        %2019 = vmatprep.mubr.f32.mxu0 %v1945
        %2020 = vmatmul.mubr.f32.gmra.mxu0 %v1941
        %v2021 = vpop.f32.mrf.mxu0
        %v2022 = vadd.f32 %v1300, %v2021
        %v2023 = vpop.f32.mrf.mxu0
        %2024 = vmatprep.mubr.f32.mxu0 %v1948
        %2025 = vmatmul.mubr.f32.gmra.mxu0 %v1942
        %v2026 = vpop.f32.mrf.mxu0
        %v2027 = vadd.f32 %v1300, %v2026
        %v2028 = vpop.f32.mrf.mxu0
        %2029 = vdwg.mxu0
        %v2030 = vadd.f32 %v2017, %v1407
        %v2031 = vadd.f32 %v2022, %v1408
        %v2032 = vadd.f32 %v2027, %v1409
        %s2033 = scalar_lea.vmem %s580, 24 [#allocation2]
        %v2034 = vld [vmem:[%s2033] sm:$0xff]
        %v2035 = vld [vmem:[%s2033 + $0x8] sm:$0xff]
        %v2036 = vld [vmem:[%s2033 + $0x10] sm:$0xf]
        %v2037 = vmul.f32 %v2030, 0.08679098
        %v2038 = vmul.f32 %v2031, 0.08679098
        %v2039 = vmul.f32 %v2032, 0.08679098
        %v2040 = vsub.f32 %v1407, %v2037
        %v2041 = vsub.f32 %v1408, %v2038
        %v2042 = vsub.f32 %v1409, %v2039
        %v2043 = vmul.f32 %v2040, 1.0075983
        %v2044 = vmul.f32 %v2041, 1.0075983
        %v2045 = vmul.f32 %v2042, 1.0075983
        %v2046 = vmul.f32 %v2034, 0.122576505
        %v2047 = vmul.f32 %v2035, 0.122576505
        %v2048 = vmul.f32 %v2036, 0.122576505
        %v2049 = vadd.f32 %v2043, %v2046
        %v2050 = vadd.f32 %v2044, %v2047
        %v2051 = vadd.f32 %v2045, %v2048
        %s2052 = scalar_lea.vmem %s0, 2
        %v2053 = vld [vmem:[%s2052] sm:$0x1]
        %v2055 = vsel %vm739, %v2053, 0
        %2057 = vmatprep.subr.mxu0 0.0
        %2058 = vmatpush1.msra.mxu0 0.0
        %2059 = vmatprep.subr.mxu0 0.0
        %2060 = vmatpush1.msra.mxu0 0.0
        %2061 = vmatprep.subr.mxu0 0.0
        %2062 = vmatpush1.msra.mxu0 0.0
        %2063 = vmatprep.subr.mxu0 0.0
        %2064 = vmatpush1.msra.mxu0 0.0
        %2065 = vmatprep.subr.mxu0 0.0
        %2066 = vmatpush1.msra.mxu0 0.0
        %2067 = vmatprep.subr.mxu0 0.0
        %2068 = vmatpush1.msra.mxu0 0.0
        %2069 = vmatprep.subr.mxu0 0.0
        %2070 = vmatpush1.msra.mxu0 0.0
        %2071 = vmatprep.subr.mxu0 0.0
        %2072 = vmatpush1.msra.mxu0 0.0
        %2073 = vmatprep.subr.mxu0 0.0
        %2074 = vmatpush1.msra.mxu0 0.0
        %2075 = vmatprep.subr.mxu0 0.0
        %2076 = vmatpush1.msra.mxu0 0.0
        %2077 = vmatprep.subr.mxu0 0.0
        %2078 = vmatpush1.msra.mxu0 0.0
        %2079 = vmatprep.subr.mxu0 0.0
        %2080 = vmatpush1.msra.mxu0 0.0
        %2081 = vmatprep.subr.mxu0 0.0
        %2082 = vmatpush1.msra.mxu0 %v652
        %2083 = vmatprep.subr.mxu0 0.0
        %2084 = vmatpush1.msra.mxu0 %v651
        %2085 = vmatprep.subr.mxu0 0.0
        %2086 = vmatpush1.msra.mxu0 %v650
        %2087 = vmatprep.subr.mxu0 0.0
        %2088 = vmatpush1.msra.mxu0 %v649
        %2089 = vmatprep.subr.mxu0 0.0
        %2090 = vmatpush2.msra.mxu0 0.0
        %2091 = vmatprep.subr.mxu0 0.0
        %2092 = vmatpush2.msra.mxu0 0.0
        %2093 = vmatprep.subr.mxu0 0.0
        %2094 = vmatpush2.msra.mxu0 0.0
        %2095 = vmatprep.subr.mxu0 0.0
        %2096 = vmatpush2.msra.mxu0 0.0
        %2097 = vmatprep.subr.mxu0 0.0
        %2098 = vmatpush2.msra.mxu0 0.0
        %2099 = vmatprep.subr.mxu0 0.0
        %2100 = vmatpush2.msra.mxu0 0.0
        %2101 = vmatprep.subr.mxu0 0.0
        %2102 = vmatpush2.msra.mxu0 0.0
        %2103 = vmatprep.subr.mxu0 0.0
        %2104 = vmatpush2.msra.mxu0 0.0
        %2105 = vmatprep.subr.mxu0 0.0
        %2106 = vmatpush2.msra.mxu0 0.0
        %2107 = vmatprep.subr.mxu0 0.0
        %2108 = vmatpush2.msra.mxu0 0.0
        %2109 = vmatprep.subr.mxu0 0.0
        %2110 = vmatpush2.msra.mxu0 0.0
        %2111 = vmatprep.subr.mxu0 0.0
        %2112 = vmatpush2.msra.mxu0 0.0
        %2113 = vmatprep.subr.mxu0 0.0
        %2114 = vmatpush2.msra.mxu0 0.0
        %2115 = vmatprep.subr.mxu0 0.0
        %2116 = vmatpush2.msra.mxu0 0.0
        %2117 = vmatprep.subr.mxu0 0.0
        %2118 = vmatpush2.msra.mxu0 0.0
        %2119 = vmatprep.subr.mxu0 0.0
        %2120 = vmatpush2.msra.mxu0 0.0
        %2121 = vmatprep.mubr.f32.mxu0 0.0
        %2122 = vmatmul.mubr.f32.gmra.mxu0 %v2055
        %v2123 = vpop.f32.mrf.mxu0
        %v2124 = vadd.f32 %v653, %v2123
        %v2125 = vpop.f32.mrf.mxu0
        %2126 = vdwg.mxu0
        %v2127 = vand.u32 2147483647, %v2124
        %v2128 = vsub.f32 0.0, %v2127
        %v2129 = vmul.f32 %v2128, 1.442695
        %v2130 = vpow.pop %v2129
        %v2131 = vadd.f32 %v2130, 1.0
        %v2132 = vlog2.pop %v2131
        %v2133 = vmul.f32 %v2132, 0.6931472
        %v2134 = vmul.f32 -0.5, %v2130
        %v2135 = vadd.f32 %v2134, 1.0
        %v2136 = vmul.f32 %v2135, %v2130
        %v2137 = vand.u32 2147483647, %v2130
        %vm2138 = vcmp.lt.f32.partialorder %v2137, 0.0004427343
        %v2139 = vsel %vm2138, %v2136, %v2133
        %v2140 = vmax.f32 %v2124, 0.0
        %v2141 = vadd.f32 %v2139, %v2140
        %v2142 = vtanh.pop %v2141
        %v2143 = vmul.f32 %v2124, %v2142
        %2144 = vmatprep.subr.mxu0 0.0
        %2145 = vmatpush1.msra.mxu0 %v669
        %2146 = vmatprep.subr.mxu0 0.0
        %2147 = vmatpush1.msra.mxu0 %v668
        %2148 = vmatprep.subr.mxu0 0.0
        %2149 = vmatpush1.msra.mxu0 %v667
        %2150 = vmatprep.subr.mxu0 0.0
        %2151 = vmatpush1.msra.mxu0 %v666
        %2152 = vmatprep.subr.mxu0 0.0
        %2153 = vmatpush1.msra.mxu0 %v665
        %2154 = vmatprep.subr.mxu0 0.0
        %2155 = vmatpush1.msra.mxu0 %v664
        %2156 = vmatprep.subr.mxu0 0.0
        %2157 = vmatpush1.msra.mxu0 %v663
        %2158 = vmatprep.subr.mxu0 0.0
        %2159 = vmatpush1.msra.mxu0 %v662
        %2160 = vmatprep.subr.mxu0 0.0
        %2161 = vmatpush1.msra.mxu0 %v661
        %2162 = vmatprep.subr.mxu0 0.0
        %2163 = vmatpush1.msra.mxu0 %v660
        %2164 = vmatprep.subr.mxu0 0.0
        %2165 = vmatpush1.msra.mxu0 %v659
        %2166 = vmatprep.subr.mxu0 0.0
        %2167 = vmatpush1.msra.mxu0 %v658
        %2168 = vmatprep.subr.mxu0 0.0
        %2169 = vmatpush1.msra.mxu0 %v657
        %2170 = vmatprep.subr.mxu0 0.0
        %2171 = vmatpush1.msra.mxu0 %v656
        %2172 = vmatprep.subr.mxu0 0.0
        %2173 = vmatpush1.msra.mxu0 %v655
        %2174 = vmatprep.subr.mxu0 0.0
        %2175 = vmatpush1.msra.mxu0 %v654
        %2176 = vmatprep.subr.mxu0 0.0
        %2177 = vmatpush2.msra.mxu0 0.0
        %2178 = vmatprep.subr.mxu0 0.0
        %2179 = vmatpush2.msra.mxu0 0.0
        %2180 = vmatprep.subr.mxu0 0.0
        %2181 = vmatpush2.msra.mxu0 0.0
        %2182 = vmatprep.subr.mxu0 0.0
        %2183 = vmatpush2.msra.mxu0 0.0
        %2184 = vmatprep.subr.mxu0 0.0
        %2185 = vmatpush2.msra.mxu0 0.0
        %2186 = vmatprep.subr.mxu0 0.0
        %2187 = vmatpush2.msra.mxu0 0.0
        %2188 = vmatprep.subr.mxu0 0.0
        %2189 = vmatpush2.msra.mxu0 0.0
        %2190 = vmatprep.subr.mxu0 0.0
        %2191 = vmatpush2.msra.mxu0 0.0
        %2192 = vmatprep.subr.mxu0 0.0
        %2193 = vmatpush2.msra.mxu0 0.0
        %2194 = vmatprep.subr.mxu0 0.0
        %2195 = vmatpush2.msra.mxu0 0.0
        %2196 = vmatprep.subr.mxu0 0.0
        %2197 = vmatpush2.msra.mxu0 0.0
        %2198 = vmatprep.subr.mxu0 0.0
        %2199 = vmatpush2.msra.mxu0 0.0
        %2200 = vmatprep.subr.mxu0 0.0
        %2201 = vmatpush2.msra.mxu0 0.0
        %2202 = vmatprep.subr.mxu0 0.0
        %2203 = vmatpush2.msra.mxu0 0.0
        %2204 = vmatprep.subr.mxu0 0.0
        %2205 = vmatpush2.msra.mxu0 0.0
        %2206 = vmatprep.subr.mxu0 0.0
        %2207 = vmatpush2.msra.mxu0 0.0
        %2208 = vmatprep.mubr.f32.mxu0 0.0
        %2209 = vmatmul.mubr.f32.gmra.mxu0 %v2143
        %v2210 = vpop.f32.mrf.mxu0
        %v2211 = vadd.f32 %v670, %v2210
        %v2212 = vpop.f32.mrf.mxu0
        %2213 = vdwg.mxu0
        %v2214 = vsel %vm908, %v2211, %v906
        %2215 = vmatprep.subr.mxu0 0.0
        %2216 = vmatpush1.msra.mxu0 %v686
        %2217 = vmatprep.subr.mxu0 0.0
        %2218 = vmatpush1.msra.mxu0 %v685
        %2219 = vmatprep.subr.mxu0 0.0
        %2220 = vmatpush1.msra.mxu0 %v684
        %2221 = vmatprep.subr.mxu0 0.0
        %2222 = vmatpush1.msra.mxu0 %v683
        %2223 = vmatprep.subr.mxu0 0.0
        %2224 = vmatpush1.msra.mxu0 %v682
        %2225 = vmatprep.subr.mxu0 0.0
        %2226 = vmatpush1.msra.mxu0 %v681
        %2227 = vmatprep.subr.mxu0 0.0
        %2228 = vmatpush1.msra.mxu0 %v680
        %2229 = vmatprep.subr.mxu0 0.0
        %2230 = vmatpush1.msra.mxu0 %v679
        %2231 = vmatprep.subr.mxu0 0.0
        %2232 = vmatpush1.msra.mxu0 %v678
        %2233 = vmatprep.subr.mxu0 0.0
        %2234 = vmatpush1.msra.mxu0 %v677
        %2235 = vmatprep.subr.mxu0 0.0
        %2236 = vmatpush1.msra.mxu0 %v676
        %2237 = vmatprep.subr.mxu0 0.0
        %2238 = vmatpush1.msra.mxu0 %v675
        %2239 = vmatprep.subr.mxu0 0.0
        %2240 = vmatpush1.msra.mxu0 %v674
        %2241 = vmatprep.subr.mxu0 0.0
        %2242 = vmatpush1.msra.mxu0 %v673
        %2243 = vmatprep.subr.mxu0 0.0
        %2244 = vmatpush1.msra.mxu0 %v672
        %2245 = vmatprep.subr.mxu0 0.0
        %2246 = vmatpush1.msra.mxu0 %v671
        %2247 = vmatprep.subr.mxu0 0.0
        %2248 = vmatpush2.msra.mxu0 0.0
        %2249 = vmatprep.subr.mxu0 0.0
        %2250 = vmatpush2.msra.mxu0 0.0
        %2251 = vmatprep.subr.mxu0 0.0
        %2252 = vmatpush2.msra.mxu0 0.0
        %2253 = vmatprep.subr.mxu0 0.0
        %2254 = vmatpush2.msra.mxu0 0.0
        %2255 = vmatprep.subr.mxu0 0.0
        %2256 = vmatpush2.msra.mxu0 0.0
        %2257 = vmatprep.subr.mxu0 0.0
        %2258 = vmatpush2.msra.mxu0 0.0
        %2259 = vmatprep.subr.mxu0 0.0
        %2260 = vmatpush2.msra.mxu0 0.0
        %2261 = vmatprep.subr.mxu0 0.0
        %2262 = vmatpush2.msra.mxu0 0.0
        %2263 = vmatprep.subr.mxu0 0.0
        %2264 = vmatpush2.msra.mxu0 0.0
        %2265 = vmatprep.subr.mxu0 0.0
        %2266 = vmatpush2.msra.mxu0 0.0
        %2267 = vmatprep.subr.mxu0 0.0
        %2268 = vmatpush2.msra.mxu0 0.0
        %2269 = vmatprep.subr.mxu0 0.0
        %2270 = vmatpush2.msra.mxu0 0.0
        %2271 = vmatprep.subr.mxu0 0.0
        %2272 = vmatpush2.msra.mxu0 0.0
        %2273 = vmatprep.subr.mxu0 0.0
        %2274 = vmatpush2.msra.mxu0 0.0
        %2275 = vmatprep.subr.mxu0 0.0
        %2276 = vmatpush2.msra.mxu0 0.0
        %2277 = vmatprep.subr.mxu0 0.0
        %2278 = vmatpush2.msra.mxu0 0.0
        %2279 = vmatprep.mubr.f32.mxu0 0.0
        %2280 = vmatmul.mubr.f32.gmra.mxu0 %v2214
        %v2281 = vpop.f32.mrf.mxu0
        %v2282 = vadd.f32 %v687, %v2281
        %v2283 = vpop.f32.mrf.mxu0
        %2284 = vdwg.mxu0
        %2285 = vmatprep.subr.mxu0 0.0
        %2286 = vmatpush1.msra.mxu0 %v703
        %2287 = vmatprep.subr.mxu0 0.0
        %2288 = vmatpush1.msra.mxu0 %v702
        %2289 = vmatprep.subr.mxu0 0.0
        %2290 = vmatpush1.msra.mxu0 %v701
        %2291 = vmatprep.subr.mxu0 0.0
        %2292 = vmatpush1.msra.mxu0 %v700
        %2293 = vmatprep.subr.mxu0 0.0
        %2294 = vmatpush1.msra.mxu0 %v699
        %2295 = vmatprep.subr.mxu0 0.0
        %2296 = vmatpush1.msra.mxu0 %v698
        %2297 = vmatprep.subr.mxu0 0.0
        %2298 = vmatpush1.msra.mxu0 %v697
        %2299 = vmatprep.subr.mxu0 0.0
        %2300 = vmatpush1.msra.mxu0 %v696
        %2301 = vmatprep.subr.mxu0 0.0
        %2302 = vmatpush1.msra.mxu0 %v695
        %2303 = vmatprep.subr.mxu0 0.0
        %2304 = vmatpush1.msra.mxu0 %v694
        %2305 = vmatprep.subr.mxu0 0.0
        %2306 = vmatpush1.msra.mxu0 %v693
        %2307 = vmatprep.subr.mxu0 0.0
        %2308 = vmatpush1.msra.mxu0 %v692
        %2309 = vmatprep.subr.mxu0 0.0
        %2310 = vmatpush1.msra.mxu0 %v691
        %2311 = vmatprep.subr.mxu0 0.0
        %2312 = vmatpush1.msra.mxu0 %v690
        %2313 = vmatprep.subr.mxu0 0.0
        %2314 = vmatpush1.msra.mxu0 %v689
        %2315 = vmatprep.subr.mxu0 0.0
        %2316 = vmatpush1.msra.mxu0 %v688
        %2317 = vmatprep.subr.mxu0 0.0
        %2318 = vmatpush2.msra.mxu0 0.0
        %2319 = vmatprep.subr.mxu0 0.0
        %2320 = vmatpush2.msra.mxu0 0.0
        %2321 = vmatprep.subr.mxu0 0.0
        %2322 = vmatpush2.msra.mxu0 0.0
        %2323 = vmatprep.subr.mxu0 0.0
        %2324 = vmatpush2.msra.mxu0 0.0
        %2325 = vmatprep.subr.mxu0 0.0
        %2326 = vmatpush2.msra.mxu0 0.0
        %2327 = vmatprep.subr.mxu0 0.0
        %2328 = vmatpush2.msra.mxu0 0.0
        %2329 = vmatprep.subr.mxu0 0.0
        %2330 = vmatpush2.msra.mxu0 0.0
        %2331 = vmatprep.subr.mxu0 0.0
        %2332 = vmatpush2.msra.mxu0 0.0
        %2333 = vmatprep.subr.mxu0 0.0
        %2334 = vmatpush2.msra.mxu0 0.0
        %2335 = vmatprep.subr.mxu0 0.0
        %2336 = vmatpush2.msra.mxu0 0.0
        %2337 = vmatprep.subr.mxu0 0.0
        %2338 = vmatpush2.msra.mxu0 0.0
        %2339 = vmatprep.subr.mxu0 0.0
        %2340 = vmatpush2.msra.mxu0 0.0
        %2341 = vmatprep.subr.mxu0 0.0
        %2342 = vmatpush2.msra.mxu0 0.0
        %2343 = vmatprep.subr.mxu0 0.0
        %2344 = vmatpush2.msra.mxu0 0.0
        %2345 = vmatprep.subr.mxu0 0.0
        %2346 = vmatpush2.msra.mxu0 0.0
        %2347 = vmatprep.subr.mxu0 0.0
        %2348 = vmatpush2.msra.mxu0 0.0
        %2349 = vmatprep.mubr.f32.mxu0 0.0
        %2350 = vmatmul.mubr.f32.gmra.mxu0 %v2214
        %v2351 = vpop.f32.mrf.mxu0
        %v2352 = vadd.f32 %v704, %v2351
        %v2353 = vpop.f32.mrf.mxu0
        %2354 = vdwg.mxu0
        %v2358 = vrot.slane %v2049, 7
        %v2359 = vrot.slane %v2050, 7
        %v2360 = vsel %vm1053, %v2358, %v2359
        %v2361 = vrot.slane %v2051, 7
        %v2362 = vsel %vm1053, %v2359, %v2361
        %v2366 = vsel %vm1053, 0.0, %v2358
        %v2367 = vrot.slane %v2049, 1
        %v2368 = vrot.slane %v2050, 1
        %v2369 = vsel %vm1063, %v2367, %v2368
        %v2370 = vrot.slane %v2051, 1
        %v2371 = vsel %vm1063, %v2368, %v2370
        %v2373 = vsel %vm1070, %v2370, 0.0
        %2374 = vrot.lane.b32.xlu0 %v2049, 10
        %v2375 = vpop.permute.xlu0 %2374
        %2376 = vrot.lane.b32.xlu0 %v2050, 10
        %v2377 = vpop.permute.xlu0 %2376
        %2378 = vrot.lane.b32.xlu0 %v2051, 10
        %v2379 = vpop.permute.xlu0 %2378
        %2384 = vrot.lane.b32.xlu0 %v2369, 20
        %v2385 = vpop.permute.xlu0 %2384
        %2386 = vrot.lane.b32.xlu0 %v2371, 20
        %v2387 = vpop.permute.xlu0 %2386
        %2388 = vrot.lane.b32.xlu0 %v2373, 20
        %v2389 = vpop.permute.xlu0 %2388
        %v2393 = vsel %vm1091, %v2366, %v2375
        %v2394 = vsel %vm1091, %v2360, %v2377
        %v2395 = vsel %vm1091, %v2362, %v2379
        %v2396 = vsel %vm1095, %v2393, %v2385
        %v2397 = vsel %vm1095, %v2394, %v2387
        %v2398 = vsel %vm1095, %v2395, %v2389
        %v2400 = vsel %vm1105, %v2396, 0
        %v2403 = vsel %vm1105, %v2397, 0
        %v2406 = vsel %vm1105, %v2398, 0
        %2408 = vmatprep.subr.mxu0 0.0
        %2409 = vmatpush1.msra.mxu0 0.0
        %2410 = vmatprep.subr.mxu0 0.0
        %2411 = vmatpush1.msra.mxu0 0.0
        %2412 = vmatprep.subr.mxu0 0.0
        %2413 = vmatpush1.msra.mxu0 0.0
        %2414 = vmatprep.subr.mxu0 0.0
        %2415 = vmatpush1.msra.mxu0 0.0
        %2416 = vmatprep.subr.mxu0 0.0
        %2417 = vmatpush1.msra.mxu0 0.0
        %2418 = vmatprep.subr.mxu0 0.0
        %2419 = vmatpush1.msra.mxu0 0.0
        %2420 = vmatprep.subr.mxu0 0.0
        %2421 = vmatpush1.msra.mxu0 0.0
        %2422 = vmatprep.subr.mxu0 0.0
        %2423 = vmatpush1.msra.mxu0 0.0
        %2424 = vmatprep.subr.mxu0 0.0
        %2425 = vmatpush1.msra.mxu0 0.0
        %2426 = vmatprep.subr.mxu0 0.0
        %2427 = vmatpush1.msra.mxu0 0.0
        %2428 = vmatprep.subr.mxu0 0.0
        %2429 = vmatpush1.msra.mxu0 0.0
        %2430 = vmatprep.subr.mxu0 0.0
        %2431 = vmatpush1.msra.mxu0 0.0
        %2432 = vmatprep.subr.mxu0 0.0
        %2433 = vmatpush1.msra.mxu0 %v1117
        %2434 = vmatprep.subr.mxu0 0.0
        %2435 = vmatpush1.msra.mxu0 %v707
        %2436 = vmatprep.subr.mxu0 0.0
        %2437 = vmatpush1.msra.mxu0 %v706
        %2438 = vmatprep.subr.mxu0 0.0
        %2439 = vmatpush1.msra.mxu0 %v705
        %2440 = vmatprep.subr.mxu0 0.0
        %2441 = vmatpush2.msra.mxu0 0.0
        %2442 = vmatprep.subr.mxu0 0.0
        %2443 = vmatpush2.msra.mxu0 0.0
        %2444 = vmatprep.subr.mxu0 0.0
        %2445 = vmatpush2.msra.mxu0 0.0
        %2446 = vmatprep.subr.mxu0 0.0
        %2447 = vmatpush2.msra.mxu0 0.0
        %2448 = vmatprep.subr.mxu0 0.0
        %2449 = vmatpush2.msra.mxu0 0.0
        %2450 = vmatprep.subr.mxu0 0.0
        %2451 = vmatpush2.msra.mxu0 0.0
        %2452 = vmatprep.subr.mxu0 0.0
        %2453 = vmatpush2.msra.mxu0 0.0
        %2454 = vmatprep.subr.mxu0 0.0
        %2455 = vmatpush2.msra.mxu0 0.0
        %2456 = vmatprep.subr.mxu0 0.0
        %2457 = vmatpush2.msra.mxu0 0.0
        %2458 = vmatprep.subr.mxu0 0.0
        %2459 = vmatpush2.msra.mxu0 0.0
        %2460 = vmatprep.subr.mxu0 0.0
        %2461 = vmatpush2.msra.mxu0 0.0
        %2462 = vmatprep.subr.mxu0 0.0
        %2463 = vmatpush2.msra.mxu0 0.0
        %2464 = vmatprep.subr.mxu0 0.0
        %2465 = vmatpush2.msra.mxu0 0.0
        %2466 = vmatprep.subr.mxu0 0.0
        %2467 = vmatpush2.msra.mxu0 0.0
        %2468 = vmatprep.subr.mxu0 0.0
        %2469 = vmatpush2.msra.mxu0 0.0
        %2470 = vmatprep.subr.mxu0 0.0
        %2471 = vmatpush2.msra.mxu0 0.0
        %2472 = vmatprep.mubr.f32.mxu0 0.0
        %2473 = vmatmul.mubr.f32.gmra.mxu0 %v2400
        %v2474 = vpop.f32.mrf.mxu0
        %v2475 = vadd.f32 %v1103, %v2474
        %v2476 = vpop.f32.mrf.mxu0
        %2477 = vmatprep.mubr.f32.mxu0 0.0
        %2478 = vmatmul.mubr.f32.gmra.mxu0 %v2403
        %v2479 = vpop.f32.mrf.mxu0
        %v2480 = vadd.f32 %v1103, %v2479
        %v2481 = vpop.f32.mrf.mxu0
        %2482 = vmatprep.mubr.f32.mxu0 0.0
        %2483 = vmatmul.mubr.f32.gmra.mxu0 %v2406
        %v2484 = vpop.f32.mrf.mxu0
        %v2485 = vadd.f32 %v1103, %v2484
        %v2486 = vpop.f32.mrf.mxu0
        %2487 = vdwg.mxu0
        %v2488 = vadd.f32 %v2282, 1.0
        %v2489 = vlaneseq
        %v2490 = vshrl.u32 %v2489, 7
        %v2491 = vsub.s32 0, %v2490
        %v2492 = vrot.slane %v2488, %v2491
        %v2493 = vmul.f32 %v2475, %v2492
        %v2494 = vmul.f32 %v2480, %v2492
        %v2495 = vmul.f32 %v2485, %v2492
        %v2496 = vlaneseq
        %v2497 = vshrl.u32 %v2496, 7
        %v2498 = vsub.s32 0, %v2497
        %v2499 = vrot.slane %v2352, %v2498
        %v2500 = vadd.f32 %v2493, %v2499
        %v2501 = vadd.f32 %v2494, %v2499
        %v2502 = vadd.f32 %v2495, %v2499
        %v2503 = vand.u32 2147483647, %v2500
        %v2504 = vand.u32 2147483647, %v2501
        %v2505 = vand.u32 2147483647, %v2502
        %v2506 = vsub.f32 0.0, %v2503
        %v2507 = vsub.f32 0.0, %v2504
        %v2508 = vsub.f32 0.0, %v2505
        %v2509 = vmul.f32 %v2506, 1.442695
        %v2510 = vpow.pop %v2509
        %v2511 = vmul.f32 %v2507, 1.442695
        %v2512 = vpow.pop %v2511
        %v2513 = vmul.f32 %v2508, 1.442695
        %v2514 = vpow.pop %v2513
        %v2515 = vadd.f32 %v2510, 1.0
        %v2516 = vlog2.pop %v2515
        %v2517 = vmul.f32 %v2516, 0.6931472
        %v2518 = vmul.f32 -0.5, %v2510
        %v2519 = vadd.f32 %v2518, 1.0
        %v2520 = vmul.f32 %v2519, %v2510
        %v2521 = vand.u32 2147483647, %v2510
        %vm2522 = vcmp.lt.f32.partialorder %v2521, 0.0004427343
        %v2523 = vsel %vm2522, %v2520, %v2517
        %v2524 = vadd.f32 %v2512, 1.0
        %v2525 = vlog2.pop %v2524
        %v2526 = vmul.f32 %v2525, 0.6931472
        %v2527 = vmul.f32 -0.5, %v2512
        %v2528 = vadd.f32 %v2527, 1.0
        %v2529 = vmul.f32 %v2528, %v2512
        %v2530 = vand.u32 2147483647, %v2512
        %vm2531 = vcmp.lt.f32.partialorder %v2530, 0.0004427343
        %v2532 = vsel %vm2531, %v2529, %v2526
        %v2533 = vadd.f32 %v2514, 1.0
        %v2534 = vlog2.pop %v2533
        %v2535 = vmul.f32 %v2534, 0.6931472
        %v2536 = vmul.f32 -0.5, %v2514
        %v2537 = vadd.f32 %v2536, 1.0
        %v2538 = vmul.f32 %v2537, %v2514
        %v2539 = vand.u32 2147483647, %v2514
        %vm2540 = vcmp.lt.f32.partialorder %v2539, 0.0004427343
        %v2541 = vsel %vm2540, %v2538, %v2535
        %v2542 = vmax.f32 %v2500, 0.0
        %v2543 = vmax.f32 %v2501, 0.0
        %v2544 = vmax.f32 %v2502, 0.0
        %v2545 = vadd.f32 %v2523, %v2542
        %v2546 = vadd.f32 %v2532, %v2543
        %v2547 = vadd.f32 %v2541, %v2544
        %v2548 = vtanh.pop %v2545
        %v2549 = vtanh.pop %v2546
        %v2550 = vtanh.pop %v2547
        %v2551 = vmul.f32 %v2500, %v2548
        %v2552 = vmul.f32 %v2501, %v2549
        %v2553 = vmul.f32 %v2502, %v2550
        %v2557 = vrot.slane %v2551, 7
        %v2558 = vrot.slane %v2552, 7
        %v2559 = vsel %vm1053, %v2557, %v2558
        %v2560 = vrot.slane %v2553, 7
        %v2561 = vsel %vm1053, %v2558, %v2560
        %v2565 = vsel %vm1053, 0.0, %v2557
        %v2566 = vrot.slane %v2551, 1
        %v2567 = vrot.slane %v2552, 1
        %v2568 = vsel %vm1063, %v2566, %v2567
        %v2569 = vrot.slane %v2553, 1
        %v2570 = vsel %vm1063, %v2567, %v2569
        %v2572 = vsel %vm1070, %v2569, 0.0
        %2573 = vrot.lane.b32.xlu0 %v2551, 64
        %v2574 = vpop.permute.xlu0 %2573
        %2575 = vrot.lane.b32.xlu0 %v2552, 64
        %v2576 = vpop.permute.xlu0 %2575
        %2577 = vrot.lane.b32.xlu0 %v2553, 64
        %v2578 = vpop.permute.xlu0 %2577
        %v2582 = vsel %vm908, %v2565, %v2574
        %v2583 = vsel %vm908, %v2559, %v2576
        %v2584 = vsel %vm908, %v2561, %v2578
        %v2585 = vsel %vm908, %v2568, 0
        %v2587 = vsel %vm908, %v2570, 0
        %v2590 = vsel %vm908, %v2572, 0
        %2592 = vmatprep.subr.mxu0 0.0
        %2593 = vmatpush1.msra.mxu0 %v725
        %2594 = vmatprep.subr.mxu0 0.0
        %2595 = vmatpush1.msra.mxu0 %v724
        %2596 = vmatprep.subr.mxu0 0.0
        %2597 = vmatpush1.msra.mxu0 %v723
        %2598 = vmatprep.subr.mxu0 0.0
        %2599 = vmatpush1.msra.mxu0 %v722
        %2600 = vmatprep.subr.mxu0 0.0
        %2601 = vmatpush1.msra.mxu0 %v721
        %2602 = vmatprep.subr.mxu0 0.0
        %2603 = vmatpush1.msra.mxu0 %v720
        %2604 = vmatprep.subr.mxu0 0.0
        %2605 = vmatpush1.msra.mxu0 %v719
        %2606 = vmatprep.subr.mxu0 0.0
        %2607 = vmatpush1.msra.mxu0 %v718
        %2608 = vmatprep.subr.mxu0 0.0
        %2609 = vmatpush1.msra.mxu0 %v717
        %2610 = vmatprep.subr.mxu0 0.0
        %2611 = vmatpush1.msra.mxu0 %v716
        %2612 = vmatprep.subr.mxu0 0.0
        %2613 = vmatpush1.msra.mxu0 %v715
        %2614 = vmatprep.subr.mxu0 0.0
        %2615 = vmatpush1.msra.mxu0 %v714
        %2616 = vmatprep.subr.mxu0 0.0
        %2617 = vmatpush1.msra.mxu0 %v713
        %2618 = vmatprep.subr.mxu0 0.0
        %2619 = vmatpush1.msra.mxu0 %v712
        %2620 = vmatprep.subr.mxu0 0.0
        %2621 = vmatpush1.msra.mxu0 %v711
        %2622 = vmatprep.subr.mxu0 0.0
        %2623 = vmatpush1.msra.mxu0 %v710
        %2624 = vmatprep.subr.mxu0 0.0
        %2625 = vmatpush2.msra.mxu0 0.0
        %2626 = vmatprep.subr.mxu0 0.0
        %2627 = vmatpush2.msra.mxu0 0.0
        %2628 = vmatprep.subr.mxu0 0.0
        %2629 = vmatpush2.msra.mxu0 0.0
        %2630 = vmatprep.subr.mxu0 0.0
        %2631 = vmatpush2.msra.mxu0 0.0
        %2632 = vmatprep.subr.mxu0 0.0
        %2633 = vmatpush2.msra.mxu0 0.0
        %2634 = vmatprep.subr.mxu0 0.0
        %2635 = vmatpush2.msra.mxu0 0.0
        %2636 = vmatprep.subr.mxu0 0.0
        %2637 = vmatpush2.msra.mxu0 0.0
        %2638 = vmatprep.subr.mxu0 0.0
        %2639 = vmatpush2.msra.mxu0 0.0
        %2640 = vmatprep.subr.mxu0 0.0
        %2641 = vmatpush2.msra.mxu0 %v733
        %2642 = vmatprep.subr.mxu0 0.0
        %2643 = vmatpush2.msra.mxu0 %v732
        %2644 = vmatprep.subr.mxu0 0.0
        %2645 = vmatpush2.msra.mxu0 %v731
        %2646 = vmatprep.subr.mxu0 0.0
        %2647 = vmatpush2.msra.mxu0 %v730
        %2648 = vmatprep.subr.mxu0 0.0
        %2649 = vmatpush2.msra.mxu0 %v729
        %2650 = vmatprep.subr.mxu0 0.0
        %2651 = vmatpush2.msra.mxu0 %v728
        %2652 = vmatprep.subr.mxu0 0.0
        %2653 = vmatpush2.msra.mxu0 %v727
        %2654 = vmatprep.subr.mxu0 0.0
        %2655 = vmatpush2.msra.mxu0 %v726
        %2656 = vmatprep.mubr.f32.mxu0 %v2585
        %2657 = vmatmul.mubr.f32.gmra.mxu0 %v2582
        %v2658 = vpop.f32.mrf.mxu0
        %v2659 = vadd.f32 %v1300, %v2658
        %v2660 = vpop.f32.mrf.mxu0
        %2661 = vmatprep.mubr.f32.mxu0 %v2587
        %2662 = vmatmul.mubr.f32.gmra.mxu0 %v2583
        %v2663 = vpop.f32.mrf.mxu0
        %v2664 = vadd.f32 %v1300, %v2663
        %v2665 = vpop.f32.mrf.mxu0
        %2666 = vmatprep.mubr.f32.mxu0 %v2590
        %2667 = vmatmul.mubr.f32.gmra.mxu0 %v2584
        %v2668 = vpop.f32.mrf.mxu0
        %v2669 = vadd.f32 %v1300, %v2668
        %v2670 = vpop.f32.mrf.mxu0
        %2671 = vdwg.mxu0
        %v2672 = vadd.f32 %v2659, %v2049
        %v2673 = vadd.f32 %v2664, %v2050
        %v2674 = vadd.f32 %v2669, %v2051
        %s2675 = scalar_lea.vmem %s580, 48 [#allocation2]
        %v2676 = vld [vmem:[%s2675] sm:$0xff]
        %v2677 = vld [vmem:[%s2675 + $0x8] sm:$0xff]
        %v2678 = vld [vmem:[%s2675 + $0x10] sm:$0xf]
        %v2679 = vmul.f32 %v2672, 0.08159013
        %v2680 = vmul.f32 %v2673, 0.08159013
        %v2681 = vmul.f32 %v2674, 0.08159013
        %v2682 = vsub.f32 %v2049, %v2679
        %v2683 = vsub.f32 %v2050, %v2680
        %v2684 = vsub.f32 %v2051, %v2681
        %v2685 = vmul.f32 %v2682, 1.0050632
        %v2686 = vmul.f32 %v2683, 1.0050632
        %v2687 = vmul.f32 %v2684, 1.0050632
        %v2688 = vmul.f32 %v2676, 0.100249685
        %v2689 = vmul.f32 %v2677, 0.100249685
        %v2690 = vmul.f32 %v2678, 0.100249685
        %v2691 = vadd.f32 %v2685, %v2688
        %v2692 = vadd.f32 %v2686, %v2689
        %v2693 = vadd.f32 %v2687, %v2690
        %s2694 = scalar_lea.vmem %s0, 3
        %v2695 = vld [vmem:[%s2694] sm:$0x1]
        %v2697 = vsel %vm739, %v2695, 0
        %2699 = vmatprep.subr.mxu0 0.0
        %2700 = vmatpush1.msra.mxu0 0.0
        %2701 = vmatprep.subr.mxu0 0.0
        %2702 = vmatpush1.msra.mxu0 0.0
        %2703 = vmatprep.subr.mxu0 0.0
        %2704 = vmatpush1.msra.mxu0 0.0
        %2705 = vmatprep.subr.mxu0 0.0
        %2706 = vmatpush1.msra.mxu0 0.0
        %2707 = vmatprep.subr.mxu0 0.0
        %2708 = vmatpush1.msra.mxu0 0.0
        %2709 = vmatprep.subr.mxu0 0.0
        %2710 = vmatpush1.msra.mxu0 0.0
        %2711 = vmatprep.subr.mxu0 0.0
        %2712 = vmatpush1.msra.mxu0 0.0
        %2713 = vmatprep.subr.mxu0 0.0
        %2714 = vmatpush1.msra.mxu0 0.0
        %2715 = vmatprep.subr.mxu0 0.0
        %2716 = vmatpush1.msra.mxu0 0.0
        %2717 = vmatprep.subr.mxu0 0.0
        %2718 = vmatpush1.msra.mxu0 0.0
        %2719 = vmatprep.subr.mxu0 0.0
        %2720 = vmatpush1.msra.mxu0 0.0
        %2721 = vmatprep.subr.mxu0 0.0
        %2722 = vmatpush1.msra.mxu0 0.0
        %2723 = vmatprep.subr.mxu0 0.0
        %2724 = vmatpush1.msra.mxu0 %v652
        %2725 = vmatprep.subr.mxu0 0.0
        %2726 = vmatpush1.msra.mxu0 %v651
        %2727 = vmatprep.subr.mxu0 0.0
        %2728 = vmatpush1.msra.mxu0 %v650
        %2729 = vmatprep.subr.mxu0 0.0
        %2730 = vmatpush1.msra.mxu0 %v649
        %2731 = vmatprep.subr.mxu0 0.0
        %2732 = vmatpush2.msra.mxu0 0.0
        %2733 = vmatprep.subr.mxu0 0.0
        %2734 = vmatpush2.msra.mxu0 0.0
        %2735 = vmatprep.subr.mxu0 0.0
        %2736 = vmatpush2.msra.mxu0 0.0
        %2737 = vmatprep.subr.mxu0 0.0
        %2738 = vmatpush2.msra.mxu0 0.0
        %2739 = vmatprep.subr.mxu0 0.0
        %2740 = vmatpush2.msra.mxu0 0.0
        %2741 = vmatprep.subr.mxu0 0.0
        %2742 = vmatpush2.msra.mxu0 0.0
        %2743 = vmatprep.subr.mxu0 0.0
        %2744 = vmatpush2.msra.mxu0 0.0
        %2745 = vmatprep.subr.mxu0 0.0
        %2746 = vmatpush2.msra.mxu0 0.0
        %2747 = vmatprep.subr.mxu0 0.0
        %2748 = vmatpush2.msra.mxu0 0.0
        %2749 = vmatprep.subr.mxu0 0.0
        %2750 = vmatpush2.msra.mxu0 0.0
        %2751 = vmatprep.subr.mxu0 0.0
        %2752 = vmatpush2.msra.mxu0 0.0
        %2753 = vmatprep.subr.mxu0 0.0
        %2754 = vmatpush2.msra.mxu0 0.0
        %2755 = vmatprep.subr.mxu0 0.0
        %2756 = vmatpush2.msra.mxu0 0.0
        %2757 = vmatprep.subr.mxu0 0.0
        %2758 = vmatpush2.msra.mxu0 0.0
        %2759 = vmatprep.subr.mxu0 0.0
        %2760 = vmatpush2.msra.mxu0 0.0
        %2761 = vmatprep.subr.mxu0 0.0
        %2762 = vmatpush2.msra.mxu0 0.0
        %2763 = vmatprep.mubr.f32.mxu0 0.0
        %2764 = vmatmul.mubr.f32.gmra.mxu0 %v2697
        %v2765 = vpop.f32.mrf.mxu0
        %v2766 = vadd.f32 %v653, %v2765
        %v2767 = vpop.f32.mrf.mxu0
        %2768 = vdwg.mxu0
        %v2769 = vand.u32 2147483647, %v2766
        %v2770 = vsub.f32 0.0, %v2769
        %v2771 = vmul.f32 %v2770, 1.442695
        %v2772 = vpow.pop %v2771
        %v2773 = vadd.f32 %v2772, 1.0
        %v2774 = vlog2.pop %v2773
        %v2775 = vmul.f32 %v2774, 0.6931472
        %v2776 = vmul.f32 -0.5, %v2772
        %v2777 = vadd.f32 %v2776, 1.0
        %v2778 = vmul.f32 %v2777, %v2772
        %v2779 = vand.u32 2147483647, %v2772
        %vm2780 = vcmp.lt.f32.partialorder %v2779, 0.0004427343
        %v2781 = vsel %vm2780, %v2778, %v2775
        %v2782 = vmax.f32 %v2766, 0.0
        %v2783 = vadd.f32 %v2781, %v2782
        %v2784 = vtanh.pop %v2783
        %v2785 = vmul.f32 %v2766, %v2784
        %2786 = vmatprep.subr.mxu0 0.0
        %2787 = vmatpush1.msra.mxu0 %v669
        %2788 = vmatprep.subr.mxu0 0.0
        %2789 = vmatpush1.msra.mxu0 %v668
        %2790 = vmatprep.subr.mxu0 0.0
        %2791 = vmatpush1.msra.mxu0 %v667
        %2792 = vmatprep.subr.mxu0 0.0
        %2793 = vmatpush1.msra.mxu0 %v666
        %2794 = vmatprep.subr.mxu0 0.0
        %2795 = vmatpush1.msra.mxu0 %v665
        %2796 = vmatprep.subr.mxu0 0.0
        %2797 = vmatpush1.msra.mxu0 %v664
        %2798 = vmatprep.subr.mxu0 0.0
        %2799 = vmatpush1.msra.mxu0 %v663
        %2800 = vmatprep.subr.mxu0 0.0
        %2801 = vmatpush1.msra.mxu0 %v662
        %2802 = vmatprep.subr.mxu0 0.0
        %2803 = vmatpush1.msra.mxu0 %v661
        %2804 = vmatprep.subr.mxu0 0.0
        %2805 = vmatpush1.msra.mxu0 %v660
        %2806 = vmatprep.subr.mxu0 0.0
        %2807 = vmatpush1.msra.mxu0 %v659
        %2808 = vmatprep.subr.mxu0 0.0
        %2809 = vmatpush1.msra.mxu0 %v658
        %2810 = vmatprep.subr.mxu0 0.0
        %2811 = vmatpush1.msra.mxu0 %v657
        %2812 = vmatprep.subr.mxu0 0.0
        %2813 = vmatpush1.msra.mxu0 %v656
        %2814 = vmatprep.subr.mxu0 0.0
        %2815 = vmatpush1.msra.mxu0 %v655
        %2816 = vmatprep.subr.mxu0 0.0
        %2817 = vmatpush1.msra.mxu0 %v654
        %2818 = vmatprep.subr.mxu0 0.0
        %2819 = vmatpush2.msra.mxu0 0.0
        %2820 = vmatprep.subr.mxu0 0.0
        %2821 = vmatpush2.msra.mxu0 0.0
        %2822 = vmatprep.subr.mxu0 0.0
        %2823 = vmatpush2.msra.mxu0 0.0
        %2824 = vmatprep.subr.mxu0 0.0
        %2825 = vmatpush2.msra.mxu0 0.0
        %2826 = vmatprep.subr.mxu0 0.0
        %2827 = vmatpush2.msra.mxu0 0.0
        %2828 = vmatprep.subr.mxu0 0.0
        %2829 = vmatpush2.msra.mxu0 0.0
        %2830 = vmatprep.subr.mxu0 0.0
        %2831 = vmatpush2.msra.mxu0 0.0
        %2832 = vmatprep.subr.mxu0 0.0
        %2833 = vmatpush2.msra.mxu0 0.0
        %2834 = vmatprep.subr.mxu0 0.0
        %2835 = vmatpush2.msra.mxu0 0.0
        %2836 = vmatprep.subr.mxu0 0.0
        %2837 = vmatpush2.msra.mxu0 0.0
        %2838 = vmatprep.subr.mxu0 0.0
        %2839 = vmatpush2.msra.mxu0 0.0
        %2840 = vmatprep.subr.mxu0 0.0
        %2841 = vmatpush2.msra.mxu0 0.0
        %2842 = vmatprep.subr.mxu0 0.0
        %2843 = vmatpush2.msra.mxu0 0.0
        %2844 = vmatprep.subr.mxu0 0.0
        %2845 = vmatpush2.msra.mxu0 0.0
        %2846 = vmatprep.subr.mxu0 0.0
        %2847 = vmatpush2.msra.mxu0 0.0
        %2848 = vmatprep.subr.mxu0 0.0
        %2849 = vmatpush2.msra.mxu0 0.0
        %2850 = vmatprep.mubr.f32.mxu0 0.0
        %2851 = vmatmul.mubr.f32.gmra.mxu0 %v2785
        %v2852 = vpop.f32.mrf.mxu0
        %v2853 = vadd.f32 %v670, %v2852
        %v2854 = vpop.f32.mrf.mxu0
        %2855 = vdwg.mxu0
        %v2856 = vsel %vm908, %v2853, %v906
        %2857 = vmatprep.subr.mxu0 0.0
        %2858 = vmatpush1.msra.mxu0 %v686
        %2859 = vmatprep.subr.mxu0 0.0
        %2860 = vmatpush1.msra.mxu0 %v685
        %2861 = vmatprep.subr.mxu0 0.0
        %2862 = vmatpush1.msra.mxu0 %v684
        %2863 = vmatprep.subr.mxu0 0.0
        %2864 = vmatpush1.msra.mxu0 %v683
        %2865 = vmatprep.subr.mxu0 0.0
        %2866 = vmatpush1.msra.mxu0 %v682
        %2867 = vmatprep.subr.mxu0 0.0
        %2868 = vmatpush1.msra.mxu0 %v681
        %2869 = vmatprep.subr.mxu0 0.0
        %2870 = vmatpush1.msra.mxu0 %v680
        %2871 = vmatprep.subr.mxu0 0.0
        %2872 = vmatpush1.msra.mxu0 %v679
        %2873 = vmatprep.subr.mxu0 0.0
        %2874 = vmatpush1.msra.mxu0 %v678
        %2875 = vmatprep.subr.mxu0 0.0
        %2876 = vmatpush1.msra.mxu0 %v677
        %2877 = vmatprep.subr.mxu0 0.0
        %2878 = vmatpush1.msra.mxu0 %v676
        %2879 = vmatprep.subr.mxu0 0.0
        %2880 = vmatpush1.msra.mxu0 %v675
        %2881 = vmatprep.subr.mxu0 0.0
        %2882 = vmatpush1.msra.mxu0 %v674
        %2883 = vmatprep.subr.mxu0 0.0
        %2884 = vmatpush1.msra.mxu0 %v673
        %2885 = vmatprep.subr.mxu0 0.0
        %2886 = vmatpush1.msra.mxu0 %v672
        %2887 = vmatprep.subr.mxu0 0.0
        %2888 = vmatpush1.msra.mxu0 %v671
        %2889 = vmatprep.subr.mxu0 0.0
        %2890 = vmatpush2.msra.mxu0 0.0
        %2891 = vmatprep.subr.mxu0 0.0
        %2892 = vmatpush2.msra.mxu0 0.0
        %2893 = vmatprep.subr.mxu0 0.0
        %2894 = vmatpush2.msra.mxu0 0.0
        %2895 = vmatprep.subr.mxu0 0.0
        %2896 = vmatpush2.msra.mxu0 0.0
        %2897 = vmatprep.subr.mxu0 0.0
        %2898 = vmatpush2.msra.mxu0 0.0
        %2899 = vmatprep.subr.mxu0 0.0
        %2900 = vmatpush2.msra.mxu0 0.0
        %2901 = vmatprep.subr.mxu0 0.0
        %2902 = vmatpush2.msra.mxu0 0.0
        %2903 = vmatprep.subr.mxu0 0.0
        %2904 = vmatpush2.msra.mxu0 0.0
        %2905 = vmatprep.subr.mxu0 0.0
        %2906 = vmatpush2.msra.mxu0 0.0
        %2907 = vmatprep.subr.mxu0 0.0
        %2908 = vmatpush2.msra.mxu0 0.0
        %2909 = vmatprep.subr.mxu0 0.0
        %2910 = vmatpush2.msra.mxu0 0.0
        %2911 = vmatprep.subr.mxu0 0.0
        %2912 = vmatpush2.msra.mxu0 0.0
        %2913 = vmatprep.subr.mxu0 0.0
        %2914 = vmatpush2.msra.mxu0 0.0
        %2915 = vmatprep.subr.mxu0 0.0
        %2916 = vmatpush2.msra.mxu0 0.0
        %2917 = vmatprep.subr.mxu0 0.0
        %2918 = vmatpush2.msra.mxu0 0.0
        %2919 = vmatprep.subr.mxu0 0.0
        %2920 = vmatpush2.msra.mxu0 0.0
        %2921 = vmatprep.mubr.f32.mxu0 0.0
        %2922 = vmatmul.mubr.f32.gmra.mxu0 %v2856
        %v2923 = vpop.f32.mrf.mxu0
        %v2924 = vadd.f32 %v687, %v2923
        %v2925 = vpop.f32.mrf.mxu0
        %2926 = vdwg.mxu0
        %2927 = vmatprep.subr.mxu0 0.0
        %2928 = vmatpush1.msra.mxu0 %v703
        %2929 = vmatprep.subr.mxu0 0.0
        %2930 = vmatpush1.msra.mxu0 %v702
        %2931 = vmatprep.subr.mxu0 0.0
        %2932 = vmatpush1.msra.mxu0 %v701
        %2933 = vmatprep.subr.mxu0 0.0
        %2934 = vmatpush1.msra.mxu0 %v700
        %2935 = vmatprep.subr.mxu0 0.0
        %2936 = vmatpush1.msra.mxu0 %v699
        %2937 = vmatprep.subr.mxu0 0.0
        %2938 = vmatpush1.msra.mxu0 %v698
        %2939 = vmatprep.subr.mxu0 0.0
        %2940 = vmatpush1.msra.mxu0 %v697
        %2941 = vmatprep.subr.mxu0 0.0
        %2942 = vmatpush1.msra.mxu0 %v696
        %2943 = vmatprep.subr.mxu0 0.0
        %2944 = vmatpush1.msra.mxu0 %v695
        %2945 = vmatprep.subr.mxu0 0.0
        %2946 = vmatpush1.msra.mxu0 %v694
        %2947 = vmatprep.subr.mxu0 0.0
        %2948 = vmatpush1.msra.mxu0 %v693
        %2949 = vmatprep.subr.mxu0 0.0
        %2950 = vmatpush1.msra.mxu0 %v692
        %2951 = vmatprep.subr.mxu0 0.0
        %2952 = vmatpush1.msra.mxu0 %v691
        %2953 = vmatprep.subr.mxu0 0.0
        %2954 = vmatpush1.msra.mxu0 %v690
        %2955 = vmatprep.subr.mxu0 0.0
        %2956 = vmatpush1.msra.mxu0 %v689
        %2957 = vmatprep.subr.mxu0 0.0
        %2958 = vmatpush1.msra.mxu0 %v688
        %2959 = vmatprep.subr.mxu0 0.0
        %2960 = vmatpush2.msra.mxu0 0.0
        %2961 = vmatprep.subr.mxu0 0.0
        %2962 = vmatpush2.msra.mxu0 0.0
        %2963 = vmatprep.subr.mxu0 0.0
        %2964 = vmatpush2.msra.mxu0 0.0
        %2965 = vmatprep.subr.mxu0 0.0
        %2966 = vmatpush2.msra.mxu0 0.0
        %2967 = vmatprep.subr.mxu0 0.0
        %2968 = vmatpush2.msra.mxu0 0.0
        %2969 = vmatprep.subr.mxu0 0.0
        %2970 = vmatpush2.msra.mxu0 0.0
        %2971 = vmatprep.subr.mxu0 0.0
        %2972 = vmatpush2.msra.mxu0 0.0
        %2973 = vmatprep.subr.mxu0 0.0
        %2974 = vmatpush2.msra.mxu0 0.0
        %2975 = vmatprep.subr.mxu0 0.0
        %2976 = vmatpush2.msra.mxu0 0.0
        %2977 = vmatprep.subr.mxu0 0.0
        %2978 = vmatpush2.msra.mxu0 0.0
        %2979 = vmatprep.subr.mxu0 0.0
        %2980 = vmatpush2.msra.mxu0 0.0
        %2981 = vmatprep.subr.mxu0 0.0
        %2982 = vmatpush2.msra.mxu0 0.0
        %2983 = vmatprep.subr.mxu0 0.0
        %2984 = vmatpush2.msra.mxu0 0.0
        %2985 = vmatprep.subr.mxu0 0.0
        %2986 = vmatpush2.msra.mxu0 0.0
        %2987 = vmatprep.subr.mxu0 0.0
        %2988 = vmatpush2.msra.mxu0 0.0
        %2989 = vmatprep.subr.mxu0 0.0
        %2990 = vmatpush2.msra.mxu0 0.0
        %2991 = vmatprep.mubr.f32.mxu0 0.0
        %2992 = vmatmul.mubr.f32.gmra.mxu0 %v2856
        %v2993 = vpop.f32.mrf.mxu0
        %v2994 = vadd.f32 %v704, %v2993
        %v2995 = vpop.f32.mrf.mxu0
        %2996 = vdwg.mxu0
        %v3000 = vrot.slane %v2691, 7
        %v3001 = vrot.slane %v2692, 7
        %v3002 = vsel %vm1053, %v3000, %v3001
        %v3003 = vrot.slane %v2693, 7
        %v3004 = vsel %vm1053, %v3001, %v3003
        %v3008 = vsel %vm1053, 0.0, %v3000
        %v3009 = vrot.slane %v2691, 1
        %v3010 = vrot.slane %v2692, 1
        %v3011 = vsel %vm1063, %v3009, %v3010
        %v3012 = vrot.slane %v2693, 1
        %v3013 = vsel %vm1063, %v3010, %v3012
        %v3015 = vsel %vm1070, %v3012, 0.0
        %3016 = vrot.lane.b32.xlu0 %v2691, 10
        %v3017 = vpop.permute.xlu0 %3016
        %3018 = vrot.lane.b32.xlu0 %v2692, 10
        %v3019 = vpop.permute.xlu0 %3018
        %3020 = vrot.lane.b32.xlu0 %v2693, 10
        %v3021 = vpop.permute.xlu0 %3020
        %3026 = vrot.lane.b32.xlu0 %v3011, 20
        %v3027 = vpop.permute.xlu0 %3026
        %3028 = vrot.lane.b32.xlu0 %v3013, 20
        %v3029 = vpop.permute.xlu0 %3028
        %3030 = vrot.lane.b32.xlu0 %v3015, 20
        %v3031 = vpop.permute.xlu0 %3030
        %v3035 = vsel %vm1091, %v3008, %v3017
        %v3036 = vsel %vm1091, %v3002, %v3019
        %v3037 = vsel %vm1091, %v3004, %v3021
        %v3038 = vsel %vm1095, %v3035, %v3027
        %v3039 = vsel %vm1095, %v3036, %v3029
        %v3040 = vsel %vm1095, %v3037, %v3031
        %v3042 = vsel %vm1105, %v3038, 0
        %v3045 = vsel %vm1105, %v3039, 0
        %v3048 = vsel %vm1105, %v3040, 0
        %3050 = vmatprep.subr.mxu0 0.0
        %3051 = vmatpush1.msra.mxu0 0.0
        %3052 = vmatprep.subr.mxu0 0.0
        %3053 = vmatpush1.msra.mxu0 0.0
        %3054 = vmatprep.subr.mxu0 0.0
        %3055 = vmatpush1.msra.mxu0 0.0
        %3056 = vmatprep.subr.mxu0 0.0
        %3057 = vmatpush1.msra.mxu0 0.0
        %3058 = vmatprep.subr.mxu0 0.0
        %3059 = vmatpush1.msra.mxu0 0.0
        %3060 = vmatprep.subr.mxu0 0.0
        %3061 = vmatpush1.msra.mxu0 0.0
        %3062 = vmatprep.subr.mxu0 0.0
        %3063 = vmatpush1.msra.mxu0 0.0
        %3064 = vmatprep.subr.mxu0 0.0
        %3065 = vmatpush1.msra.mxu0 0.0
        %3066 = vmatprep.subr.mxu0 0.0
        %3067 = vmatpush1.msra.mxu0 0.0
        %3068 = vmatprep.subr.mxu0 0.0
        %3069 = vmatpush1.msra.mxu0 0.0
        %3070 = vmatprep.subr.mxu0 0.0
        %3071 = vmatpush1.msra.mxu0 0.0
        %3072 = vmatprep.subr.mxu0 0.0
        %3073 = vmatpush1.msra.mxu0 0.0
        %3074 = vmatprep.subr.mxu0 0.0
        %3075 = vmatpush1.msra.mxu0 %v1117
        %3076 = vmatprep.subr.mxu0 0.0
        %3077 = vmatpush1.msra.mxu0 %v707
        %3078 = vmatprep.subr.mxu0 0.0
        %3079 = vmatpush1.msra.mxu0 %v706
        %3080 = vmatprep.subr.mxu0 0.0
        %3081 = vmatpush1.msra.mxu0 %v705
        %3082 = vmatprep.subr.mxu0 0.0
        %3083 = vmatpush2.msra.mxu0 0.0
        %3084 = vmatprep.subr.mxu0 0.0
        %3085 = vmatpush2.msra.mxu0 0.0
        %3086 = vmatprep.subr.mxu0 0.0
        %3087 = vmatpush2.msra.mxu0 0.0
        %3088 = vmatprep.subr.mxu0 0.0
        %3089 = vmatpush2.msra.mxu0 0.0
        %3090 = vmatprep.subr.mxu0 0.0
        %3091 = vmatpush2.msra.mxu0 0.0
        %3092 = vmatprep.subr.mxu0 0.0
        %3093 = vmatpush2.msra.mxu0 0.0
        %3094 = vmatprep.subr.mxu0 0.0
        %3095 = vmatpush2.msra.mxu0 0.0
        %3096 = vmatprep.subr.mxu0 0.0
        %3097 = vmatpush2.msra.mxu0 0.0
        %3098 = vmatprep.subr.mxu0 0.0
        %3099 = vmatpush2.msra.mxu0 0.0
        %3100 = vmatprep.subr.mxu0 0.0
        %3101 = vmatpush2.msra.mxu0 0.0
        %3102 = vmatprep.subr.mxu0 0.0
        %3103 = vmatpush2.msra.mxu0 0.0
        %3104 = vmatprep.subr.mxu0 0.0
        %3105 = vmatpush2.msra.mxu0 0.0
        %3106 = vmatprep.subr.mxu0 0.0
        %3107 = vmatpush2.msra.mxu0 0.0
        %3108 = vmatprep.subr.mxu0 0.0
        %3109 = vmatpush2.msra.mxu0 0.0
        %3110 = vmatprep.subr.mxu0 0.0
        %3111 = vmatpush2.msra.mxu0 0.0
        %3112 = vmatprep.subr.mxu0 0.0
        %3113 = vmatpush2.msra.mxu0 0.0
        %3114 = vmatprep.mubr.f32.mxu0 0.0
        %3115 = vmatmul.mubr.f32.gmra.mxu0 %v3042
        %v3116 = vpop.f32.mrf.mxu0
        %v3117 = vadd.f32 %v1103, %v3116
        %v3118 = vpop.f32.mrf.mxu0
        %3119 = vmatprep.mubr.f32.mxu0 0.0
        %3120 = vmatmul.mubr.f32.gmra.mxu0 %v3045
        %v3121 = vpop.f32.mrf.mxu0
        %v3122 = vadd.f32 %v1103, %v3121
        %v3123 = vpop.f32.mrf.mxu0
        %3124 = vmatprep.mubr.f32.mxu0 0.0
        %3125 = vmatmul.mubr.f32.gmra.mxu0 %v3048
        %v3126 = vpop.f32.mrf.mxu0
        %v3127 = vadd.f32 %v1103, %v3126
        %v3128 = vpop.f32.mrf.mxu0
        %3129 = vdwg.mxu0
        %v3130 = vadd.f32 %v2924, 1.0
        %v3131 = vlaneseq
        %v3132 = vshrl.u32 %v3131, 7
        %v3133 = vsub.s32 0, %v3132
        %v3134 = vrot.slane %v3130, %v3133
        %v3135 = vmul.f32 %v3117, %v3134
        %v3136 = vmul.f32 %v3122, %v3134
        %v3137 = vmul.f32 %v3127, %v3134
        %v3138 = vlaneseq
        %v3139 = vshrl.u32 %v3138, 7
        %v3140 = vsub.s32 0, %v3139
        %v3141 = vrot.slane %v2994, %v3140
        %v3142 = vadd.f32 %v3135, %v3141
        %v3143 = vadd.f32 %v3136, %v3141
        %v3144 = vadd.f32 %v3137, %v3141
        %v3145 = vand.u32 2147483647, %v3142
        %v3146 = vand.u32 2147483647, %v3143
        %v3147 = vand.u32 2147483647, %v3144
        %v3148 = vsub.f32 0.0, %v3145
        %v3149 = vsub.f32 0.0, %v3146
        %v3150 = vsub.f32 0.0, %v3147
        %v3151 = vmul.f32 %v3148, 1.442695
        %v3152 = vpow.pop %v3151
        %v3153 = vmul.f32 %v3149, 1.442695
        %v3154 = vpow.pop %v3153
        %v3155 = vmul.f32 %v3150, 1.442695
        %v3156 = vpow.pop %v3155
        %v3157 = vadd.f32 %v3152, 1.0
        %v3158 = vlog2.pop %v3157
        %v3159 = vmul.f32 %v3158, 0.6931472
        %v3160 = vmul.f32 -0.5, %v3152
        %v3161 = vadd.f32 %v3160, 1.0
        %v3162 = vmul.f32 %v3161, %v3152
        %v3163 = vand.u32 2147483647, %v3152
        %vm3164 = vcmp.lt.f32.partialorder %v3163, 0.0004427343
        %v3165 = vsel %vm3164, %v3162, %v3159
        %v3166 = vadd.f32 %v3154, 1.0
        %v3167 = vlog2.pop %v3166
        %v3168 = vmul.f32 %v3167, 0.6931472
        %v3169 = vmul.f32 -0.5, %v3154
        %v3170 = vadd.f32 %v3169, 1.0
        %v3171 = vmul.f32 %v3170, %v3154
        %v3172 = vand.u32 2147483647, %v3154
        %vm3173 = vcmp.lt.f32.partialorder %v3172, 0.0004427343
        %v3174 = vsel %vm3173, %v3171, %v3168
        %v3175 = vadd.f32 %v3156, 1.0
        %v3176 = vlog2.pop %v3175
        %v3177 = vmul.f32 %v3176, 0.6931472
        %v3178 = vmul.f32 -0.5, %v3156
        %v3179 = vadd.f32 %v3178, 1.0
        %v3180 = vmul.f32 %v3179, %v3156
        %v3181 = vand.u32 2147483647, %v3156
        %vm3182 = vcmp.lt.f32.partialorder %v3181, 0.0004427343
        %v3183 = vsel %vm3182, %v3180, %v3177
        %v3184 = vmax.f32 %v3142, 0.0
        %v3185 = vmax.f32 %v3143, 0.0
        %v3186 = vmax.f32 %v3144, 0.0
        %v3187 = vadd.f32 %v3165, %v3184
        %v3188 = vadd.f32 %v3174, %v3185
        %v3189 = vadd.f32 %v3183, %v3186
        %v3190 = vtanh.pop %v3187
        %v3191 = vtanh.pop %v3188
        %v3192 = vtanh.pop %v3189
        %v3193 = vmul.f32 %v3142, %v3190
        %v3194 = vmul.f32 %v3143, %v3191
        %v3195 = vmul.f32 %v3144, %v3192
        %v3199 = vrot.slane %v3193, 7
        %v3200 = vrot.slane %v3194, 7
        %v3201 = vsel %vm1053, %v3199, %v3200
        %v3202 = vrot.slane %v3195, 7
        %v3203 = vsel %vm1053, %v3200, %v3202
        %v3207 = vsel %vm1053, 0.0, %v3199
        %v3208 = vrot.slane %v3193, 1
        %v3209 = vrot.slane %v3194, 1
        %v3210 = vsel %vm1063, %v3208, %v3209
        %v3211 = vrot.slane %v3195, 1
        %v3212 = vsel %vm1063, %v3209, %v3211
        %v3214 = vsel %vm1070, %v3211, 0.0
        %3215 = vrot.lane.b32.xlu0 %v3193, 64
        %v3216 = vpop.permute.xlu0 %3215
        %3217 = vrot.lane.b32.xlu0 %v3194, 64
        %v3218 = vpop.permute.xlu0 %3217
        %3219 = vrot.lane.b32.xlu0 %v3195, 64
        %v3220 = vpop.permute.xlu0 %3219
        %v3224 = vsel %vm908, %v3207, %v3216
        %v3225 = vsel %vm908, %v3201, %v3218
        %v3226 = vsel %vm908, %v3203, %v3220
        %v3227 = vsel %vm908, %v3210, 0
        %v3229 = vsel %vm908, %v3212, 0
        %v3232 = vsel %vm908, %v3214, 0
        %3234 = vmatprep.subr.mxu0 0.0
        %3235 = vmatpush1.msra.mxu0 %v725
        %3236 = vmatprep.subr.mxu0 0.0
        %3237 = vmatpush1.msra.mxu0 %v724
        %3238 = vmatprep.subr.mxu0 0.0
        %3239 = vmatpush1.msra.mxu0 %v723
        %3240 = vmatprep.subr.mxu0 0.0
        %3241 = vmatpush1.msra.mxu0 %v722
        %3242 = vmatprep.subr.mxu0 0.0
        %3243 = vmatpush1.msra.mxu0 %v721
        %3244 = vmatprep.subr.mxu0 0.0
        %3245 = vmatpush1.msra.mxu0 %v720
        %3246 = vmatprep.subr.mxu0 0.0
        %3247 = vmatpush1.msra.mxu0 %v719
        %3248 = vmatprep.subr.mxu0 0.0
        %3249 = vmatpush1.msra.mxu0 %v718
        %3250 = vmatprep.subr.mxu0 0.0
        %3251 = vmatpush1.msra.mxu0 %v717
        %3252 = vmatprep.subr.mxu0 0.0
        %3253 = vmatpush1.msra.mxu0 %v716
        %3254 = vmatprep.subr.mxu0 0.0
        %3255 = vmatpush1.msra.mxu0 %v715
        %3256 = vmatprep.subr.mxu0 0.0
        %3257 = vmatpush1.msra.mxu0 %v714
        %3258 = vmatprep.subr.mxu0 0.0
        %3259 = vmatpush1.msra.mxu0 %v713
        %3260 = vmatprep.subr.mxu0 0.0
        %3261 = vmatpush1.msra.mxu0 %v712
        %3262 = vmatprep.subr.mxu0 0.0
        %3263 = vmatpush1.msra.mxu0 %v711
        %3264 = vmatprep.subr.mxu0 0.0
        %3265 = vmatpush1.msra.mxu0 %v710
        %3266 = vmatprep.subr.mxu0 0.0
        %3267 = vmatpush2.msra.mxu0 0.0
        %3268 = vmatprep.subr.mxu0 0.0
        %3269 = vmatpush2.msra.mxu0 0.0
        %3270 = vmatprep.subr.mxu0 0.0
        %3271 = vmatpush2.msra.mxu0 0.0
        %3272 = vmatprep.subr.mxu0 0.0
        %3273 = vmatpush2.msra.mxu0 0.0
        %3274 = vmatprep.subr.mxu0 0.0
        %3275 = vmatpush2.msra.mxu0 0.0
        %3276 = vmatprep.subr.mxu0 0.0
        %3277 = vmatpush2.msra.mxu0 0.0
        %3278 = vmatprep.subr.mxu0 0.0
        %3279 = vmatpush2.msra.mxu0 0.0
        %3280 = vmatprep.subr.mxu0 0.0
        %3281 = vmatpush2.msra.mxu0 0.0
        %3282 = vmatprep.subr.mxu0 0.0
        %3283 = vmatpush2.msra.mxu0 %v733
        %3284 = vmatprep.subr.mxu0 0.0
        %3285 = vmatpush2.msra.mxu0 %v732
        %3286 = vmatprep.subr.mxu0 0.0
        %3287 = vmatpush2.msra.mxu0 %v731
        %3288 = vmatprep.subr.mxu0 0.0
        %3289 = vmatpush2.msra.mxu0 %v730
        %3290 = vmatprep.subr.mxu0 0.0
        %3291 = vmatpush2.msra.mxu0 %v729
        %3292 = vmatprep.subr.mxu0 0.0
        %3293 = vmatpush2.msra.mxu0 %v728
        %3294 = vmatprep.subr.mxu0 0.0
        %3295 = vmatpush2.msra.mxu0 %v727
        %3296 = vmatprep.subr.mxu0 0.0
        %3297 = vmatpush2.msra.mxu0 %v726
        %3298 = vmatprep.mubr.f32.mxu0 %v3227
        %3299 = vmatmul.mubr.f32.gmra.mxu0 %v3224
        %v3300 = vpop.f32.mrf.mxu0
        %v3301 = vadd.f32 %v1300, %v3300
        %v3302 = vpop.f32.mrf.mxu0
        %3303 = vmatprep.mubr.f32.mxu0 %v3229
        %3304 = vmatmul.mubr.f32.gmra.mxu0 %v3225
        %v3305 = vpop.f32.mrf.mxu0
        %v3306 = vadd.f32 %v1300, %v3305
        %v3307 = vpop.f32.mrf.mxu0
        %3308 = vmatprep.mubr.f32.mxu0 %v3232
        %3309 = vmatmul.mubr.f32.gmra.mxu0 %v3226
        %v3310 = vpop.f32.mrf.mxu0
        %v3311 = vadd.f32 %v1300, %v3310
        %v3312 = vpop.f32.mrf.mxu0
        %3313 = vdwg.mxu0
        %v3314 = vadd.f32 %v3301, %v2691
        %v3315 = vadd.f32 %v3306, %v2692
        %v3316 = vadd.f32 %v3311, %v2693
        %s3317 = scalar_lea.vmem %s580, 72 [#allocation2]
        %v3318 = vld [vmem:[%s3317] sm:$0xff]
        %v3319 = vld [vmem:[%s3317 + $0x8] sm:$0xff]
        %v3320 = vld [vmem:[%s3317 + $0x10] sm:$0xf]
        %v3321 = vmul.f32 %v3314, 0.07055084
        %v3322 = vmul.f32 %v3315, 0.07055084
        %v3323 = vmul.f32 %v3316, 0.07055084
        %v3324 = vsub.f32 %v2691, %v3321
        %v3325 = vsub.f32 %v2692, %v3322
        %v3326 = vsub.f32 %v2693, %v3323
        %v3327 = vmul.f32 %v3324, 1.0025471
        %v3328 = vmul.f32 %v3325, 1.0025471
        %v3329 = vmul.f32 %v3326, 1.0025471
        %v3330 = vmul.f32 %v3318, 0.07123903
        %v3331 = vmul.f32 %v3319, 0.07123903
        %v3332 = vmul.f32 %v3320, 0.07123903
        %v3333 = vadd.f32 %v3327, %v3330
        %v3334 = vadd.f32 %v3328, %v3331
        %v3335 = vadd.f32 %v3329, %v3332
        %s3336 = scalar_lea.vmem %s0, 4
        %v3337 = vld [vmem:[%s3336] sm:$0x1]
        %v3339 = vsel %vm739, %v3337, 0
        %3341 = vmatprep.subr.mxu0 0.0
        %3342 = vmatpush1.msra.mxu0 0.0
        %3343 = vmatprep.subr.mxu0 0.0
        %3344 = vmatpush1.msra.mxu0 0.0
        %3345 = vmatprep.subr.mxu0 0.0
        %3346 = vmatpush1.msra.mxu0 0.0
        %3347 = vmatprep.subr.mxu0 0.0
        %3348 = vmatpush1.msra.mxu0 0.0
        %3349 = vmatprep.subr.mxu0 0.0
        %3350 = vmatpush1.msra.mxu0 0.0
        %3351 = vmatprep.subr.mxu0 0.0
        %3352 = vmatpush1.msra.mxu0 0.0
        %3353 = vmatprep.subr.mxu0 0.0
        %3354 = vmatpush1.msra.mxu0 0.0
        %3355 = vmatprep.subr.mxu0 0.0
        %3356 = vmatpush1.msra.mxu0 0.0
        %3357 = vmatprep.subr.mxu0 0.0
        %3358 = vmatpush1.msra.mxu0 0.0
        %3359 = vmatprep.subr.mxu0 0.0
        %3360 = vmatpush1.msra.mxu0 0.0
        %3361 = vmatprep.subr.mxu0 0.0
        %3362 = vmatpush1.msra.mxu0 0.0
        %3363 = vmatprep.subr.mxu0 0.0
        %3364 = vmatpush1.msra.mxu0 0.0
        %3365 = vmatprep.subr.mxu0 0.0
        %3366 = vmatpush1.msra.mxu0 %v652
        %3367 = vmatprep.subr.mxu0 0.0
        %3368 = vmatpush1.msra.mxu0 %v651
        %3369 = vmatprep.subr.mxu0 0.0
        %3370 = vmatpush1.msra.mxu0 %v650
        %3371 = vmatprep.subr.mxu0 0.0
        %3372 = vmatpush1.msra.mxu0 %v649
        %3373 = vmatprep.subr.mxu0 0.0
        %3374 = vmatpush2.msra.mxu0 0.0
        %3375 = vmatprep.subr.mxu0 0.0
        %3376 = vmatpush2.msra.mxu0 0.0
        %3377 = vmatprep.subr.mxu0 0.0
        %3378 = vmatpush2.msra.mxu0 0.0
        %3379 = vmatprep.subr.mxu0 0.0
        %3380 = vmatpush2.msra.mxu0 0.0
        %3381 = vmatprep.subr.mxu0 0.0
        %3382 = vmatpush2.msra.mxu0 0.0
        %3383 = vmatprep.subr.mxu0 0.0
        %3384 = vmatpush2.msra.mxu0 0.0
        %3385 = vmatprep.subr.mxu0 0.0
        %3386 = vmatpush2.msra.mxu0 0.0
        %3387 = vmatprep.subr.mxu0 0.0
        %3388 = vmatpush2.msra.mxu0 0.0
        %3389 = vmatprep.subr.mxu0 0.0
        %3390 = vmatpush2.msra.mxu0 0.0
        %3391 = vmatprep.subr.mxu0 0.0
        %3392 = vmatpush2.msra.mxu0 0.0
        %3393 = vmatprep.subr.mxu0 0.0
        %3394 = vmatpush2.msra.mxu0 0.0
        %3395 = vmatprep.subr.mxu0 0.0
        %3396 = vmatpush2.msra.mxu0 0.0
        %3397 = vmatprep.subr.mxu0 0.0
        %3398 = vmatpush2.msra.mxu0 0.0
        %3399 = vmatprep.subr.mxu0 0.0
        %3400 = vmatpush2.msra.mxu0 0.0
        %3401 = vmatprep.subr.mxu0 0.0
        %3402 = vmatpush2.msra.mxu0 0.0
        %3403 = vmatprep.subr.mxu0 0.0
        %3404 = vmatpush2.msra.mxu0 0.0
        %3405 = vmatprep.mubr.f32.mxu0 0.0
        %3406 = vmatmul.mubr.f32.gmra.mxu0 %v3339
        %v3407 = vpop.f32.mrf.mxu0
        %v3408 = vadd.f32 %v653, %v3407
        %v3409 = vpop.f32.mrf.mxu0
        %3410 = vdwg.mxu0
        %v3411 = vand.u32 2147483647, %v3408
        %v3412 = vsub.f32 0.0, %v3411
        %v3413 = vmul.f32 %v3412, 1.442695
        %v3414 = vpow.pop %v3413
        %v3415 = vadd.f32 %v3414, 1.0
        %v3416 = vlog2.pop %v3415
        %v3417 = vmul.f32 %v3416, 0.6931472
        %v3418 = vmul.f32 -0.5, %v3414
        %v3419 = vadd.f32 %v3418, 1.0
        %v3420 = vmul.f32 %v3419, %v3414
        %v3421 = vand.u32 2147483647, %v3414
        %vm3422 = vcmp.lt.f32.partialorder %v3421, 0.0004427343
        %v3423 = vsel %vm3422, %v3420, %v3417
        %v3424 = vmax.f32 %v3408, 0.0
        %v3425 = vadd.f32 %v3423, %v3424
        %v3426 = vtanh.pop %v3425
        %v3427 = vmul.f32 %v3408, %v3426
        %3428 = vmatprep.subr.mxu0 0.0
        %3429 = vmatpush1.msra.mxu0 %v669
        %3430 = vmatprep.subr.mxu0 0.0
        %3431 = vmatpush1.msra.mxu0 %v668
        %3432 = vmatprep.subr.mxu0 0.0
        %3433 = vmatpush1.msra.mxu0 %v667
        %3434 = vmatprep.subr.mxu0 0.0
        %3435 = vmatpush1.msra.mxu0 %v666
        %3436 = vmatprep.subr.mxu0 0.0
        %3437 = vmatpush1.msra.mxu0 %v665
        %3438 = vmatprep.subr.mxu0 0.0
        %3439 = vmatpush1.msra.mxu0 %v664
        %3440 = vmatprep.subr.mxu0 0.0
        %3441 = vmatpush1.msra.mxu0 %v663
        %3442 = vmatprep.subr.mxu0 0.0
        %3443 = vmatpush1.msra.mxu0 %v662
        %3444 = vmatprep.subr.mxu0 0.0
        %3445 = vmatpush1.msra.mxu0 %v661
        %3446 = vmatprep.subr.mxu0 0.0
        %3447 = vmatpush1.msra.mxu0 %v660
        %3448 = vmatprep.subr.mxu0 0.0
        %3449 = vmatpush1.msra.mxu0 %v659
        %3450 = vmatprep.subr.mxu0 0.0
        %3451 = vmatpush1.msra.mxu0 %v658
        %3452 = vmatprep.subr.mxu0 0.0
        %3453 = vmatpush1.msra.mxu0 %v657
        %3454 = vmatprep.subr.mxu0 0.0
        %3455 = vmatpush1.msra.mxu0 %v656
        %3456 = vmatprep.subr.mxu0 0.0
        %3457 = vmatpush1.msra.mxu0 %v655
        %3458 = vmatprep.subr.mxu0 0.0
        %3459 = vmatpush1.msra.mxu0 %v654
        %3460 = vmatprep.subr.mxu0 0.0
        %3461 = vmatpush2.msra.mxu0 0.0
        %3462 = vmatprep.subr.mxu0 0.0
        %3463 = vmatpush2.msra.mxu0 0.0
        %3464 = vmatprep.subr.mxu0 0.0
        %3465 = vmatpush2.msra.mxu0 0.0
        %3466 = vmatprep.subr.mxu0 0.0
        %3467 = vmatpush2.msra.mxu0 0.0
        %3468 = vmatprep.subr.mxu0 0.0
        %3469 = vmatpush2.msra.mxu0 0.0
        %3470 = vmatprep.subr.mxu0 0.0
        %3471 = vmatpush2.msra.mxu0 0.0
        %3472 = vmatprep.subr.mxu0 0.0
        %3473 = vmatpush2.msra.mxu0 0.0
        %3474 = vmatprep.subr.mxu0 0.0
        %3475 = vmatpush2.msra.mxu0 0.0
        %3476 = vmatprep.subr.mxu0 0.0
        %3477 = vmatpush2.msra.mxu0 0.0
        %3478 = vmatprep.subr.mxu0 0.0
        %3479 = vmatpush2.msra.mxu0 0.0
        %3480 = vmatprep.subr.mxu0 0.0
        %3481 = vmatpush2.msra.mxu0 0.0
        %3482 = vmatprep.subr.mxu0 0.0
        %3483 = vmatpush2.msra.mxu0 0.0
        %3484 = vmatprep.subr.mxu0 0.0
        %3485 = vmatpush2.msra.mxu0 0.0
        %3486 = vmatprep.subr.mxu0 0.0
        %3487 = vmatpush2.msra.mxu0 0.0
        %3488 = vmatprep.subr.mxu0 0.0
        %3489 = vmatpush2.msra.mxu0 0.0
        %3490 = vmatprep.subr.mxu0 0.0
        %3491 = vmatpush2.msra.mxu0 0.0
        %3492 = vmatprep.mubr.f32.mxu0 0.0
        %3493 = vmatmul.mubr.f32.gmra.mxu0 %v3427
        %v3494 = vpop.f32.mrf.mxu0
        %v3495 = vadd.f32 %v670, %v3494
        %v3496 = vpop.f32.mrf.mxu0
        %3497 = vdwg.mxu0
        %v3498 = vsel %vm908, %v3495, %v906
        %3499 = vmatprep.subr.mxu0 0.0
        %3500 = vmatpush1.msra.mxu0 %v686
        %3501 = vmatprep.subr.mxu0 0.0
        %3502 = vmatpush1.msra.mxu0 %v685
        %3503 = vmatprep.subr.mxu0 0.0
        %3504 = vmatpush1.msra.mxu0 %v684
        %3505 = vmatprep.subr.mxu0 0.0
        %3506 = vmatpush1.msra.mxu0 %v683
        %3507 = vmatprep.subr.mxu0 0.0
        %3508 = vmatpush1.msra.mxu0 %v682
        %3509 = vmatprep.subr.mxu0 0.0
        %3510 = vmatpush1.msra.mxu0 %v681
        %3511 = vmatprep.subr.mxu0 0.0
        %3512 = vmatpush1.msra.mxu0 %v680
        %3513 = vmatprep.subr.mxu0 0.0
        %3514 = vmatpush1.msra.mxu0 %v679
        %3515 = vmatprep.subr.mxu0 0.0
        %3516 = vmatpush1.msra.mxu0 %v678
        %3517 = vmatprep.subr.mxu0 0.0
        %3518 = vmatpush1.msra.mxu0 %v677
        %3519 = vmatprep.subr.mxu0 0.0
        %3520 = vmatpush1.msra.mxu0 %v676
        %3521 = vmatprep.subr.mxu0 0.0
        %3522 = vmatpush1.msra.mxu0 %v675
        %3523 = vmatprep.subr.mxu0 0.0
        %3524 = vmatpush1.msra.mxu0 %v674
        %3525 = vmatprep.subr.mxu0 0.0
        %3526 = vmatpush1.msra.mxu0 %v673
        %3527 = vmatprep.subr.mxu0 0.0
        %3528 = vmatpush1.msra.mxu0 %v672
        %3529 = vmatprep.subr.mxu0 0.0
        %3530 = vmatpush1.msra.mxu0 %v671
        %3531 = vmatprep.subr.mxu0 0.0
        %3532 = vmatpush2.msra.mxu0 0.0
        %3533 = vmatprep.subr.mxu0 0.0
        %3534 = vmatpush2.msra.mxu0 0.0
        %3535 = vmatprep.subr.mxu0 0.0
        %3536 = vmatpush2.msra.mxu0 0.0
        %3537 = vmatprep.subr.mxu0 0.0
        %3538 = vmatpush2.msra.mxu0 0.0
        %3539 = vmatprep.subr.mxu0 0.0
        %3540 = vmatpush2.msra.mxu0 0.0
        %3541 = vmatprep.subr.mxu0 0.0
        %3542 = vmatpush2.msra.mxu0 0.0
        %3543 = vmatprep.subr.mxu0 0.0
        %3544 = vmatpush2.msra.mxu0 0.0
        %3545 = vmatprep.subr.mxu0 0.0
        %3546 = vmatpush2.msra.mxu0 0.0
        %3547 = vmatprep.subr.mxu0 0.0
        %3548 = vmatpush2.msra.mxu0 0.0
        %3549 = vmatprep.subr.mxu0 0.0
        %3550 = vmatpush2.msra.mxu0 0.0
        %3551 = vmatprep.subr.mxu0 0.0
        %3552 = vmatpush2.msra.mxu0 0.0
        %3553 = vmatprep.subr.mxu0 0.0
        %3554 = vmatpush2.msra.mxu0 0.0
        %3555 = vmatprep.subr.mxu0 0.0
        %3556 = vmatpush2.msra.mxu0 0.0
        %3557 = vmatprep.subr.mxu0 0.0
        %3558 = vmatpush2.msra.mxu0 0.0
        %3559 = vmatprep.subr.mxu0 0.0
        %3560 = vmatpush2.msra.mxu0 0.0
        %3561 = vmatprep.subr.mxu0 0.0
        %3562 = vmatpush2.msra.mxu0 0.0
        %3563 = vmatprep.mubr.f32.mxu0 0.0
        %3564 = vmatmul.mubr.f32.gmra.mxu0 %v3498
        %v3565 = vpop.f32.mrf.mxu0
        %v3566 = vadd.f32 %v687, %v3565
        %v3567 = vpop.f32.mrf.mxu0
        %3568 = vdwg.mxu0
        %3569 = vmatprep.subr.mxu0 0.0
        %3570 = vmatpush1.msra.mxu0 %v703
        %3571 = vmatprep.subr.mxu0 0.0
        %3572 = vmatpush1.msra.mxu0 %v702
        %3573 = vmatprep.subr.mxu0 0.0
        %3574 = vmatpush1.msra.mxu0 %v701
        %3575 = vmatprep.subr.mxu0 0.0
        %3576 = vmatpush1.msra.mxu0 %v700
        %3577 = vmatprep.subr.mxu0 0.0
        %3578 = vmatpush1.msra.mxu0 %v699
        %3579 = vmatprep.subr.mxu0 0.0
        %3580 = vmatpush1.msra.mxu0 %v698
        %3581 = vmatprep.subr.mxu0 0.0
        %3582 = vmatpush1.msra.mxu0 %v697
        %3583 = vmatprep.subr.mxu0 0.0
        %3584 = vmatpush1.msra.mxu0 %v696
        %3585 = vmatprep.subr.mxu0 0.0
        %3586 = vmatpush1.msra.mxu0 %v695
        %3587 = vmatprep.subr.mxu0 0.0
        %3588 = vmatpush1.msra.mxu0 %v694
        %3589 = vmatprep.subr.mxu0 0.0
        %3590 = vmatpush1.msra.mxu0 %v693
        %3591 = vmatprep.subr.mxu0 0.0
        %3592 = vmatpush1.msra.mxu0 %v692
        %3593 = vmatprep.subr.mxu0 0.0
        %3594 = vmatpush1.msra.mxu0 %v691
        %3595 = vmatprep.subr.mxu0 0.0
        %3596 = vmatpush1.msra.mxu0 %v690
        %3597 = vmatprep.subr.mxu0 0.0
        %3598 = vmatpush1.msra.mxu0 %v689
        %3599 = vmatprep.subr.mxu0 0.0
        %3600 = vmatpush1.msra.mxu0 %v688
        %3601 = vmatprep.subr.mxu0 0.0
        %3602 = vmatpush2.msra.mxu0 0.0
        %3603 = vmatprep.subr.mxu0 0.0
        %3604 = vmatpush2.msra.mxu0 0.0
        %3605 = vmatprep.subr.mxu0 0.0
        %3606 = vmatpush2.msra.mxu0 0.0
        %3607 = vmatprep.subr.mxu0 0.0
        %3608 = vmatpush2.msra.mxu0 0.0
        %3609 = vmatprep.subr.mxu0 0.0
        %3610 = vmatpush2.msra.mxu0 0.0
        %3611 = vmatprep.subr.mxu0 0.0
        %3612 = vmatpush2.msra.mxu0 0.0
        %3613 = vmatprep.subr.mxu0 0.0
        %3614 = vmatpush2.msra.mxu0 0.0
        %3615 = vmatprep.subr.mxu0 0.0
        %3616 = vmatpush2.msra.mxu0 0.0
        %3617 = vmatprep.subr.mxu0 0.0
        %3618 = vmatpush2.msra.mxu0 0.0
        %3619 = vmatprep.subr.mxu0 0.0
        %3620 = vmatpush2.msra.mxu0 0.0
        %3621 = vmatprep.subr.mxu0 0.0
        %3622 = vmatpush2.msra.mxu0 0.0
        %3623 = vmatprep.subr.mxu0 0.0
        %3624 = vmatpush2.msra.mxu0 0.0
        %3625 = vmatprep.subr.mxu0 0.0
        %3626 = vmatpush2.msra.mxu0 0.0
        %3627 = vmatprep.subr.mxu0 0.0
        %3628 = vmatpush2.msra.mxu0 0.0
        %3629 = vmatprep.subr.mxu0 0.0
        %3630 = vmatpush2.msra.mxu0 0.0
        %3631 = vmatprep.subr.mxu0 0.0
        %3632 = vmatpush2.msra.mxu0 0.0
        %3633 = vmatprep.mubr.f32.mxu0 0.0
        %3634 = vmatmul.mubr.f32.gmra.mxu0 %v3498
        %v3635 = vpop.f32.mrf.mxu0
        %v3636 = vadd.f32 %v704, %v3635
        %v3637 = vpop.f32.mrf.mxu0
        %3638 = vdwg.mxu0
        %v3642 = vrot.slane %v3333, 7
        %v3643 = vrot.slane %v3334, 7
        %v3644 = vsel %vm1053, %v3642, %v3643
        %v3645 = vrot.slane %v3335, 7
        %v3646 = vsel %vm1053, %v3643, %v3645
        %v3650 = vsel %vm1053, 0.0, %v3642
        %v3651 = vrot.slane %v3333, 1
        %v3652 = vrot.slane %v3334, 1
        %v3653 = vsel %vm1063, %v3651, %v3652
        %v3654 = vrot.slane %v3335, 1
        %v3655 = vsel %vm1063, %v3652, %v3654
        %v3657 = vsel %vm1070, %v3654, 0.0
        %3658 = vrot.lane.b32.xlu0 %v3333, 10
        %v3659 = vpop.permute.xlu0 %3658
        %3660 = vrot.lane.b32.xlu0 %v3334, 10
        %v3661 = vpop.permute.xlu0 %3660
        %3662 = vrot.lane.b32.xlu0 %v3335, 10
        %v3663 = vpop.permute.xlu0 %3662
        %3668 = vrot.lane.b32.xlu0 %v3653, 20
        %v3669 = vpop.permute.xlu0 %3668
        %3670 = vrot.lane.b32.xlu0 %v3655, 20
        %v3671 = vpop.permute.xlu0 %3670
        %3672 = vrot.lane.b32.xlu0 %v3657, 20
        %v3673 = vpop.permute.xlu0 %3672
        %v3677 = vsel %vm1091, %v3650, %v3659
        %v3678 = vsel %vm1091, %v3644, %v3661
        %v3679 = vsel %vm1091, %v3646, %v3663
        %v3680 = vsel %vm1095, %v3677, %v3669
        %v3681 = vsel %vm1095, %v3678, %v3671
        %v3682 = vsel %vm1095, %v3679, %v3673
        %v3684 = vsel %vm1105, %v3680, 0
        %v3687 = vsel %vm1105, %v3681, 0
        %v3690 = vsel %vm1105, %v3682, 0
        %3692 = vmatprep.subr.mxu0 0.0
        %3693 = vmatpush1.msra.mxu0 0.0
        %3694 = vmatprep.subr.mxu0 0.0
        %3695 = vmatpush1.msra.mxu0 0.0
        %3696 = vmatprep.subr.mxu0 0.0
        %3697 = vmatpush1.msra.mxu0 0.0
        %3698 = vmatprep.subr.mxu0 0.0
        %3699 = vmatpush1.msra.mxu0 0.0
        %3700 = vmatprep.subr.mxu0 0.0
        %3701 = vmatpush1.msra.mxu0 0.0
        %3702 = vmatprep.subr.mxu0 0.0
        %3703 = vmatpush1.msra.mxu0 0.0
        %3704 = vmatprep.subr.mxu0 0.0
        %3705 = vmatpush1.msra.mxu0 0.0
        %3706 = vmatprep.subr.mxu0 0.0
        %3707 = vmatpush1.msra.mxu0 0.0
        %3708 = vmatprep.subr.mxu0 0.0
        %3709 = vmatpush1.msra.mxu0 0.0
        %3710 = vmatprep.subr.mxu0 0.0
        %3711 = vmatpush1.msra.mxu0 0.0
        %3712 = vmatprep.subr.mxu0 0.0
        %3713 = vmatpush1.msra.mxu0 0.0
        %3714 = vmatprep.subr.mxu0 0.0
        %3715 = vmatpush1.msra.mxu0 0.0
        %3716 = vmatprep.subr.mxu0 0.0
        %3717 = vmatpush1.msra.mxu0 %v1117
        %3718 = vmatprep.subr.mxu0 0.0
        %3719 = vmatpush1.msra.mxu0 %v707
        %3720 = vmatprep.subr.mxu0 0.0
        %3721 = vmatpush1.msra.mxu0 %v706
        %3722 = vmatprep.subr.mxu0 0.0
        %3723 = vmatpush1.msra.mxu0 %v705
        %3724 = vmatprep.subr.mxu0 0.0
        %3725 = vmatpush2.msra.mxu0 0.0
        %3726 = vmatprep.subr.mxu0 0.0
        %3727 = vmatpush2.msra.mxu0 0.0
        %3728 = vmatprep.subr.mxu0 0.0
        %3729 = vmatpush2.msra.mxu0 0.0
        %3730 = vmatprep.subr.mxu0 0.0
        %3731 = vmatpush2.msra.mxu0 0.0
        %3732 = vmatprep.subr.mxu0 0.0
        %3733 = vmatpush2.msra.mxu0 0.0
        %3734 = vmatprep.subr.mxu0 0.0
        %3735 = vmatpush2.msra.mxu0 0.0
        %3736 = vmatprep.subr.mxu0 0.0
        %3737 = vmatpush2.msra.mxu0 0.0
        %3738 = vmatprep.subr.mxu0 0.0
        %3739 = vmatpush2.msra.mxu0 0.0
        %3740 = vmatprep.subr.mxu0 0.0
        %3741 = vmatpush2.msra.mxu0 0.0
        %3742 = vmatprep.subr.mxu0 0.0
        %3743 = vmatpush2.msra.mxu0 0.0
        %3744 = vmatprep.subr.mxu0 0.0
        %3745 = vmatpush2.msra.mxu0 0.0
        %3746 = vmatprep.subr.mxu0 0.0
        %3747 = vmatpush2.msra.mxu0 0.0
        %3748 = vmatprep.subr.mxu0 0.0
        %3749 = vmatpush2.msra.mxu0 0.0
        %3750 = vmatprep.subr.mxu0 0.0
        %3751 = vmatpush2.msra.mxu0 0.0
        %3752 = vmatprep.subr.mxu0 0.0
        %3753 = vmatpush2.msra.mxu0 0.0
        %3754 = vmatprep.subr.mxu0 0.0
        %3755 = vmatpush2.msra.mxu0 0.0
        %3756 = vmatprep.mubr.f32.mxu0 0.0
        %3757 = vmatmul.mubr.f32.gmra.mxu0 %v3684
        %v3758 = vpop.f32.mrf.mxu0
        %v3759 = vadd.f32 %v1103, %v3758
        %v3760 = vpop.f32.mrf.mxu0
        %3761 = vmatprep.mubr.f32.mxu0 0.0
        %3762 = vmatmul.mubr.f32.gmra.mxu0 %v3687
        %v3763 = vpop.f32.mrf.mxu0
        %v3764 = vadd.f32 %v1103, %v3763
        %v3765 = vpop.f32.mrf.mxu0
        %3766 = vmatprep.mubr.f32.mxu0 0.0
        %3767 = vmatmul.mubr.f32.gmra.mxu0 %v3690
        %v3768 = vpop.f32.mrf.mxu0
        %v3769 = vadd.f32 %v1103, %v3768
        %v3770 = vpop.f32.mrf.mxu0
        %3771 = vdwg.mxu0
        %v3772 = vadd.f32 %v3566, 1.0
        %v3773 = vlaneseq
        %v3774 = vshrl.u32 %v3773, 7
        %v3775 = vsub.s32 0, %v3774
        %v3776 = vrot.slane %v3772, %v3775
        %v3777 = vmul.f32 %v3759, %v3776
        %v3778 = vmul.f32 %v3764, %v3776
        %v3779 = vmul.f32 %v3769, %v3776
        %v3780 = vlaneseq
        %v3781 = vshrl.u32 %v3780, 7
        %v3782 = vsub.s32 0, %v3781
        %v3783 = vrot.slane %v3636, %v3782
        %v3784 = vadd.f32 %v3777, %v3783
        %v3785 = vadd.f32 %v3778, %v3783
        %v3786 = vadd.f32 %v3779, %v3783
        %v3787 = vand.u32 2147483647, %v3784
        %v3788 = vand.u32 2147483647, %v3785
        %v3789 = vand.u32 2147483647, %v3786
        %v3790 = vsub.f32 0.0, %v3787
        %v3791 = vsub.f32 0.0, %v3788
        %v3792 = vsub.f32 0.0, %v3789
        %v3793 = vmul.f32 %v3790, 1.442695
        %v3794 = vpow.pop %v3793
        %v3795 = vmul.f32 %v3791, 1.442695
        %v3796 = vpow.pop %v3795
        %v3797 = vmul.f32 %v3792, 1.442695
        %v3798 = vpow.pop %v3797
        %v3799 = vadd.f32 %v3794, 1.0
        %v3800 = vlog2.pop %v3799
        %v3801 = vmul.f32 %v3800, 0.6931472
        %v3802 = vmul.f32 -0.5, %v3794
        %v3803 = vadd.f32 %v3802, 1.0
        %v3804 = vmul.f32 %v3803, %v3794
        %v3805 = vand.u32 2147483647, %v3794
        %vm3806 = vcmp.lt.f32.partialorder %v3805, 0.0004427343
        %v3807 = vsel %vm3806, %v3804, %v3801
        %v3808 = vadd.f32 %v3796, 1.0
        %v3809 = vlog2.pop %v3808
        %v3810 = vmul.f32 %v3809, 0.6931472
        %v3811 = vmul.f32 -0.5, %v3796
        %v3812 = vadd.f32 %v3811, 1.0
        %v3813 = vmul.f32 %v3812, %v3796
        %v3814 = vand.u32 2147483647, %v3796
        %vm3815 = vcmp.lt.f32.partialorder %v3814, 0.0004427343
        %v3816 = vsel %vm3815, %v3813, %v3810
        %v3817 = vadd.f32 %v3798, 1.0
        %v3818 = vlog2.pop %v3817
        %v3819 = vmul.f32 %v3818, 0.6931472
        %v3820 = vmul.f32 -0.5, %v3798
        %v3821 = vadd.f32 %v3820, 1.0
        %v3822 = vmul.f32 %v3821, %v3798
        %v3823 = vand.u32 2147483647, %v3798
        %vm3824 = vcmp.lt.f32.partialorder %v3823, 0.0004427343
        %v3825 = vsel %vm3824, %v3822, %v3819
        %v3826 = vmax.f32 %v3784, 0.0
        %v3827 = vmax.f32 %v3785, 0.0
        %v3828 = vmax.f32 %v3786, 0.0
        %v3829 = vadd.f32 %v3807, %v3826
        %v3830 = vadd.f32 %v3816, %v3827
        %v3831 = vadd.f32 %v3825, %v3828
        %v3832 = vtanh.pop %v3829
        %v3833 = vtanh.pop %v3830
        %v3834 = vtanh.pop %v3831
        %v3835 = vmul.f32 %v3784, %v3832
        %v3836 = vmul.f32 %v3785, %v3833
        %v3837 = vmul.f32 %v3786, %v3834
        %v3841 = vrot.slane %v3835, 7
        %v3842 = vrot.slane %v3836, 7
        %v3843 = vsel %vm1053, %v3841, %v3842
        %v3844 = vrot.slane %v3837, 7
        %v3845 = vsel %vm1053, %v3842, %v3844
        %v3849 = vsel %vm1053, 0.0, %v3841
        %v3850 = vrot.slane %v3835, 1
        %v3851 = vrot.slane %v3836, 1
        %v3852 = vsel %vm1063, %v3850, %v3851
        %v3853 = vrot.slane %v3837, 1
        %v3854 = vsel %vm1063, %v3851, %v3853
        %v3856 = vsel %vm1070, %v3853, 0.0
        %3857 = vrot.lane.b32.xlu0 %v3835, 64
        %v3858 = vpop.permute.xlu0 %3857
        %3859 = vrot.lane.b32.xlu0 %v3836, 64
        %v3860 = vpop.permute.xlu0 %3859
        %3861 = vrot.lane.b32.xlu0 %v3837, 64
        %v3862 = vpop.permute.xlu0 %3861
        %v3866 = vsel %vm908, %v3849, %v3858
        %v3867 = vsel %vm908, %v3843, %v3860
        %v3868 = vsel %vm908, %v3845, %v3862
        %v3869 = vsel %vm908, %v3852, 0
        %v3871 = vsel %vm908, %v3854, 0
        %v3874 = vsel %vm908, %v3856, 0
        %3876 = vmatprep.subr.mxu0 0.0
        %3877 = vmatpush1.msra.mxu0 %v725
        %3878 = vmatprep.subr.mxu0 0.0
        %3879 = vmatpush1.msra.mxu0 %v724
        %3880 = vmatprep.subr.mxu0 0.0
        %3881 = vmatpush1.msra.mxu0 %v723
        %3882 = vmatprep.subr.mxu0 0.0
        %3883 = vmatpush1.msra.mxu0 %v722
        %3884 = vmatprep.subr.mxu0 0.0
        %3885 = vmatpush1.msra.mxu0 %v721
        %3886 = vmatprep.subr.mxu0 0.0
        %3887 = vmatpush1.msra.mxu0 %v720
        %3888 = vmatprep.subr.mxu0 0.0
        %3889 = vmatpush1.msra.mxu0 %v719
        %3890 = vmatprep.subr.mxu0 0.0
        %3891 = vmatpush1.msra.mxu0 %v718
        %3892 = vmatprep.subr.mxu0 0.0
        %3893 = vmatpush1.msra.mxu0 %v717
        %3894 = vmatprep.subr.mxu0 0.0
        %3895 = vmatpush1.msra.mxu0 %v716
        %3896 = vmatprep.subr.mxu0 0.0
        %3897 = vmatpush1.msra.mxu0 %v715
        %3898 = vmatprep.subr.mxu0 0.0
        %3899 = vmatpush1.msra.mxu0 %v714
        %3900 = vmatprep.subr.mxu0 0.0
        %3901 = vmatpush1.msra.mxu0 %v713
        %3902 = vmatprep.subr.mxu0 0.0
        %3903 = vmatpush1.msra.mxu0 %v712
        %3904 = vmatprep.subr.mxu0 0.0
        %3905 = vmatpush1.msra.mxu0 %v711
        %3906 = vmatprep.subr.mxu0 0.0
        %3907 = vmatpush1.msra.mxu0 %v710
        %3908 = vmatprep.subr.mxu0 0.0
        %3909 = vmatpush2.msra.mxu0 0.0
        %3910 = vmatprep.subr.mxu0 0.0
        %3911 = vmatpush2.msra.mxu0 0.0
        %3912 = vmatprep.subr.mxu0 0.0
        %3913 = vmatpush2.msra.mxu0 0.0
        %3914 = vmatprep.subr.mxu0 0.0
        %3915 = vmatpush2.msra.mxu0 0.0
        %3916 = vmatprep.subr.mxu0 0.0
        %3917 = vmatpush2.msra.mxu0 0.0
        %3918 = vmatprep.subr.mxu0 0.0
        %3919 = vmatpush2.msra.mxu0 0.0
        %3920 = vmatprep.subr.mxu0 0.0
        %3921 = vmatpush2.msra.mxu0 0.0
        %3922 = vmatprep.subr.mxu0 0.0
        %3923 = vmatpush2.msra.mxu0 0.0
        %3924 = vmatprep.subr.mxu0 0.0
        %3925 = vmatpush2.msra.mxu0 %v733
        %3926 = vmatprep.subr.mxu0 0.0
        %3927 = vmatpush2.msra.mxu0 %v732
        %3928 = vmatprep.subr.mxu0 0.0
        %3929 = vmatpush2.msra.mxu0 %v731
        %3930 = vmatprep.subr.mxu0 0.0
        %3931 = vmatpush2.msra.mxu0 %v730
        %3932 = vmatprep.subr.mxu0 0.0
        %3933 = vmatpush2.msra.mxu0 %v729
        %3934 = vmatprep.subr.mxu0 0.0
        %3935 = vmatpush2.msra.mxu0 %v728
        %3936 = vmatprep.subr.mxu0 0.0
        %3937 = vmatpush2.msra.mxu0 %v727
        %3938 = vmatprep.subr.mxu0 0.0
        %3939 = vmatpush2.msra.mxu0 %v726
        %3940 = vmatprep.mubr.f32.mxu0 %v3869
        %3941 = vmatmul.mubr.f32.gmra.mxu0 %v3866
        %v3942 = vpop.f32.mrf.mxu0
        %v3943 = vadd.f32 %v1300, %v3942
        %v3944 = vpop.f32.mrf.mxu0
        %3945 = vmatprep.mubr.f32.mxu0 %v3871
        %3946 = vmatmul.mubr.f32.gmra.mxu0 %v3867
        %v3947 = vpop.f32.mrf.mxu0
        %v3948 = vadd.f32 %v1300, %v3947
        %v3949 = vpop.f32.mrf.mxu0
        %3950 = vmatprep.mubr.f32.mxu0 %v3874
        %3951 = vmatmul.mubr.f32.gmra.mxu0 %v3868
        %v3952 = vpop.f32.mrf.mxu0
        %v3953 = vadd.f32 %v1300, %v3952
        %v3954 = vpop.f32.mrf.mxu0
        %3955 = vdwg.mxu0
        %v3956 = vadd.f32 %v3943, %v3333
        %v3957 = vadd.f32 %v3948, %v3334
        %v3958 = vadd.f32 %v3953, %v3335
        %s3959 = scalar_lea.vmem %s580, 96 [#allocation2]
        %v3960 = vld [vmem:[%s3959] sm:$0xff]
        %v3961 = vld [vmem:[%s3959 + $0x8] sm:$0xff]
        %v3962 = vld [vmem:[%s3959 + $0x10] sm:$0xf]
        %v3963 = vmul.f32 %v3956, 0.01
        %v3964 = vmul.f32 %v3957, 0.01
        %v3965 = vmul.f32 %v3958, 0.01
        %v3966 = vsub.f32 %v3333, %v3963
        %v3967 = vsub.f32 %v3334, %v3964
        %v3968 = vsub.f32 %v3335, %v3965
        %v3969 = vmul.f32 %v3966, 1.00005
        %v3970 = vmul.f32 %v3967, 1.00005
        %v3971 = vmul.f32 %v3968, 1.00005
        %v3972 = vmul.f32 %v3960, 0.0
        %v3973 = vmul.f32 %v3961, 0.0
        %v3974 = vmul.f32 %v3962, 0.0
        %v3975 = vadd.f32 %v3969, %v3972
        %v3976 = vadd.f32 %v3970, %v3973
        %v3977 = vadd.f32 %v3971, %v3974
        %3978 = vst.msk [vmem:[%s647] sm:$0xff] %vm1091, %v3975
        %3979 = vst.msk [vmem:[%s647 + $0x8] sm:$0xff] %vm1091, %v3976
        %vm3980 = vcmask 76800
        %3981 = vst.msk [vmem:[%s647 + $0x10] sm:$0xf] %vm3980, %v3977
        %p3982 = scmp.lt.s32.totalorder %s27, 1
        %s3983 = scalar_select %p3982, %s27, 1
        %s3984 = smul.addr %s3983, 3
        %s3985 = smul.addr %s3984, 8
        %s3986 = scalar_lea.vmem %s16, %s3985
        // Predicated region
        $region123: #{dp_forward.5} parent=117 // pred_check
          %p3987 = pneg %p396
        $region124: #{dp_forward.5} parent=117 // pred_check_branch
          %3989 = sbr.rel (%p3987) target = $region126
        $region125: #{dp_forward.5} parent=117 // pred_region
          _
        $region126: #{dp_forward.5} parent=117 // pred_fallthru
          _
      $region118: #{dp_forward.5} parent=5 // pred_fallthru
        _
      %p3990 = scmp.le.s32.totalorder 2, %s22
      // Predicated region
      $region127: #{dp_forward.5} parent=5 // pred_check
        %p3991 = pneg %p3990
      $region128: #{dp_forward.5} parent=5 // pred_check_branch
        %3993 = sbr.rel (%p3991) target = $region130
      $region129: #{dp_forward.5} parent=5 // pred_region
        %s3994 = ssub.s32 %s22, 2
        // Predicated region
        $region131: #{dp_forward.5} parent=129 // pred_check
          %p3995 = pneg %p402
        $region132: #{dp_forward.5} parent=129 // pred_check_branch
          %3997 = sbr.rel (%p3995) target = $region134
        $region133: #{dp_forward.5} parent=129 // pred_region
          %p3998 = scmp.lt.s32.totalorder %s28, 1
          %s3999 = scalar_select %p3998, %s28, 1
          %s4000 = smul.addr %s3999, 3
          %s4001 = smul.addr %s4000, 8
          %s4002 = scalar_lea.vmem %s16, %s4001
        $region134: #{dp_forward.5} parent=129 // pred_fallthru
          _
      $region130: #{dp_forward.5} parent=5 // pred_fallthru
        _
    $region6: #{dp_forward.5} parent=1 // loop_footer
      %s26 = sadd.s32 1, %s22
    $region7: #{dp_forward.5} parent=1 // loop_footer_branch
      %21 = sbr.rel target = $region3
    $region8: #{dp_forward.5} parent=1 // loop_exit
      _

</llo_original>
